<compile_context>
chip_gen: v6e
topology: v6e:2x2x1
jax: 0.10.0
libtpu: 0.0.40
codegen_flags: <defaults>
</compile_context>

<pallas_src>
import functools

import numpy as np
import jax
import jax.numpy as jnp
from jax import lax
from jax.experimental import pallas as pl
from jax.experimental.pallas import tpu as pltpu


# ----------------------------- Pallas kernel --------------------------------
def _window_attn_v2_kernel(x_ref, wq_ref, wk_ref, wv_ref, bq_ref, bk_ref, bv_ref,
                           wp_ref, bp_ref, mask_ref, mh_ref, seg_ref, bias_ref,
                           itau_ref, o_ref, *, num_heads):
    # x_ref   : (Bblk, N, C)
    # wq/wk/wv: (C, C)     torch qkv weight^T split into q/k/v columns
    # bq/bk/bv: (1, C)
    # wp_ref  : (C, C)     torch proj weight^T;  bp_ref: (1, C)
    # mask_ref: (H*N, C)   0/1, 1 where channel c belongs to key-column j's head
    # mh_ref  : (C, H*N)   mask^T (per-head squared q-norms via one matmul)
    # seg_ref : (H*N, H*N) block-diagonal ones (segmented softmax sums via one matmul)
    # bias_ref: (N, H*N)   meta-network relative-position bias, head-folded
    # itau_ref: (1, H*N)   1 / clamp(tau_h, 0.01), repeated N times per head
    # o_ref   : (Bblk, N, C)
    Bblk, N, C = x_ref.shape
    HN = num_heads * N
    R = Bblk * N
    mm_dtype = wq_ref.dtype            # bf16 on the v6e/v7x path, f32 otherwise

    x2 = x_ref[...].reshape(R, C)      # leading-dim merge only (layout preserving)

    # Batched qkv projections over every window in the block (f32 accumulation).
    q2 = jnp.dot(x2, wq_ref[...], preferred_element_type=jnp.float32) + bq_ref[...]
    k2 = jnp.dot(x2, wk_ref[...], preferred_element_type=jnp.float32) + bk_ref[...]
    v2 = jnp.dot(x2, wv_ref[...], preferred_element_type=jnp.float32) + bv_ref[...]

    # Per-head squared q-norms, already broadcast to every key column of that head.
    qn2 = jnp.dot(q2 * q2, mh_ref[...],
                  preferred_element_type=jnp.float32).reshape(Bblk, N, HN)

    q3 = q2.reshape(Bblk, N, C)
    k3 = k2.reshape(Bblk, N, C)
    v3 = v2.reshape(Bblk, N, C)

    # Fold the head axis onto the key axis: block-diagonal K / V of shape
    # (Bblk, H*N, C); channels outside column j's head are zeroed by the mask.
    mask = mask_ref[...]
    k_bd = jnp.concatenate([k3] * num_heads, axis=1) * mask
    v_bd = jnp.concatenate([v3] * num_heads, axis=1) * mask

    kn2 = jnp.sum(k_bd * k_bd, axis=-1)                          # (Bblk, H*N)

    # All heads' raw scores in one einsum: (Bblk, N, H*N).
    s = jnp.einsum('bnc,bkc->bnk', q3.astype(mm_dtype), k_bd.astype(mm_dtype),
                   preferred_element_type=jnp.float32)

    # Cosine attention: / max(|q||k|, 1e-6), / clamp(tau, 0.01), + relative bias.
    inv_den = lax.rsqrt(jnp.maximum(qn2 * kn2[:, None, :], 1e-12))
    s = s * inv_den * itau_ref[...] + bias_ref[...]

    # Per-head softmax over the key axis.  Row max is taken over all H*N columns
    # (a per-row constant cancels inside every head's segment so the per-head softmax
    # stays exact); segment sums come from one block-diagonal-ones matmul.
    s = s - jnp.max(s, axis=-1, keepdims=True)
    p = jnp.exp(s)
    seg_sum = jnp.dot(p.reshape(R, HN), seg_ref[...],
                      preferred_element_type=jnp.float32).reshape(Bblk, N, HN)
    p = p * pl.reciprocal(seg_sum, approx=True)

    # attn @ V: block-diagonal V re-scatters each head's output into its own
    # channels, so this single einsum already yields the head-concatenated layout.
    attn_out = jnp.einsum('bnk,bkc->bnc', p.astype(mm_dtype), v_bd.astype(mm_dtype),
                          preferred_element_type=jnp.float32)

    out2 = jnp.dot(attn_out.reshape(R, C).astype(mm_dtype), wp_ref[...],
                   preferred_element_type=jnp.float32) + bp_ref[...]
    o_ref[...] = out2.reshape(Bblk, N, C).astype(o_ref.dtype)


# ------------------------------- wrapper -------------------------------------
def _auto_compute_dtype():
    # bf16 MXU-operand path by default on v6e/v7x (review item); keep f32 on v5e
    # (no bf16 VPU/EUP).  Softmax / norm arithmetic is f32 on every path.
    try:
        kind = jax.devices()[0].device_kind.lower()
    except Exception:
        return jnp.float32
    if ("v5 lite" in kind) or ("v5e" in kind) or ("v5lite" in kind):
        return jnp.float32
    return jnp.bfloat16


def window_attention_v2_pallas(x, w_qkv, b_qkv, w_proj, b_proj, rel_bias, tau,
                               num_heads, *, block_windows=None, compute_dtype="auto",
                               target_block_bytes=1 << 20):
    """Fused WindowAttentionV2 forward (mask=None, dropout=0).

    x        : (B_, N, C) = (num_windows*batch, Wh*Ww, dim)
    w_qkv    : (3C, C) torch Linear weight;  b_qkv: (3C,)
    w_proj   : (C, C)  torch Linear weight;  b_proj: (C,)
    rel_bias : (H, N, N) meta-network relative-position bias (input independent,
               computed once outside the kernel)
    tau      : (1, H, 1, 1) (anything reshapeable to (H,)) per-head temperature
    """
    B_, N, C = x.shape
    H = num_heads
    HN = H * N
    out_dtype = x.dtype

    if compute_dtype == "auto":
        compute_dtype = _auto_compute_dtype()
    if compute_dtype is None:
        compute_dtype = jnp.float32

    # block_windows from a byte budget: collapses to grid=(1,) at demo size (no extra
    # per-step pipeline overhead on single-TC v5e/v6e, Bblk*N=256 rows per MXU tile);
    # large B_ keeps several steps so DMAs overlap compute and blocks fit v7x VMEM.
    itemsize = jnp.dtype(compute_dtype).itemsize
    if block_windows is None:
        per_window = N * C * itemsize
        block_windows = int(max(1, min(B_, target_block_bytes // per_window)))
        while B_ % block_windows:
            block_windows -= 1
    assert B_ % block_windows == 0, "B_ must be divisible by block_windows"
    grid = (B_ // block_windows,)

    # Explicit VMEM budget (x/out blocks double-buffered + f32 intermediates),
    # capped well below v7x's 64 MiB physical VMEM.
    block_bytes_f32 = block_windows * N * C * 4
    vmem_limit = int(min(48 * 1024 * 1024,
                         max(16 * 1024 * 1024, 24 * block_bytes_f32)))

    # ---- parameter prep (torch Linear computes x @ W^T + b) ----
    wqkv_t = jnp.asarray(w_qkv, jnp.float32).T                  # (C, 3C)
    wq, wk, wv = wqkv_t[:, :C], wqkv_t[:, C:2 * C], wqkv_t[:, 2 * C:]
    b_qkv = jnp.asarray(b_qkv, jnp.float32)
    bq = b_qkv[:C][None, :]
    bk = b_qkv[C:2 * C][None, :]
    bv = b_qkv[2 * C:][None, :]
    wp = jnp.asarray(w_proj, jnp.float32).T
    bp = jnp.asarray(b_proj, jnp.float32)[None, :]

    # ---- head-folding constants ----
    head_of_col = np.repeat(np.arange(H), N)                    # key column j -> head
    head_of_chan = np.repeat(np.arange(H), C // H)              # channel c -> head
    head_mask = jnp.asarray(head_of_col[:, None] == head_of_chan[None, :],
                            jnp.float32)                        # (HN, C)
    mh = jnp.asarray(head_of_chan[:, None] == head_of_col[None, :],
                     jnp.float32)                               # (C, HN)
    seg_ones = jnp.asarray(head_of_col[:, None] == head_of_col[None, :],
                           jnp.float32)                         # (HN, HN)
    bias_col = jnp.transpose(jnp.asarray(rel_bias, jnp.float32),
                             (1, 0, 2)).reshape(N, HN)          # (N, HN)
    inv_tau = 1.0 / jnp.maximum(jnp.asarray(tau, jnp.float32).reshape(H), 0.01)
    inv_tau = jnp.repeat(inv_tau, N)[None, :]                   # (1, HN)

    x_in = x.astype(compute_dtype)
    wq, wk, wv, wp = (a.astype(compute_dtype) for a in (wq, wk, wv, wp))

    kernel = functools.partial(_window_attn_v2_kernel, num_heads=H)

    def rep2(b):
        return (0, 0)

    return pl.pallas_call(
        kernel,
        out_shape=jax.ShapeDtypeStruct((B_, N, C), out_dtype),
        grid_spec=pltpu.PrefetchScalarGridSpec(
            num_scalar_prefetch=0,
            grid=grid,
            in_specs=[
                pl.BlockSpec((block_windows, N, C), lambda b: (b, 0, 0)),  # x
                pl.BlockSpec((C, C), rep2),     # wq^T
                pl.BlockSpec((C, C), rep2),     # wk^T
                pl.BlockSpec((C, C), rep2),     # wv^T
                pl.BlockSpec((1, C), rep2),     # bq
                pl.BlockSpec((1, C), rep2),     # bk
                pl.BlockSpec((1, C), rep2),     # bv
                pl.BlockSpec((C, C), rep2),     # wproj^T
                pl.BlockSpec((1, C), rep2),     # bproj
                pl.BlockSpec((HN, C), rep2),    # head mask
                pl.BlockSpec((C, HN), rep2),    # mask^T
                pl.BlockSpec((HN, HN), rep2),   # segment ones
                pl.BlockSpec((N, HN), rep2),    # folded relative-position bias
                pl.BlockSpec((1, HN), rep2),    # 1/tau per key column
            ],
            out_specs=pl.BlockSpec((block_windows, N, C), lambda b: (b, 0, 0)),
        ),
        compiler_params=pltpu.CompilerParams(
            dimension_semantics=("parallel",),
            vmem_limit_bytes=vmem_limit),
    )(x_in, wq, wk, wv, bq, bk, bv, wp, bp, head_mask, mh, seg_ones, bias_col, inv_tau)


# ----------------------------- glue / reference ------------------------------
def make_meta_relative_bias(window_size, num_heads, w1, b1, w2, b2):
    """Input-independent relative-position bias from the module's meta_network.
    Mirrors WindowAttentionV2.__make_pair_wise_relative_positions and
    __get_relative_positional_encodings (whose reshape requires Wh*Ww == num_heads**2,
    exactly as in the original code)."""
    Wh, Ww = window_size
    N = Wh * Ww
    assert N == num_heads ** 2, "module's bias reshape assumes Wh*Ww == num_heads**2"
    coords = np.stack(np.meshgrid(np.arange(Wh), np.arange(Ww), indexing="ij"))
    coords_flat = coords.reshape(2, -1)
    rel = coords_flat[:, :, None] - coords_flat[:, None, :]       # (2, N, N)
    rel = rel.transpose(1, 2, 0).reshape(-1, 2).astype(np.float32)
    rel_log = np.sign(rel) * np.log1p(np.abs(rel))                # (N*N, 2)
    h = jnp.maximum(jnp.asarray(rel_log) @ w1.T + b1, 0.0)        # ReLU
    bias = h @ w2.T + b2                                          # (N*N, H)
    return bias.T.reshape(num_heads, N, N)


def reference_window_attention_v2(x, w_qkv, b_qkv, w_proj, b_proj, rel_bias, tau,
                                  num_heads):
    B_, N, C = x.shape
    hd = C // num_heads
    qkv = x @ w_qkv.T + b_qkv
    qkv = qkv.reshape(B_, N, 3, num_heads, hd).transpose(2, 0, 3, 1, 4)
    q, k, v = qkv[0], qkv[1], qkv[2]
    qn = jnp.linalg.norm(q, axis=-1, keepdims=True)
    kn = jnp.linalg.norm(k, axis=-1, keepdims=True)
    attn = jnp.einsum('bhnd,bhmd->bhnm', q, k)
    attn = attn / jnp.maximum(qn * jnp.swapaxes(kn, -2, -1), 1e-6)
    attn = attn / jnp.maximum(jnp.asarray(tau, jnp.float32).reshape(1, num_heads, 1, 1),
                              0.01)
    attn = attn + rel_bias[None]
    attn = jax.nn.softmax(attn, axis=-1)
    out = jnp.einsum('bhnm,bhmd->bhnd', attn, v)
    out = out.transpose(0, 2, 1, 3).reshape(B_, N, C)
    return out @ w_proj.T + b_proj


# ----------------------------------- main ------------------------------------
if __name__ == "__main__":
    # Small shapes consistent with the module's attention core: dim=32, window 4x4 ->
    # N=16, 4 heads (N == num_heads**2 as the module's bias reshape requires),
    # B_ = num_windows*batch = 16.
    dim = 32
    window_size = (4, 4)
    num_heads = 4
    N = window_size[0] * window_size[1]
    B_ = 16
    meta_hidden = 256

    key = jax.random.PRNGKey(0)
    (k_x, k_wqkv, k_bqkv, k_wproj, k_bproj,
     k_m1w, k_m1b, k_m2w, k_tau) = jax.random.split(key, 9)

    x = jax.random.normal(k_x, (B_, N, dim), dtype=jnp.float32)
    w_qkv = 0.02 * jax.random.normal(k_wqkv, (3 * dim, dim), dtype=jnp.float32)
    b_qkv = 0.02 * jax.random.normal(k_bqkv, (3 * dim,), dtype=jnp.float32)
    w_proj = 0.02 * jax.random.normal(k_wproj, (dim, dim), dtype=jnp.float32)
    b_proj = 0.02 * jax.random.normal(k_bproj, (dim,), dtype=jnp.float32)
    # meta-network (2 -> 256 -> num_heads) weights and per-head temperature tau.
    m1_w = 0.1 * jax.random.normal(k_m1w, (meta_hidden, 2), dtype=jnp.float32)
    m1_b = 0.1 * jax.random.normal(k_m1b, (meta_hidden,), dtype=jnp.float32)
    m2_w = 0.1 * jax.random.normal(k_m2w, (num_heads, meta_hidden), dtype=jnp.float32)
    m2_b = jnp.zeros((num_heads,), dtype=jnp.float32)
    tau = 0.5 + jax.random.uniform(k_tau, (1, num_heads, 1, 1), dtype=jnp.float32)

    # Input-independent relative-position bias from the meta network (plain-JAX glue).
    rel_bias = make_meta_relative_bias(window_size, num_heads, m1_w, m1_b, m2_w, m2_b)

    # TODO(synk): shifted-window `mask` path and attn/proj dropout are not implemented
    # (Res2SA builds its Swin block with shift_size=0 and drop/attn_drop=0.0), and the
    # surrounding Res2SA conv/BatchNorm/LayerNorm/MLP stages are outside this kernel.

    # f32 path (tight check) and bf16 operand path (loose check, per review).
    out_f32 = jax.block_until_ready(window_attention_v2_pallas(
        x, w_qkv, b_qkv, w_proj, b_proj, rel_bias, tau, num_heads,
        compute_dtype=jnp.float32))
    out_bf16 = jax.block_until_ready(window_attention_v2_pallas(
        x, w_qkv, b_qkv, w_proj, b_proj, rel_bias, tau, num_heads,
        compute_dtype=jnp.bfloat16))

    ref = reference_window_attention_v2(x, w_qkv, b_qkv, w_proj, b_proj,
                                        rel_bias, tau, num_heads)

    # f32 tolerance loosened slightly vs exact because the softmax denominator uses
    # the hardware approximate reciprocal; bf16 path checked at bf16-level tolerance.
    np.testing.assert_allclose(np.asarray(out_f32), np.asarray(ref),
                               rtol=2e-3, atol=2e-3)
    np.testing.assert_allclose(np.asarray(out_bf16), np.asarray(ref),
                               rtol=5e-2, atol=1e-2)
    print("KERNEL_OK")
</pallas_src>

<mosaic_0001>
module attributes {stable_mosaic.version = 11 : i64} {
  func.func @_window_attn_v2_kernel(%arg0: i32, %arg1: memref<16x16x32xf32, #tpu.memory_space<vmem>>, %arg2: memref<32x32xf32, #tpu.memory_space<vmem>>, %arg3: memref<32x32xf32, #tpu.memory_space<vmem>>, %arg4: memref<32x32xf32, #tpu.memory_space<vmem>>, %arg5: memref<1x32xf32, #tpu.memory_space<vmem>>, %arg6: memref<1x32xf32, #tpu.memory_space<vmem>>, %arg7: memref<1x32xf32, #tpu.memory_space<vmem>>, %arg8: memref<32x32xf32, #tpu.memory_space<vmem>>, %arg9: memref<1x32xf32, #tpu.memory_space<vmem>>, %arg10: memref<64x32xf32, #tpu.memory_space<vmem>>, %arg11: memref<32x64xf32, #tpu.memory_space<vmem>>, %arg12: memref<64x64xf32, #tpu.memory_space<vmem>>, %arg13: memref<16x64xf32, #tpu.memory_space<vmem>>, %arg14: memref<1x64xf32, #tpu.memory_space<vmem>>, %arg15: memref<16x16x32xf32, #tpu.memory_space<vmem>>) attributes {dimension_semantics = [#tpu.dimension_semantics<parallel>], iteration_bounds = array<i64: 1>, scalar_prefetch = 0 : i64, scratch_operands = 0 : i64, tpu.core_type = #tpu.core_type<tc>, window_params = [{transform_indices = @transform_0, window_bounds = array<i64: 16, 16, 32>}, {pipeline_mode = #tpu.pipeline_mode<synchronous>, transform_indices = @transform_1, window_bounds = array<i64: 32, 32>}, {pipeline_mode = #tpu.pipeline_mode<synchronous>, transform_indices = @transform_2, window_bounds = array<i64: 32, 32>}, {pipeline_mode = #tpu.pipeline_mode<synchronous>, transform_indices = @transform_3, window_bounds = array<i64: 32, 32>}, {pipeline_mode = #tpu.pipeline_mode<synchronous>, transform_indices = @transform_4, window_bounds = array<i64: 1, 32>}, {pipeline_mode = #tpu.pipeline_mode<synchronous>, transform_indices = @transform_5, window_bounds = array<i64: 1, 32>}, {pipeline_mode = #tpu.pipeline_mode<synchronous>, transform_indices = @transform_6, window_bounds = array<i64: 1, 32>}, {pipeline_mode = #tpu.pipeline_mode<synchronous>, transform_indices = @transform_7, window_bounds = array<i64: 32, 32>}, {pipeline_mode = #tpu.pipeline_mode<synchronous>, transform_indices = @transform_8, window_bounds = array<i64: 1, 32>}, {pipeline_mode = #tpu.pipeline_mode<synchronous>, transform_indices = @transform_9, window_bounds = array<i64: 64, 32>}, {pipeline_mode = #tpu.pipeline_mode<synchronous>, transform_indices = @transform_10, window_bounds = array<i64: 32, 64>}, {pipeline_mode = #tpu.pipeline_mode<synchronous>, transform_indices = @transform_11, window_bounds = array<i64: 64, 64>}, {pipeline_mode = #tpu.pipeline_mode<synchronous>, transform_indices = @transform_12, window_bounds = array<i64: 16, 64>}, {pipeline_mode = #tpu.pipeline_mode<synchronous>, transform_indices = @transform_13, window_bounds = array<i64: 1, 64>}, {transform_indices = @transform_14, window_bounds = array<i64: 16, 16, 32>}]} {
    %c0 = arith.constant 0 : index
    %c0_0 = arith.constant 0 : index
    %c0_1 = arith.constant 0 : index
    %0 = vector.load %arg1[%c0, %c0_0, %c0_1] : memref<16x16x32xf32, #tpu.memory_space<vmem>>, vector<16x16x32xf32>
    %1 = vector.shape_cast %0 : vector<16x16x32xf32> to vector<256x32xf32>
    %c0_2 = arith.constant 0 : index
    %c0_3 = arith.constant 0 : index
    %2 = vector.load %arg2[%c0_2, %c0_3] : memref<32x32xf32, #tpu.memory_space<vmem>>, vector<32x32xf32>
    %cst = arith.constant dense<0.000000e+00> : vector<256x32xf32>
    %3 = tpu.matmul %1, %2, %cst {dimension_numbers = #tpu.dot_dimension_numbers<[1], [0], [0], [1], [0, 0, 1, 1], [], []>} : vector<256x32xf32>, vector<32x32xf32>, vector<256x32xf32> -> vector<256x32xf32>
    %c0_4 = arith.constant 0 : index
    %c0_5 = arith.constant 0 : index
    %4 = vector.load %arg5[%c0_4, %c0_5] : memref<1x32xf32, #tpu.memory_space<vmem>>, vector<1x32xf32>
    %5 = vector.broadcast %4 : vector<1x32xf32> to vector<256x32xf32>
    %6 = arith.addf %3, %5 : vector<256x32xf32>
    %c0_6 = arith.constant 0 : index
    %c0_7 = arith.constant 0 : index
    %7 = vector.load %arg3[%c0_6, %c0_7] : memref<32x32xf32, #tpu.memory_space<vmem>>, vector<32x32xf32>
    %cst_8 = arith.constant dense<0.000000e+00> : vector<256x32xf32>
    %8 = tpu.matmul %1, %7, %cst_8 {dimension_numbers = #tpu.dot_dimension_numbers<[1], [0], [0], [1], [0, 0, 1, 1], [], []>} : vector<256x32xf32>, vector<32x32xf32>, vector<256x32xf32> -> vector<256x32xf32>
    %c0_9 = arith.constant 0 : index
    %c0_10 = arith.constant 0 : index
    %9 = vector.load %arg6[%c0_9, %c0_10] : memref<1x32xf32, #tpu.memory_space<vmem>>, vector<1x32xf32>
    %10 = vector.broadcast %9 : vector<1x32xf32> to vector<256x32xf32>
    %11 = arith.addf %8, %10 : vector<256x32xf32>
    %c0_11 = arith.constant 0 : index
    %c0_12 = arith.constant 0 : index
    %12 = vector.load %arg4[%c0_11, %c0_12] : memref<32x32xf32, #tpu.memory_space<vmem>>, vector<32x32xf32>
    %cst_13 = arith.constant dense<0.000000e+00> : vector<256x32xf32>
    %13 = tpu.matmul %1, %12, %cst_13 {dimension_numbers = #tpu.dot_dimension_numbers<[1], [0], [0], [1], [0, 0, 1, 1], [], []>} : vector<256x32xf32>, vector<32x32xf32>, vector<256x32xf32> -> vector<256x32xf32>
    %c0_14 = arith.constant 0 : index
    %c0_15 = arith.constant 0 : index
    %14 = vector.load %arg7[%c0_14, %c0_15] : memref<1x32xf32, #tpu.memory_space<vmem>>, vector<1x32xf32>
    %15 = vector.broadcast %14 : vector<1x32xf32> to vector<256x32xf32>
    %16 = arith.addf %13, %15 : vector<256x32xf32>
    %17 = arith.mulf %6, %6 : vector<256x32xf32>
    %c0_16 = arith.constant 0 : index
    %c0_17 = arith.constant 0 : index
    %18 = vector.load %arg11[%c0_16, %c0_17] : memref<32x64xf32, #tpu.memory_space<vmem>>, vector<32x64xf32>
    %cst_18 = arith.constant dense<0.000000e+00> : vector<256x64xf32>
    %19 = tpu.matmul %17, %18, %cst_18 {dimension_numbers = #tpu.dot_dimension_numbers<[1], [0], [0], [1], [0, 0, 1, 1], [], []>} : vector<256x32xf32>, vector<32x64xf32>, vector<256x64xf32> -> vector<256x64xf32>
    %20 = vector.shape_cast %19 : vector<256x64xf32> to vector<16x16x64xf32>
    %21 = vector.shape_cast %6 : vector<256x32xf32> to vector<16x16x32xf32>
    %22 = vector.shape_cast %11 : vector<256x32xf32> to vector<16x16x32xf32>
    %23 = vector.shape_cast %16 : vector<256x32xf32> to vector<16x16x32xf32>
    %c0_19 = arith.constant 0 : index
    %c0_20 = arith.constant 0 : index
    %24 = vector.load %arg10[%c0_19, %c0_20] : memref<64x32xf32, #tpu.memory_space<vmem>>, vector<64x32xf32>
    %25 = tpu.concatenate %22, %22, %22, %22 in 1 : vector<16x16x32xf32>, vector<16x16x32xf32>, vector<16x16x32xf32>, vector<16x16x32xf32> -> vector<16x64x32xf32>
    %26 = vector.shape_cast %24 : vector<64x32xf32> to vector<1x64x32xf32>
    %27 = vector.broadcast %26 : vector<1x64x32xf32> to vector<16x64x32xf32>
    %28 = arith.mulf %25, %27 : vector<16x64x32xf32>
    %29 = tpu.concatenate %23, %23, %23, %23 in 1 : vector<16x16x32xf32>, vector<16x16x32xf32>, vector<16x16x32xf32>, vector<16x16x32xf32> -> vector<16x64x32xf32>
    %30 = vector.shape_cast %24 : vector<64x32xf32> to vector<1x64x32xf32>
    %31 = vector.broadcast %30 : vector<1x64x32xf32> to vector<16x64x32xf32>
    %32 = arith.mulf %29, %31 : vector<16x64x32xf32>
    %33 = arith.mulf %28, %28 : vector<16x64x32xf32>
    %cst_21 = arith.constant dense<0.000000e+00> : vector<16x64xf32>
    %34 = vector.multi_reduction <add>, %33, %cst_21 [2] : vector<16x64x32xf32> to vector<16x64xf32>
    "tpu.trace_start"() <{level = 10 : i32, message = "bnc,bkc->bnk"}> : () -> ()
    %cst_22 = arith.constant dense<0.000000e+00> : vector<16x16x64xf32>
    %35 = tpu.matmul %21, %28, %cst_22 {dimension_numbers = #tpu.dot_dimension_numbers<[2], [2], [1], [1], [0, 0, 0, 1, 1, 1], [0], [0]>} : vector<16x16x32xf32>, vector<16x64x32xf32>, vector<16x16x64xf32> -> vector<16x16x64xf32>
    "tpu.trace_stop"() : () -> ()
    %36 = vector.shape_cast %34 : vector<16x64xf32> to vector<16x1x64xf32>
    %37 = vector.broadcast %36 : vector<16x1x64xf32> to vector<16x16x64xf32>
    %38 = arith.mulf %20, %37 : vector<16x16x64xf32>
    %cst_23 = arith.constant 9.99999996E-13 : f32
    %39 = vector.broadcast %cst_23 : f32 to vector<16x16x64xf32>
    %40 = arith.maximumf %38, %39 : vector<16x16x64xf32>
    %41 = math.rsqrt %40 : vector<16x16x64xf32>
    %42 = arith.mulf %35, %41 : vector<16x16x64xf32>
    %c0_24 = arith.constant 0 : index
    %c0_25 = arith.constant 0 : index
    %43 = vector.load %arg14[%c0_24, %c0_25] : memref<1x64xf32, #tpu.memory_space<vmem>>, vector<1x64xf32>
    %44 = vector.shape_cast %43 : vector<1x64xf32> to vector<1x1x64xf32>
    %45 = vector.broadcast %44 : vector<1x1x64xf32> to vector<16x16x64xf32>
    %46 = arith.mulf %42, %45 : vector<16x16x64xf32>
    %c0_26 = arith.constant 0 : index
    %c0_27 = arith.constant 0 : index
    %47 = vector.load %arg13[%c0_26, %c0_27] : memref<16x64xf32, #tpu.memory_space<vmem>>, vector<16x64xf32>
    %48 = vector.shape_cast %47 : vector<16x64xf32> to vector<1x16x64xf32>
    %49 = vector.broadcast %48 : vector<1x16x64xf32> to vector<16x16x64xf32>
    %50 = arith.addf %46, %49 : vector<16x16x64xf32>
    %cst_28 = arith.constant dense<0xFF800000> : vector<16x16xf32>
    %51 = vector.multi_reduction <maximumf>, %50, %cst_28 [2] : vector<16x16x64xf32> to vector<16x16xf32>
    %52 = vector.shape_cast %51 : vector<16x16xf32> to vector<16x16x1xf32>
    %53 = vector.broadcast %52 : vector<16x16x1xf32> to vector<16x16x64xf32>
    %54 = arith.subf %50, %53 : vector<16x16x64xf32>
    %55 = math.exp %54 : vector<16x16x64xf32>
    %56 = vector.shape_cast %55 : vector<16x16x64xf32> to vector<256x64xf32>
    %c0_29 = arith.constant 0 : index
    %c0_30 = arith.constant 0 : index
    %57 = vector.load %arg12[%c0_29, %c0_30] : memref<64x64xf32, #tpu.memory_space<vmem>>, vector<64x64xf32>
    %cst_31 = arith.constant dense<0.000000e+00> : vector<256x64xf32>
    %58 = tpu.matmul %56, %57, %cst_31 {dimension_numbers = #tpu.dot_dimension_numbers<[1], [0], [0], [1], [0, 0, 1, 1], [], []>} : vector<256x64xf32>, vector<64x64xf32>, vector<256x64xf32> -> vector<256x64xf32>
    %59 = vector.shape_cast %58 : vector<256x64xf32> to vector<16x16x64xf32>
    %60 = tpu.reciprocal %59 {approx = true} : vector<16x16x64xf32> -> vector<16x16x64xf32>
    %61 = arith.mulf %55, %60 : vector<16x16x64xf32>
    "tpu.trace_start"() <{level = 10 : i32, message = "bnk,bkc->bnc"}> : () -> ()
    %cst_32 = arith.constant dense<0.000000e+00> : vector<16x16x32xf32>
    %62 = tpu.matmul %61, %32, %cst_32 {dimension_numbers = #tpu.dot_dimension_numbers<[2], [1], [1], [2], [0, 0, 0, 1, 1, 2], [0], [0]>} : vector<16x16x64xf32>, vector<16x64x32xf32>, vector<16x16x32xf32> -> vector<16x16x32xf32>
    "tpu.trace_stop"() : () -> ()
    %63 = vector.shape_cast %62 : vector<16x16x32xf32> to vector<256x32xf32>
    %c0_33 = arith.constant 0 : index
    %c0_34 = arith.constant 0 : index
    %64 = vector.load %arg8[%c0_33, %c0_34] : memref<32x32xf32, #tpu.memory_space<vmem>>, vector<32x32xf32>
    %cst_35 = arith.constant dense<0.000000e+00> : vector<256x32xf32>
    %65 = tpu.matmul %63, %64, %cst_35 {dimension_numbers = #tpu.dot_dimension_numbers<[1], [0], [0], [1], [0, 0, 1, 1], [], []>} : vector<256x32xf32>, vector<32x32xf32>, vector<256x32xf32> -> vector<256x32xf32>
    %c0_36 = arith.constant 0 : index
    %c0_37 = arith.constant 0 : index
    %66 = vector.load %arg9[%c0_36, %c0_37] : memref<1x32xf32, #tpu.memory_space<vmem>>, vector<1x32xf32>
    %67 = vector.broadcast %66 : vector<1x32xf32> to vector<256x32xf32>
    %68 = arith.addf %65, %67 : vector<256x32xf32>
    %69 = vector.shape_cast %68 : vector<256x32xf32> to vector<16x16x32xf32>
    %c0_38 = arith.constant 0 : index
    %c0_39 = arith.constant 0 : index
    %c0_40 = arith.constant 0 : index
    %70 = vector.load %arg15[%c0_38, %c0_39, %c0_40] : memref<16x16x32xf32, #tpu.memory_space<vmem>>, vector<16x16x32xf32>
    tpu.vector_store %arg15[%c0_38, %c0_39, %c0_40], %69 {strides = array<i32>} : memref<16x16x32xf32, #tpu.memory_space<vmem>>, vector<16x16x32xf32>,
    return
  }
  func.func @transform_0(%arg0: i32) -> (i32, i32, i32) {
    %c0_i32 = arith.constant 0 : i32
    %c0_i32_0 = arith.constant 0 : i32
    %c0_i32_1 = arith.constant 0 : i32
    return %arg0, %c0_i32, %c0_i32_0 : i32, i32, i32
  }
  func.func @transform_1(%arg0: i32) -> (i32, i32) {
    %c0_i32 = arith.constant 0 : i32
    %c0_i32_0 = arith.constant 0 : i32
    %c0_i32_1 = arith.constant 0 : i32
    return %c0_i32, %c0_i32_0 : i32, i32
  }
  func.func @transform_2(%arg0: i32) -> (i32, i32) {
    %c0_i32 = arith.constant 0 : i32
    %c0_i32_0 = arith.constant 0 : i32
    %c0_i32_1 = arith.constant 0 : i32
    return %c0_i32, %c0_i32_0 : i32, i32
  }
  func.func @transform_3(%arg0: i32) -> (i32, i32) {
    %c0_i32 = arith.constant 0 : i32
    %c0_i32_0 = arith.constant 0 : i32
    %c0_i32_1 = arith.constant 0 : i32
    return %c0_i32, %c0_i32_0 : i32, i32
  }
  func.func @transform_4(%arg0: i32) -> (i32, i32) {
    %c0_i32 = arith.constant 0 : i32
    %c0_i32_0 = arith.constant 0 : i32
    %c0_i32_1 = arith.constant 0 : i32
    return %c0_i32, %c0_i32_0 : i32, i32
  }
  func.func @transform_5(%arg0: i32) -> (i32, i32) {
    %c0_i32 = arith.constant 0 : i32
    %c0_i32_0 = arith.constant 0 : i32
    %c0_i32_1 = arith.constant 0 : i32
    return %c0_i32, %c0_i32_0 : i32, i32
  }
  func.func @transform_6(%arg0: i32) -> (i32, i32) {
    %c0_i32 = arith.constant 0 : i32
    %c0_i32_0 = arith.constant 0 : i32
    %c0_i32_1 = arith.constant 0 : i32
    return %c0_i32, %c0_i32_0 : i32, i32
  }
  func.func @transform_7(%arg0: i32) -> (i32, i32) {
    %c0_i32 = arith.constant 0 : i32
    %c0_i32_0 = arith.constant 0 : i32
    %c0_i32_1 = arith.constant 0 : i32
    return %c0_i32, %c0_i32_0 : i32, i32
  }
  func.func @transform_8(%arg0: i32) -> (i32, i32) {
    %c0_i32 = arith.constant 0 : i32
    %c0_i32_0 = arith.constant 0 : i32
    %c0_i32_1 = arith.constant 0 : i32
    return %c0_i32, %c0_i32_0 : i32, i32
  }
  func.func @transform_9(%arg0: i32) -> (i32, i32) {
    %c0_i32 = arith.constant 0 : i32
    %c0_i32_0 = arith.constant 0 : i32
    %c0_i32_1 = arith.constant 0 : i32
    return %c0_i32, %c0_i32_0 : i32, i32
  }
  func.func @transform_10(%arg0: i32) -> (i32, i32) {
    %c0_i32 = arith.constant 0 : i32
    %c0_i32_0 = arith.constant 0 : i32
    %c0_i32_1 = arith.constant 0 : i32
    return %c0_i32, %c0_i32_0 : i32, i32
  }
  func.func @transform_11(%arg0: i32) -> (i32, i32) {
    %c0_i32 = arith.constant 0 : i32
    %c0_i32_0 = arith.constant 0 : i32
    %c0_i32_1 = arith.constant 0 : i32
    return %c0_i32, %c0_i32_0 : i32, i32
  }
  func.func @transform_12(%arg0: i32) -> (i32, i32) {
    %c0_i32 = arith.constant 0 : i32
    %c0_i32_0 = arith.constant 0 : i32
    %c0_i32_1 = arith.constant 0 : i32
    return %c0_i32, %c0_i32_0 : i32, i32
  }
  func.func @transform_13(%arg0: i32) -> (i32, i32) {
    %c0_i32 = arith.constant 0 : i32
    %c0_i32_0 = arith.constant 0 : i32
    %c0_i32_1 = arith.constant 0 : i32
    return %c0_i32, %c0_i32_0 : i32, i32
  }
  func.func @transform_14(%arg0: i32) -> (i32, i32, i32) {
    %c0_i32 = arith.constant 0 : i32
    %c0_i32_0 = arith.constant 0 : i32
    %c0_i32_1 = arith.constant 0 : i32
    return %arg0, %c0_i32, %c0_i32_0 : i32, i32, i32
  }
}

</mosaic_0001>

<llo_original>
// kernel: tpu_custom_call.1
$region0: #{tpu_custom_call.1}
  #allocation0 [shape = 'u32[]', space=smem, size = 0x4, offset = 0x4, fixed_abs, tag = 'smem constant byte address 0x4 - core index']
  #allocation1 [shape = 'u32[144,128]{1,0:T(1,128)}', space=vmem, size = 0x12000, scoped, tag = 'internal scratch']
  %s0 = inlined_call_operand.hbm [shape: f32[16,16,32], index: 0, kind: input, shape index: {}]
  %s1 = inlined_call_operand.vmem [shape: f32[32,32], index: 1, kind: input, shape index: {}]
  %s2 = inlined_call_operand.hbm [shape: f32[32,32], index: 2, kind: input, shape index: {}]
  %s3 = inlined_call_operand.hbm [shape: f32[32,32], index: 3, kind: input, shape index: {}]
  %s4 = inlined_call_operand.vmem [shape: f32[1,32], index: 4, kind: input, shape index: {}]
  %s5 = inlined_call_operand.vmem [shape: f32[1,32], index: 5, kind: input, shape index: {}]
  %s6 = inlined_call_operand.vmem [shape: f32[1,32], index: 6, kind: input, shape index: {}]
  %s7 = inlined_call_operand.hbm [shape: f32[32,32], index: 7, kind: input, shape index: {}]
  %s8 = inlined_call_operand.vmem [shape: f32[1,32], index: 8, kind: input, shape index: {}]
  %s9 = inlined_call_operand.vmem [shape: f32[64,32], index: 9, kind: input, shape index: {}]
  %s10 = inlined_call_operand.hbm [shape: f32[32,64], index: 10, kind: input, shape index: {}]
  %s11 = inlined_call_operand.vmem [shape: f32[64,64], index: 11, kind: input, shape index: {}]
  %s12 = inlined_call_operand.vmem [shape: f32[16,64], index: 12, kind: input, shape index: {}]
  %s13 = inlined_call_operand.vmem [shape: f32[1,64], index: 13, kind: input, shape index: {}]
  %s14 = inlined_call_operand.hbm [shape: f32[16,16,32], index: 14, kind: output, shape index: {}]
  %s15 = sld [smem:[#allocation0]]
  $region86: #{tpu_custom_call.1} parent=0
    _
  %s17 = ssub.s32 1, %s15
  %s18 = scalar_select 0, %s17, %s15
  $region1: #{tpu_custom_call.1} parent=0
    #allocation2 [shape = 'u8[131072]{0}', space=vmem, size = 0x20000, scoped, tag = 'input window, operand 0, single buffered']
    #allocation3 [shape = 's32[1]{0}', space=sflag, size = 0x4, scoped, tag = 'scoped memory for tpu_custom_call.1']
    #allocation4 [shape = 's32[1]{0}', space=sflag, size = 0x4, scoped, tag = 'scoped memory for tpu_custom_call.1']
    #allocation5 [shape = 'u8[16384]{0}', space=vmem, size = 0x4000, scoped, tag = 'input window, operand 2, single buffered']
    #allocation6 [shape = 's32[1]{0}', space=sflag, size = 0x4, scoped, tag = 'scoped memory for tpu_custom_call.1']
    #allocation7 [shape = 'u8[16384]{0}', space=vmem, size = 0x4000, scoped, tag = 'input window, operand 3, single buffered']
    #allocation8 [shape = 'u8[16384]{0}', space=vmem, size = 0x4000, scoped, tag = 'input window, operand 7, single buffered']
    #allocation9 [shape = 's32[1]{0}', space=sflag, size = 0x4, scoped, tag = 'scoped memory for tpu_custom_call.1']
    #allocation10 [shape = 'u8[16384]{0}', space=vmem, size = 0x4000, scoped, tag = 'input window, operand 10, single buffered']
    #allocation11 [shape = 'u8[131072]{0}', space=vmem, size = 0x20000, scoped, tag = 'output window, operand 0, single buffered']
    %19 = vsyncpa [#allocation3], 0
    %20 = vsyncpa [#allocation6], 0
    %21 = vsyncpa [#allocation9], 0
    %22 = vsyncpa [#allocation4], 0
    // Predicated region
    $region2: #{tpu_custom_call.1} parent=1 // pred_check
      _
    $region3: #{tpu_custom_call.1} parent=1 // pred_check_branch
      %24 = sbr.rel (0) target = $region5
    $region4: #{tpu_custom_call.1} parent=1 // pred_region
      %s26 = ssub.s32 4096, 4096
      %27 = vsyncadd [#allocation3], %s26
      %s28 = sshll.u32 [#allocation2], 4
      %s29 = int_to_ptr.vmem [resolvable:$true] %s28
      %34 = dma.hbm_to_vmem [thread:$0]  %s0, 4096, %s29, [#allocation3], 128, 128, 8
    $region5: #{tpu_custom_call.1} parent=1 // pred_fallthru
      _
    // Predicated region
    $region6: #{tpu_custom_call.1} parent=1 // pred_check
      _
    $region7: #{tpu_custom_call.1} parent=1 // pred_check_branch
      %36 = sbr.rel (0) target = $region9
    $region8: #{tpu_custom_call.1} parent=1 // pred_region
      _
    $region9: #{tpu_custom_call.1} parent=1 // pred_fallthru
      _
    // Predicated region
    $region10: #{tpu_custom_call.1} parent=1 // pred_check
      _
    $region11: #{tpu_custom_call.1} parent=1 // pred_check_branch
      %38 = sbr.rel (0) target = $region13
    $region12: #{tpu_custom_call.1} parent=1 // pred_region
      %s40 = ssub.s32 512, 512
      %41 = vsyncadd [#allocation6], %s40
      %s42 = sshll.u32 [#allocation5], 4
      %s43 = int_to_ptr.vmem [resolvable:$true] %s42
      %48 = dma.hbm_to_vmem [thread:$0]  %s2, 512, %s43, [#allocation6], 128, 128, 8
    $region13: #{tpu_custom_call.1} parent=1 // pred_fallthru
      _
    // Predicated region
    $region14: #{tpu_custom_call.1} parent=1 // pred_check
      _
    $region15: #{tpu_custom_call.1} parent=1 // pred_check_branch
      %50 = sbr.rel (0) target = $region17
    $region16: #{tpu_custom_call.1} parent=1 // pred_region
      %s52 = ssub.s32 512, 512
      %53 = vsyncadd [#allocation6], %s52
      %s54 = sshll.u32 [#allocation7], 4
      %s55 = int_to_ptr.vmem [resolvable:$true] %s54
      %60 = dma.hbm_to_vmem [thread:$0]  %s3, 512, %s55, [#allocation6], 128, 128, 8
    $region17: #{tpu_custom_call.1} parent=1 // pred_fallthru
      _
    // Predicated region
    $region18: #{tpu_custom_call.1} parent=1 // pred_check
      _
    $region19: #{tpu_custom_call.1} parent=1 // pred_check_branch
      %62 = sbr.rel (0) target = $region21
    $region20: #{tpu_custom_call.1} parent=1 // pred_region
      _
    $region21: #{tpu_custom_call.1} parent=1 // pred_fallthru
      _
    // Predicated region
    $region22: #{tpu_custom_call.1} parent=1 // pred_check
      _
    $region23: #{tpu_custom_call.1} parent=1 // pred_check_branch
      %64 = sbr.rel (0) target = $region25
    $region24: #{tpu_custom_call.1} parent=1 // pred_region
      _
    $region25: #{tpu_custom_call.1} parent=1 // pred_fallthru
      _
    // Predicated region
    $region26: #{tpu_custom_call.1} parent=1 // pred_check
      _
    $region27: #{tpu_custom_call.1} parent=1 // pred_check_branch
      %66 = sbr.rel (0) target = $region29
    $region28: #{tpu_custom_call.1} parent=1 // pred_region
      _
    $region29: #{tpu_custom_call.1} parent=1 // pred_fallthru
      _
    // Predicated region
    $region30: #{tpu_custom_call.1} parent=1 // pred_check
      _
    $region31: #{tpu_custom_call.1} parent=1 // pred_check_branch
      %68 = sbr.rel (0) target = $region33
    $region32: #{tpu_custom_call.1} parent=1 // pred_region
      %s70 = ssub.s32 512, 512
      %71 = vsyncadd [#allocation9], %s70
      %s72 = sshll.u32 [#allocation8], 4
      %s73 = int_to_ptr.vmem [resolvable:$true] %s72
      %78 = dma.hbm_to_vmem [thread:$0]  %s7, 512, %s73, [#allocation9], 128, 128, 8
    $region33: #{tpu_custom_call.1} parent=1 // pred_fallthru
      _
    // Predicated region
    $region34: #{tpu_custom_call.1} parent=1 // pred_check
      _
    $region35: #{tpu_custom_call.1} parent=1 // pred_check_branch
      %80 = sbr.rel (0) target = $region37
    $region36: #{tpu_custom_call.1} parent=1 // pred_region
      _
    $region37: #{tpu_custom_call.1} parent=1 // pred_fallthru
      _
    // Predicated region
    $region38: #{tpu_custom_call.1} parent=1 // pred_check
      _
    $region39: #{tpu_custom_call.1} parent=1 // pred_check_branch
      %82 = sbr.rel (0) target = $region41
    $region40: #{tpu_custom_call.1} parent=1 // pred_region
      _
    $region41: #{tpu_custom_call.1} parent=1 // pred_fallthru
      _
    // Predicated region
    $region42: #{tpu_custom_call.1} parent=1 // pred_check
      _
    $region43: #{tpu_custom_call.1} parent=1 // pred_check_branch
      %84 = sbr.rel (0) target = $region45
    $region44: #{tpu_custom_call.1} parent=1 // pred_region
      %s86 = ssub.s32 512, 512
      %87 = vsyncadd [#allocation9], %s86
      %s88 = sshll.u32 [#allocation10], 4
      %s89 = int_to_ptr.vmem [resolvable:$true] %s88
      %94 = dma.hbm_to_vmem [thread:$0]  %s10, 512, %s89, [#allocation9], 128, 128, 8
    $region45: #{tpu_custom_call.1} parent=1 // pred_fallthru
      _
    // Predicated region
    $region46: #{tpu_custom_call.1} parent=1 // pred_check
      _
    $region47: #{tpu_custom_call.1} parent=1 // pred_check_branch
      %96 = sbr.rel (0) target = $region49
    $region48: #{tpu_custom_call.1} parent=1 // pred_region
      _
    $region49: #{tpu_custom_call.1} parent=1 // pred_fallthru
      _
    // Predicated region
    $region50: #{tpu_custom_call.1} parent=1 // pred_check
      _
    $region51: #{tpu_custom_call.1} parent=1 // pred_check_branch
      %98 = sbr.rel (0) target = $region53
    $region52: #{tpu_custom_call.1} parent=1 // pred_region
      _
    $region53: #{tpu_custom_call.1} parent=1 // pred_fallthru
      _
    // Predicated region
    $region54: #{tpu_custom_call.1} parent=1 // pred_check
      _
    $region55: #{tpu_custom_call.1} parent=1 // pred_check_branch
      %100 = sbr.rel (0) target = $region57
    $region56: #{tpu_custom_call.1} parent=1 // pred_region
      _
    $region57: #{tpu_custom_call.1} parent=1 // pred_fallthru
      _
    // Predicated region
    $region58: #{tpu_custom_call.1} parent=1 // pred_check
      _
    $region59: #{tpu_custom_call.1} parent=1 // pred_check_branch
      %102 = sbr.rel (0) target = $region61
    $region60: #{tpu_custom_call.1} parent=1 // pred_region
      %103 = dma.done [#allocation3], 4096
    $region61: #{tpu_custom_call.1} parent=1 // pred_fallthru
      _
    // Predicated region
    $region62: #{tpu_custom_call.1} parent=1 // pred_check
      _
    $region63: #{tpu_custom_call.1} parent=1 // pred_check_branch
      %105 = sbr.rel (0) target = $region65
    $region64: #{tpu_custom_call.1} parent=1 // pred_region
      %106 = dma.done [#allocation6], 512
    $region65: #{tpu_custom_call.1} parent=1 // pred_fallthru
      _
    // Predicated region
    $region66: #{tpu_custom_call.1} parent=1 // pred_check
      _
    $region67: #{tpu_custom_call.1} parent=1 // pred_check_branch
      %108 = sbr.rel (0) target = $region69
    $region68: #{tpu_custom_call.1} parent=1 // pred_region
      %109 = dma.done [#allocation6], 512
    $region69: #{tpu_custom_call.1} parent=1 // pred_fallthru
      _
    // Predicated region
    $region70: #{tpu_custom_call.1} parent=1 // pred_check
      _
    $region71: #{tpu_custom_call.1} parent=1 // pred_check_branch
      %111 = sbr.rel (0) target = $region73
    $region72: #{tpu_custom_call.1} parent=1 // pred_region
      %112 = dma.done [#allocation9], 512
    $region73: #{tpu_custom_call.1} parent=1 // pred_fallthru
      _
    // Predicated region
    $region74: #{tpu_custom_call.1} parent=1 // pred_check
      _
    $region75: #{tpu_custom_call.1} parent=1 // pred_check_branch
      %114 = sbr.rel (0) target = $region77
    $region76: #{tpu_custom_call.1} parent=1 // pred_region
      %115 = dma.done [#allocation9], 512
    $region77: #{tpu_custom_call.1} parent=1 // pred_fallthru
      _
    %v116 = vld [vmem:[#allocation2] sm:$0xff]
    %v117 = vld [vmem:[#allocation2 + $0x8] sm:$0xff]
    %v118 = vld [vmem:[#allocation2 + $0x10] sm:$0xff]
    %v119 = vld [vmem:[#allocation2 + $0x18] sm:$0xff]
    %v120 = vld [vmem:[#allocation2 + $0x20] sm:$0xff]
    %v121 = vld [vmem:[#allocation2 + $0x28] sm:$0xff]
    %v122 = vld [vmem:[#allocation2 + $0x30] sm:$0xff]
    %v123 = vld [vmem:[#allocation2 + $0x38] sm:$0xff]
    %v124 = vld [vmem:[#allocation2 + $0x40] sm:$0xff]
    %v125 = vld [vmem:[#allocation2 + $0x48] sm:$0xff]
    %v126 = vld [vmem:[#allocation2 + $0x50] sm:$0xff]
    %v127 = vld [vmem:[#allocation2 + $0x58] sm:$0xff]
    %v128 = vld [vmem:[#allocation2 + $0x60] sm:$0xff]
    %v129 = vld [vmem:[#allocation2 + $0x68] sm:$0xff]
    %v130 = vld [vmem:[#allocation2 + $0x70] sm:$0xff]
    %v131 = vld [vmem:[#allocation2 + $0x78] sm:$0xff]
    %v132 = vld [vmem:[#allocation2 + $0x80] sm:$0xff]
    %v133 = vld [vmem:[#allocation2 + $0x88] sm:$0xff]
    %v134 = vld [vmem:[#allocation2 + $0x90] sm:$0xff]
    %v135 = vld [vmem:[#allocation2 + $0x98] sm:$0xff]
    %v136 = vld [vmem:[#allocation2 + $0xa0] sm:$0xff]
    %v137 = vld [vmem:[#allocation2 + $0xa8] sm:$0xff]
    %v138 = vld [vmem:[#allocation2 + $0xb0] sm:$0xff]
    %v139 = vld [vmem:[#allocation2 + $0xb8] sm:$0xff]
    %v140 = vld [vmem:[#allocation2 + $0xc0] sm:$0xff]
    %v141 = vld [vmem:[#allocation2 + $0xc8] sm:$0xff]
    %v142 = vld [vmem:[#allocation2 + $0xd0] sm:$0xff]
    %v143 = vld [vmem:[#allocation2 + $0xd8] sm:$0xff]
    %v144 = vld [vmem:[#allocation2 + $0xe0] sm:$0xff]
    %v145 = vld [vmem:[#allocation2 + $0xe8] sm:$0xff]
    %v146 = vld [vmem:[#allocation2 + $0xf0] sm:$0xff]
    %v147 = vld [vmem:[#allocation2 + $0xf8] sm:$0xff]
    %v148 = vld [vmem:[%s1] sm:$0xff]
    %v149 = vld [vmem:[%s1 + $0x8] sm:$0xff]
    %v150 = vld [vmem:[%s1 + $0x10] sm:$0xff]
    %v151 = vld [vmem:[%s1 + $0x18] sm:$0xff]
    %v152 = vld [vmem:[%s4] sm:$0x1]
    %v154 = vlaneseq
    %v155 = vshrl.u32 %v154, 7
    %v156 = vsub.s32 0, %v155
    %v157 = vrot.slane %v152, %v156
    %vm159 = vcmask 261120
    %v161 = vsel %vm159, %v116, 0
    %v164 = vsel %vm159, %v117, 0
    %v167 = vsel %vm159, %v118, 0
    %v170 = vsel %vm159, %v119, 0
    %v173 = vsel %vm159, %v120, 0
    %v176 = vsel %vm159, %v121, 0
    %v179 = vsel %vm159, %v122, 0
    %v182 = vsel %vm159, %v123, 0
    %v185 = vsel %vm159, %v124, 0
    %v188 = vsel %vm159, %v125, 0
    %v191 = vsel %vm159, %v126, 0
    %v194 = vsel %vm159, %v127, 0
    %v197 = vsel %vm159, %v128, 0
    %v200 = vsel %vm159, %v129, 0
    %v203 = vsel %vm159, %v130, 0
    %v206 = vsel %vm159, %v131, 0
    %v209 = vsel %vm159, %v132, 0
    %v212 = vsel %vm159, %v133, 0
    %v215 = vsel %vm159, %v134, 0
    %v218 = vsel %vm159, %v135, 0
    %v221 = vsel %vm159, %v136, 0
    %v224 = vsel %vm159, %v137, 0
    %v227 = vsel %vm159, %v138, 0
    %v230 = vsel %vm159, %v139, 0
    %v233 = vsel %vm159, %v140, 0
    %v236 = vsel %vm159, %v141, 0
    %v239 = vsel %vm159, %v142, 0
    %v242 = vsel %vm159, %v143, 0
    %v245 = vsel %vm159, %v144, 0
    %v248 = vsel %vm159, %v145, 0
    %v251 = vsel %vm159, %v146, 0
    %v254 = vsel %vm159, %v147, 0
    %256 = vmatprep.subr.mxu0 0.0
    %257 = vmatpush1.msra.mxu0 0.0
    %258 = vmatprep.subr.mxu0 0.0
    %259 = vmatpush1.msra.mxu0 0.0
    %260 = vmatprep.subr.mxu0 0.0
    %261 = vmatpush1.msra.mxu0 0.0
    %262 = vmatprep.subr.mxu0 0.0
    %263 = vmatpush1.msra.mxu0 0.0
    %264 = vmatprep.subr.mxu0 0.0
    %265 = vmatpush1.msra.mxu0 0.0
    %266 = vmatprep.subr.mxu0 0.0
    %267 = vmatpush1.msra.mxu0 0.0
    %268 = vmatprep.subr.mxu0 0.0
    %269 = vmatpush1.msra.mxu0 0.0
    %270 = vmatprep.subr.mxu0 0.0
    %271 = vmatpush1.msra.mxu0 0.0
    %272 = vmatprep.subr.mxu0 0.0
    %273 = vmatpush1.msra.mxu0 0.0
    %274 = vmatprep.subr.mxu0 0.0
    %275 = vmatpush1.msra.mxu0 0.0
    %276 = vmatprep.subr.mxu0 0.0
    %277 = vmatpush1.msra.mxu0 0.0
    %278 = vmatprep.subr.mxu0 0.0
    %279 = vmatpush1.msra.mxu0 0.0
    %280 = vmatprep.subr.mxu0 0.0
    %281 = vmatpush1.msra.mxu0 %v151
    %282 = vmatprep.subr.mxu0 0.0
    %283 = vmatpush1.msra.mxu0 %v150
    %284 = vmatprep.subr.mxu0 0.0
    %285 = vmatpush1.msra.mxu0 %v149
    %286 = vmatprep.subr.mxu0 0.0
    %287 = vmatpush1.msra.mxu0 %v148
    %288 = vmatprep.subr.mxu0 0.0
    %289 = vmatpush2.msra.mxu0 0.0
    %290 = vmatprep.subr.mxu0 0.0
    %291 = vmatpush2.msra.mxu0 0.0
    %292 = vmatprep.subr.mxu0 0.0
    %293 = vmatpush2.msra.mxu0 0.0
    %294 = vmatprep.subr.mxu0 0.0
    %295 = vmatpush2.msra.mxu0 0.0
    %296 = vmatprep.subr.mxu0 0.0
    %297 = vmatpush2.msra.mxu0 0.0
    %298 = vmatprep.subr.mxu0 0.0
    %299 = vmatpush2.msra.mxu0 0.0
    %300 = vmatprep.subr.mxu0 0.0
    %301 = vmatpush2.msra.mxu0 0.0
    %302 = vmatprep.subr.mxu0 0.0
    %303 = vmatpush2.msra.mxu0 0.0
    %304 = vmatprep.subr.mxu0 0.0
    %305 = vmatpush2.msra.mxu0 0.0
    %306 = vmatprep.subr.mxu0 0.0
    %307 = vmatpush2.msra.mxu0 0.0
    %308 = vmatprep.subr.mxu0 0.0
    %309 = vmatpush2.msra.mxu0 0.0
    %310 = vmatprep.subr.mxu0 0.0
    %311 = vmatpush2.msra.mxu0 0.0
    %312 = vmatprep.subr.mxu0 0.0
    %313 = vmatpush2.msra.mxu0 0.0
    %314 = vmatprep.subr.mxu0 0.0
    %315 = vmatpush2.msra.mxu0 0.0
    %316 = vmatprep.subr.mxu0 0.0
    %317 = vmatpush2.msra.mxu0 0.0
    %318 = vmatprep.subr.mxu0 0.0
    %319 = vmatpush2.msra.mxu0 0.0
    %320 = vmatprep.mubr.f32.mxu0 0.0
    %321 = vmatmul.mubr.f32.gmra.mxu0 %v161
    %v322 = vpop.f32.mrf.mxu0
    %v323 = vadd.f32 %v157, %v322
    %v324 = vpop.f32.mrf.mxu0
    %325 = vmatprep.mubr.f32.mxu0 0.0
    %326 = vmatmul.mubr.f32.gmra.mxu0 %v164
    %v327 = vpop.f32.mrf.mxu0
    %v328 = vadd.f32 %v157, %v327
    %v329 = vpop.f32.mrf.mxu0
    %330 = vmatprep.mubr.f32.mxu0 0.0
    %331 = vmatmul.mubr.f32.gmra.mxu0 %v167
    %v332 = vpop.f32.mrf.mxu0
    %v333 = vadd.f32 %v157, %v332
    %v334 = vpop.f32.mrf.mxu0
    %335 = vmatprep.mubr.f32.mxu0 0.0
    %336 = vmatmul.mubr.f32.gmra.mxu0 %v170
    %v337 = vpop.f32.mrf.mxu0
    %v338 = vadd.f32 %v157, %v337
    %v339 = vpop.f32.mrf.mxu0
    %340 = vmatprep.mubr.f32.mxu0 0.0
    %341 = vmatmul.mubr.f32.gmra.mxu0 %v173
    %v342 = vpop.f32.mrf.mxu0
    %v343 = vadd.f32 %v157, %v342
    %v344 = vpop.f32.mrf.mxu0
    %345 = vmatprep.mubr.f32.mxu0 0.0
    %346 = vmatmul.mubr.f32.gmra.mxu0 %v176
    %v347 = vpop.f32.mrf.mxu0
    %v348 = vadd.f32 %v157, %v347
    %v349 = vpop.f32.mrf.mxu0
    %350 = vmatprep.mubr.f32.mxu0 0.0
    %351 = vmatmul.mubr.f32.gmra.mxu0 %v179
    %v352 = vpop.f32.mrf.mxu0
    %v353 = vadd.f32 %v157, %v352
    %v354 = vpop.f32.mrf.mxu0
    %355 = vmatprep.mubr.f32.mxu0 0.0
    %356 = vmatmul.mubr.f32.gmra.mxu0 %v182
    %v357 = vpop.f32.mrf.mxu0
    %v358 = vadd.f32 %v157, %v357
    %v359 = vpop.f32.mrf.mxu0
    %360 = vmatprep.mubr.f32.mxu0 0.0
    %361 = vmatmul.mubr.f32.gmra.mxu0 %v185
    %v362 = vpop.f32.mrf.mxu0
    %v363 = vadd.f32 %v157, %v362
    %v364 = vpop.f32.mrf.mxu0
    %365 = vmatprep.mubr.f32.mxu0 0.0
    %366 = vmatmul.mubr.f32.gmra.mxu0 %v188
    %v367 = vpop.f32.mrf.mxu0
    %v368 = vadd.f32 %v157, %v367
    %v369 = vpop.f32.mrf.mxu0
    %370 = vmatprep.mubr.f32.mxu0 0.0
    %371 = vmatmul.mubr.f32.gmra.mxu0 %v191
    %v372 = vpop.f32.mrf.mxu0
    %v373 = vadd.f32 %v157, %v372
    %v374 = vpop.f32.mrf.mxu0
    %375 = vmatprep.mubr.f32.mxu0 0.0
    %376 = vmatmul.mubr.f32.gmra.mxu0 %v194
    %v377 = vpop.f32.mrf.mxu0
    %v378 = vadd.f32 %v157, %v377
    %v379 = vpop.f32.mrf.mxu0
    %380 = vmatprep.mubr.f32.mxu0 0.0
    %381 = vmatmul.mubr.f32.gmra.mxu0 %v197
    %v382 = vpop.f32.mrf.mxu0
    %v383 = vadd.f32 %v157, %v382
    %v384 = vpop.f32.mrf.mxu0
    %385 = vmatprep.mubr.f32.mxu0 0.0
    %386 = vmatmul.mubr.f32.gmra.mxu0 %v200
    %v387 = vpop.f32.mrf.mxu0
    %v388 = vadd.f32 %v157, %v387
    %v389 = vpop.f32.mrf.mxu0
    %390 = vmatprep.mubr.f32.mxu0 0.0
    %391 = vmatmul.mubr.f32.gmra.mxu0 %v203
    %v392 = vpop.f32.mrf.mxu0
    %v393 = vadd.f32 %v157, %v392
    %v394 = vpop.f32.mrf.mxu0
    %395 = vmatprep.mubr.f32.mxu0 0.0
    %396 = vmatmul.mubr.f32.gmra.mxu0 %v206
    %v397 = vpop.f32.mrf.mxu0
    %v398 = vadd.f32 %v157, %v397
    %v399 = vpop.f32.mrf.mxu0
    %400 = vmatprep.mubr.f32.mxu0 0.0
    %401 = vmatmul.mubr.f32.gmra.mxu0 %v209
    %v402 = vpop.f32.mrf.mxu0
    %v403 = vadd.f32 %v157, %v402
    %v404 = vpop.f32.mrf.mxu0
    %405 = vmatprep.mubr.f32.mxu0 0.0
    %406 = vmatmul.mubr.f32.gmra.mxu0 %v212
    %v407 = vpop.f32.mrf.mxu0
    %v408 = vadd.f32 %v157, %v407
    %v409 = vpop.f32.mrf.mxu0
    %410 = vmatprep.mubr.f32.mxu0 0.0
    %411 = vmatmul.mubr.f32.gmra.mxu0 %v215
    %v412 = vpop.f32.mrf.mxu0
    %v413 = vadd.f32 %v157, %v412
    %v414 = vpop.f32.mrf.mxu0
    %415 = vmatprep.mubr.f32.mxu0 0.0
    %416 = vmatmul.mubr.f32.gmra.mxu0 %v218
    %v417 = vpop.f32.mrf.mxu0
    %v418 = vadd.f32 %v157, %v417
    %v419 = vpop.f32.mrf.mxu0
    %420 = vmatprep.mubr.f32.mxu0 0.0
    %421 = vmatmul.mubr.f32.gmra.mxu0 %v221
    %v422 = vpop.f32.mrf.mxu0
    %v423 = vadd.f32 %v157, %v422
    %v424 = vpop.f32.mrf.mxu0
    %425 = vmatprep.mubr.f32.mxu0 0.0
    %426 = vmatmul.mubr.f32.gmra.mxu0 %v224
    %v427 = vpop.f32.mrf.mxu0
    %v428 = vadd.f32 %v157, %v427
    %v429 = vpop.f32.mrf.mxu0
    %430 = vmatprep.mubr.f32.mxu0 0.0
    %431 = vmatmul.mubr.f32.gmra.mxu0 %v227
    %v432 = vpop.f32.mrf.mxu0
    %v433 = vadd.f32 %v157, %v432
    %v434 = vpop.f32.mrf.mxu0
    %435 = vmatprep.mubr.f32.mxu0 0.0
    %436 = vmatmul.mubr.f32.gmra.mxu0 %v230
    %v437 = vpop.f32.mrf.mxu0
    %v438 = vadd.f32 %v157, %v437
    %v439 = vpop.f32.mrf.mxu0
    %440 = vmatprep.mubr.f32.mxu0 0.0
    %441 = vmatmul.mubr.f32.gmra.mxu0 %v233
    %v442 = vpop.f32.mrf.mxu0
    %v443 = vadd.f32 %v157, %v442
    %v444 = vpop.f32.mrf.mxu0
    %445 = vmatprep.mubr.f32.mxu0 0.0
    %446 = vmatmul.mubr.f32.gmra.mxu0 %v236
    %v447 = vpop.f32.mrf.mxu0
    %v448 = vadd.f32 %v157, %v447
    %v449 = vpop.f32.mrf.mxu0
    %450 = vmatprep.mubr.f32.mxu0 0.0
    %451 = vmatmul.mubr.f32.gmra.mxu0 %v239
    %v452 = vpop.f32.mrf.mxu0
    %v453 = vadd.f32 %v157, %v452
    %v454 = vpop.f32.mrf.mxu0
    %455 = vmatprep.mubr.f32.mxu0 0.0
    %456 = vmatmul.mubr.f32.gmra.mxu0 %v242
    %v457 = vpop.f32.mrf.mxu0
    %v458 = vadd.f32 %v157, %v457
    %v459 = vpop.f32.mrf.mxu0
    %460 = vmatprep.mubr.f32.mxu0 0.0
    %461 = vmatmul.mubr.f32.gmra.mxu0 %v245
    %v462 = vpop.f32.mrf.mxu0
    %v463 = vadd.f32 %v157, %v462
    %v464 = vpop.f32.mrf.mxu0
    %465 = vmatprep.mubr.f32.mxu0 0.0
    %466 = vmatmul.mubr.f32.gmra.mxu0 %v248
    %v467 = vpop.f32.mrf.mxu0
    %v468 = vadd.f32 %v157, %v467
    %v469 = vpop.f32.mrf.mxu0
    %470 = vmatprep.mubr.f32.mxu0 0.0
    %471 = vmatmul.mubr.f32.gmra.mxu0 %v251
    %v472 = vpop.f32.mrf.mxu0
    %v473 = vadd.f32 %v157, %v472
    %v474 = vpop.f32.mrf.mxu0
    %475 = vmatprep.mubr.f32.mxu0 0.0
    %476 = vmatmul.mubr.f32.gmra.mxu0 %v254
    %v477 = vpop.f32.mrf.mxu0
    %v478 = vadd.f32 %v157, %v477
    %v479 = vpop.f32.mrf.mxu0
    %480 = vdwg.mxu0
    %v481 = vld [vmem:[#allocation5] sm:$0xff]
    %v482 = vld [vmem:[#allocation5 + $0x8] sm:$0xff]
    %v483 = vld [vmem:[#allocation5 + $0x10] sm:$0xff]
    %v484 = vld [vmem:[#allocation5 + $0x18] sm:$0xff]
    %v485 = vld [vmem:[%s5] sm:$0x1]
    %v487 = vlaneseq
    %v488 = vshrl.u32 %v487, 7
    %v489 = vsub.s32 0, %v488
    %v490 = vrot.slane %v485, %v489
    %492 = vmatprep.subr.mxu0 0.0
    %493 = vmatpush1.msra.mxu0 0.0
    %494 = vmatprep.subr.mxu0 0.0
    %495 = vmatpush1.msra.mxu0 0.0
    %496 = vmatprep.subr.mxu0 0.0
    %497 = vmatpush1.msra.mxu0 0.0
    %498 = vmatprep.subr.mxu0 0.0
    %499 = vmatpush1.msra.mxu0 0.0
    %500 = vmatprep.subr.mxu0 0.0
    %501 = vmatpush1.msra.mxu0 0.0
    %502 = vmatprep.subr.mxu0 0.0
    %503 = vmatpush1.msra.mxu0 0.0
    %504 = vmatprep.subr.mxu0 0.0
    %505 = vmatpush1.msra.mxu0 0.0
    %506 = vmatprep.subr.mxu0 0.0
    %507 = vmatpush1.msra.mxu0 0.0
    %508 = vmatprep.subr.mxu0 0.0
    %509 = vmatpush1.msra.mxu0 0.0
    %510 = vmatprep.subr.mxu0 0.0
    %511 = vmatpush1.msra.mxu0 0.0
    %512 = vmatprep.subr.mxu0 0.0
    %513 = vmatpush1.msra.mxu0 0.0
    %514 = vmatprep.subr.mxu0 0.0
    %515 = vmatpush1.msra.mxu0 0.0
    %516 = vmatprep.subr.mxu0 0.0
    %517 = vmatpush1.msra.mxu0 %v484
    %518 = vmatprep.subr.mxu0 0.0
    %519 = vmatpush1.msra.mxu0 %v483
    %520 = vmatprep.subr.mxu0 0.0
    %521 = vmatpush1.msra.mxu0 %v482
    %522 = vmatprep.subr.mxu0 0.0
    %523 = vmatpush1.msra.mxu0 %v481
    %524 = vmatprep.subr.mxu0 0.0
    %525 = vmatpush2.msra.mxu0 0.0
    %526 = vmatprep.subr.mxu0 0.0
    %527 = vmatpush2.msra.mxu0 0.0
    %528 = vmatprep.subr.mxu0 0.0
    %529 = vmatpush2.msra.mxu0 0.0
    %530 = vmatprep.subr.mxu0 0.0
    %531 = vmatpush2.msra.mxu0 0.0
    %532 = vmatprep.subr.mxu0 0.0
    %533 = vmatpush2.msra.mxu0 0.0
    %534 = vmatprep.subr.mxu0 0.0
    %535 = vmatpush2.msra.mxu0 0.0
    %536 = vmatprep.subr.mxu0 0.0
    %537 = vmatpush2.msra.mxu0 0.0
    %538 = vmatprep.subr.mxu0 0.0
    %539 = vmatpush2.msra.mxu0 0.0
    %540 = vmatprep.subr.mxu0 0.0
    %541 = vmatpush2.msra.mxu0 0.0
    %542 = vmatprep.subr.mxu0 0.0
    %543 = vmatpush2.msra.mxu0 0.0
    %544 = vmatprep.subr.mxu0 0.0
    %545 = vmatpush2.msra.mxu0 0.0
    %546 = vmatprep.subr.mxu0 0.0
    %547 = vmatpush2.msra.mxu0 0.0
    %548 = vmatprep.subr.mxu0 0.0
    %549 = vmatpush2.msra.mxu0 0.0
    %550 = vmatprep.subr.mxu0 0.0
    %551 = vmatpush2.msra.mxu0 0.0
    %552 = vmatprep.subr.mxu0 0.0
    %553 = vmatpush2.msra.mxu0 0.0
    %554 = vmatprep.subr.mxu0 0.0
    %555 = vmatpush2.msra.mxu0 0.0
    %556 = vmatprep.mubr.f32.mxu0 0.0
    %557 = vmatmul.mubr.f32.gmra.mxu0 %v161
    %v558 = vpop.f32.mrf.mxu0
    %v559 = vadd.f32 %v490, %v558
    %v560 = vpop.f32.mrf.mxu0
    %561 = vmatprep.mubr.f32.mxu0 0.0
    %562 = vmatmul.mubr.f32.gmra.mxu0 %v164
    %v563 = vpop.f32.mrf.mxu0
    %v564 = vadd.f32 %v490, %v563
    %v565 = vpop.f32.mrf.mxu0
    %566 = vmatprep.mubr.f32.mxu0 0.0
    %567 = vmatmul.mubr.f32.gmra.mxu0 %v167
    %v568 = vpop.f32.mrf.mxu0
    %v569 = vadd.f32 %v490, %v568
    %v570 = vpop.f32.mrf.mxu0
    %571 = vmatprep.mubr.f32.mxu0 0.0
    %572 = vmatmul.mubr.f32.gmra.mxu0 %v170
    %v573 = vpop.f32.mrf.mxu0
    %v574 = vadd.f32 %v490, %v573
    %v575 = vpop.f32.mrf.mxu0
    %576 = vmatprep.mubr.f32.mxu0 0.0
    %577 = vmatmul.mubr.f32.gmra.mxu0 %v173
    %v578 = vpop.f32.mrf.mxu0
    %v579 = vadd.f32 %v490, %v578
    %v580 = vpop.f32.mrf.mxu0
    %581 = vmatprep.mubr.f32.mxu0 0.0
    %582 = vmatmul.mubr.f32.gmra.mxu0 %v176
    %v583 = vpop.f32.mrf.mxu0
    %v584 = vadd.f32 %v490, %v583
    %v585 = vpop.f32.mrf.mxu0
    %586 = vmatprep.mubr.f32.mxu0 0.0
    %587 = vmatmul.mubr.f32.gmra.mxu0 %v179
    %v588 = vpop.f32.mrf.mxu0
    %v589 = vadd.f32 %v490, %v588
    %v590 = vpop.f32.mrf.mxu0
    %591 = vmatprep.mubr.f32.mxu0 0.0
    %592 = vmatmul.mubr.f32.gmra.mxu0 %v182
    %v593 = vpop.f32.mrf.mxu0
    %v594 = vadd.f32 %v490, %v593
    %v595 = vpop.f32.mrf.mxu0
    %596 = vmatprep.mubr.f32.mxu0 0.0
    %597 = vmatmul.mubr.f32.gmra.mxu0 %v185
    %v598 = vpop.f32.mrf.mxu0
    %v599 = vadd.f32 %v490, %v598
    %v600 = vpop.f32.mrf.mxu0
    %601 = vmatprep.mubr.f32.mxu0 0.0
    %602 = vmatmul.mubr.f32.gmra.mxu0 %v188
    %v603 = vpop.f32.mrf.mxu0
    %v604 = vadd.f32 %v490, %v603
    %v605 = vpop.f32.mrf.mxu0
    %606 = vmatprep.mubr.f32.mxu0 0.0
    %607 = vmatmul.mubr.f32.gmra.mxu0 %v191
    %v608 = vpop.f32.mrf.mxu0
    %v609 = vadd.f32 %v490, %v608
    %v610 = vpop.f32.mrf.mxu0
    %611 = vmatprep.mubr.f32.mxu0 0.0
    %612 = vmatmul.mubr.f32.gmra.mxu0 %v194
    %v613 = vpop.f32.mrf.mxu0
    %v614 = vadd.f32 %v490, %v613
    %v615 = vpop.f32.mrf.mxu0
    %616 = vmatprep.mubr.f32.mxu0 0.0
    %617 = vmatmul.mubr.f32.gmra.mxu0 %v197
    %v618 = vpop.f32.mrf.mxu0
    %v619 = vadd.f32 %v490, %v618
    %v620 = vpop.f32.mrf.mxu0
    %621 = vmatprep.mubr.f32.mxu0 0.0
    %622 = vmatmul.mubr.f32.gmra.mxu0 %v200
    %v623 = vpop.f32.mrf.mxu0
    %v624 = vadd.f32 %v490, %v623
    %v625 = vpop.f32.mrf.mxu0
    %626 = vmatprep.mubr.f32.mxu0 0.0
    %627 = vmatmul.mubr.f32.gmra.mxu0 %v203
    %v628 = vpop.f32.mrf.mxu0
    %v629 = vadd.f32 %v490, %v628
    %v630 = vpop.f32.mrf.mxu0
    %631 = vmatprep.mubr.f32.mxu0 0.0
    %632 = vmatmul.mubr.f32.gmra.mxu0 %v206
    %v633 = vpop.f32.mrf.mxu0
    %v634 = vadd.f32 %v490, %v633
    %v635 = vpop.f32.mrf.mxu0
    %636 = vmatprep.mubr.f32.mxu0 0.0
    %637 = vmatmul.mubr.f32.gmra.mxu0 %v209
    %v638 = vpop.f32.mrf.mxu0
    %v639 = vadd.f32 %v490, %v638
    %v640 = vpop.f32.mrf.mxu0
    %641 = vmatprep.mubr.f32.mxu0 0.0
    %642 = vmatmul.mubr.f32.gmra.mxu0 %v212
    %v643 = vpop.f32.mrf.mxu0
    %v644 = vadd.f32 %v490, %v643
    %v645 = vpop.f32.mrf.mxu0
    %646 = vmatprep.mubr.f32.mxu0 0.0
    %647 = vmatmul.mubr.f32.gmra.mxu0 %v215
    %v648 = vpop.f32.mrf.mxu0
    %v649 = vadd.f32 %v490, %v648
    %v650 = vpop.f32.mrf.mxu0
    %651 = vmatprep.mubr.f32.mxu0 0.0
    %652 = vmatmul.mubr.f32.gmra.mxu0 %v218
    %v653 = vpop.f32.mrf.mxu0
    %v654 = vadd.f32 %v490, %v653
    %v655 = vpop.f32.mrf.mxu0
    %656 = vmatprep.mubr.f32.mxu0 0.0
    %657 = vmatmul.mubr.f32.gmra.mxu0 %v221
    %v658 = vpop.f32.mrf.mxu0
    %v659 = vadd.f32 %v490, %v658
    %v660 = vpop.f32.mrf.mxu0
    %661 = vmatprep.mubr.f32.mxu0 0.0
    %662 = vmatmul.mubr.f32.gmra.mxu0 %v224
    %v663 = vpop.f32.mrf.mxu0
    %v664 = vadd.f32 %v490, %v663
    %v665 = vpop.f32.mrf.mxu0
    %666 = vmatprep.mubr.f32.mxu0 0.0
    %667 = vmatmul.mubr.f32.gmra.mxu0 %v227
    %v668 = vpop.f32.mrf.mxu0
    %v669 = vadd.f32 %v490, %v668
    %v670 = vpop.f32.mrf.mxu0
    %671 = vmatprep.mubr.f32.mxu0 0.0
    %672 = vmatmul.mubr.f32.gmra.mxu0 %v230
    %v673 = vpop.f32.mrf.mxu0
    %v674 = vadd.f32 %v490, %v673
    %v675 = vpop.f32.mrf.mxu0
    %676 = vmatprep.mubr.f32.mxu0 0.0
    %677 = vmatmul.mubr.f32.gmra.mxu0 %v233
    %v678 = vpop.f32.mrf.mxu0
    %v679 = vadd.f32 %v490, %v678
    %v680 = vpop.f32.mrf.mxu0
    %681 = vmatprep.mubr.f32.mxu0 0.0
    %682 = vmatmul.mubr.f32.gmra.mxu0 %v236
    %v683 = vpop.f32.mrf.mxu0
    %v684 = vadd.f32 %v490, %v683
    %v685 = vpop.f32.mrf.mxu0
    %686 = vmatprep.mubr.f32.mxu0 0.0
    %687 = vmatmul.mubr.f32.gmra.mxu0 %v239
    %v688 = vpop.f32.mrf.mxu0
    %v689 = vadd.f32 %v490, %v688
    %v690 = vpop.f32.mrf.mxu0
    %691 = vmatprep.mubr.f32.mxu0 0.0
    %692 = vmatmul.mubr.f32.gmra.mxu0 %v242
    %v693 = vpop.f32.mrf.mxu0
    %v694 = vadd.f32 %v490, %v693
    %v695 = vpop.f32.mrf.mxu0
    %696 = vmatprep.mubr.f32.mxu0 0.0
    %697 = vmatmul.mubr.f32.gmra.mxu0 %v245
    %v698 = vpop.f32.mrf.mxu0
    %v699 = vadd.f32 %v490, %v698
    %v700 = vpop.f32.mrf.mxu0
    %701 = vmatprep.mubr.f32.mxu0 0.0
    %702 = vmatmul.mubr.f32.gmra.mxu0 %v248
    %v703 = vpop.f32.mrf.mxu0
    %v704 = vadd.f32 %v490, %v703
    %v705 = vpop.f32.mrf.mxu0
    %706 = vmatprep.mubr.f32.mxu0 0.0
    %707 = vmatmul.mubr.f32.gmra.mxu0 %v251
    %v708 = vpop.f32.mrf.mxu0
    %v709 = vadd.f32 %v490, %v708
    %v710 = vpop.f32.mrf.mxu0
    %711 = vmatprep.mubr.f32.mxu0 0.0
    %712 = vmatmul.mubr.f32.gmra.mxu0 %v254
    %v713 = vpop.f32.mrf.mxu0
    %v714 = vadd.f32 %v490, %v713
    %v715 = vpop.f32.mrf.mxu0
    %716 = vdwg.mxu0
    %v717 = vld [vmem:[#allocation7] sm:$0xff]
    %v718 = vld [vmem:[#allocation7 + $0x8] sm:$0xff]
    %v719 = vld [vmem:[#allocation7 + $0x10] sm:$0xff]
    %v720 = vld [vmem:[#allocation7 + $0x18] sm:$0xff]
    %v721 = vld [vmem:[%s6] sm:$0x1]
    %v723 = vlaneseq
    %v724 = vshrl.u32 %v723, 7
    %v725 = vsub.s32 0, %v724
    %v726 = vrot.slane %v721, %v725
    %728 = vmatprep.subr.mxu0 0.0
    %729 = vmatpush1.msra.mxu0 0.0
    %730 = vmatprep.subr.mxu0 0.0
    %731 = vmatpush1.msra.mxu0 0.0
    %732 = vmatprep.subr.mxu0 0.0
    %733 = vmatpush1.msra.mxu0 0.0
    %734 = vmatprep.subr.mxu0 0.0
    %735 = vmatpush1.msra.mxu0 0.0
    %736 = vmatprep.subr.mxu0 0.0
    %737 = vmatpush1.msra.mxu0 0.0
    %738 = vmatprep.subr.mxu0 0.0
    %739 = vmatpush1.msra.mxu0 0.0
    %740 = vmatprep.subr.mxu0 0.0
    %741 = vmatpush1.msra.mxu0 0.0
    %742 = vmatprep.subr.mxu0 0.0
    %743 = vmatpush1.msra.mxu0 0.0
    %744 = vmatprep.subr.mxu0 0.0
    %745 = vmatpush1.msra.mxu0 0.0
    %746 = vmatprep.subr.mxu0 0.0
    %747 = vmatpush1.msra.mxu0 0.0
    %748 = vmatprep.subr.mxu0 0.0
    %749 = vmatpush1.msra.mxu0 0.0
    %750 = vmatprep.subr.mxu0 0.0
    %751 = vmatpush1.msra.mxu0 0.0
    %752 = vmatprep.subr.mxu0 0.0
    %753 = vmatpush1.msra.mxu0 %v720
    %754 = vmatprep.subr.mxu0 0.0
    %755 = vmatpush1.msra.mxu0 %v719
    %756 = vmatprep.subr.mxu0 0.0
    %757 = vmatpush1.msra.mxu0 %v718
    %758 = vmatprep.subr.mxu0 0.0
    %759 = vmatpush1.msra.mxu0 %v717
    %760 = vmatprep.subr.mxu0 0.0
    %761 = vmatpush2.msra.mxu0 0.0
    %762 = vmatprep.subr.mxu0 0.0
    %763 = vmatpush2.msra.mxu0 0.0
    %764 = vmatprep.subr.mxu0 0.0
    %765 = vmatpush2.msra.mxu0 0.0
    %766 = vmatprep.subr.mxu0 0.0
    %767 = vmatpush2.msra.mxu0 0.0
    %768 = vmatprep.subr.mxu0 0.0
    %769 = vmatpush2.msra.mxu0 0.0
    %770 = vmatprep.subr.mxu0 0.0
    %771 = vmatpush2.msra.mxu0 0.0
    %772 = vmatprep.subr.mxu0 0.0
    %773 = vmatpush2.msra.mxu0 0.0
    %774 = vmatprep.subr.mxu0 0.0
    %775 = vmatpush2.msra.mxu0 0.0
    %776 = vmatprep.subr.mxu0 0.0
    %777 = vmatpush2.msra.mxu0 0.0
    %778 = vmatprep.subr.mxu0 0.0
    %779 = vmatpush2.msra.mxu0 0.0
    %780 = vmatprep.subr.mxu0 0.0
    %781 = vmatpush2.msra.mxu0 0.0
    %782 = vmatprep.subr.mxu0 0.0
    %783 = vmatpush2.msra.mxu0 0.0
    %784 = vmatprep.subr.mxu0 0.0
    %785 = vmatpush2.msra.mxu0 0.0
    %786 = vmatprep.subr.mxu0 0.0
    %787 = vmatpush2.msra.mxu0 0.0
    %788 = vmatprep.subr.mxu0 0.0
    %789 = vmatpush2.msra.mxu0 0.0
    %790 = vmatprep.subr.mxu0 0.0
    %791 = vmatpush2.msra.mxu0 0.0
    %792 = vmatprep.mubr.f32.mxu0 0.0
    %793 = vmatmul.mubr.f32.gmra.mxu0 %v161
    %v794 = vpop.f32.mrf.mxu0
    %v795 = vadd.f32 %v726, %v794
    %v796 = vpop.f32.mrf.mxu0
    %797 = vmatprep.mubr.f32.mxu0 0.0
    %798 = vmatmul.mubr.f32.gmra.mxu0 %v164
    %v799 = vpop.f32.mrf.mxu0
    %v800 = vadd.f32 %v726, %v799
    %v801 = vpop.f32.mrf.mxu0
    %802 = vmatprep.mubr.f32.mxu0 0.0
    %803 = vmatmul.mubr.f32.gmra.mxu0 %v167
    %v804 = vpop.f32.mrf.mxu0
    %v805 = vadd.f32 %v726, %v804
    %v806 = vpop.f32.mrf.mxu0
    %807 = vmatprep.mubr.f32.mxu0 0.0
    %808 = vmatmul.mubr.f32.gmra.mxu0 %v170
    %v809 = vpop.f32.mrf.mxu0
    %v810 = vadd.f32 %v726, %v809
    %v811 = vpop.f32.mrf.mxu0
    %812 = vmatprep.mubr.f32.mxu0 0.0
    %813 = vmatmul.mubr.f32.gmra.mxu0 %v173
    %v814 = vpop.f32.mrf.mxu0
    %v815 = vadd.f32 %v726, %v814
    %v816 = vpop.f32.mrf.mxu0
    %817 = vmatprep.mubr.f32.mxu0 0.0
    %818 = vmatmul.mubr.f32.gmra.mxu0 %v176
    %v819 = vpop.f32.mrf.mxu0
    %v820 = vadd.f32 %v726, %v819
    %v821 = vpop.f32.mrf.mxu0
    %822 = vmatprep.mubr.f32.mxu0 0.0
    %823 = vmatmul.mubr.f32.gmra.mxu0 %v179
    %v824 = vpop.f32.mrf.mxu0
    %v825 = vadd.f32 %v726, %v824
    %v826 = vpop.f32.mrf.mxu0
    %827 = vmatprep.mubr.f32.mxu0 0.0
    %828 = vmatmul.mubr.f32.gmra.mxu0 %v182
    %v829 = vpop.f32.mrf.mxu0
    %v830 = vadd.f32 %v726, %v829
    %v831 = vpop.f32.mrf.mxu0
    %832 = vmatprep.mubr.f32.mxu0 0.0
    %833 = vmatmul.mubr.f32.gmra.mxu0 %v185
    %v834 = vpop.f32.mrf.mxu0
    %v835 = vadd.f32 %v726, %v834
    %v836 = vpop.f32.mrf.mxu0
    %837 = vmatprep.mubr.f32.mxu0 0.0
    %838 = vmatmul.mubr.f32.gmra.mxu0 %v188
    %v839 = vpop.f32.mrf.mxu0
    %v840 = vadd.f32 %v726, %v839
    %v841 = vpop.f32.mrf.mxu0
    %842 = vmatprep.mubr.f32.mxu0 0.0
    %843 = vmatmul.mubr.f32.gmra.mxu0 %v191
    %v844 = vpop.f32.mrf.mxu0
    %v845 = vadd.f32 %v726, %v844
    %v846 = vpop.f32.mrf.mxu0
    %847 = vmatprep.mubr.f32.mxu0 0.0
    %848 = vmatmul.mubr.f32.gmra.mxu0 %v194
    %v849 = vpop.f32.mrf.mxu0
    %v850 = vadd.f32 %v726, %v849
    %v851 = vpop.f32.mrf.mxu0
    %852 = vmatprep.mubr.f32.mxu0 0.0
    %853 = vmatmul.mubr.f32.gmra.mxu0 %v197
    %v854 = vpop.f32.mrf.mxu0
    %v855 = vadd.f32 %v726, %v854
    %v856 = vpop.f32.mrf.mxu0
    %857 = vmatprep.mubr.f32.mxu0 0.0
    %858 = vmatmul.mubr.f32.gmra.mxu0 %v200
    %v859 = vpop.f32.mrf.mxu0
    %v860 = vadd.f32 %v726, %v859
    %v861 = vpop.f32.mrf.mxu0
    %862 = vmatprep.mubr.f32.mxu0 0.0
    %863 = vmatmul.mubr.f32.gmra.mxu0 %v203
    %v864 = vpop.f32.mrf.mxu0
    %v865 = vadd.f32 %v726, %v864
    %v866 = vpop.f32.mrf.mxu0
    %867 = vmatprep.mubr.f32.mxu0 0.0
    %868 = vmatmul.mubr.f32.gmra.mxu0 %v206
    %v869 = vpop.f32.mrf.mxu0
    %v870 = vadd.f32 %v726, %v869
    %v871 = vpop.f32.mrf.mxu0
    %872 = vmatprep.mubr.f32.mxu0 0.0
    %873 = vmatmul.mubr.f32.gmra.mxu0 %v209
    %v874 = vpop.f32.mrf.mxu0
    %v875 = vadd.f32 %v726, %v874
    %v876 = vpop.f32.mrf.mxu0
    %877 = vmatprep.mubr.f32.mxu0 0.0
    %878 = vmatmul.mubr.f32.gmra.mxu0 %v212
    %v879 = vpop.f32.mrf.mxu0
    %v880 = vadd.f32 %v726, %v879
    %v881 = vpop.f32.mrf.mxu0
    %882 = vmatprep.mubr.f32.mxu0 0.0
    %883 = vmatmul.mubr.f32.gmra.mxu0 %v215
    %v884 = vpop.f32.mrf.mxu0
    %v885 = vadd.f32 %v726, %v884
    %v886 = vpop.f32.mrf.mxu0
    %887 = vmatprep.mubr.f32.mxu0 0.0
    %888 = vmatmul.mubr.f32.gmra.mxu0 %v218
    %v889 = vpop.f32.mrf.mxu0
    %v890 = vadd.f32 %v726, %v889
    %v891 = vpop.f32.mrf.mxu0
    %892 = vmatprep.mubr.f32.mxu0 0.0
    %893 = vmatmul.mubr.f32.gmra.mxu0 %v221
    %v894 = vpop.f32.mrf.mxu0
    %v895 = vadd.f32 %v726, %v894
    %v896 = vpop.f32.mrf.mxu0
    %897 = vmatprep.mubr.f32.mxu0 0.0
    %898 = vmatmul.mubr.f32.gmra.mxu0 %v224
    %v899 = vpop.f32.mrf.mxu0
    %v900 = vadd.f32 %v726, %v899
    %v901 = vpop.f32.mrf.mxu0
    %902 = vmatprep.mubr.f32.mxu0 0.0
    %903 = vmatmul.mubr.f32.gmra.mxu0 %v227
    %v904 = vpop.f32.mrf.mxu0
    %v905 = vadd.f32 %v726, %v904
    %v906 = vpop.f32.mrf.mxu0
    %907 = vmatprep.mubr.f32.mxu0 0.0
    %908 = vmatmul.mubr.f32.gmra.mxu0 %v230
    %v909 = vpop.f32.mrf.mxu0
    %v910 = vadd.f32 %v726, %v909
    %v911 = vpop.f32.mrf.mxu0
    %912 = vmatprep.mubr.f32.mxu0 0.0
    %913 = vmatmul.mubr.f32.gmra.mxu0 %v233
    %v914 = vpop.f32.mrf.mxu0
    %v915 = vadd.f32 %v726, %v914
    %v916 = vpop.f32.mrf.mxu0
    %917 = vmatprep.mubr.f32.mxu0 0.0
    %918 = vmatmul.mubr.f32.gmra.mxu0 %v236
    %v919 = vpop.f32.mrf.mxu0
    %v920 = vadd.f32 %v726, %v919
    %v921 = vpop.f32.mrf.mxu0
    %922 = vmatprep.mubr.f32.mxu0 0.0
    %923 = vmatmul.mubr.f32.gmra.mxu0 %v239
    %v924 = vpop.f32.mrf.mxu0
    %v925 = vadd.f32 %v726, %v924
    %v926 = vpop.f32.mrf.mxu0
    %927 = vmatprep.mubr.f32.mxu0 0.0
    %928 = vmatmul.mubr.f32.gmra.mxu0 %v242
    %v929 = vpop.f32.mrf.mxu0
    %v930 = vadd.f32 %v726, %v929
    %v931 = vpop.f32.mrf.mxu0
    %932 = vmatprep.mubr.f32.mxu0 0.0
    %933 = vmatmul.mubr.f32.gmra.mxu0 %v245
    %v934 = vpop.f32.mrf.mxu0
    %v935 = vadd.f32 %v726, %v934
    %v936 = vpop.f32.mrf.mxu0
    %937 = vmatprep.mubr.f32.mxu0 0.0
    %938 = vmatmul.mubr.f32.gmra.mxu0 %v248
    %v939 = vpop.f32.mrf.mxu0
    %v940 = vadd.f32 %v726, %v939
    %v941 = vpop.f32.mrf.mxu0
    %942 = vmatprep.mubr.f32.mxu0 0.0
    %943 = vmatmul.mubr.f32.gmra.mxu0 %v251
    %v944 = vpop.f32.mrf.mxu0
    %v945 = vadd.f32 %v726, %v944
    %v946 = vpop.f32.mrf.mxu0
    %947 = vmatprep.mubr.f32.mxu0 0.0
    %948 = vmatmul.mubr.f32.gmra.mxu0 %v254
    %v949 = vpop.f32.mrf.mxu0
    %v950 = vadd.f32 %v726, %v949
    %v951 = vpop.f32.mrf.mxu0
    %952 = vdwg.mxu0
    %v953 = vmul.f32 %v323, %v323
    %v954 = vmul.f32 %v328, %v328
    %v955 = vmul.f32 %v333, %v333
    %v956 = vmul.f32 %v338, %v338
    %v957 = vmul.f32 %v343, %v343
    %v958 = vmul.f32 %v348, %v348
    %v959 = vmul.f32 %v353, %v353
    %v960 = vmul.f32 %v358, %v358
    %v961 = vmul.f32 %v363, %v363
    %v962 = vmul.f32 %v368, %v368
    %v963 = vmul.f32 %v373, %v373
    %v964 = vmul.f32 %v378, %v378
    %v965 = vmul.f32 %v383, %v383
    %v966 = vmul.f32 %v388, %v388
    %v967 = vmul.f32 %v393, %v393
    %v968 = vmul.f32 %v398, %v398
    %v969 = vmul.f32 %v403, %v403
    %v970 = vmul.f32 %v408, %v408
    %v971 = vmul.f32 %v413, %v413
    %v972 = vmul.f32 %v418, %v418
    %v973 = vmul.f32 %v423, %v423
    %v974 = vmul.f32 %v428, %v428
    %v975 = vmul.f32 %v433, %v433
    %v976 = vmul.f32 %v438, %v438
    %v977 = vmul.f32 %v443, %v443
    %v978 = vmul.f32 %v448, %v448
    %v979 = vmul.f32 %v453, %v453
    %v980 = vmul.f32 %v458, %v458
    %v981 = vmul.f32 %v463, %v463
    %v982 = vmul.f32 %v468, %v468
    %v983 = vmul.f32 %v473, %v473
    %v984 = vmul.f32 %v478, %v478
    %v985 = vld [vmem:[#allocation10] sm:$0xff]
    %v986 = vld [vmem:[#allocation10 + $0x8] sm:$0xff]
    %v987 = vld [vmem:[#allocation10 + $0x10] sm:$0xff]
    %v988 = vld [vmem:[#allocation10 + $0x18] sm:$0xff]
    %v990 = vsel %vm159, %v953, 0
    %v993 = vsel %vm159, %v954, 0
    %v996 = vsel %vm159, %v955, 0
    %v999 = vsel %vm159, %v956, 0
    %v1002 = vsel %vm159, %v957, 0
    %v1005 = vsel %vm159, %v958, 0
    %v1008 = vsel %vm159, %v959, 0
    %v1011 = vsel %vm159, %v960, 0
    %v1014 = vsel %vm159, %v961, 0
    %v1017 = vsel %vm159, %v962, 0
    %v1020 = vsel %vm159, %v963, 0
    %v1023 = vsel %vm159, %v964, 0
    %v1026 = vsel %vm159, %v965, 0
    %v1029 = vsel %vm159, %v966, 0
    %v1032 = vsel %vm159, %v967, 0
    %v1035 = vsel %vm159, %v968, 0
    %v1038 = vsel %vm159, %v969, 0
    %v1041 = vsel %vm159, %v970, 0
    %v1044 = vsel %vm159, %v971, 0
    %v1047 = vsel %vm159, %v972, 0
    %v1050 = vsel %vm159, %v973, 0
    %v1053 = vsel %vm159, %v974, 0
    %v1056 = vsel %vm159, %v975, 0
    %v1059 = vsel %vm159, %v976, 0
    %v1062 = vsel %vm159, %v977, 0
    %v1065 = vsel %vm159, %v978, 0
    %v1068 = vsel %vm159, %v979, 0
    %v1071 = vsel %vm159, %v980, 0
    %v1074 = vsel %vm159, %v981, 0
    %v1077 = vsel %vm159, %v982, 0
    %v1080 = vsel %vm159, %v983, 0
    %v1083 = vsel %vm159, %v984, 0
    %1085 = vmatprep.subr.mxu0 0.0
    %1086 = vmatpush1.msra.mxu0 0.0
    %1087 = vmatprep.subr.mxu0 0.0
    %1088 = vmatpush1.msra.mxu0 0.0
    %1089 = vmatprep.subr.mxu0 0.0
    %1090 = vmatpush1.msra.mxu0 0.0
    %1091 = vmatprep.subr.mxu0 0.0
    %1092 = vmatpush1.msra.mxu0 0.0
    %1093 = vmatprep.subr.mxu0 0.0
    %1094 = vmatpush1.msra.mxu0 0.0
    %1095 = vmatprep.subr.mxu0 0.0
    %1096 = vmatpush1.msra.mxu0 0.0
    %1097 = vmatprep.subr.mxu0 0.0
    %1098 = vmatpush1.msra.mxu0 0.0
    %1099 = vmatprep.subr.mxu0 0.0
    %1100 = vmatpush1.msra.mxu0 0.0
    %1101 = vmatprep.subr.mxu0 0.0
    %1102 = vmatpush1.msra.mxu0 0.0
    %1103 = vmatprep.subr.mxu0 0.0
    %1104 = vmatpush1.msra.mxu0 0.0
    %1105 = vmatprep.subr.mxu0 0.0
    %1106 = vmatpush1.msra.mxu0 0.0
    %1107 = vmatprep.subr.mxu0 0.0
    %1108 = vmatpush1.msra.mxu0 0.0
    %1109 = vmatprep.subr.mxu0 0.0
    %1110 = vmatpush1.msra.mxu0 %v988
    %1111 = vmatprep.subr.mxu0 0.0
    %1112 = vmatpush1.msra.mxu0 %v987
    %1113 = vmatprep.subr.mxu0 0.0
    %1114 = vmatpush1.msra.mxu0 %v986
    %1115 = vmatprep.subr.mxu0 0.0
    %1116 = vmatpush1.msra.mxu0 %v985
    %1117 = vmatprep.subr.mxu0 0.0
    %1118 = vmatpush2.msra.mxu0 0.0
    %1119 = vmatprep.subr.mxu0 0.0
    %1120 = vmatpush2.msra.mxu0 0.0
    %1121 = vmatprep.subr.mxu0 0.0
    %1122 = vmatpush2.msra.mxu0 0.0
    %1123 = vmatprep.subr.mxu0 0.0
    %1124 = vmatpush2.msra.mxu0 0.0
    %1125 = vmatprep.subr.mxu0 0.0
    %1126 = vmatpush2.msra.mxu0 0.0
    %1127 = vmatprep.subr.mxu0 0.0
    %1128 = vmatpush2.msra.mxu0 0.0
    %1129 = vmatprep.subr.mxu0 0.0
    %1130 = vmatpush2.msra.mxu0 0.0
    %1131 = vmatprep.subr.mxu0 0.0
    %1132 = vmatpush2.msra.mxu0 0.0
    %1133 = vmatprep.subr.mxu0 0.0
    %1134 = vmatpush2.msra.mxu0 0.0
    %1135 = vmatprep.subr.mxu0 0.0
    %1136 = vmatpush2.msra.mxu0 0.0
    %1137 = vmatprep.subr.mxu0 0.0
    %1138 = vmatpush2.msra.mxu0 0.0
    %1139 = vmatprep.subr.mxu0 0.0
    %1140 = vmatpush2.msra.mxu0 0.0
    %1141 = vmatprep.subr.mxu0 0.0
    %1142 = vmatpush2.msra.mxu0 0.0
    %1143 = vmatprep.subr.mxu0 0.0
    %1144 = vmatpush2.msra.mxu0 0.0
    %1145 = vmatprep.subr.mxu0 0.0
    %1146 = vmatpush2.msra.mxu0 0.0
    %1147 = vmatprep.subr.mxu0 0.0
    %1148 = vmatpush2.msra.mxu0 0.0
    %1149 = vmatprep.mubr.f32.mxu0 0.0
    %1150 = vmatmul.mubr.f32.gmra.mxu0 %v990
    %v1151 = vpop.f32.mrf.mxu0
    %v1152 = vadd.f32 0.0, %v1151
    %v1153 = vpop.f32.mrf.mxu0
    %1154 = vmatprep.mubr.f32.mxu0 0.0
    %1155 = vmatmul.mubr.f32.gmra.mxu0 %v993
    %v1156 = vpop.f32.mrf.mxu0
    %v1157 = vadd.f32 0.0, %v1156
    %v1158 = vpop.f32.mrf.mxu0
    %1159 = vmatprep.mubr.f32.mxu0 0.0
    %1160 = vmatmul.mubr.f32.gmra.mxu0 %v996
    %v1161 = vpop.f32.mrf.mxu0
    %v1162 = vadd.f32 0.0, %v1161
    %v1163 = vpop.f32.mrf.mxu0
    %1164 = vmatprep.mubr.f32.mxu0 0.0
    %1165 = vmatmul.mubr.f32.gmra.mxu0 %v999
    %v1166 = vpop.f32.mrf.mxu0
    %v1167 = vadd.f32 0.0, %v1166
    %v1168 = vpop.f32.mrf.mxu0
    %1169 = vmatprep.mubr.f32.mxu0 0.0
    %1170 = vmatmul.mubr.f32.gmra.mxu0 %v1002
    %v1171 = vpop.f32.mrf.mxu0
    %v1172 = vadd.f32 0.0, %v1171
    %v1173 = vpop.f32.mrf.mxu0
    %1174 = vmatprep.mubr.f32.mxu0 0.0
    %1175 = vmatmul.mubr.f32.gmra.mxu0 %v1005
    %v1176 = vpop.f32.mrf.mxu0
    %v1177 = vadd.f32 0.0, %v1176
    %v1178 = vpop.f32.mrf.mxu0
    %1179 = vmatprep.mubr.f32.mxu0 0.0
    %1180 = vmatmul.mubr.f32.gmra.mxu0 %v1008
    %v1181 = vpop.f32.mrf.mxu0
    %v1182 = vadd.f32 0.0, %v1181
    %v1183 = vpop.f32.mrf.mxu0
    %1184 = vmatprep.mubr.f32.mxu0 0.0
    %1185 = vmatmul.mubr.f32.gmra.mxu0 %v1011
    %v1186 = vpop.f32.mrf.mxu0
    %v1187 = vadd.f32 0.0, %v1186
    %v1188 = vpop.f32.mrf.mxu0
    %1189 = vmatprep.mubr.f32.mxu0 0.0
    %1190 = vmatmul.mubr.f32.gmra.mxu0 %v1014
    %v1191 = vpop.f32.mrf.mxu0
    %v1192 = vadd.f32 0.0, %v1191
    %v1193 = vpop.f32.mrf.mxu0
    %1194 = vmatprep.mubr.f32.mxu0 0.0
    %1195 = vmatmul.mubr.f32.gmra.mxu0 %v1017
    %v1196 = vpop.f32.mrf.mxu0
    %v1197 = vadd.f32 0.0, %v1196
    %v1198 = vpop.f32.mrf.mxu0
    %1199 = vmatprep.mubr.f32.mxu0 0.0
    %1200 = vmatmul.mubr.f32.gmra.mxu0 %v1020
    %v1201 = vpop.f32.mrf.mxu0
    %v1202 = vadd.f32 0.0, %v1201
    %v1203 = vpop.f32.mrf.mxu0
    %1204 = vmatprep.mubr.f32.mxu0 0.0
    %1205 = vmatmul.mubr.f32.gmra.mxu0 %v1023
    %v1206 = vpop.f32.mrf.mxu0
    %v1207 = vadd.f32 0.0, %v1206
    %v1208 = vpop.f32.mrf.mxu0
    %1209 = vmatprep.mubr.f32.mxu0 0.0
    %1210 = vmatmul.mubr.f32.gmra.mxu0 %v1026
    %v1211 = vpop.f32.mrf.mxu0
    %v1212 = vadd.f32 0.0, %v1211
    %v1213 = vpop.f32.mrf.mxu0
    %1214 = vmatprep.mubr.f32.mxu0 0.0
    %1215 = vmatmul.mubr.f32.gmra.mxu0 %v1029
    %v1216 = vpop.f32.mrf.mxu0
    %v1217 = vadd.f32 0.0, %v1216
    %v1218 = vpop.f32.mrf.mxu0
    %1219 = vmatprep.mubr.f32.mxu0 0.0
    %1220 = vmatmul.mubr.f32.gmra.mxu0 %v1032
    %v1221 = vpop.f32.mrf.mxu0
    %v1222 = vadd.f32 0.0, %v1221
    %v1223 = vpop.f32.mrf.mxu0
    %1224 = vmatprep.mubr.f32.mxu0 0.0
    %1225 = vmatmul.mubr.f32.gmra.mxu0 %v1035
    %v1226 = vpop.f32.mrf.mxu0
    %v1227 = vadd.f32 0.0, %v1226
    %v1228 = vpop.f32.mrf.mxu0
    %1229 = vmatprep.mubr.f32.mxu0 0.0
    %1230 = vmatmul.mubr.f32.gmra.mxu0 %v1038
    %v1231 = vpop.f32.mrf.mxu0
    %v1232 = vadd.f32 0.0, %v1231
    %v1233 = vpop.f32.mrf.mxu0
    %1234 = vmatprep.mubr.f32.mxu0 0.0
    %1235 = vmatmul.mubr.f32.gmra.mxu0 %v1041
    %v1236 = vpop.f32.mrf.mxu0
    %v1237 = vadd.f32 0.0, %v1236
    %v1238 = vpop.f32.mrf.mxu0
    %1239 = vmatprep.mubr.f32.mxu0 0.0
    %1240 = vmatmul.mubr.f32.gmra.mxu0 %v1044
    %v1241 = vpop.f32.mrf.mxu0
    %v1242 = vadd.f32 0.0, %v1241
    %v1243 = vpop.f32.mrf.mxu0
    %1244 = vmatprep.mubr.f32.mxu0 0.0
    %1245 = vmatmul.mubr.f32.gmra.mxu0 %v1047
    %v1246 = vpop.f32.mrf.mxu0
    %v1247 = vadd.f32 0.0, %v1246
    %v1248 = vpop.f32.mrf.mxu0
    %1249 = vmatprep.mubr.f32.mxu0 0.0
    %1250 = vmatmul.mubr.f32.gmra.mxu0 %v1050
    %v1251 = vpop.f32.mrf.mxu0
    %v1252 = vadd.f32 0.0, %v1251
    %v1253 = vpop.f32.mrf.mxu0
    %1254 = vmatprep.mubr.f32.mxu0 0.0
    %1255 = vmatmul.mubr.f32.gmra.mxu0 %v1053
    %v1256 = vpop.f32.mrf.mxu0
    %v1257 = vadd.f32 0.0, %v1256
    %v1258 = vpop.f32.mrf.mxu0
    %1259 = vmatprep.mubr.f32.mxu0 0.0
    %1260 = vmatmul.mubr.f32.gmra.mxu0 %v1056
    %v1261 = vpop.f32.mrf.mxu0
    %v1262 = vadd.f32 0.0, %v1261
    %v1263 = vpop.f32.mrf.mxu0
    %1264 = vmatprep.mubr.f32.mxu0 0.0
    %1265 = vmatmul.mubr.f32.gmra.mxu0 %v1059
    %v1266 = vpop.f32.mrf.mxu0
    %v1267 = vadd.f32 0.0, %v1266
    %v1268 = vpop.f32.mrf.mxu0
    %1269 = vmatprep.mubr.f32.mxu0 0.0
    %1270 = vmatmul.mubr.f32.gmra.mxu0 %v1062
    %v1271 = vpop.f32.mrf.mxu0
    %v1272 = vadd.f32 0.0, %v1271
    %v1273 = vpop.f32.mrf.mxu0
    %1274 = vmatprep.mubr.f32.mxu0 0.0
    %1275 = vmatmul.mubr.f32.gmra.mxu0 %v1065
    %v1276 = vpop.f32.mrf.mxu0
    %v1277 = vadd.f32 0.0, %v1276
    %v1278 = vpop.f32.mrf.mxu0
    %1279 = vmatprep.mubr.f32.mxu0 0.0
    %1280 = vmatmul.mubr.f32.gmra.mxu0 %v1068
    %v1281 = vpop.f32.mrf.mxu0
    %v1282 = vadd.f32 0.0, %v1281
    %v1283 = vpop.f32.mrf.mxu0
    %1284 = vmatprep.mubr.f32.mxu0 0.0
    %1285 = vmatmul.mubr.f32.gmra.mxu0 %v1071
    %v1286 = vpop.f32.mrf.mxu0
    %v1287 = vadd.f32 0.0, %v1286
    %v1288 = vpop.f32.mrf.mxu0
    %1289 = vmatprep.mubr.f32.mxu0 0.0
    %1290 = vmatmul.mubr.f32.gmra.mxu0 %v1074
    %v1291 = vpop.f32.mrf.mxu0
    %v1292 = vadd.f32 0.0, %v1291
    %v1293 = vpop.f32.mrf.mxu0
    %1294 = vmatprep.mubr.f32.mxu0 0.0
    %1295 = vmatmul.mubr.f32.gmra.mxu0 %v1077
    %v1296 = vpop.f32.mrf.mxu0
    %v1297 = vadd.f32 0.0, %v1296
    %v1298 = vpop.f32.mrf.mxu0
    %1299 = vmatprep.mubr.f32.mxu0 0.0
    %1300 = vmatmul.mubr.f32.gmra.mxu0 %v1080
    %v1301 = vpop.f32.mrf.mxu0
    %v1302 = vadd.f32 0.0, %v1301
    %v1303 = vpop.f32.mrf.mxu0
    %1304 = vmatprep.mubr.f32.mxu0 0.0
    %1305 = vmatmul.mubr.f32.gmra.mxu0 %v1083
    %v1306 = vpop.f32.mrf.mxu0
    %v1307 = vadd.f32 0.0, %v1306
    %v1308 = vpop.f32.mrf.mxu0
    %1309 = vdwg.mxu0
    %v1310 = vld [vmem:[%s9] sm:$0xff]
    %v1311 = vld [vmem:[%s9 + $0x8] sm:$0xff]
    %v1312 = vld [vmem:[%s9 + $0x10] sm:$0xff]
    %v1313 = vld [vmem:[%s9 + $0x18] sm:$0xff]
    %v1314 = vld [vmem:[%s9 + $0x20] sm:$0xff]
    %v1315 = vld [vmem:[%s9 + $0x28] sm:$0xff]
    %v1316 = vld [vmem:[%s9 + $0x30] sm:$0xff]
    %v1317 = vld [vmem:[%s9 + $0x38] sm:$0xff]
    %v1318 = vmul.f32 %v559, %v1310
    %v1319 = vmul.f32 %v564, %v1311
    %v1320 = vmul.f32 %v559, %v1312
    %v1321 = vmul.f32 %v564, %v1313
    %v1322 = vmul.f32 %v559, %v1314
    %v1323 = vmul.f32 %v564, %v1315
    %v1324 = vmul.f32 %v559, %v1316
    %v1325 = vmul.f32 %v564, %v1317
    %v1326 = vmul.f32 %v569, %v1310
    %v1327 = vmul.f32 %v574, %v1311
    %v1328 = vmul.f32 %v569, %v1312
    %v1329 = vmul.f32 %v574, %v1313
    %v1330 = vmul.f32 %v569, %v1314
    %v1331 = vmul.f32 %v574, %v1315
    %v1332 = vmul.f32 %v569, %v1316
    %v1333 = vmul.f32 %v574, %v1317
    %v1334 = vmul.f32 %v579, %v1310
    %v1335 = vmul.f32 %v584, %v1311
    %v1336 = vmul.f32 %v579, %v1312
    %v1337 = vmul.f32 %v584, %v1313
    %v1338 = vmul.f32 %v579, %v1314
    %v1339 = vmul.f32 %v584, %v1315
    %v1340 = vmul.f32 %v579, %v1316
    %v1341 = vmul.f32 %v584, %v1317
    %v1342 = vmul.f32 %v589, %v1310
    %v1343 = vmul.f32 %v594, %v1311
    %v1344 = vmul.f32 %v589, %v1312
    %v1345 = vmul.f32 %v594, %v1313
    %v1346 = vmul.f32 %v589, %v1314
    %v1347 = vmul.f32 %v594, %v1315
    %v1348 = vmul.f32 %v589, %v1316
    %v1349 = vmul.f32 %v594, %v1317
    %v1350 = vmul.f32 %v599, %v1310
    %v1351 = vmul.f32 %v604, %v1311
    %v1352 = vmul.f32 %v599, %v1312
    %v1353 = vmul.f32 %v604, %v1313
    %v1354 = vmul.f32 %v599, %v1314
    %v1355 = vmul.f32 %v604, %v1315
    %v1356 = vmul.f32 %v599, %v1316
    %v1357 = vmul.f32 %v604, %v1317
    %v1358 = vmul.f32 %v609, %v1310
    %v1359 = vmul.f32 %v614, %v1311
    %v1360 = vmul.f32 %v609, %v1312
    %v1361 = vmul.f32 %v614, %v1313
    %v1362 = vmul.f32 %v609, %v1314
    %v1363 = vmul.f32 %v614, %v1315
    %v1364 = vmul.f32 %v609, %v1316
    %v1365 = vmul.f32 %v614, %v1317
    %v1366 = vmul.f32 %v619, %v1310
    %v1367 = vmul.f32 %v624, %v1311
    %v1368 = vmul.f32 %v619, %v1312
    %v1369 = vmul.f32 %v624, %v1313
    %v1370 = vmul.f32 %v619, %v1314
    %v1371 = vmul.f32 %v624, %v1315
    %v1372 = vmul.f32 %v619, %v1316
    %v1373 = vmul.f32 %v624, %v1317
    %v1374 = vmul.f32 %v629, %v1310
    %v1375 = vmul.f32 %v634, %v1311
    %v1376 = vmul.f32 %v629, %v1312
    %v1377 = vmul.f32 %v634, %v1313
    %v1378 = vmul.f32 %v629, %v1314
    %v1379 = vmul.f32 %v634, %v1315
    %v1380 = vmul.f32 %v629, %v1316
    %v1381 = vmul.f32 %v634, %v1317
    %v1382 = vmul.f32 %v639, %v1310
    %v1383 = vmul.f32 %v644, %v1311
    %v1384 = vmul.f32 %v639, %v1312
    %v1385 = vmul.f32 %v644, %v1313
    %v1386 = vmul.f32 %v639, %v1314
    %v1387 = vmul.f32 %v644, %v1315
    %v1388 = vmul.f32 %v639, %v1316
    %v1389 = vmul.f32 %v644, %v1317
    %v1390 = vmul.f32 %v649, %v1310
    %v1391 = vmul.f32 %v654, %v1311
    %v1392 = vmul.f32 %v649, %v1312
    %v1393 = vmul.f32 %v654, %v1313
    %v1394 = vmul.f32 %v649, %v1314
    %v1395 = vmul.f32 %v654, %v1315
    %v1396 = vmul.f32 %v649, %v1316
    %v1397 = vmul.f32 %v654, %v1317
    %v1398 = vmul.f32 %v659, %v1310
    %v1399 = vmul.f32 %v664, %v1311
    %v1400 = vmul.f32 %v659, %v1312
    %v1401 = vmul.f32 %v664, %v1313
    %v1402 = vmul.f32 %v659, %v1314
    %v1403 = vmul.f32 %v664, %v1315
    %v1404 = vmul.f32 %v659, %v1316
    %v1405 = vmul.f32 %v664, %v1317
    %v1406 = vmul.f32 %v669, %v1310
    %v1407 = vmul.f32 %v674, %v1311
    %v1408 = vmul.f32 %v669, %v1312
    %v1409 = vmul.f32 %v674, %v1313
    %v1410 = vmul.f32 %v669, %v1314
    %v1411 = vmul.f32 %v674, %v1315
    %v1412 = vmul.f32 %v669, %v1316
    %v1413 = vmul.f32 %v674, %v1317
    %v1414 = vmul.f32 %v679, %v1310
    %v1415 = vmul.f32 %v684, %v1311
    %v1416 = vmul.f32 %v679, %v1312
    %v1417 = vmul.f32 %v684, %v1313
    %v1418 = vmul.f32 %v679, %v1314
    %v1419 = vmul.f32 %v684, %v1315
    %v1420 = vmul.f32 %v679, %v1316
    %v1421 = vmul.f32 %v684, %v1317
    %v1422 = vmul.f32 %v689, %v1310
    %v1423 = vmul.f32 %v694, %v1311
    %v1424 = vmul.f32 %v689, %v1312
    %v1425 = vmul.f32 %v694, %v1313
    %v1426 = vmul.f32 %v689, %v1314
    %v1427 = vmul.f32 %v694, %v1315
    %v1428 = vmul.f32 %v689, %v1316
    %v1429 = vmul.f32 %v694, %v1317
    %v1430 = vmul.f32 %v699, %v1310
    %v1431 = vmul.f32 %v704, %v1311
    %v1432 = vmul.f32 %v699, %v1312
    %v1433 = vmul.f32 %v704, %v1313
    %v1434 = vmul.f32 %v699, %v1314
    %v1435 = vmul.f32 %v704, %v1315
    %v1436 = vmul.f32 %v699, %v1316
    %v1437 = vmul.f32 %v704, %v1317
    %v1438 = vmul.f32 %v709, %v1310
    %v1439 = vmul.f32 %v714, %v1311
    %v1440 = vmul.f32 %v709, %v1312
    %v1441 = vmul.f32 %v714, %v1313
    %v1442 = vmul.f32 %v709, %v1314
    %v1443 = vmul.f32 %v714, %v1315
    %v1444 = vmul.f32 %v709, %v1316
    %v1445 = vmul.f32 %v714, %v1317
    %v1446 = vmul.f32 %v795, %v1310
    %v1447 = vmul.f32 %v800, %v1311
    %v1448 = vmul.f32 %v795, %v1312
    %v1449 = vmul.f32 %v800, %v1313
    %v1450 = vmul.f32 %v795, %v1314
    %v1451 = vmul.f32 %v800, %v1315
    %v1452 = vmul.f32 %v795, %v1316
    %v1453 = vmul.f32 %v800, %v1317
    %v1454 = vmul.f32 %v805, %v1310
    %v1455 = vmul.f32 %v810, %v1311
    %v1456 = vmul.f32 %v805, %v1312
    %v1457 = vmul.f32 %v810, %v1313
    %v1458 = vmul.f32 %v805, %v1314
    %v1459 = vmul.f32 %v810, %v1315
    %v1460 = vmul.f32 %v805, %v1316
    %v1461 = vmul.f32 %v810, %v1317
    %v1462 = vmul.f32 %v815, %v1310
    %v1463 = vmul.f32 %v820, %v1311
    %v1464 = vmul.f32 %v815, %v1312
    %v1465 = vmul.f32 %v820, %v1313
    %v1466 = vmul.f32 %v815, %v1314
    %v1467 = vmul.f32 %v820, %v1315
    %v1468 = vmul.f32 %v815, %v1316
    %v1469 = vmul.f32 %v820, %v1317
    %v1470 = vmul.f32 %v825, %v1310
    %v1471 = vmul.f32 %v830, %v1311
    %v1472 = vmul.f32 %v825, %v1312
    %v1473 = vmul.f32 %v830, %v1313
    %v1474 = vmul.f32 %v825, %v1314
    %v1475 = vmul.f32 %v830, %v1315
    %v1476 = vmul.f32 %v825, %v1316
    %v1477 = vmul.f32 %v830, %v1317
    %v1478 = vmul.f32 %v835, %v1310
    %v1479 = vmul.f32 %v840, %v1311
    %v1480 = vmul.f32 %v835, %v1312
    %v1481 = vmul.f32 %v840, %v1313
    %v1482 = vmul.f32 %v835, %v1314
    %v1483 = vmul.f32 %v840, %v1315
    %v1484 = vmul.f32 %v835, %v1316
    %v1485 = vmul.f32 %v840, %v1317
    %v1486 = vmul.f32 %v845, %v1310
    %v1487 = vmul.f32 %v850, %v1311
    %v1488 = vmul.f32 %v845, %v1312
    %v1489 = vmul.f32 %v850, %v1313
    %v1490 = vmul.f32 %v845, %v1314
    %v1491 = vmul.f32 %v850, %v1315
    %v1492 = vmul.f32 %v845, %v1316
    %v1493 = vmul.f32 %v850, %v1317
    %v1494 = vmul.f32 %v855, %v1310
    %v1495 = vmul.f32 %v860, %v1311
    %v1496 = vmul.f32 %v855, %v1312
    %v1497 = vmul.f32 %v860, %v1313
    %v1498 = vmul.f32 %v855, %v1314
    %v1499 = vmul.f32 %v860, %v1315
    %v1500 = vmul.f32 %v855, %v1316
    %v1501 = vmul.f32 %v860, %v1317
    %v1502 = vmul.f32 %v865, %v1310
    %v1503 = vmul.f32 %v870, %v1311
    %v1504 = vmul.f32 %v865, %v1312
    %v1505 = vmul.f32 %v870, %v1313
    %v1506 = vmul.f32 %v865, %v1314
    %v1507 = vmul.f32 %v870, %v1315
    %v1508 = vmul.f32 %v865, %v1316
    %v1509 = vmul.f32 %v870, %v1317
    %v1510 = vmul.f32 %v875, %v1310
    %v1511 = vmul.f32 %v880, %v1311
    %v1512 = vmul.f32 %v875, %v1312
    %v1513 = vmul.f32 %v880, %v1313
    %v1514 = vmul.f32 %v875, %v1314
    %v1515 = vmul.f32 %v880, %v1315
    %v1516 = vmul.f32 %v875, %v1316
    %v1517 = vmul.f32 %v880, %v1317
    %v1518 = vmul.f32 %v885, %v1310
    %v1519 = vmul.f32 %v890, %v1311
    %v1520 = vmul.f32 %v885, %v1312
    %v1521 = vmul.f32 %v890, %v1313
    %v1522 = vmul.f32 %v885, %v1314
    %v1523 = vmul.f32 %v890, %v1315
    %v1524 = vmul.f32 %v885, %v1316
    %v1525 = vmul.f32 %v890, %v1317
    %v1526 = vmul.f32 %v895, %v1310
    %v1527 = vmul.f32 %v900, %v1311
    %v1528 = vmul.f32 %v895, %v1312
    %v1529 = vmul.f32 %v900, %v1313
    %v1530 = vmul.f32 %v895, %v1314
    %v1531 = vmul.f32 %v900, %v1315
    %v1532 = vmul.f32 %v895, %v1316
    %v1533 = vmul.f32 %v900, %v1317
    %v1534 = vmul.f32 %v905, %v1310
    %v1535 = vmul.f32 %v910, %v1311
    %v1536 = vmul.f32 %v905, %v1312
    %v1537 = vmul.f32 %v910, %v1313
    %v1538 = vmul.f32 %v905, %v1314
    %v1539 = vmul.f32 %v910, %v1315
    %v1540 = vmul.f32 %v905, %v1316
    %v1541 = vmul.f32 %v910, %v1317
    %v1542 = vmul.f32 %v915, %v1310
    %v1543 = vmul.f32 %v920, %v1311
    %v1544 = vmul.f32 %v915, %v1312
    %v1545 = vmul.f32 %v920, %v1313
    %v1546 = vmul.f32 %v915, %v1314
    %v1547 = vmul.f32 %v920, %v1315
    %v1548 = vmul.f32 %v915, %v1316
    %v1549 = vmul.f32 %v920, %v1317
    %v1550 = vmul.f32 %v925, %v1310
    %v1551 = vmul.f32 %v930, %v1311
    %v1552 = vmul.f32 %v925, %v1312
    %v1553 = vmul.f32 %v930, %v1313
    %v1554 = vmul.f32 %v925, %v1314
    %v1555 = vmul.f32 %v930, %v1315
    %v1556 = vmul.f32 %v925, %v1316
    %v1557 = vmul.f32 %v930, %v1317
    %v1558 = vmul.f32 %v935, %v1310
    %v1559 = vmul.f32 %v940, %v1311
    %v1560 = vmul.f32 %v935, %v1312
    %v1561 = vmul.f32 %v940, %v1313
    %v1562 = vmul.f32 %v935, %v1314
    %v1563 = vmul.f32 %v940, %v1315
    %v1564 = vmul.f32 %v935, %v1316
    %v1565 = vmul.f32 %v940, %v1317
    %v1566 = vmul.f32 %v945, %v1310
    %v1567 = vmul.f32 %v950, %v1311
    %v1568 = vmul.f32 %v945, %v1312
    %v1569 = vmul.f32 %v950, %v1313
    %v1570 = vmul.f32 %v945, %v1314
    %v1571 = vmul.f32 %v950, %v1315
    %v1572 = vmul.f32 %v945, %v1316
    %v1573 = vmul.f32 %v950, %v1317
    %v1574 = vmul.f32 %v1318, %v1318
    %v1575 = vmul.f32 %v1319, %v1319
    %v1576 = vmul.f32 %v1320, %v1320
    %v1577 = vmul.f32 %v1321, %v1321
    %v1578 = vmul.f32 %v1322, %v1322
    %v1579 = vmul.f32 %v1323, %v1323
    %v1580 = vmul.f32 %v1324, %v1324
    %v1581 = vmul.f32 %v1325, %v1325
    %v1582 = vmul.f32 %v1326, %v1326
    %v1583 = vmul.f32 %v1327, %v1327
    %v1584 = vmul.f32 %v1328, %v1328
    %v1585 = vmul.f32 %v1329, %v1329
    %v1586 = vmul.f32 %v1330, %v1330
    %v1587 = vmul.f32 %v1331, %v1331
    %v1588 = vmul.f32 %v1332, %v1332
    %v1589 = vmul.f32 %v1333, %v1333
    %v1590 = vmul.f32 %v1334, %v1334
    %v1591 = vmul.f32 %v1335, %v1335
    %v1592 = vmul.f32 %v1336, %v1336
    %v1593 = vmul.f32 %v1337, %v1337
    %v1594 = vmul.f32 %v1338, %v1338
    %v1595 = vmul.f32 %v1339, %v1339
    %v1596 = vmul.f32 %v1340, %v1340
    %v1597 = vmul.f32 %v1341, %v1341
    %v1598 = vmul.f32 %v1342, %v1342
    %v1599 = vmul.f32 %v1343, %v1343
    %v1600 = vmul.f32 %v1344, %v1344
    %v1601 = vmul.f32 %v1345, %v1345
    %v1602 = vmul.f32 %v1346, %v1346
    %v1603 = vmul.f32 %v1347, %v1347
    %v1604 = vmul.f32 %v1348, %v1348
    %v1605 = vmul.f32 %v1349, %v1349
    %v1606 = vmul.f32 %v1350, %v1350
    %v1607 = vmul.f32 %v1351, %v1351
    %v1608 = vmul.f32 %v1352, %v1352
    %v1609 = vmul.f32 %v1353, %v1353
    %v1610 = vmul.f32 %v1354, %v1354
    %v1611 = vmul.f32 %v1355, %v1355
    %v1612 = vmul.f32 %v1356, %v1356
    %v1613 = vmul.f32 %v1357, %v1357
    %v1614 = vmul.f32 %v1358, %v1358
    %v1615 = vmul.f32 %v1359, %v1359
    %v1616 = vmul.f32 %v1360, %v1360
    %v1617 = vmul.f32 %v1361, %v1361
    %v1618 = vmul.f32 %v1362, %v1362
    %v1619 = vmul.f32 %v1363, %v1363
    %v1620 = vmul.f32 %v1364, %v1364
    %v1621 = vmul.f32 %v1365, %v1365
    %v1622 = vmul.f32 %v1366, %v1366
    %v1623 = vmul.f32 %v1367, %v1367
    %v1624 = vmul.f32 %v1368, %v1368
    %v1625 = vmul.f32 %v1369, %v1369
    %v1626 = vmul.f32 %v1370, %v1370
    %v1627 = vmul.f32 %v1371, %v1371
    %v1628 = vmul.f32 %v1372, %v1372
    %v1629 = vmul.f32 %v1373, %v1373
    %v1630 = vmul.f32 %v1374, %v1374
    %v1631 = vmul.f32 %v1375, %v1375
    %v1632 = vmul.f32 %v1376, %v1376
    %v1633 = vmul.f32 %v1377, %v1377
    %v1634 = vmul.f32 %v1378, %v1378
    %v1635 = vmul.f32 %v1379, %v1379
    %v1636 = vmul.f32 %v1380, %v1380
    %v1637 = vmul.f32 %v1381, %v1381
    %v1638 = vmul.f32 %v1382, %v1382
    %v1639 = vmul.f32 %v1383, %v1383
    %v1640 = vmul.f32 %v1384, %v1384
    %v1641 = vmul.f32 %v1385, %v1385
    %v1642 = vmul.f32 %v1386, %v1386
    %v1643 = vmul.f32 %v1387, %v1387
    %v1644 = vmul.f32 %v1388, %v1388
    %v1645 = vmul.f32 %v1389, %v1389
    %v1646 = vmul.f32 %v1390, %v1390
    %v1647 = vmul.f32 %v1391, %v1391
    %v1648 = vmul.f32 %v1392, %v1392
    %v1649 = vmul.f32 %v1393, %v1393
    %v1650 = vmul.f32 %v1394, %v1394
    %v1651 = vmul.f32 %v1395, %v1395
    %v1652 = vmul.f32 %v1396, %v1396
    %v1653 = vmul.f32 %v1397, %v1397
    %v1654 = vmul.f32 %v1398, %v1398
    %v1655 = vmul.f32 %v1399, %v1399
    %v1656 = vmul.f32 %v1400, %v1400
    %v1657 = vmul.f32 %v1401, %v1401
    %v1658 = vmul.f32 %v1402, %v1402
    %v1659 = vmul.f32 %v1403, %v1403
    %v1660 = vmul.f32 %v1404, %v1404
    %v1661 = vmul.f32 %v1405, %v1405
    %v1662 = vmul.f32 %v1406, %v1406
    %v1663 = vmul.f32 %v1407, %v1407
    %v1664 = vmul.f32 %v1408, %v1408
    %v1665 = vmul.f32 %v1409, %v1409
    %v1666 = vmul.f32 %v1410, %v1410
    %v1667 = vmul.f32 %v1411, %v1411
    %v1668 = vmul.f32 %v1412, %v1412
    %v1669 = vmul.f32 %v1413, %v1413
    %v1670 = vmul.f32 %v1414, %v1414
    %v1671 = vmul.f32 %v1415, %v1415
    %v1672 = vmul.f32 %v1416, %v1416
    %v1673 = vmul.f32 %v1417, %v1417
    %v1674 = vmul.f32 %v1418, %v1418
    %v1675 = vmul.f32 %v1419, %v1419
    %v1676 = vmul.f32 %v1420, %v1420
    %v1677 = vmul.f32 %v1421, %v1421
    %v1678 = vmul.f32 %v1422, %v1422
    %v1679 = vmul.f32 %v1423, %v1423
    %v1680 = vmul.f32 %v1424, %v1424
    %v1681 = vmul.f32 %v1425, %v1425
    %v1682 = vmul.f32 %v1426, %v1426
    %v1683 = vmul.f32 %v1427, %v1427
    %v1684 = vmul.f32 %v1428, %v1428
    %v1685 = vmul.f32 %v1429, %v1429
    %v1686 = vmul.f32 %v1430, %v1430
    %v1687 = vmul.f32 %v1431, %v1431
    %v1688 = vmul.f32 %v1432, %v1432
    %v1689 = vmul.f32 %v1433, %v1433
    %v1690 = vmul.f32 %v1434, %v1434
    %v1691 = vmul.f32 %v1435, %v1435
    %v1692 = vmul.f32 %v1436, %v1436
    %v1693 = vmul.f32 %v1437, %v1437
    %v1694 = vmul.f32 %v1438, %v1438
    %v1695 = vmul.f32 %v1439, %v1439
    %v1696 = vmul.f32 %v1440, %v1440
    %v1697 = vmul.f32 %v1441, %v1441
    %v1698 = vmul.f32 %v1442, %v1442
    %v1699 = vmul.f32 %v1443, %v1443
    %v1700 = vmul.f32 %v1444, %v1444
    %v1701 = vmul.f32 %v1445, %v1445
    %v1702 = vsel %vm159, %v1574, 0.0
    %1703 = vadd.xlane.f32.xlu0 %v1702
    %v1704 = vpop.xlane.xlu0 %1703
    %v1705 = vsel %vm159, %v1575, 0.0
    %1706 = vadd.xlane.f32.xlu0 %v1705
    %v1707 = vpop.xlane.xlu0 %1706
    %v1708 = vsel %vm159, %v1576, 0.0
    %1709 = vadd.xlane.f32.xlu0 %v1708
    %v1710 = vpop.xlane.xlu0 %1709
    %v1711 = vsel %vm159, %v1577, 0.0
    %1712 = vadd.xlane.f32.xlu0 %v1711
    %v1713 = vpop.xlane.xlu0 %1712
    %v1714 = vsel %vm159, %v1578, 0.0
    %1715 = vadd.xlane.f32.xlu0 %v1714
    %v1716 = vpop.xlane.xlu0 %1715
    %v1717 = vsel %vm159, %v1579, 0.0
    %1718 = vadd.xlane.f32.xlu0 %v1717
    %v1719 = vpop.xlane.xlu0 %1718
    %v1720 = vsel %vm159, %v1580, 0.0
    %1721 = vadd.xlane.f32.xlu0 %v1720
    %v1722 = vpop.xlane.xlu0 %1721
    %v1723 = vsel %vm159, %v1581, 0.0
    %1724 = vadd.xlane.f32.xlu0 %v1723
    %v1725 = vpop.xlane.xlu0 %1724
    %v1726 = vsel %vm159, %v1582, 0.0
    %1727 = vadd.xlane.f32.xlu0 %v1726
    %v1728 = vpop.xlane.xlu0 %1727
    %v1729 = vsel %vm159, %v1583, 0.0
    %1730 = vadd.xlane.f32.xlu0 %v1729
    %v1731 = vpop.xlane.xlu0 %1730
    %v1732 = vsel %vm159, %v1584, 0.0
    %1733 = vadd.xlane.f32.xlu0 %v1732
    %v1734 = vpop.xlane.xlu0 %1733
    %v1735 = vsel %vm159, %v1585, 0.0
    %1736 = vadd.xlane.f32.xlu0 %v1735
    %v1737 = vpop.xlane.xlu0 %1736
    %v1738 = vsel %vm159, %v1586, 0.0
    %1739 = vadd.xlane.f32.xlu0 %v1738
    %v1740 = vpop.xlane.xlu0 %1739
    %v1741 = vsel %vm159, %v1587, 0.0
    %1742 = vadd.xlane.f32.xlu0 %v1741
    %v1743 = vpop.xlane.xlu0 %1742
    %v1744 = vsel %vm159, %v1588, 0.0
    %1745 = vadd.xlane.f32.xlu0 %v1744
    %v1746 = vpop.xlane.xlu0 %1745
    %v1747 = vsel %vm159, %v1589, 0.0
    %1748 = vadd.xlane.f32.xlu0 %v1747
    %v1749 = vpop.xlane.xlu0 %1748
    %v1750 = vsel %vm159, %v1590, 0.0
    %1751 = vadd.xlane.f32.xlu0 %v1750
    %v1752 = vpop.xlane.xlu0 %1751
    %v1753 = vsel %vm159, %v1591, 0.0
    %1754 = vadd.xlane.f32.xlu0 %v1753
    %v1755 = vpop.xlane.xlu0 %1754
    %v1756 = vsel %vm159, %v1592, 0.0
    %1757 = vadd.xlane.f32.xlu0 %v1756
    %v1758 = vpop.xlane.xlu0 %1757
    %v1759 = vsel %vm159, %v1593, 0.0
    %1760 = vadd.xlane.f32.xlu0 %v1759
    %v1761 = vpop.xlane.xlu0 %1760
    %v1762 = vsel %vm159, %v1594, 0.0
    %1763 = vadd.xlane.f32.xlu0 %v1762
    %v1764 = vpop.xlane.xlu0 %1763
    %v1765 = vsel %vm159, %v1595, 0.0
    %1766 = vadd.xlane.f32.xlu0 %v1765
    %v1767 = vpop.xlane.xlu0 %1766
    %v1768 = vsel %vm159, %v1596, 0.0
    %1769 = vadd.xlane.f32.xlu0 %v1768
    %v1770 = vpop.xlane.xlu0 %1769
    %v1771 = vsel %vm159, %v1597, 0.0
    %1772 = vadd.xlane.f32.xlu0 %v1771
    %v1773 = vpop.xlane.xlu0 %1772
    %v1774 = vsel %vm159, %v1598, 0.0
    %1775 = vadd.xlane.f32.xlu0 %v1774
    %v1776 = vpop.xlane.xlu0 %1775
    %v1777 = vsel %vm159, %v1599, 0.0
    %1778 = vadd.xlane.f32.xlu0 %v1777
    %v1779 = vpop.xlane.xlu0 %1778
    %v1780 = vsel %vm159, %v1600, 0.0
    %1781 = vadd.xlane.f32.xlu0 %v1780
    %v1782 = vpop.xlane.xlu0 %1781
    %v1783 = vsel %vm159, %v1601, 0.0
    %1784 = vadd.xlane.f32.xlu0 %v1783
    %v1785 = vpop.xlane.xlu0 %1784
    %v1786 = vsel %vm159, %v1602, 0.0
    %1787 = vadd.xlane.f32.xlu0 %v1786
    %v1788 = vpop.xlane.xlu0 %1787
    %v1789 = vsel %vm159, %v1603, 0.0
    %1790 = vadd.xlane.f32.xlu0 %v1789
    %v1791 = vpop.xlane.xlu0 %1790
    %v1792 = vsel %vm159, %v1604, 0.0
    %1793 = vadd.xlane.f32.xlu0 %v1792
    %v1794 = vpop.xlane.xlu0 %1793
    %v1795 = vsel %vm159, %v1605, 0.0
    %1796 = vadd.xlane.f32.xlu0 %v1795
    %v1797 = vpop.xlane.xlu0 %1796
    %v1798 = vsel %vm159, %v1606, 0.0
    %1799 = vadd.xlane.f32.xlu0 %v1798
    %v1800 = vpop.xlane.xlu0 %1799
    %v1801 = vsel %vm159, %v1607, 0.0
    %1802 = vadd.xlane.f32.xlu0 %v1801
    %v1803 = vpop.xlane.xlu0 %1802
    %v1804 = vsel %vm159, %v1608, 0.0
    %1805 = vadd.xlane.f32.xlu0 %v1804
    %v1806 = vpop.xlane.xlu0 %1805
    %v1807 = vsel %vm159, %v1609, 0.0
    %1808 = vadd.xlane.f32.xlu0 %v1807
    %v1809 = vpop.xlane.xlu0 %1808
    %v1810 = vsel %vm159, %v1610, 0.0
    %1811 = vadd.xlane.f32.xlu0 %v1810
    %v1812 = vpop.xlane.xlu0 %1811
    %v1813 = vsel %vm159, %v1611, 0.0
    %1814 = vadd.xlane.f32.xlu0 %v1813
    %v1815 = vpop.xlane.xlu0 %1814
    %v1816 = vsel %vm159, %v1612, 0.0
    %1817 = vadd.xlane.f32.xlu0 %v1816
    %v1818 = vpop.xlane.xlu0 %1817
    %v1819 = vsel %vm159, %v1613, 0.0
    %1820 = vadd.xlane.f32.xlu0 %v1819
    %v1821 = vpop.xlane.xlu0 %1820
    %v1822 = vsel %vm159, %v1614, 0.0
    %1823 = vadd.xlane.f32.xlu0 %v1822
    %v1824 = vpop.xlane.xlu0 %1823
    %v1825 = vsel %vm159, %v1615, 0.0
    %1826 = vadd.xlane.f32.xlu0 %v1825
    %v1827 = vpop.xlane.xlu0 %1826
    %v1828 = vsel %vm159, %v1616, 0.0
    %1829 = vadd.xlane.f32.xlu0 %v1828
    %v1830 = vpop.xlane.xlu0 %1829
    %v1831 = vsel %vm159, %v1617, 0.0
    %1832 = vadd.xlane.f32.xlu0 %v1831
    %v1833 = vpop.xlane.xlu0 %1832
    %v1834 = vsel %vm159, %v1618, 0.0
    %1835 = vadd.xlane.f32.xlu0 %v1834
    %v1836 = vpop.xlane.xlu0 %1835
    %v1837 = vsel %vm159, %v1619, 0.0
    %1838 = vadd.xlane.f32.xlu0 %v1837
    %v1839 = vpop.xlane.xlu0 %1838
    %v1840 = vsel %vm159, %v1620, 0.0
    %1841 = vadd.xlane.f32.xlu0 %v1840
    %v1842 = vpop.xlane.xlu0 %1841
    %v1843 = vsel %vm159, %v1621, 0.0
    %1844 = vadd.xlane.f32.xlu0 %v1843
    %v1845 = vpop.xlane.xlu0 %1844
    %v1846 = vsel %vm159, %v1622, 0.0
    %1847 = vadd.xlane.f32.xlu0 %v1846
    %v1848 = vpop.xlane.xlu0 %1847
    %v1849 = vsel %vm159, %v1623, 0.0
    %1850 = vadd.xlane.f32.xlu0 %v1849
    %v1851 = vpop.xlane.xlu0 %1850
    %v1852 = vsel %vm159, %v1624, 0.0
    %1853 = vadd.xlane.f32.xlu0 %v1852
    %v1854 = vpop.xlane.xlu0 %1853
    %v1855 = vsel %vm159, %v1625, 0.0
    %1856 = vadd.xlane.f32.xlu0 %v1855
    %v1857 = vpop.xlane.xlu0 %1856
    %v1858 = vsel %vm159, %v1626, 0.0
    %1859 = vadd.xlane.f32.xlu0 %v1858
    %v1860 = vpop.xlane.xlu0 %1859
    %v1861 = vsel %vm159, %v1627, 0.0
    %1862 = vadd.xlane.f32.xlu0 %v1861
    %v1863 = vpop.xlane.xlu0 %1862
    %v1864 = vsel %vm159, %v1628, 0.0
    %1865 = vadd.xlane.f32.xlu0 %v1864
    %v1866 = vpop.xlane.xlu0 %1865
    %v1867 = vsel %vm159, %v1629, 0.0
    %1868 = vadd.xlane.f32.xlu0 %v1867
    %v1869 = vpop.xlane.xlu0 %1868
    %v1870 = vsel %vm159, %v1630, 0.0
    %1871 = vadd.xlane.f32.xlu0 %v1870
    %v1872 = vpop.xlane.xlu0 %1871
    %v1873 = vsel %vm159, %v1631, 0.0
    %1874 = vadd.xlane.f32.xlu0 %v1873
    %v1875 = vpop.xlane.xlu0 %1874
    %v1876 = vsel %vm159, %v1632, 0.0
    %1877 = vadd.xlane.f32.xlu0 %v1876
    %v1878 = vpop.xlane.xlu0 %1877
    %v1879 = vsel %vm159, %v1633, 0.0
    %1880 = vadd.xlane.f32.xlu0 %v1879
    %v1881 = vpop.xlane.xlu0 %1880
    %v1882 = vsel %vm159, %v1634, 0.0
    %1883 = vadd.xlane.f32.xlu0 %v1882
    %v1884 = vpop.xlane.xlu0 %1883
    %v1885 = vsel %vm159, %v1635, 0.0
    %1886 = vadd.xlane.f32.xlu0 %v1885
    %v1887 = vpop.xlane.xlu0 %1886
    %v1888 = vsel %vm159, %v1636, 0.0
    %1889 = vadd.xlane.f32.xlu0 %v1888
    %v1890 = vpop.xlane.xlu0 %1889
    %v1891 = vsel %vm159, %v1637, 0.0
    %1892 = vadd.xlane.f32.xlu0 %v1891
    %v1893 = vpop.xlane.xlu0 %1892
    %v1894 = vsel %vm159, %v1638, 0.0
    %1895 = vadd.xlane.f32.xlu0 %v1894
    %v1896 = vpop.xlane.xlu0 %1895
    %v1897 = vsel %vm159, %v1639, 0.0
    %1898 = vadd.xlane.f32.xlu0 %v1897
    %v1899 = vpop.xlane.xlu0 %1898
    %v1900 = vsel %vm159, %v1640, 0.0
    %1901 = vadd.xlane.f32.xlu0 %v1900
    %v1902 = vpop.xlane.xlu0 %1901
    %v1903 = vsel %vm159, %v1641, 0.0
    %1904 = vadd.xlane.f32.xlu0 %v1903
    %v1905 = vpop.xlane.xlu0 %1904
    %v1906 = vsel %vm159, %v1642, 0.0
    %1907 = vadd.xlane.f32.xlu0 %v1906
    %v1908 = vpop.xlane.xlu0 %1907
    %v1909 = vsel %vm159, %v1643, 0.0
    %1910 = vadd.xlane.f32.xlu0 %v1909
    %v1911 = vpop.xlane.xlu0 %1910
    %v1912 = vsel %vm159, %v1644, 0.0
    %1913 = vadd.xlane.f32.xlu0 %v1912
    %v1914 = vpop.xlane.xlu0 %1913
    %v1915 = vsel %vm159, %v1645, 0.0
    %1916 = vadd.xlane.f32.xlu0 %v1915
    %v1917 = vpop.xlane.xlu0 %1916
    %v1918 = vsel %vm159, %v1646, 0.0
    %1919 = vadd.xlane.f32.xlu0 %v1918
    %v1920 = vpop.xlane.xlu0 %1919
    %v1921 = vsel %vm159, %v1647, 0.0
    %1922 = vadd.xlane.f32.xlu0 %v1921
    %v1923 = vpop.xlane.xlu0 %1922
    %v1924 = vsel %vm159, %v1648, 0.0
    %1925 = vadd.xlane.f32.xlu0 %v1924
    %v1926 = vpop.xlane.xlu0 %1925
    %v1927 = vsel %vm159, %v1649, 0.0
    %1928 = vadd.xlane.f32.xlu0 %v1927
    %v1929 = vpop.xlane.xlu0 %1928
    %v1930 = vsel %vm159, %v1650, 0.0
    %1931 = vadd.xlane.f32.xlu0 %v1930
    %v1932 = vpop.xlane.xlu0 %1931
    %v1933 = vsel %vm159, %v1651, 0.0
    %1934 = vadd.xlane.f32.xlu0 %v1933
    %v1935 = vpop.xlane.xlu0 %1934
    %v1936 = vsel %vm159, %v1652, 0.0
    %1937 = vadd.xlane.f32.xlu0 %v1936
    %v1938 = vpop.xlane.xlu0 %1937
    %v1939 = vsel %vm159, %v1653, 0.0
    %1940 = vadd.xlane.f32.xlu0 %v1939
    %v1941 = vpop.xlane.xlu0 %1940
    %v1942 = vsel %vm159, %v1654, 0.0
    %1943 = vadd.xlane.f32.xlu0 %v1942
    %v1944 = vpop.xlane.xlu0 %1943
    %v1945 = vsel %vm159, %v1655, 0.0
    %1946 = vadd.xlane.f32.xlu0 %v1945
    %v1947 = vpop.xlane.xlu0 %1946
    %v1948 = vsel %vm159, %v1656, 0.0
    %1949 = vadd.xlane.f32.xlu0 %v1948
    %v1950 = vpop.xlane.xlu0 %1949
    %v1951 = vsel %vm159, %v1657, 0.0
    %1952 = vadd.xlane.f32.xlu0 %v1951
    %v1953 = vpop.xlane.xlu0 %1952
    %v1954 = vsel %vm159, %v1658, 0.0
    %1955 = vadd.xlane.f32.xlu0 %v1954
    %v1956 = vpop.xlane.xlu0 %1955
    %v1957 = vsel %vm159, %v1659, 0.0
    %1958 = vadd.xlane.f32.xlu0 %v1957
    %v1959 = vpop.xlane.xlu0 %1958
    %v1960 = vsel %vm159, %v1660, 0.0
    %1961 = vadd.xlane.f32.xlu0 %v1960
    %v1962 = vpop.xlane.xlu0 %1961
    %v1963 = vsel %vm159, %v1661, 0.0
    %1964 = vadd.xlane.f32.xlu0 %v1963
    %v1965 = vpop.xlane.xlu0 %1964
    %v1966 = vsel %vm159, %v1662, 0.0
    %1967 = vadd.xlane.f32.xlu0 %v1966
    %v1968 = vpop.xlane.xlu0 %1967
    %v1969 = vsel %vm159, %v1663, 0.0
    %1970 = vadd.xlane.f32.xlu0 %v1969
    %v1971 = vpop.xlane.xlu0 %1970
    %v1972 = vsel %vm159, %v1664, 0.0
    %1973 = vadd.xlane.f32.xlu0 %v1972
    %v1974 = vpop.xlane.xlu0 %1973
    %v1975 = vsel %vm159, %v1665, 0.0
    %1976 = vadd.xlane.f32.xlu0 %v1975
    %v1977 = vpop.xlane.xlu0 %1976
    %v1978 = vsel %vm159, %v1666, 0.0
    %1979 = vadd.xlane.f32.xlu0 %v1978
    %v1980 = vpop.xlane.xlu0 %1979
    %v1981 = vsel %vm159, %v1667, 0.0
    %1982 = vadd.xlane.f32.xlu0 %v1981
    %v1983 = vpop.xlane.xlu0 %1982
    %v1984 = vsel %vm159, %v1668, 0.0
    %1985 = vadd.xlane.f32.xlu0 %v1984
    %v1986 = vpop.xlane.xlu0 %1985
    %v1987 = vsel %vm159, %v1669, 0.0
    %1988 = vadd.xlane.f32.xlu0 %v1987
    %v1989 = vpop.xlane.xlu0 %1988
    %v1990 = vsel %vm159, %v1670, 0.0
    %1991 = vadd.xlane.f32.xlu0 %v1990
    %v1992 = vpop.xlane.xlu0 %1991
    %v1993 = vsel %vm159, %v1671, 0.0
    %1994 = vadd.xlane.f32.xlu0 %v1993
    %v1995 = vpop.xlane.xlu0 %1994
    %v1996 = vsel %vm159, %v1672, 0.0
    %1997 = vadd.xlane.f32.xlu0 %v1996
    %v1998 = vpop.xlane.xlu0 %1997
    %v1999 = vsel %vm159, %v1673, 0.0
    %2000 = vadd.xlane.f32.xlu0 %v1999
    %v2001 = vpop.xlane.xlu0 %2000
    %v2002 = vsel %vm159, %v1674, 0.0
    %2003 = vadd.xlane.f32.xlu0 %v2002
    %v2004 = vpop.xlane.xlu0 %2003
    %v2005 = vsel %vm159, %v1675, 0.0
    %2006 = vadd.xlane.f32.xlu0 %v2005
    %v2007 = vpop.xlane.xlu0 %2006
    %v2008 = vsel %vm159, %v1676, 0.0
    %2009 = vadd.xlane.f32.xlu0 %v2008
    %v2010 = vpop.xlane.xlu0 %2009
    %v2011 = vsel %vm159, %v1677, 0.0
    %2012 = vadd.xlane.f32.xlu0 %v2011
    %v2013 = vpop.xlane.xlu0 %2012
    %v2014 = vsel %vm159, %v1678, 0.0
    %2015 = vadd.xlane.f32.xlu0 %v2014
    %v2016 = vpop.xlane.xlu0 %2015
    %v2017 = vsel %vm159, %v1679, 0.0
    %2018 = vadd.xlane.f32.xlu0 %v2017
    %v2019 = vpop.xlane.xlu0 %2018
    %v2020 = vsel %vm159, %v1680, 0.0
    %2021 = vadd.xlane.f32.xlu0 %v2020
    %v2022 = vpop.xlane.xlu0 %2021
    %v2023 = vsel %vm159, %v1681, 0.0
    %2024 = vadd.xlane.f32.xlu0 %v2023
    %v2025 = vpop.xlane.xlu0 %2024
    %v2026 = vsel %vm159, %v1682, 0.0
    %2027 = vadd.xlane.f32.xlu0 %v2026
    %v2028 = vpop.xlane.xlu0 %2027
    %v2029 = vsel %vm159, %v1683, 0.0
    %2030 = vadd.xlane.f32.xlu0 %v2029
    %v2031 = vpop.xlane.xlu0 %2030
    %v2032 = vsel %vm159, %v1684, 0.0
    %2033 = vadd.xlane.f32.xlu0 %v2032
    %v2034 = vpop.xlane.xlu0 %2033
    %v2035 = vsel %vm159, %v1685, 0.0
    %2036 = vadd.xlane.f32.xlu0 %v2035
    %v2037 = vpop.xlane.xlu0 %2036
    %v2038 = vsel %vm159, %v1686, 0.0
    %2039 = vadd.xlane.f32.xlu0 %v2038
    %v2040 = vpop.xlane.xlu0 %2039
    %v2041 = vsel %vm159, %v1687, 0.0
    %2042 = vadd.xlane.f32.xlu0 %v2041
    %v2043 = vpop.xlane.xlu0 %2042
    %v2044 = vsel %vm159, %v1688, 0.0
    %2045 = vadd.xlane.f32.xlu0 %v2044
    %v2046 = vpop.xlane.xlu0 %2045
    %v2047 = vsel %vm159, %v1689, 0.0
    %2048 = vadd.xlane.f32.xlu0 %v2047
    %v2049 = vpop.xlane.xlu0 %2048
    %v2050 = vsel %vm159, %v1690, 0.0
    %2051 = vadd.xlane.f32.xlu0 %v2050
    %v2052 = vpop.xlane.xlu0 %2051
    %v2053 = vsel %vm159, %v1691, 0.0
    %2054 = vadd.xlane.f32.xlu0 %v2053
    %v2055 = vpop.xlane.xlu0 %2054
    %v2056 = vsel %vm159, %v1692, 0.0
    %2057 = vadd.xlane.f32.xlu0 %v2056
    %v2058 = vpop.xlane.xlu0 %2057
    %v2059 = vsel %vm159, %v1693, 0.0
    %2060 = vadd.xlane.f32.xlu0 %v2059
    %v2061 = vpop.xlane.xlu0 %2060
    %v2062 = vsel %vm159, %v1694, 0.0
    %2063 = vadd.xlane.f32.xlu0 %v2062
    %v2064 = vpop.xlane.xlu0 %2063
    %v2065 = vsel %vm159, %v1695, 0.0
    %2066 = vadd.xlane.f32.xlu0 %v2065
    %v2067 = vpop.xlane.xlu0 %2066
    %v2068 = vsel %vm159, %v1696, 0.0
    %2069 = vadd.xlane.f32.xlu0 %v2068
    %v2070 = vpop.xlane.xlu0 %2069
    %v2071 = vsel %vm159, %v1697, 0.0
    %2072 = vadd.xlane.f32.xlu0 %v2071
    %v2073 = vpop.xlane.xlu0 %2072
    %v2074 = vsel %vm159, %v1698, 0.0
    %2075 = vadd.xlane.f32.xlu0 %v2074
    %v2076 = vpop.xlane.xlu0 %2075
    %v2077 = vsel %vm159, %v1699, 0.0
    %2078 = vadd.xlane.f32.xlu0 %v2077
    %v2079 = vpop.xlane.xlu0 %2078
    %v2080 = vsel %vm159, %v1700, 0.0
    %2081 = vadd.xlane.f32.xlu0 %v2080
    %v2082 = vpop.xlane.xlu0 %2081
    %v2083 = vsel %vm159, %v1701, 0.0
    %2084 = vadd.xlane.f32.xlu0 %v2083
    %v2085 = vpop.xlane.xlu0 %2084
    %v2087 = vsel %vm159, %v323, 0
    %v2090 = vsel %vm159, %v328, 0
    %v2093 = vsel %vm159, %v1318, 0
    %v2096 = vsel %vm159, %v1319, 0
    %v2099 = vsel %vm159, %v1320, 0
    %v2102 = vsel %vm159, %v1321, 0
    %v2105 = vsel %vm159, %v1322, 0
    %v2108 = vsel %vm159, %v1323, 0
    %v2111 = vsel %vm159, %v1324, 0
    %v2114 = vsel %vm159, %v1325, 0
    %2116 = vmatprep.subr.mxu0 0.0
    %2117 = vmatpush1.xpose.msra.mxu0 0.0
    %2118 = vmatprep.subr.mxu0 0.0
    %2119 = vmatpush1.xpose.msra.mxu0 0.0
    %2120 = vmatprep.subr.mxu0 0.0
    %2121 = vmatpush1.xpose.msra.mxu0 0.0
    %2122 = vmatprep.subr.mxu0 0.0
    %2123 = vmatpush1.xpose.msra.mxu0 0.0
    %2124 = vmatprep.subr.mxu0 0.0
    %2125 = vmatpush1.xpose.msra.mxu0 0.0
    %2126 = vmatprep.subr.mxu0 0.0
    %2127 = vmatpush1.xpose.msra.mxu0 0.0
    %2128 = vmatprep.subr.mxu0 0.0
    %2129 = vmatpush1.xpose.msra.mxu0 0.0
    %2130 = vmatprep.subr.mxu0 0.0
    %2131 = vmatpush1.xpose.msra.mxu0 0.0
    %2132 = vmatprep.subr.mxu0 0.0
    %2133 = vmatpush1.xpose.msra.mxu0 %v2114
    %2134 = vmatprep.subr.mxu0 0.0
    %2135 = vmatpush1.xpose.msra.mxu0 %v2111
    %2136 = vmatprep.subr.mxu0 0.0
    %2137 = vmatpush1.xpose.msra.mxu0 %v2108
    %2138 = vmatprep.subr.mxu0 0.0
    %2139 = vmatpush1.xpose.msra.mxu0 %v2105
    %2140 = vmatprep.subr.mxu0 0.0
    %2141 = vmatpush1.xpose.msra.mxu0 %v2102
    %2142 = vmatprep.subr.mxu0 0.0
    %2143 = vmatpush1.xpose.msra.mxu0 %v2099
    %2144 = vmatprep.subr.mxu0 0.0
    %2145 = vmatpush1.xpose.msra.mxu0 %v2096
    %2146 = vmatprep.subr.mxu0 0.0
    %2147 = vmatpush1.xpose.msra.mxu0 %v2093
    %2148 = vmatprep.subr.mxu0 0.0
    %2149 = vmatpush2.xpose.msra.mxu0 0.0
    %2150 = vmatprep.subr.mxu0 0.0
    %2151 = vmatpush2.xpose.msra.mxu0 0.0
    %2152 = vmatprep.subr.mxu0 0.0
    %2153 = vmatpush2.xpose.msra.mxu0 0.0
    %2154 = vmatprep.subr.mxu0 0.0
    %2155 = vmatpush2.xpose.msra.mxu0 0.0
    %2156 = vmatprep.subr.mxu0 0.0
    %2157 = vmatpush2.xpose.msra.mxu0 0.0
    %2158 = vmatprep.subr.mxu0 0.0
    %2159 = vmatpush2.xpose.msra.mxu0 0.0
    %2160 = vmatprep.subr.mxu0 0.0
    %2161 = vmatpush2.xpose.msra.mxu0 0.0
    %2162 = vmatprep.subr.mxu0 0.0
    %2163 = vmatpush2.xpose.msra.mxu0 0.0
    %2164 = vmatprep.subr.mxu0 0.0
    %2165 = vmatpush2.xpose.msra.mxu0 0.0
    %2166 = vmatprep.subr.mxu0 0.0
    %2167 = vmatpush2.xpose.msra.mxu0 0.0
    %2168 = vmatprep.subr.mxu0 0.0
    %2169 = vmatpush2.xpose.msra.mxu0 0.0
    %2170 = vmatprep.subr.mxu0 0.0
    %2171 = vmatpush2.xpose.msra.mxu0 0.0
    %2172 = vmatprep.subr.mxu0 0.0
    %2173 = vmatpush2.xpose.msra.mxu0 0.0
    %2174 = vmatprep.subr.mxu0 0.0
    %2175 = vmatpush2.xpose.msra.mxu0 0.0
    %2176 = vmatprep.subr.mxu0 0.0
    %2177 = vmatpush2.xpose.msra.mxu0 0.0
    %2178 = vmatprep.subr.mxu0 0.0
    %2179 = vmatpush2.xpose.msra.mxu0 0.0
    %2180 = vmatprep.mubr.f32.mxu0 0.0
    %2181 = vmatmul.mubr.f32.gmra.mxu0 %v2087
    %v2182 = vpop.f32.mrf.mxu0
    %v2183 = vadd.f32 0.0, %v2182
    %v2184 = vpop.f32.mrf.mxu0
    %2185 = vmatprep.mubr.f32.mxu0 0.0
    %2186 = vmatmul.mubr.f32.gmra.mxu0 %v2090
    %v2187 = vpop.f32.mrf.mxu0
    %v2188 = vadd.f32 0.0, %v2187
    %v2189 = vpop.f32.mrf.mxu0
    %2190 = vdwg.mxu0
    %v2192 = vsel %vm159, %v333, 0
    %v2195 = vsel %vm159, %v338, 0
    %v2198 = vsel %vm159, %v1326, 0
    %v2201 = vsel %vm159, %v1327, 0
    %v2204 = vsel %vm159, %v1328, 0
    %v2207 = vsel %vm159, %v1329, 0
    %v2210 = vsel %vm159, %v1330, 0
    %v2213 = vsel %vm159, %v1331, 0
    %v2216 = vsel %vm159, %v1332, 0
    %v2219 = vsel %vm159, %v1333, 0
    %2221 = vmatprep.subr.mxu0 0.0
    %2222 = vmatpush1.xpose.msra.mxu0 0.0
    %2223 = vmatprep.subr.mxu0 0.0
    %2224 = vmatpush1.xpose.msra.mxu0 0.0
    %2225 = vmatprep.subr.mxu0 0.0
    %2226 = vmatpush1.xpose.msra.mxu0 0.0
    %2227 = vmatprep.subr.mxu0 0.0
    %2228 = vmatpush1.xpose.msra.mxu0 0.0
    %2229 = vmatprep.subr.mxu0 0.0
    %2230 = vmatpush1.xpose.msra.mxu0 0.0
    %2231 = vmatprep.subr.mxu0 0.0
    %2232 = vmatpush1.xpose.msra.mxu0 0.0
    %2233 = vmatprep.subr.mxu0 0.0
    %2234 = vmatpush1.xpose.msra.mxu0 0.0
    %2235 = vmatprep.subr.mxu0 0.0
    %2236 = vmatpush1.xpose.msra.mxu0 0.0
    %2237 = vmatprep.subr.mxu0 0.0
    %2238 = vmatpush1.xpose.msra.mxu0 %v2219
    %2239 = vmatprep.subr.mxu0 0.0
    %2240 = vmatpush1.xpose.msra.mxu0 %v2216
    %2241 = vmatprep.subr.mxu0 0.0
    %2242 = vmatpush1.xpose.msra.mxu0 %v2213
    %2243 = vmatprep.subr.mxu0 0.0
    %2244 = vmatpush1.xpose.msra.mxu0 %v2210
    %2245 = vmatprep.subr.mxu0 0.0
    %2246 = vmatpush1.xpose.msra.mxu0 %v2207
    %2247 = vmatprep.subr.mxu0 0.0
    %2248 = vmatpush1.xpose.msra.mxu0 %v2204
    %2249 = vmatprep.subr.mxu0 0.0
    %2250 = vmatpush1.xpose.msra.mxu0 %v2201
    %2251 = vmatprep.subr.mxu0 0.0
    %2252 = vmatpush1.xpose.msra.mxu0 %v2198
    %2253 = vmatprep.subr.mxu0 0.0
    %2254 = vmatpush2.xpose.msra.mxu0 0.0
    %2255 = vmatprep.subr.mxu0 0.0
    %2256 = vmatpush2.xpose.msra.mxu0 0.0
    %2257 = vmatprep.subr.mxu0 0.0
    %2258 = vmatpush2.xpose.msra.mxu0 0.0
    %2259 = vmatprep.subr.mxu0 0.0
    %2260 = vmatpush2.xpose.msra.mxu0 0.0
    %2261 = vmatprep.subr.mxu0 0.0
    %2262 = vmatpush2.xpose.msra.mxu0 0.0
    %2263 = vmatprep.subr.mxu0 0.0
    %2264 = vmatpush2.xpose.msra.mxu0 0.0
    %2265 = vmatprep.subr.mxu0 0.0
    %2266 = vmatpush2.xpose.msra.mxu0 0.0
    %2267 = vmatprep.subr.mxu0 0.0
    %2268 = vmatpush2.xpose.msra.mxu0 0.0
    %2269 = vmatprep.subr.mxu0 0.0
    %2270 = vmatpush2.xpose.msra.mxu0 0.0
    %2271 = vmatprep.subr.mxu0 0.0
    %2272 = vmatpush2.xpose.msra.mxu0 0.0
    %2273 = vmatprep.subr.mxu0 0.0
    %2274 = vmatpush2.xpose.msra.mxu0 0.0
    %2275 = vmatprep.subr.mxu0 0.0
    %2276 = vmatpush2.xpose.msra.mxu0 0.0
    %2277 = vmatprep.subr.mxu0 0.0
    %2278 = vmatpush2.xpose.msra.mxu0 0.0
    %2279 = vmatprep.subr.mxu0 0.0
    %2280 = vmatpush2.xpose.msra.mxu0 0.0
    %2281 = vmatprep.subr.mxu0 0.0
    %2282 = vmatpush2.xpose.msra.mxu0 0.0
    %2283 = vmatprep.subr.mxu0 0.0
    %2284 = vmatpush2.xpose.msra.mxu0 0.0
    %2285 = vmatprep.mubr.f32.mxu0 0.0
    %2286 = vmatmul.mubr.f32.gmra.mxu0 %v2192
    %v2287 = vpop.f32.mrf.mxu0
    %v2288 = vadd.f32 0.0, %v2287
    %v2289 = vpop.f32.mrf.mxu0
    %2290 = vmatprep.mubr.f32.mxu0 0.0
    %2291 = vmatmul.mubr.f32.gmra.mxu0 %v2195
    %v2292 = vpop.f32.mrf.mxu0
    %v2293 = vadd.f32 0.0, %v2292
    %v2294 = vpop.f32.mrf.mxu0
    %2295 = vdwg.mxu0
    %v2297 = vsel %vm159, %v343, 0
    %v2300 = vsel %vm159, %v348, 0
    %v2303 = vsel %vm159, %v1334, 0
    %v2306 = vsel %vm159, %v1335, 0
    %v2309 = vsel %vm159, %v1336, 0
    %v2312 = vsel %vm159, %v1337, 0
    %v2315 = vsel %vm159, %v1338, 0
    %v2318 = vsel %vm159, %v1339, 0
    %v2321 = vsel %vm159, %v1340, 0
    %v2324 = vsel %vm159, %v1341, 0
    %2326 = vmatprep.subr.mxu0 0.0
    %2327 = vmatpush1.xpose.msra.mxu0 0.0
    %2328 = vmatprep.subr.mxu0 0.0
    %2329 = vmatpush1.xpose.msra.mxu0 0.0
    %2330 = vmatprep.subr.mxu0 0.0
    %2331 = vmatpush1.xpose.msra.mxu0 0.0
    %2332 = vmatprep.subr.mxu0 0.0
    %2333 = vmatpush1.xpose.msra.mxu0 0.0
    %2334 = vmatprep.subr.mxu0 0.0
    %2335 = vmatpush1.xpose.msra.mxu0 0.0
    %2336 = vmatprep.subr.mxu0 0.0
    %2337 = vmatpush1.xpose.msra.mxu0 0.0
    %2338 = vmatprep.subr.mxu0 0.0
    %2339 = vmatpush1.xpose.msra.mxu0 0.0
    %2340 = vmatprep.subr.mxu0 0.0
    %2341 = vmatpush1.xpose.msra.mxu0 0.0
    %2342 = vmatprep.subr.mxu0 0.0
    %2343 = vmatpush1.xpose.msra.mxu0 %v2324
    %2344 = vmatprep.subr.mxu0 0.0
    %2345 = vmatpush1.xpose.msra.mxu0 %v2321
    %2346 = vmatprep.subr.mxu0 0.0
    %2347 = vmatpush1.xpose.msra.mxu0 %v2318
    %2348 = vmatprep.subr.mxu0 0.0
    %2349 = vmatpush1.xpose.msra.mxu0 %v2315
    %2350 = vmatprep.subr.mxu0 0.0
    %2351 = vmatpush1.xpose.msra.mxu0 %v2312
    %2352 = vmatprep.subr.mxu0 0.0
    %2353 = vmatpush1.xpose.msra.mxu0 %v2309
    %2354 = vmatprep.subr.mxu0 0.0
    %2355 = vmatpush1.xpose.msra.mxu0 %v2306
    %2356 = vmatprep.subr.mxu0 0.0
    %2357 = vmatpush1.xpose.msra.mxu0 %v2303
    %2358 = vmatprep.subr.mxu0 0.0
    %2359 = vmatpush2.xpose.msra.mxu0 0.0
    %2360 = vmatprep.subr.mxu0 0.0
    %2361 = vmatpush2.xpose.msra.mxu0 0.0
    %2362 = vmatprep.subr.mxu0 0.0
    %2363 = vmatpush2.xpose.msra.mxu0 0.0
    %2364 = vmatprep.subr.mxu0 0.0
    %2365 = vmatpush2.xpose.msra.mxu0 0.0
    %2366 = vmatprep.subr.mxu0 0.0
    %2367 = vmatpush2.xpose.msra.mxu0 0.0
    %2368 = vmatprep.subr.mxu0 0.0
    %2369 = vmatpush2.xpose.msra.mxu0 0.0
    %2370 = vmatprep.subr.mxu0 0.0
    %2371 = vmatpush2.xpose.msra.mxu0 0.0
    %2372 = vmatprep.subr.mxu0 0.0
    %2373 = vmatpush2.xpose.msra.mxu0 0.0
    %2374 = vmatprep.subr.mxu0 0.0
    %2375 = vmatpush2.xpose.msra.mxu0 0.0
    %2376 = vmatprep.subr.mxu0 0.0
    %2377 = vmatpush2.xpose.msra.mxu0 0.0
    %2378 = vmatprep.subr.mxu0 0.0
    %2379 = vmatpush2.xpose.msra.mxu0 0.0
    %2380 = vmatprep.subr.mxu0 0.0
    %2381 = vmatpush2.xpose.msra.mxu0 0.0
    %2382 = vmatprep.subr.mxu0 0.0
    %2383 = vmatpush2.xpose.msra.mxu0 0.0
    %2384 = vmatprep.subr.mxu0 0.0
    %2385 = vmatpush2.xpose.msra.mxu0 0.0
    %2386 = vmatprep.subr.mxu0 0.0
    %2387 = vmatpush2.xpose.msra.mxu0 0.0
    %2388 = vmatprep.subr.mxu0 0.0
    %2389 = vmatpush2.xpose.msra.mxu0 0.0
    %2390 = vmatprep.mubr.f32.mxu0 0.0
    %2391 = vmatmul.mubr.f32.gmra.mxu0 %v2297
    %v2392 = vpop.f32.mrf.mxu0
    %v2393 = vadd.f32 0.0, %v2392
    %v2394 = vpop.f32.mrf.mxu0
    %2395 = vmatprep.mubr.f32.mxu0 0.0
    %2396 = vmatmul.mubr.f32.gmra.mxu0 %v2300
    %v2397 = vpop.f32.mrf.mxu0
    %v2398 = vadd.f32 0.0, %v2397
    %v2399 = vpop.f32.mrf.mxu0
    %2400 = vdwg.mxu0
    %v2402 = vsel %vm159, %v353, 0
    %v2405 = vsel %vm159, %v358, 0
    %v2408 = vsel %vm159, %v1342, 0
    %v2411 = vsel %vm159, %v1343, 0
    %v2414 = vsel %vm159, %v1344, 0
    %v2417 = vsel %vm159, %v1345, 0
    %v2420 = vsel %vm159, %v1346, 0
    %v2423 = vsel %vm159, %v1347, 0
    %v2426 = vsel %vm159, %v1348, 0
    %v2429 = vsel %vm159, %v1349, 0
    %2431 = vmatprep.subr.mxu0 0.0
    %2432 = vmatpush1.xpose.msra.mxu0 0.0
    %2433 = vmatprep.subr.mxu0 0.0
    %2434 = vmatpush1.xpose.msra.mxu0 0.0
    %2435 = vmatprep.subr.mxu0 0.0
    %2436 = vmatpush1.xpose.msra.mxu0 0.0
    %2437 = vmatprep.subr.mxu0 0.0
    %2438 = vmatpush1.xpose.msra.mxu0 0.0
    %2439 = vmatprep.subr.mxu0 0.0
    %2440 = vmatpush1.xpose.msra.mxu0 0.0
    %2441 = vmatprep.subr.mxu0 0.0
    %2442 = vmatpush1.xpose.msra.mxu0 0.0
    %2443 = vmatprep.subr.mxu0 0.0
    %2444 = vmatpush1.xpose.msra.mxu0 0.0
    %2445 = vmatprep.subr.mxu0 0.0
    %2446 = vmatpush1.xpose.msra.mxu0 0.0
    %2447 = vmatprep.subr.mxu0 0.0
    %2448 = vmatpush1.xpose.msra.mxu0 %v2429
    %2449 = vmatprep.subr.mxu0 0.0
    %2450 = vmatpush1.xpose.msra.mxu0 %v2426
    %2451 = vmatprep.subr.mxu0 0.0
    %2452 = vmatpush1.xpose.msra.mxu0 %v2423
    %2453 = vmatprep.subr.mxu0 0.0
    %2454 = vmatpush1.xpose.msra.mxu0 %v2420
    %2455 = vmatprep.subr.mxu0 0.0
    %2456 = vmatpush1.xpose.msra.mxu0 %v2417
    %2457 = vmatprep.subr.mxu0 0.0
    %2458 = vmatpush1.xpose.msra.mxu0 %v2414
    %2459 = vmatprep.subr.mxu0 0.0
    %2460 = vmatpush1.xpose.msra.mxu0 %v2411
    %2461 = vmatprep.subr.mxu0 0.0
    %2462 = vmatpush1.xpose.msra.mxu0 %v2408
    %2463 = vmatprep.subr.mxu0 0.0
    %2464 = vmatpush2.xpose.msra.mxu0 0.0
    %2465 = vmatprep.subr.mxu0 0.0
    %2466 = vmatpush2.xpose.msra.mxu0 0.0
    %2467 = vmatprep.subr.mxu0 0.0
    %2468 = vmatpush2.xpose.msra.mxu0 0.0
    %2469 = vmatprep.subr.mxu0 0.0
    %2470 = vmatpush2.xpose.msra.mxu0 0.0
    %2471 = vmatprep.subr.mxu0 0.0
    %2472 = vmatpush2.xpose.msra.mxu0 0.0
    %2473 = vmatprep.subr.mxu0 0.0
    %2474 = vmatpush2.xpose.msra.mxu0 0.0
    %2475 = vmatprep.subr.mxu0 0.0
    %2476 = vmatpush2.xpose.msra.mxu0 0.0
    %2477 = vmatprep.subr.mxu0 0.0
    %2478 = vmatpush2.xpose.msra.mxu0 0.0
    %2479 = vmatprep.subr.mxu0 0.0
    %2480 = vmatpush2.xpose.msra.mxu0 0.0
    %2481 = vmatprep.subr.mxu0 0.0
    %2482 = vmatpush2.xpose.msra.mxu0 0.0
    %2483 = vmatprep.subr.mxu0 0.0
    %2484 = vmatpush2.xpose.msra.mxu0 0.0
    %2485 = vmatprep.subr.mxu0 0.0
    %2486 = vmatpush2.xpose.msra.mxu0 0.0
    %2487 = vmatprep.subr.mxu0 0.0
    %2488 = vmatpush2.xpose.msra.mxu0 0.0
    %2489 = vmatprep.subr.mxu0 0.0
    %2490 = vmatpush2.xpose.msra.mxu0 0.0
    %2491 = vmatprep.subr.mxu0 0.0
    %2492 = vmatpush2.xpose.msra.mxu0 0.0
    %2493 = vmatprep.subr.mxu0 0.0
    %2494 = vmatpush2.xpose.msra.mxu0 0.0
    %2495 = vmatprep.mubr.f32.mxu0 0.0
    %2496 = vmatmul.mubr.f32.gmra.mxu0 %v2402
    %v2497 = vpop.f32.mrf.mxu0
    %v2498 = vadd.f32 0.0, %v2497
    %v2499 = vpop.f32.mrf.mxu0
    %2500 = vmatprep.mubr.f32.mxu0 0.0
    %2501 = vmatmul.mubr.f32.gmra.mxu0 %v2405
    %v2502 = vpop.f32.mrf.mxu0
    %v2503 = vadd.f32 0.0, %v2502
    %v2504 = vpop.f32.mrf.mxu0
    %2505 = vdwg.mxu0
    %v2507 = vsel %vm159, %v363, 0
    %v2510 = vsel %vm159, %v368, 0
    %v2513 = vsel %vm159, %v1350, 0
    %v2516 = vsel %vm159, %v1351, 0
    %v2519 = vsel %vm159, %v1352, 0
    %v2522 = vsel %vm159, %v1353, 0
    %v2525 = vsel %vm159, %v1354, 0
    %v2528 = vsel %vm159, %v1355, 0
    %v2531 = vsel %vm159, %v1356, 0
    %v2534 = vsel %vm159, %v1357, 0
    %2536 = vmatprep.subr.mxu0 0.0
    %2537 = vmatpush1.xpose.msra.mxu0 0.0
    %2538 = vmatprep.subr.mxu0 0.0
    %2539 = vmatpush1.xpose.msra.mxu0 0.0
    %2540 = vmatprep.subr.mxu0 0.0
    %2541 = vmatpush1.xpose.msra.mxu0 0.0
    %2542 = vmatprep.subr.mxu0 0.0
    %2543 = vmatpush1.xpose.msra.mxu0 0.0
    %2544 = vmatprep.subr.mxu0 0.0
    %2545 = vmatpush1.xpose.msra.mxu0 0.0
    %2546 = vmatprep.subr.mxu0 0.0
    %2547 = vmatpush1.xpose.msra.mxu0 0.0
    %2548 = vmatprep.subr.mxu0 0.0
    %2549 = vmatpush1.xpose.msra.mxu0 0.0
    %2550 = vmatprep.subr.mxu0 0.0
    %2551 = vmatpush1.xpose.msra.mxu0 0.0
    %2552 = vmatprep.subr.mxu0 0.0
    %2553 = vmatpush1.xpose.msra.mxu0 %v2534
    %2554 = vmatprep.subr.mxu0 0.0
    %2555 = vmatpush1.xpose.msra.mxu0 %v2531
    %2556 = vmatprep.subr.mxu0 0.0
    %2557 = vmatpush1.xpose.msra.mxu0 %v2528
    %2558 = vmatprep.subr.mxu0 0.0
    %2559 = vmatpush1.xpose.msra.mxu0 %v2525
    %2560 = vmatprep.subr.mxu0 0.0
    %2561 = vmatpush1.xpose.msra.mxu0 %v2522
    %2562 = vmatprep.subr.mxu0 0.0
    %2563 = vmatpush1.xpose.msra.mxu0 %v2519
    %2564 = vmatprep.subr.mxu0 0.0
    %2565 = vmatpush1.xpose.msra.mxu0 %v2516
    %2566 = vmatprep.subr.mxu0 0.0
    %2567 = vmatpush1.xpose.msra.mxu0 %v2513
    %2568 = vmatprep.subr.mxu0 0.0
    %2569 = vmatpush2.xpose.msra.mxu0 0.0
    %2570 = vmatprep.subr.mxu0 0.0
    %2571 = vmatpush2.xpose.msra.mxu0 0.0
    %2572 = vmatprep.subr.mxu0 0.0
    %2573 = vmatpush2.xpose.msra.mxu0 0.0
    %2574 = vmatprep.subr.mxu0 0.0
    %2575 = vmatpush2.xpose.msra.mxu0 0.0
    %2576 = vmatprep.subr.mxu0 0.0
    %2577 = vmatpush2.xpose.msra.mxu0 0.0
    %2578 = vmatprep.subr.mxu0 0.0
    %2579 = vmatpush2.xpose.msra.mxu0 0.0
    %2580 = vmatprep.subr.mxu0 0.0
    %2581 = vmatpush2.xpose.msra.mxu0 0.0
    %2582 = vmatprep.subr.mxu0 0.0
    %2583 = vmatpush2.xpose.msra.mxu0 0.0
    %2584 = vmatprep.subr.mxu0 0.0
    %2585 = vmatpush2.xpose.msra.mxu0 0.0
    %2586 = vmatprep.subr.mxu0 0.0
    %2587 = vmatpush2.xpose.msra.mxu0 0.0
    %2588 = vmatprep.subr.mxu0 0.0
    %2589 = vmatpush2.xpose.msra.mxu0 0.0
    %2590 = vmatprep.subr.mxu0 0.0
    %2591 = vmatpush2.xpose.msra.mxu0 0.0
    %2592 = vmatprep.subr.mxu0 0.0
    %2593 = vmatpush2.xpose.msra.mxu0 0.0
    %2594 = vmatprep.subr.mxu0 0.0
    %2595 = vmatpush2.xpose.msra.mxu0 0.0
    %2596 = vmatprep.subr.mxu0 0.0
    %2597 = vmatpush2.xpose.msra.mxu0 0.0
    %2598 = vmatprep.subr.mxu0 0.0
    %2599 = vmatpush2.xpose.msra.mxu0 0.0
    %2600 = vmatprep.mubr.f32.mxu0 0.0
    %2601 = vmatmul.mubr.f32.gmra.mxu0 %v2507
    %v2602 = vpop.f32.mrf.mxu0
    %v2603 = vadd.f32 0.0, %v2602
    %v2604 = vpop.f32.mrf.mxu0
    %2605 = vmatprep.mubr.f32.mxu0 0.0
    %2606 = vmatmul.mubr.f32.gmra.mxu0 %v2510
    %v2607 = vpop.f32.mrf.mxu0
    %v2608 = vadd.f32 0.0, %v2607
    %v2609 = vpop.f32.mrf.mxu0
    %2610 = vdwg.mxu0
    %v2612 = vsel %vm159, %v373, 0
    %v2615 = vsel %vm159, %v378, 0
    %v2618 = vsel %vm159, %v1358, 0
    %v2621 = vsel %vm159, %v1359, 0
    %v2624 = vsel %vm159, %v1360, 0
    %v2627 = vsel %vm159, %v1361, 0
    %v2630 = vsel %vm159, %v1362, 0
    %v2633 = vsel %vm159, %v1363, 0
    %v2636 = vsel %vm159, %v1364, 0
    %v2639 = vsel %vm159, %v1365, 0
    %2641 = vmatprep.subr.mxu0 0.0
    %2642 = vmatpush1.xpose.msra.mxu0 0.0
    %2643 = vmatprep.subr.mxu0 0.0
    %2644 = vmatpush1.xpose.msra.mxu0 0.0
    %2645 = vmatprep.subr.mxu0 0.0
    %2646 = vmatpush1.xpose.msra.mxu0 0.0
    %2647 = vmatprep.subr.mxu0 0.0
    %2648 = vmatpush1.xpose.msra.mxu0 0.0
    %2649 = vmatprep.subr.mxu0 0.0
    %2650 = vmatpush1.xpose.msra.mxu0 0.0
    %2651 = vmatprep.subr.mxu0 0.0
    %2652 = vmatpush1.xpose.msra.mxu0 0.0
    %2653 = vmatprep.subr.mxu0 0.0
    %2654 = vmatpush1.xpose.msra.mxu0 0.0
    %2655 = vmatprep.subr.mxu0 0.0
    %2656 = vmatpush1.xpose.msra.mxu0 0.0
    %2657 = vmatprep.subr.mxu0 0.0
    %2658 = vmatpush1.xpose.msra.mxu0 %v2639
    %2659 = vmatprep.subr.mxu0 0.0
    %2660 = vmatpush1.xpose.msra.mxu0 %v2636
    %2661 = vmatprep.subr.mxu0 0.0
    %2662 = vmatpush1.xpose.msra.mxu0 %v2633
    %2663 = vmatprep.subr.mxu0 0.0
    %2664 = vmatpush1.xpose.msra.mxu0 %v2630
    %2665 = vmatprep.subr.mxu0 0.0
    %2666 = vmatpush1.xpose.msra.mxu0 %v2627
    %2667 = vmatprep.subr.mxu0 0.0
    %2668 = vmatpush1.xpose.msra.mxu0 %v2624
    %2669 = vmatprep.subr.mxu0 0.0
    %2670 = vmatpush1.xpose.msra.mxu0 %v2621
    %2671 = vmatprep.subr.mxu0 0.0
    %2672 = vmatpush1.xpose.msra.mxu0 %v2618
    %2673 = vmatprep.subr.mxu0 0.0
    %2674 = vmatpush2.xpose.msra.mxu0 0.0
    %2675 = vmatprep.subr.mxu0 0.0
    %2676 = vmatpush2.xpose.msra.mxu0 0.0
    %2677 = vmatprep.subr.mxu0 0.0
    %2678 = vmatpush2.xpose.msra.mxu0 0.0
    %2679 = vmatprep.subr.mxu0 0.0
    %2680 = vmatpush2.xpose.msra.mxu0 0.0
    %2681 = vmatprep.subr.mxu0 0.0
    %2682 = vmatpush2.xpose.msra.mxu0 0.0
    %2683 = vmatprep.subr.mxu0 0.0
    %2684 = vmatpush2.xpose.msra.mxu0 0.0
    %2685 = vmatprep.subr.mxu0 0.0
    %2686 = vmatpush2.xpose.msra.mxu0 0.0
    %2687 = vmatprep.subr.mxu0 0.0
    %2688 = vmatpush2.xpose.msra.mxu0 0.0
    %2689 = vmatprep.subr.mxu0 0.0
    %2690 = vmatpush2.xpose.msra.mxu0 0.0
    %2691 = vmatprep.subr.mxu0 0.0
    %2692 = vmatpush2.xpose.msra.mxu0 0.0
    %2693 = vmatprep.subr.mxu0 0.0
    %2694 = vmatpush2.xpose.msra.mxu0 0.0
    %2695 = vmatprep.subr.mxu0 0.0
    %2696 = vmatpush2.xpose.msra.mxu0 0.0
    %2697 = vmatprep.subr.mxu0 0.0
    %2698 = vmatpush2.xpose.msra.mxu0 0.0
    %2699 = vmatprep.subr.mxu0 0.0
    %2700 = vmatpush2.xpose.msra.mxu0 0.0
    %2701 = vmatprep.subr.mxu0 0.0
    %2702 = vmatpush2.xpose.msra.mxu0 0.0
    %2703 = vmatprep.subr.mxu0 0.0
    %2704 = vmatpush2.xpose.msra.mxu0 0.0
    %2705 = vmatprep.mubr.f32.mxu0 0.0
    %2706 = vmatmul.mubr.f32.gmra.mxu0 %v2612
    %v2707 = vpop.f32.mrf.mxu0
    %v2708 = vadd.f32 0.0, %v2707
    %v2709 = vpop.f32.mrf.mxu0
    %2710 = vmatprep.mubr.f32.mxu0 0.0
    %2711 = vmatmul.mubr.f32.gmra.mxu0 %v2615
    %v2712 = vpop.f32.mrf.mxu0
    %v2713 = vadd.f32 0.0, %v2712
    %v2714 = vpop.f32.mrf.mxu0
    %2715 = vdwg.mxu0
    %v2717 = vsel %vm159, %v383, 0
    %v2720 = vsel %vm159, %v388, 0
    %v2723 = vsel %vm159, %v1366, 0
    %v2726 = vsel %vm159, %v1367, 0
    %v2729 = vsel %vm159, %v1368, 0
    %v2732 = vsel %vm159, %v1369, 0
    %v2735 = vsel %vm159, %v1370, 0
    %v2738 = vsel %vm159, %v1371, 0
    %v2741 = vsel %vm159, %v1372, 0
    %v2744 = vsel %vm159, %v1373, 0
    %2746 = vmatprep.subr.mxu0 0.0
    %2747 = vmatpush1.xpose.msra.mxu0 0.0
    %2748 = vmatprep.subr.mxu0 0.0
    %2749 = vmatpush1.xpose.msra.mxu0 0.0
    %2750 = vmatprep.subr.mxu0 0.0
    %2751 = vmatpush1.xpose.msra.mxu0 0.0
    %2752 = vmatprep.subr.mxu0 0.0
    %2753 = vmatpush1.xpose.msra.mxu0 0.0
    %2754 = vmatprep.subr.mxu0 0.0
    %2755 = vmatpush1.xpose.msra.mxu0 0.0
    %2756 = vmatprep.subr.mxu0 0.0
    %2757 = vmatpush1.xpose.msra.mxu0 0.0
    %2758 = vmatprep.subr.mxu0 0.0
    %2759 = vmatpush1.xpose.msra.mxu0 0.0
    %2760 = vmatprep.subr.mxu0 0.0
    %2761 = vmatpush1.xpose.msra.mxu0 0.0
    %2762 = vmatprep.subr.mxu0 0.0
    %2763 = vmatpush1.xpose.msra.mxu0 %v2744
    %2764 = vmatprep.subr.mxu0 0.0
    %2765 = vmatpush1.xpose.msra.mxu0 %v2741
    %2766 = vmatprep.subr.mxu0 0.0
    %2767 = vmatpush1.xpose.msra.mxu0 %v2738
    %2768 = vmatprep.subr.mxu0 0.0
    %2769 = vmatpush1.xpose.msra.mxu0 %v2735
    %2770 = vmatprep.subr.mxu0 0.0
    %2771 = vmatpush1.xpose.msra.mxu0 %v2732
    %2772 = vmatprep.subr.mxu0 0.0
    %2773 = vmatpush1.xpose.msra.mxu0 %v2729
    %2774 = vmatprep.subr.mxu0 0.0
    %2775 = vmatpush1.xpose.msra.mxu0 %v2726
    %2776 = vmatprep.subr.mxu0 0.0
    %2777 = vmatpush1.xpose.msra.mxu0 %v2723
    %2778 = vmatprep.subr.mxu0 0.0
    %2779 = vmatpush2.xpose.msra.mxu0 0.0
    %2780 = vmatprep.subr.mxu0 0.0
    %2781 = vmatpush2.xpose.msra.mxu0 0.0
    %2782 = vmatprep.subr.mxu0 0.0
    %2783 = vmatpush2.xpose.msra.mxu0 0.0
    %2784 = vmatprep.subr.mxu0 0.0
    %2785 = vmatpush2.xpose.msra.mxu0 0.0
    %2786 = vmatprep.subr.mxu0 0.0
    %2787 = vmatpush2.xpose.msra.mxu0 0.0
    %2788 = vmatprep.subr.mxu0 0.0
    %2789 = vmatpush2.xpose.msra.mxu0 0.0
    %2790 = vmatprep.subr.mxu0 0.0
    %2791 = vmatpush2.xpose.msra.mxu0 0.0
    %2792 = vmatprep.subr.mxu0 0.0
    %2793 = vmatpush2.xpose.msra.mxu0 0.0
    %2794 = vmatprep.subr.mxu0 0.0
    %2795 = vmatpush2.xpose.msra.mxu0 0.0
    %2796 = vmatprep.subr.mxu0 0.0
    %2797 = vmatpush2.xpose.msra.mxu0 0.0
    %2798 = vmatprep.subr.mxu0 0.0
    %2799 = vmatpush2.xpose.msra.mxu0 0.0
    %2800 = vmatprep.subr.mxu0 0.0
    %2801 = vmatpush2.xpose.msra.mxu0 0.0
    %2802 = vmatprep.subr.mxu0 0.0
    %2803 = vmatpush2.xpose.msra.mxu0 0.0
    %2804 = vmatprep.subr.mxu0 0.0
    %2805 = vmatpush2.xpose.msra.mxu0 0.0
    %2806 = vmatprep.subr.mxu0 0.0
    %2807 = vmatpush2.xpose.msra.mxu0 0.0
    %2808 = vmatprep.subr.mxu0 0.0
    %2809 = vmatpush2.xpose.msra.mxu0 0.0
    %2810 = vmatprep.mubr.f32.mxu0 0.0
    %2811 = vmatmul.mubr.f32.gmra.mxu0 %v2717
    %v2812 = vpop.f32.mrf.mxu0
    %v2813 = vadd.f32 0.0, %v2812
    %v2814 = vpop.f32.mrf.mxu0
    %2815 = vmatprep.mubr.f32.mxu0 0.0
    %2816 = vmatmul.mubr.f32.gmra.mxu0 %v2720
    %v2817 = vpop.f32.mrf.mxu0
    %v2818 = vadd.f32 0.0, %v2817
    %v2819 = vpop.f32.mrf.mxu0
    %2820 = vdwg.mxu0
    %v2822 = vsel %vm159, %v393, 0
    %v2825 = vsel %vm159, %v398, 0
    %v2828 = vsel %vm159, %v1374, 0
    %v2831 = vsel %vm159, %v1375, 0
    %v2834 = vsel %vm159, %v1376, 0
    %v2837 = vsel %vm159, %v1377, 0
    %v2840 = vsel %vm159, %v1378, 0
    %v2843 = vsel %vm159, %v1379, 0
    %v2846 = vsel %vm159, %v1380, 0
    %v2849 = vsel %vm159, %v1381, 0
    %2851 = vmatprep.subr.mxu0 0.0
    %2852 = vmatpush1.xpose.msra.mxu0 0.0
    %2853 = vmatprep.subr.mxu0 0.0
    %2854 = vmatpush1.xpose.msra.mxu0 0.0
    %2855 = vmatprep.subr.mxu0 0.0
    %2856 = vmatpush1.xpose.msra.mxu0 0.0
    %2857 = vmatprep.subr.mxu0 0.0
    %2858 = vmatpush1.xpose.msra.mxu0 0.0
    %2859 = vmatprep.subr.mxu0 0.0
    %2860 = vmatpush1.xpose.msra.mxu0 0.0
    %2861 = vmatprep.subr.mxu0 0.0
    %2862 = vmatpush1.xpose.msra.mxu0 0.0
    %2863 = vmatprep.subr.mxu0 0.0
    %2864 = vmatpush1.xpose.msra.mxu0 0.0
    %2865 = vmatprep.subr.mxu0 0.0
    %2866 = vmatpush1.xpose.msra.mxu0 0.0
    %2867 = vmatprep.subr.mxu0 0.0
    %2868 = vmatpush1.xpose.msra.mxu0 %v2849
    %2869 = vmatprep.subr.mxu0 0.0
    %2870 = vmatpush1.xpose.msra.mxu0 %v2846
    %2871 = vmatprep.subr.mxu0 0.0
    %2872 = vmatpush1.xpose.msra.mxu0 %v2843
    %2873 = vmatprep.subr.mxu0 0.0
    %2874 = vmatpush1.xpose.msra.mxu0 %v2840
    %2875 = vmatprep.subr.mxu0 0.0
    %2876 = vmatpush1.xpose.msra.mxu0 %v2837
    %2877 = vmatprep.subr.mxu0 0.0
    %2878 = vmatpush1.xpose.msra.mxu0 %v2834
    %2879 = vmatprep.subr.mxu0 0.0
    %2880 = vmatpush1.xpose.msra.mxu0 %v2831
    %2881 = vmatprep.subr.mxu0 0.0
    %2882 = vmatpush1.xpose.msra.mxu0 %v2828
    %2883 = vmatprep.subr.mxu0 0.0
    %2884 = vmatpush2.xpose.msra.mxu0 0.0
    %2885 = vmatprep.subr.mxu0 0.0
    %2886 = vmatpush2.xpose.msra.mxu0 0.0
    %2887 = vmatprep.subr.mxu0 0.0
    %2888 = vmatpush2.xpose.msra.mxu0 0.0
    %2889 = vmatprep.subr.mxu0 0.0
    %2890 = vmatpush2.xpose.msra.mxu0 0.0
    %2891 = vmatprep.subr.mxu0 0.0
    %2892 = vmatpush2.xpose.msra.mxu0 0.0
    %2893 = vmatprep.subr.mxu0 0.0
    %2894 = vmatpush2.xpose.msra.mxu0 0.0
    %2895 = vmatprep.subr.mxu0 0.0
    %2896 = vmatpush2.xpose.msra.mxu0 0.0
    %2897 = vmatprep.subr.mxu0 0.0
    %2898 = vmatpush2.xpose.msra.mxu0 0.0
    %2899 = vmatprep.subr.mxu0 0.0
    %2900 = vmatpush2.xpose.msra.mxu0 0.0
    %2901 = vmatprep.subr.mxu0 0.0
    %2902 = vmatpush2.xpose.msra.mxu0 0.0
    %2903 = vmatprep.subr.mxu0 0.0
    %2904 = vmatpush2.xpose.msra.mxu0 0.0
    %2905 = vmatprep.subr.mxu0 0.0
    %2906 = vmatpush2.xpose.msra.mxu0 0.0
    %2907 = vmatprep.subr.mxu0 0.0
    %2908 = vmatpush2.xpose.msra.mxu0 0.0
    %2909 = vmatprep.subr.mxu0 0.0
    %2910 = vmatpush2.xpose.msra.mxu0 0.0
    %2911 = vmatprep.subr.mxu0 0.0
    %2912 = vmatpush2.xpose.msra.mxu0 0.0
    %2913 = vmatprep.subr.mxu0 0.0
    %2914 = vmatpush2.xpose.msra.mxu0 0.0
    %2915 = vmatprep.mubr.f32.mxu0 0.0
    %2916 = vmatmul.mubr.f32.gmra.mxu0 %v2822
    %v2917 = vpop.f32.mrf.mxu0
    %v2918 = vadd.f32 0.0, %v2917
    %v2919 = vpop.f32.mrf.mxu0
    %2920 = vmatprep.mubr.f32.mxu0 0.0
    %2921 = vmatmul.mubr.f32.gmra.mxu0 %v2825
    %v2922 = vpop.f32.mrf.mxu0
    %v2923 = vadd.f32 0.0, %v2922
    %v2924 = vpop.f32.mrf.mxu0
    %2925 = vdwg.mxu0
    %v2927 = vsel %vm159, %v403, 0
    %v2930 = vsel %vm159, %v408, 0
    %v2933 = vsel %vm159, %v1382, 0
    %v2936 = vsel %vm159, %v1383, 0
    %v2939 = vsel %vm159, %v1384, 0
    %v2942 = vsel %vm159, %v1385, 0
    %v2945 = vsel %vm159, %v1386, 0
    %v2948 = vsel %vm159, %v1387, 0
    %v2951 = vsel %vm159, %v1388, 0
    %v2954 = vsel %vm159, %v1389, 0
    %2956 = vmatprep.subr.mxu0 0.0
    %2957 = vmatpush1.xpose.msra.mxu0 0.0
    %2958 = vmatprep.subr.mxu0 0.0
    %2959 = vmatpush1.xpose.msra.mxu0 0.0
    %2960 = vmatprep.subr.mxu0 0.0
    %2961 = vmatpush1.xpose.msra.mxu0 0.0
    %2962 = vmatprep.subr.mxu0 0.0
    %2963 = vmatpush1.xpose.msra.mxu0 0.0
    %2964 = vmatprep.subr.mxu0 0.0
    %2965 = vmatpush1.xpose.msra.mxu0 0.0
    %2966 = vmatprep.subr.mxu0 0.0
    %2967 = vmatpush1.xpose.msra.mxu0 0.0
    %2968 = vmatprep.subr.mxu0 0.0
    %2969 = vmatpush1.xpose.msra.mxu0 0.0
    %2970 = vmatprep.subr.mxu0 0.0
    %2971 = vmatpush1.xpose.msra.mxu0 0.0
    %2972 = vmatprep.subr.mxu0 0.0
    %2973 = vmatpush1.xpose.msra.mxu0 %v2954
    %2974 = vmatprep.subr.mxu0 0.0
    %2975 = vmatpush1.xpose.msra.mxu0 %v2951
    %2976 = vmatprep.subr.mxu0 0.0
    %2977 = vmatpush1.xpose.msra.mxu0 %v2948
    %2978 = vmatprep.subr.mxu0 0.0
    %2979 = vmatpush1.xpose.msra.mxu0 %v2945
    %2980 = vmatprep.subr.mxu0 0.0
    %2981 = vmatpush1.xpose.msra.mxu0 %v2942
    %2982 = vmatprep.subr.mxu0 0.0
    %2983 = vmatpush1.xpose.msra.mxu0 %v2939
    %2984 = vmatprep.subr.mxu0 0.0
    %2985 = vmatpush1.xpose.msra.mxu0 %v2936
    %2986 = vmatprep.subr.mxu0 0.0
    %2987 = vmatpush1.xpose.msra.mxu0 %v2933
    %2988 = vmatprep.subr.mxu0 0.0
    %2989 = vmatpush2.xpose.msra.mxu0 0.0
    %2990 = vmatprep.subr.mxu0 0.0
    %2991 = vmatpush2.xpose.msra.mxu0 0.0
    %2992 = vmatprep.subr.mxu0 0.0
    %2993 = vmatpush2.xpose.msra.mxu0 0.0
    %2994 = vmatprep.subr.mxu0 0.0
    %2995 = vmatpush2.xpose.msra.mxu0 0.0
    %2996 = vmatprep.subr.mxu0 0.0
    %2997 = vmatpush2.xpose.msra.mxu0 0.0
    %2998 = vmatprep.subr.mxu0 0.0
    %2999 = vmatpush2.xpose.msra.mxu0 0.0
    %3000 = vmatprep.subr.mxu0 0.0
    %3001 = vmatpush2.xpose.msra.mxu0 0.0
    %3002 = vmatprep.subr.mxu0 0.0
    %3003 = vmatpush2.xpose.msra.mxu0 0.0
    %3004 = vmatprep.subr.mxu0 0.0
    %3005 = vmatpush2.xpose.msra.mxu0 0.0
    %3006 = vmatprep.subr.mxu0 0.0
    %3007 = vmatpush2.xpose.msra.mxu0 0.0
    %3008 = vmatprep.subr.mxu0 0.0
    %3009 = vmatpush2.xpose.msra.mxu0 0.0
    %3010 = vmatprep.subr.mxu0 0.0
    %3011 = vmatpush2.xpose.msra.mxu0 0.0
    %3012 = vmatprep.subr.mxu0 0.0
    %3013 = vmatpush2.xpose.msra.mxu0 0.0
    %3014 = vmatprep.subr.mxu0 0.0
    %3015 = vmatpush2.xpose.msra.mxu0 0.0
    %3016 = vmatprep.subr.mxu0 0.0
    %3017 = vmatpush2.xpose.msra.mxu0 0.0
    %3018 = vmatprep.subr.mxu0 0.0
    %3019 = vmatpush2.xpose.msra.mxu0 0.0
    %3020 = vmatprep.mubr.f32.mxu0 0.0
    %3021 = vmatmul.mubr.f32.gmra.mxu0 %v2927
    %v3022 = vpop.f32.mrf.mxu0
    %v3023 = vadd.f32 0.0, %v3022
    %v3024 = vpop.f32.mrf.mxu0
    %3025 = vmatprep.mubr.f32.mxu0 0.0
    %3026 = vmatmul.mubr.f32.gmra.mxu0 %v2930
    %v3027 = vpop.f32.mrf.mxu0
    %v3028 = vadd.f32 0.0, %v3027
    %v3029 = vpop.f32.mrf.mxu0
    %3030 = vdwg.mxu0
    %v3032 = vsel %vm159, %v413, 0
    %v3035 = vsel %vm159, %v418, 0
    %v3038 = vsel %vm159, %v1390, 0
    %v3041 = vsel %vm159, %v1391, 0
    %v3044 = vsel %vm159, %v1392, 0
    %v3047 = vsel %vm159, %v1393, 0
    %v3050 = vsel %vm159, %v1394, 0
    %v3053 = vsel %vm159, %v1395, 0
    %v3056 = vsel %vm159, %v1396, 0
    %v3059 = vsel %vm159, %v1397, 0
    %3061 = vmatprep.subr.mxu0 0.0
    %3062 = vmatpush1.xpose.msra.mxu0 0.0
    %3063 = vmatprep.subr.mxu0 0.0
    %3064 = vmatpush1.xpose.msra.mxu0 0.0
    %3065 = vmatprep.subr.mxu0 0.0
    %3066 = vmatpush1.xpose.msra.mxu0 0.0
    %3067 = vmatprep.subr.mxu0 0.0
    %3068 = vmatpush1.xpose.msra.mxu0 0.0
    %3069 = vmatprep.subr.mxu0 0.0
    %3070 = vmatpush1.xpose.msra.mxu0 0.0
    %3071 = vmatprep.subr.mxu0 0.0
    %3072 = vmatpush1.xpose.msra.mxu0 0.0
    %3073 = vmatprep.subr.mxu0 0.0
    %3074 = vmatpush1.xpose.msra.mxu0 0.0
    %3075 = vmatprep.subr.mxu0 0.0
    %3076 = vmatpush1.xpose.msra.mxu0 0.0
    %3077 = vmatprep.subr.mxu0 0.0
    %3078 = vmatpush1.xpose.msra.mxu0 %v3059
    %3079 = vmatprep.subr.mxu0 0.0
    %3080 = vmatpush1.xpose.msra.mxu0 %v3056
    %3081 = vmatprep.subr.mxu0 0.0
    %3082 = vmatpush1.xpose.msra.mxu0 %v3053
    %3083 = vmatprep.subr.mxu0 0.0
    %3084 = vmatpush1.xpose.msra.mxu0 %v3050
    %3085 = vmatprep.subr.mxu0 0.0
    %3086 = vmatpush1.xpose.msra.mxu0 %v3047
    %3087 = vmatprep.subr.mxu0 0.0
    %3088 = vmatpush1.xpose.msra.mxu0 %v3044
    %3089 = vmatprep.subr.mxu0 0.0
    %3090 = vmatpush1.xpose.msra.mxu0 %v3041
    %3091 = vmatprep.subr.mxu0 0.0
    %3092 = vmatpush1.xpose.msra.mxu0 %v3038
    %3093 = vmatprep.subr.mxu0 0.0
    %3094 = vmatpush2.xpose.msra.mxu0 0.0
    %3095 = vmatprep.subr.mxu0 0.0
    %3096 = vmatpush2.xpose.msra.mxu0 0.0
    %3097 = vmatprep.subr.mxu0 0.0
    %3098 = vmatpush2.xpose.msra.mxu0 0.0
    %3099 = vmatprep.subr.mxu0 0.0
    %3100 = vmatpush2.xpose.msra.mxu0 0.0
    %3101 = vmatprep.subr.mxu0 0.0
    %3102 = vmatpush2.xpose.msra.mxu0 0.0
    %3103 = vmatprep.subr.mxu0 0.0
    %3104 = vmatpush2.xpose.msra.mxu0 0.0
    %3105 = vmatprep.subr.mxu0 0.0
    %3106 = vmatpush2.xpose.msra.mxu0 0.0
    %3107 = vmatprep.subr.mxu0 0.0
    %3108 = vmatpush2.xpose.msra.mxu0 0.0
    %3109 = vmatprep.subr.mxu0 0.0
    %3110 = vmatpush2.xpose.msra.mxu0 0.0
    %3111 = vmatprep.subr.mxu0 0.0
    %3112 = vmatpush2.xpose.msra.mxu0 0.0
    %3113 = vmatprep.subr.mxu0 0.0
    %3114 = vmatpush2.xpose.msra.mxu0 0.0
    %3115 = vmatprep.subr.mxu0 0.0
    %3116 = vmatpush2.xpose.msra.mxu0 0.0
    %3117 = vmatprep.subr.mxu0 0.0
    %3118 = vmatpush2.xpose.msra.mxu0 0.0
    %3119 = vmatprep.subr.mxu0 0.0
    %3120 = vmatpush2.xpose.msra.mxu0 0.0
    %3121 = vmatprep.subr.mxu0 0.0
    %3122 = vmatpush2.xpose.msra.mxu0 0.0
    %3123 = vmatprep.subr.mxu0 0.0
    %3124 = vmatpush2.xpose.msra.mxu0 0.0
    %3125 = vmatprep.mubr.f32.mxu0 0.0
    %3126 = vmatmul.mubr.f32.gmra.mxu0 %v3032
    %v3127 = vpop.f32.mrf.mxu0
    %v3128 = vadd.f32 0.0, %v3127
    %v3129 = vpop.f32.mrf.mxu0
    %3130 = vmatprep.mubr.f32.mxu0 0.0
    %3131 = vmatmul.mubr.f32.gmra.mxu0 %v3035
    %v3132 = vpop.f32.mrf.mxu0
    %v3133 = vadd.f32 0.0, %v3132
    %v3134 = vpop.f32.mrf.mxu0
    %3135 = vdwg.mxu0
    %v3137 = vsel %vm159, %v423, 0
    %v3140 = vsel %vm159, %v428, 0
    %v3143 = vsel %vm159, %v1398, 0
    %v3146 = vsel %vm159, %v1399, 0
    %v3149 = vsel %vm159, %v1400, 0
    %v3152 = vsel %vm159, %v1401, 0
    %v3155 = vsel %vm159, %v1402, 0
    %v3158 = vsel %vm159, %v1403, 0
    %v3161 = vsel %vm159, %v1404, 0
    %v3164 = vsel %vm159, %v1405, 0
    %3166 = vmatprep.subr.mxu0 0.0
    %3167 = vmatpush1.xpose.msra.mxu0 0.0
    %3168 = vmatprep.subr.mxu0 0.0
    %3169 = vmatpush1.xpose.msra.mxu0 0.0
    %3170 = vmatprep.subr.mxu0 0.0
    %3171 = vmatpush1.xpose.msra.mxu0 0.0
    %3172 = vmatprep.subr.mxu0 0.0
    %3173 = vmatpush1.xpose.msra.mxu0 0.0
    %3174 = vmatprep.subr.mxu0 0.0
    %3175 = vmatpush1.xpose.msra.mxu0 0.0
    %3176 = vmatprep.subr.mxu0 0.0
    %3177 = vmatpush1.xpose.msra.mxu0 0.0
    %3178 = vmatprep.subr.mxu0 0.0
    %3179 = vmatpush1.xpose.msra.mxu0 0.0
    %3180 = vmatprep.subr.mxu0 0.0
    %3181 = vmatpush1.xpose.msra.mxu0 0.0
    %3182 = vmatprep.subr.mxu0 0.0
    %3183 = vmatpush1.xpose.msra.mxu0 %v3164
    %3184 = vmatprep.subr.mxu0 0.0
    %3185 = vmatpush1.xpose.msra.mxu0 %v3161
    %3186 = vmatprep.subr.mxu0 0.0
    %3187 = vmatpush1.xpose.msra.mxu0 %v3158
    %3188 = vmatprep.subr.mxu0 0.0
    %3189 = vmatpush1.xpose.msra.mxu0 %v3155
    %3190 = vmatprep.subr.mxu0 0.0
    %3191 = vmatpush1.xpose.msra.mxu0 %v3152
    %3192 = vmatprep.subr.mxu0 0.0
    %3193 = vmatpush1.xpose.msra.mxu0 %v3149
    %3194 = vmatprep.subr.mxu0 0.0
    %3195 = vmatpush1.xpose.msra.mxu0 %v3146
    %3196 = vmatprep.subr.mxu0 0.0
    %3197 = vmatpush1.xpose.msra.mxu0 %v3143
    %3198 = vmatprep.subr.mxu0 0.0
    %3199 = vmatpush2.xpose.msra.mxu0 0.0
    %3200 = vmatprep.subr.mxu0 0.0
    %3201 = vmatpush2.xpose.msra.mxu0 0.0
    %3202 = vmatprep.subr.mxu0 0.0
    %3203 = vmatpush2.xpose.msra.mxu0 0.0
    %3204 = vmatprep.subr.mxu0 0.0
    %3205 = vmatpush2.xpose.msra.mxu0 0.0
    %3206 = vmatprep.subr.mxu0 0.0
    %3207 = vmatpush2.xpose.msra.mxu0 0.0
    %3208 = vmatprep.subr.mxu0 0.0
    %3209 = vmatpush2.xpose.msra.mxu0 0.0
    %3210 = vmatprep.subr.mxu0 0.0
    %3211 = vmatpush2.xpose.msra.mxu0 0.0
    %3212 = vmatprep.subr.mxu0 0.0
    %3213 = vmatpush2.xpose.msra.mxu0 0.0
    %3214 = vmatprep.subr.mxu0 0.0
    %3215 = vmatpush2.xpose.msra.mxu0 0.0
    %3216 = vmatprep.subr.mxu0 0.0
    %3217 = vmatpush2.xpose.msra.mxu0 0.0
    %3218 = vmatprep.subr.mxu0 0.0
    %3219 = vmatpush2.xpose.msra.mxu0 0.0
    %3220 = vmatprep.subr.mxu0 0.0
    %3221 = vmatpush2.xpose.msra.mxu0 0.0
    %3222 = vmatprep.subr.mxu0 0.0
    %3223 = vmatpush2.xpose.msra.mxu0 0.0
    %3224 = vmatprep.subr.mxu0 0.0
    %3225 = vmatpush2.xpose.msra.mxu0 0.0
    %3226 = vmatprep.subr.mxu0 0.0
    %3227 = vmatpush2.xpose.msra.mxu0 0.0
    %3228 = vmatprep.subr.mxu0 0.0
    %3229 = vmatpush2.xpose.msra.mxu0 0.0
    %3230 = vmatprep.mubr.f32.mxu0 0.0
    %3231 = vmatmul.mubr.f32.gmra.mxu0 %v3137
    %v3232 = vpop.f32.mrf.mxu0
    %v3233 = vadd.f32 0.0, %v3232
    %v3234 = vpop.f32.mrf.mxu0
    %3235 = vmatprep.mubr.f32.mxu0 0.0
    %3236 = vmatmul.mubr.f32.gmra.mxu0 %v3140
    %v3237 = vpop.f32.mrf.mxu0
    %v3238 = vadd.f32 0.0, %v3237
    %v3239 = vpop.f32.mrf.mxu0
    %3240 = vdwg.mxu0
    %v3242 = vsel %vm159, %v433, 0
    %v3245 = vsel %vm159, %v438, 0
    %v3248 = vsel %vm159, %v1406, 0
    %v3251 = vsel %vm159, %v1407, 0
    %v3254 = vsel %vm159, %v1408, 0
    %v3257 = vsel %vm159, %v1409, 0
    %v3260 = vsel %vm159, %v1410, 0
    %v3263 = vsel %vm159, %v1411, 0
    %v3266 = vsel %vm159, %v1412, 0
    %v3269 = vsel %vm159, %v1413, 0
    %3271 = vmatprep.subr.mxu0 0.0
    %3272 = vmatpush1.xpose.msra.mxu0 0.0
    %3273 = vmatprep.subr.mxu0 0.0
    %3274 = vmatpush1.xpose.msra.mxu0 0.0
    %3275 = vmatprep.subr.mxu0 0.0
    %3276 = vmatpush1.xpose.msra.mxu0 0.0
    %3277 = vmatprep.subr.mxu0 0.0
    %3278 = vmatpush1.xpose.msra.mxu0 0.0
    %3279 = vmatprep.subr.mxu0 0.0
    %3280 = vmatpush1.xpose.msra.mxu0 0.0
    %3281 = vmatprep.subr.mxu0 0.0
    %3282 = vmatpush1.xpose.msra.mxu0 0.0
    %3283 = vmatprep.subr.mxu0 0.0
    %3284 = vmatpush1.xpose.msra.mxu0 0.0
    %3285 = vmatprep.subr.mxu0 0.0
    %3286 = vmatpush1.xpose.msra.mxu0 0.0
    %3287 = vmatprep.subr.mxu0 0.0
    %3288 = vmatpush1.xpose.msra.mxu0 %v3269
    %3289 = vmatprep.subr.mxu0 0.0
    %3290 = vmatpush1.xpose.msra.mxu0 %v3266
    %3291 = vmatprep.subr.mxu0 0.0
    %3292 = vmatpush1.xpose.msra.mxu0 %v3263
    %3293 = vmatprep.subr.mxu0 0.0
    %3294 = vmatpush1.xpose.msra.mxu0 %v3260
    %3295 = vmatprep.subr.mxu0 0.0
    %3296 = vmatpush1.xpose.msra.mxu0 %v3257
    %3297 = vmatprep.subr.mxu0 0.0
    %3298 = vmatpush1.xpose.msra.mxu0 %v3254
    %3299 = vmatprep.subr.mxu0 0.0
    %3300 = vmatpush1.xpose.msra.mxu0 %v3251
    %3301 = vmatprep.subr.mxu0 0.0
    %3302 = vmatpush1.xpose.msra.mxu0 %v3248
    %3303 = vmatprep.subr.mxu0 0.0
    %3304 = vmatpush2.xpose.msra.mxu0 0.0
    %3305 = vmatprep.subr.mxu0 0.0
    %3306 = vmatpush2.xpose.msra.mxu0 0.0
    %3307 = vmatprep.subr.mxu0 0.0
    %3308 = vmatpush2.xpose.msra.mxu0 0.0
    %3309 = vmatprep.subr.mxu0 0.0
    %3310 = vmatpush2.xpose.msra.mxu0 0.0
    %3311 = vmatprep.subr.mxu0 0.0
    %3312 = vmatpush2.xpose.msra.mxu0 0.0
    %3313 = vmatprep.subr.mxu0 0.0
    %3314 = vmatpush2.xpose.msra.mxu0 0.0
    %3315 = vmatprep.subr.mxu0 0.0
    %3316 = vmatpush2.xpose.msra.mxu0 0.0
    %3317 = vmatprep.subr.mxu0 0.0
    %3318 = vmatpush2.xpose.msra.mxu0 0.0
    %3319 = vmatprep.subr.mxu0 0.0
    %3320 = vmatpush2.xpose.msra.mxu0 0.0
    %3321 = vmatprep.subr.mxu0 0.0
    %3322 = vmatpush2.xpose.msra.mxu0 0.0
    %3323 = vmatprep.subr.mxu0 0.0
    %3324 = vmatpush2.xpose.msra.mxu0 0.0
    %3325 = vmatprep.subr.mxu0 0.0
    %3326 = vmatpush2.xpose.msra.mxu0 0.0
    %3327 = vmatprep.subr.mxu0 0.0
    %3328 = vmatpush2.xpose.msra.mxu0 0.0
    %3329 = vmatprep.subr.mxu0 0.0
    %3330 = vmatpush2.xpose.msra.mxu0 0.0
    %3331 = vmatprep.subr.mxu0 0.0
    %3332 = vmatpush2.xpose.msra.mxu0 0.0
    %3333 = vmatprep.subr.mxu0 0.0
    %3334 = vmatpush2.xpose.msra.mxu0 0.0
    %3335 = vmatprep.mubr.f32.mxu0 0.0
    %3336 = vmatmul.mubr.f32.gmra.mxu0 %v3242
    %v3337 = vpop.f32.mrf.mxu0
    %v3338 = vadd.f32 0.0, %v3337
    %v3339 = vpop.f32.mrf.mxu0
    %3340 = vmatprep.mubr.f32.mxu0 0.0
    %3341 = vmatmul.mubr.f32.gmra.mxu0 %v3245
    %v3342 = vpop.f32.mrf.mxu0
    %v3343 = vadd.f32 0.0, %v3342
    %v3344 = vpop.f32.mrf.mxu0
    %3345 = vdwg.mxu0
    %v3347 = vsel %vm159, %v443, 0
    %v3350 = vsel %vm159, %v448, 0
    %v3353 = vsel %vm159, %v1414, 0
    %v3356 = vsel %vm159, %v1415, 0
    %v3359 = vsel %vm159, %v1416, 0
    %v3362 = vsel %vm159, %v1417, 0
    %v3365 = vsel %vm159, %v1418, 0
    %v3368 = vsel %vm159, %v1419, 0
    %v3371 = vsel %vm159, %v1420, 0
    %v3374 = vsel %vm159, %v1421, 0
    %3376 = vmatprep.subr.mxu0 0.0
    %3377 = vmatpush1.xpose.msra.mxu0 0.0
    %3378 = vmatprep.subr.mxu0 0.0
    %3379 = vmatpush1.xpose.msra.mxu0 0.0
    %3380 = vmatprep.subr.mxu0 0.0
    %3381 = vmatpush1.xpose.msra.mxu0 0.0
    %3382 = vmatprep.subr.mxu0 0.0
    %3383 = vmatpush1.xpose.msra.mxu0 0.0
    %3384 = vmatprep.subr.mxu0 0.0
    %3385 = vmatpush1.xpose.msra.mxu0 0.0
    %3386 = vmatprep.subr.mxu0 0.0
    %3387 = vmatpush1.xpose.msra.mxu0 0.0
    %3388 = vmatprep.subr.mxu0 0.0
    %3389 = vmatpush1.xpose.msra.mxu0 0.0
    %3390 = vmatprep.subr.mxu0 0.0
    %3391 = vmatpush1.xpose.msra.mxu0 0.0
    %3392 = vmatprep.subr.mxu0 0.0
    %3393 = vmatpush1.xpose.msra.mxu0 %v3374
    %3394 = vmatprep.subr.mxu0 0.0
    %3395 = vmatpush1.xpose.msra.mxu0 %v3371
    %3396 = vmatprep.subr.mxu0 0.0
    %3397 = vmatpush1.xpose.msra.mxu0 %v3368
    %3398 = vmatprep.subr.mxu0 0.0
    %3399 = vmatpush1.xpose.msra.mxu0 %v3365
    %3400 = vmatprep.subr.mxu0 0.0
    %3401 = vmatpush1.xpose.msra.mxu0 %v3362
    %3402 = vmatprep.subr.mxu0 0.0
    %3403 = vmatpush1.xpose.msra.mxu0 %v3359
    %3404 = vmatprep.subr.mxu0 0.0
    %3405 = vmatpush1.xpose.msra.mxu0 %v3356
    %3406 = vmatprep.subr.mxu0 0.0
    %3407 = vmatpush1.xpose.msra.mxu0 %v3353
    %3408 = vmatprep.subr.mxu0 0.0
    %3409 = vmatpush2.xpose.msra.mxu0 0.0
    %3410 = vmatprep.subr.mxu0 0.0
    %3411 = vmatpush2.xpose.msra.mxu0 0.0
    %3412 = vmatprep.subr.mxu0 0.0
    %3413 = vmatpush2.xpose.msra.mxu0 0.0
    %3414 = vmatprep.subr.mxu0 0.0
    %3415 = vmatpush2.xpose.msra.mxu0 0.0
    %3416 = vmatprep.subr.mxu0 0.0
    %3417 = vmatpush2.xpose.msra.mxu0 0.0
    %3418 = vmatprep.subr.mxu0 0.0
    %3419 = vmatpush2.xpose.msra.mxu0 0.0
    %3420 = vmatprep.subr.mxu0 0.0
    %3421 = vmatpush2.xpose.msra.mxu0 0.0
    %3422 = vmatprep.subr.mxu0 0.0
    %3423 = vmatpush2.xpose.msra.mxu0 0.0
    %3424 = vmatprep.subr.mxu0 0.0
    %3425 = vmatpush2.xpose.msra.mxu0 0.0
    %3426 = vmatprep.subr.mxu0 0.0
    %3427 = vmatpush2.xpose.msra.mxu0 0.0
    %3428 = vmatprep.subr.mxu0 0.0
    %3429 = vmatpush2.xpose.msra.mxu0 0.0
    %3430 = vmatprep.subr.mxu0 0.0
    %3431 = vmatpush2.xpose.msra.mxu0 0.0
    %3432 = vmatprep.subr.mxu0 0.0
    %3433 = vmatpush2.xpose.msra.mxu0 0.0
    %3434 = vmatprep.subr.mxu0 0.0
    %3435 = vmatpush2.xpose.msra.mxu0 0.0
    %3436 = vmatprep.subr.mxu0 0.0
    %3437 = vmatpush2.xpose.msra.mxu0 0.0
    %3438 = vmatprep.subr.mxu0 0.0
    %3439 = vmatpush2.xpose.msra.mxu0 0.0
    %3440 = vmatprep.mubr.f32.mxu0 0.0
    %3441 = vmatmul.mubr.f32.gmra.mxu0 %v3347
    %v3442 = vpop.f32.mrf.mxu0
    %v3443 = vadd.f32 0.0, %v3442
    %v3444 = vpop.f32.mrf.mxu0
    %3445 = vmatprep.mubr.f32.mxu0 0.0
    %3446 = vmatmul.mubr.f32.gmra.mxu0 %v3350
    %v3447 = vpop.f32.mrf.mxu0
    %v3448 = vadd.f32 0.0, %v3447
    %v3449 = vpop.f32.mrf.mxu0
    %3450 = vdwg.mxu0
    %v3452 = vsel %vm159, %v453, 0
    %v3455 = vsel %vm159, %v458, 0
    %v3458 = vsel %vm159, %v1422, 0
    %v3461 = vsel %vm159, %v1423, 0
    %v3464 = vsel %vm159, %v1424, 0
    %v3467 = vsel %vm159, %v1425, 0
    %v3470 = vsel %vm159, %v1426, 0
    %v3473 = vsel %vm159, %v1427, 0
    %v3476 = vsel %vm159, %v1428, 0
    %v3479 = vsel %vm159, %v1429, 0
    %3481 = vmatprep.subr.mxu0 0.0
    %3482 = vmatpush1.xpose.msra.mxu0 0.0
    %3483 = vmatprep.subr.mxu0 0.0
    %3484 = vmatpush1.xpose.msra.mxu0 0.0
    %3485 = vmatprep.subr.mxu0 0.0
    %3486 = vmatpush1.xpose.msra.mxu0 0.0
    %3487 = vmatprep.subr.mxu0 0.0
    %3488 = vmatpush1.xpose.msra.mxu0 0.0
    %3489 = vmatprep.subr.mxu0 0.0
    %3490 = vmatpush1.xpose.msra.mxu0 0.0
    %3491 = vmatprep.subr.mxu0 0.0
    %3492 = vmatpush1.xpose.msra.mxu0 0.0
    %3493 = vmatprep.subr.mxu0 0.0
    %3494 = vmatpush1.xpose.msra.mxu0 0.0
    %3495 = vmatprep.subr.mxu0 0.0
    %3496 = vmatpush1.xpose.msra.mxu0 0.0
    %3497 = vmatprep.subr.mxu0 0.0
    %3498 = vmatpush1.xpose.msra.mxu0 %v3479
    %3499 = vmatprep.subr.mxu0 0.0
    %3500 = vmatpush1.xpose.msra.mxu0 %v3476
    %3501 = vmatprep.subr.mxu0 0.0
    %3502 = vmatpush1.xpose.msra.mxu0 %v3473
    %3503 = vmatprep.subr.mxu0 0.0
    %3504 = vmatpush1.xpose.msra.mxu0 %v3470
    %3505 = vmatprep.subr.mxu0 0.0
    %3506 = vmatpush1.xpose.msra.mxu0 %v3467
    %3507 = vmatprep.subr.mxu0 0.0
    %3508 = vmatpush1.xpose.msra.mxu0 %v3464
    %3509 = vmatprep.subr.mxu0 0.0
    %3510 = vmatpush1.xpose.msra.mxu0 %v3461
    %3511 = vmatprep.subr.mxu0 0.0
    %3512 = vmatpush1.xpose.msra.mxu0 %v3458
    %3513 = vmatprep.subr.mxu0 0.0
    %3514 = vmatpush2.xpose.msra.mxu0 0.0
    %3515 = vmatprep.subr.mxu0 0.0
    %3516 = vmatpush2.xpose.msra.mxu0 0.0
    %3517 = vmatprep.subr.mxu0 0.0
    %3518 = vmatpush2.xpose.msra.mxu0 0.0
    %3519 = vmatprep.subr.mxu0 0.0
    %3520 = vmatpush2.xpose.msra.mxu0 0.0
    %3521 = vmatprep.subr.mxu0 0.0
    %3522 = vmatpush2.xpose.msra.mxu0 0.0
    %3523 = vmatprep.subr.mxu0 0.0
    %3524 = vmatpush2.xpose.msra.mxu0 0.0
    %3525 = vmatprep.subr.mxu0 0.0
    %3526 = vmatpush2.xpose.msra.mxu0 0.0
    %3527 = vmatprep.subr.mxu0 0.0
    %3528 = vmatpush2.xpose.msra.mxu0 0.0
    %3529 = vmatprep.subr.mxu0 0.0
    %3530 = vmatpush2.xpose.msra.mxu0 0.0
    %3531 = vmatprep.subr.mxu0 0.0
    %3532 = vmatpush2.xpose.msra.mxu0 0.0
    %3533 = vmatprep.subr.mxu0 0.0
    %3534 = vmatpush2.xpose.msra.mxu0 0.0
    %3535 = vmatprep.subr.mxu0 0.0
    %3536 = vmatpush2.xpose.msra.mxu0 0.0
    %3537 = vmatprep.subr.mxu0 0.0
    %3538 = vmatpush2.xpose.msra.mxu0 0.0
    %3539 = vmatprep.subr.mxu0 0.0
    %3540 = vmatpush2.xpose.msra.mxu0 0.0
    %3541 = vmatprep.subr.mxu0 0.0
    %3542 = vmatpush2.xpose.msra.mxu0 0.0
    %3543 = vmatprep.subr.mxu0 0.0
    %3544 = vmatpush2.xpose.msra.mxu0 0.0
    %3545 = vmatprep.mubr.f32.mxu0 0.0
    %3546 = vmatmul.mubr.f32.gmra.mxu0 %v3452
    %v3547 = vpop.f32.mrf.mxu0
    %v3548 = vadd.f32 0.0, %v3547
    %v3549 = vpop.f32.mrf.mxu0
    %3550 = vmatprep.mubr.f32.mxu0 0.0
    %3551 = vmatmul.mubr.f32.gmra.mxu0 %v3455
    %v3552 = vpop.f32.mrf.mxu0
    %v3553 = vadd.f32 0.0, %v3552
    %v3554 = vpop.f32.mrf.mxu0
    %3555 = vdwg.mxu0
    %v3557 = vsel %vm159, %v463, 0
    %v3560 = vsel %vm159, %v468, 0
    %v3563 = vsel %vm159, %v1430, 0
    %v3566 = vsel %vm159, %v1431, 0
    %v3569 = vsel %vm159, %v1432, 0
    %v3572 = vsel %vm159, %v1433, 0
    %v3575 = vsel %vm159, %v1434, 0
    %v3578 = vsel %vm159, %v1435, 0
    %v3581 = vsel %vm159, %v1436, 0
    %v3584 = vsel %vm159, %v1437, 0
    %3586 = vmatprep.subr.mxu0 0.0
    %3587 = vmatpush1.xpose.msra.mxu0 0.0
    %3588 = vmatprep.subr.mxu0 0.0
    %3589 = vmatpush1.xpose.msra.mxu0 0.0
    %3590 = vmatprep.subr.mxu0 0.0
    %3591 = vmatpush1.xpose.msra.mxu0 0.0
    %3592 = vmatprep.subr.mxu0 0.0
    %3593 = vmatpush1.xpose.msra.mxu0 0.0
    %3594 = vmatprep.subr.mxu0 0.0
    %3595 = vmatpush1.xpose.msra.mxu0 0.0
    %3596 = vmatprep.subr.mxu0 0.0
    %3597 = vmatpush1.xpose.msra.mxu0 0.0
    %3598 = vmatprep.subr.mxu0 0.0
    %3599 = vmatpush1.xpose.msra.mxu0 0.0
    %3600 = vmatprep.subr.mxu0 0.0
    %3601 = vmatpush1.xpose.msra.mxu0 0.0
    %3602 = vmatprep.subr.mxu0 0.0
    %3603 = vmatpush1.xpose.msra.mxu0 %v3584
    %3604 = vmatprep.subr.mxu0 0.0
    %3605 = vmatpush1.xpose.msra.mxu0 %v3581
    %3606 = vmatprep.subr.mxu0 0.0
    %3607 = vmatpush1.xpose.msra.mxu0 %v3578
    %3608 = vmatprep.subr.mxu0 0.0
    %3609 = vmatpush1.xpose.msra.mxu0 %v3575
    %3610 = vmatprep.subr.mxu0 0.0
    %3611 = vmatpush1.xpose.msra.mxu0 %v3572
    %3612 = vmatprep.subr.mxu0 0.0
    %3613 = vmatpush1.xpose.msra.mxu0 %v3569
    %3614 = vmatprep.subr.mxu0 0.0
    %3615 = vmatpush1.xpose.msra.mxu0 %v3566
    %3616 = vmatprep.subr.mxu0 0.0
    %3617 = vmatpush1.xpose.msra.mxu0 %v3563
    %3618 = vmatprep.subr.mxu0 0.0
    %3619 = vmatpush2.xpose.msra.mxu0 0.0
    %3620 = vmatprep.subr.mxu0 0.0
    %3621 = vmatpush2.xpose.msra.mxu0 0.0
    %3622 = vmatprep.subr.mxu0 0.0
    %3623 = vmatpush2.xpose.msra.mxu0 0.0
    %3624 = vmatprep.subr.mxu0 0.0
    %3625 = vmatpush2.xpose.msra.mxu0 0.0
    %3626 = vmatprep.subr.mxu0 0.0
    %3627 = vmatpush2.xpose.msra.mxu0 0.0
    %3628 = vmatprep.subr.mxu0 0.0
    %3629 = vmatpush2.xpose.msra.mxu0 0.0
    %3630 = vmatprep.subr.mxu0 0.0
    %3631 = vmatpush2.xpose.msra.mxu0 0.0
    %3632 = vmatprep.subr.mxu0 0.0
    %3633 = vmatpush2.xpose.msra.mxu0 0.0
    %3634 = vmatprep.subr.mxu0 0.0
    %3635 = vmatpush2.xpose.msra.mxu0 0.0
    %3636 = vmatprep.subr.mxu0 0.0
    %3637 = vmatpush2.xpose.msra.mxu0 0.0
    %3638 = vmatprep.subr.mxu0 0.0
    %3639 = vmatpush2.xpose.msra.mxu0 0.0
    %3640 = vmatprep.subr.mxu0 0.0
    %3641 = vmatpush2.xpose.msra.mxu0 0.0
    %3642 = vmatprep.subr.mxu0 0.0
    %3643 = vmatpush2.xpose.msra.mxu0 0.0
    %3644 = vmatprep.subr.mxu0 0.0
    %3645 = vmatpush2.xpose.msra.mxu0 0.0
    %3646 = vmatprep.subr.mxu0 0.0
    %3647 = vmatpush2.xpose.msra.mxu0 0.0
    %3648 = vmatprep.subr.mxu0 0.0
    %3649 = vmatpush2.xpose.msra.mxu0 0.0
    %3650 = vmatprep.mubr.f32.mxu0 0.0
    %3651 = vmatmul.mubr.f32.gmra.mxu0 %v3557
    %v3652 = vpop.f32.mrf.mxu0
    %v3653 = vadd.f32 0.0, %v3652
    %v3654 = vpop.f32.mrf.mxu0
    %3655 = vmatprep.mubr.f32.mxu0 0.0
    %3656 = vmatmul.mubr.f32.gmra.mxu0 %v3560
    %v3657 = vpop.f32.mrf.mxu0
    %v3658 = vadd.f32 0.0, %v3657
    %v3659 = vpop.f32.mrf.mxu0
    %3660 = vdwg.mxu0
    %v3662 = vsel %vm159, %v473, 0
    %v3665 = vsel %vm159, %v478, 0
    %v3668 = vsel %vm159, %v1438, 0
    %v3671 = vsel %vm159, %v1439, 0
    %v3674 = vsel %vm159, %v1440, 0
    %v3677 = vsel %vm159, %v1441, 0
    %v3680 = vsel %vm159, %v1442, 0
    %v3683 = vsel %vm159, %v1443, 0
    %v3686 = vsel %vm159, %v1444, 0
    %v3689 = vsel %vm159, %v1445, 0
    %3691 = vmatprep.subr.mxu0 0.0
    %3692 = vmatpush1.xpose.msra.mxu0 0.0
    %3693 = vmatprep.subr.mxu0 0.0
    %3694 = vmatpush1.xpose.msra.mxu0 0.0
    %3695 = vmatprep.subr.mxu0 0.0
    %3696 = vmatpush1.xpose.msra.mxu0 0.0
    %3697 = vmatprep.subr.mxu0 0.0
    %3698 = vmatpush1.xpose.msra.mxu0 0.0
    %3699 = vmatprep.subr.mxu0 0.0
    %3700 = vmatpush1.xpose.msra.mxu0 0.0
    %3701 = vmatprep.subr.mxu0 0.0
    %3702 = vmatpush1.xpose.msra.mxu0 0.0
    %3703 = vmatprep.subr.mxu0 0.0
    %3704 = vmatpush1.xpose.msra.mxu0 0.0
    %3705 = vmatprep.subr.mxu0 0.0
    %3706 = vmatpush1.xpose.msra.mxu0 0.0
    %3707 = vmatprep.subr.mxu0 0.0
    %3708 = vmatpush1.xpose.msra.mxu0 %v3689
    %3709 = vmatprep.subr.mxu0 0.0
    %3710 = vmatpush1.xpose.msra.mxu0 %v3686
    %3711 = vmatprep.subr.mxu0 0.0
    %3712 = vmatpush1.xpose.msra.mxu0 %v3683
    %3713 = vmatprep.subr.mxu0 0.0
    %3714 = vmatpush1.xpose.msra.mxu0 %v3680
    %3715 = vmatprep.subr.mxu0 0.0
    %3716 = vmatpush1.xpose.msra.mxu0 %v3677
    %3717 = vmatprep.subr.mxu0 0.0
    %3718 = vmatpush1.xpose.msra.mxu0 %v3674
    %3719 = vmatprep.subr.mxu0 0.0
    %3720 = vmatpush1.xpose.msra.mxu0 %v3671
    %3721 = vmatprep.subr.mxu0 0.0
    %3722 = vmatpush1.xpose.msra.mxu0 %v3668
    %3723 = vmatprep.subr.mxu0 0.0
    %3724 = vmatpush2.xpose.msra.mxu0 0.0
    %3725 = vmatprep.subr.mxu0 0.0
    %3726 = vmatpush2.xpose.msra.mxu0 0.0
    %3727 = vmatprep.subr.mxu0 0.0
    %3728 = vmatpush2.xpose.msra.mxu0 0.0
    %3729 = vmatprep.subr.mxu0 0.0
    %3730 = vmatpush2.xpose.msra.mxu0 0.0
    %3731 = vmatprep.subr.mxu0 0.0
    %3732 = vmatpush2.xpose.msra.mxu0 0.0
    %3733 = vmatprep.subr.mxu0 0.0
    %3734 = vmatpush2.xpose.msra.mxu0 0.0
    %3735 = vmatprep.subr.mxu0 0.0
    %3736 = vmatpush2.xpose.msra.mxu0 0.0
    %3737 = vmatprep.subr.mxu0 0.0
    %3738 = vmatpush2.xpose.msra.mxu0 0.0
    %3739 = vmatprep.subr.mxu0 0.0
    %3740 = vmatpush2.xpose.msra.mxu0 0.0
    %3741 = vmatprep.subr.mxu0 0.0
    %3742 = vmatpush2.xpose.msra.mxu0 0.0
    %3743 = vmatprep.subr.mxu0 0.0
    %3744 = vmatpush2.xpose.msra.mxu0 0.0
    %3745 = vmatprep.subr.mxu0 0.0
    %3746 = vmatpush2.xpose.msra.mxu0 0.0
    %3747 = vmatprep.subr.mxu0 0.0
    %3748 = vmatpush2.xpose.msra.mxu0 0.0
    %3749 = vmatprep.subr.mxu0 0.0
    %3750 = vmatpush2.xpose.msra.mxu0 0.0
    %3751 = vmatprep.subr.mxu0 0.0
    %3752 = vmatpush2.xpose.msra.mxu0 0.0
    %3753 = vmatprep.subr.mxu0 0.0
    %3754 = vmatpush2.xpose.msra.mxu0 0.0
    %3755 = vmatprep.mubr.f32.mxu0 0.0
    %3756 = vmatmul.mubr.f32.gmra.mxu0 %v3662
    %v3757 = vpop.f32.mrf.mxu0
    %v3758 = vadd.f32 0.0, %v3757
    %v3759 = vpop.f32.mrf.mxu0
    %3760 = vmatprep.mubr.f32.mxu0 0.0
    %3761 = vmatmul.mubr.f32.gmra.mxu0 %v3665
    %v3762 = vpop.f32.mrf.mxu0
    %v3763 = vadd.f32 0.0, %v3762
    %v3764 = vpop.f32.mrf.mxu0
    %3765 = vdwg.mxu0
    %v3894 = vlaneseq
    %v3895 = vand.u32 %v3894, 127
    %v3896 = vlaneseq
    %v3897 = vshrl.u32 %v3896, 7
    %v3898 = vsub.s32 %v3895, %v3897
    %v3899 = vrot.slane %v1704, %v3898
    %v3900 = vadd.s32 %v3895, 4294967288
    %v3901 = vlaneseq
    %v3902 = vshrl.u32 %v3901, 7
    %v3903 = vsub.s32 %v3900, %v3902
    %v3904 = vrot.slane %v1707, %v3903
    %vm3905 = vcmask 130112
    %v3906 = vsel %vm3905, %v3904, %v3899
    %v3907 = vadd.s32 %v3895, 4294967280
    %v3908 = vlaneseq
    %v3909 = vshrl.u32 %v3908, 7
    %v3910 = vsub.s32 %v3907, %v3909
    %v3911 = vrot.slane %v1710, %v3910
    %vm3912 = vcmask 195712
    %v3913 = vsel %vm3912, %v3911, %v3906
    %v3914 = vadd.s32 %v3895, 4294967272
    %v3915 = vlaneseq
    %v3916 = vshrl.u32 %v3915, 7
    %v3917 = vsub.s32 %v3914, %v3916
    %v3918 = vrot.slane %v1713, %v3917
    %vm3919 = vcmask 261312
    %v3920 = vsel %vm3919, %v3918, %v3913
    %v3921 = vadd.s32 %v3895, 4294967264
    %v3922 = vlaneseq
    %v3923 = vshrl.u32 %v3922, 7
    %v3924 = vsub.s32 %v3921, %v3923
    %v3925 = vrot.slane %v1716, %v3924
    %vm3926 = vcmask 326912
    %v3927 = vsel %vm3926, %v3925, %v3920
    %v3928 = vadd.s32 %v3895, 4294967256
    %v3929 = vlaneseq
    %v3930 = vshrl.u32 %v3929, 7
    %v3931 = vsub.s32 %v3928, %v3930
    %v3932 = vrot.slane %v1719, %v3931
    %vm3933 = vcmask 392512
    %v3934 = vsel %vm3933, %v3932, %v3927
    %v3935 = vadd.s32 %v3895, 4294967248
    %v3936 = vlaneseq
    %v3937 = vshrl.u32 %v3936, 7
    %v3938 = vsub.s32 %v3935, %v3937
    %v3939 = vrot.slane %v1722, %v3938
    %vm3940 = vcmask 458112
    %v3941 = vsel %vm3940, %v3939, %v3934
    %v3942 = vadd.s32 %v3895, 4294967240
    %v3943 = vlaneseq
    %v3944 = vshrl.u32 %v3943, 7
    %v3945 = vsub.s32 %v3942, %v3944
    %v3946 = vrot.slane %v1725, %v3945
    %vm3947 = vcmask 523712
    %v3948 = vsel %vm3947, %v3946, %v3941
    %v3949 = vlaneseq
    %v3950 = vshrl.u32 %v3949, 7
    %v3951 = vsub.s32 %v3895, %v3950
    %v3952 = vrot.slane %v1728, %v3951
    %v3953 = vlaneseq
    %v3954 = vshrl.u32 %v3953, 7
    %v3955 = vsub.s32 %v3900, %v3954
    %v3956 = vrot.slane %v1731, %v3955
    %v3957 = vsel %vm3905, %v3956, %v3952
    %v3958 = vlaneseq
    %v3959 = vshrl.u32 %v3958, 7
    %v3960 = vsub.s32 %v3907, %v3959
    %v3961 = vrot.slane %v1734, %v3960
    %v3962 = vsel %vm3912, %v3961, %v3957
    %v3963 = vlaneseq
    %v3964 = vshrl.u32 %v3963, 7
    %v3965 = vsub.s32 %v3914, %v3964
    %v3966 = vrot.slane %v1737, %v3965
    %v3967 = vsel %vm3919, %v3966, %v3962
    %v3968 = vlaneseq
    %v3969 = vshrl.u32 %v3968, 7
    %v3970 = vsub.s32 %v3921, %v3969
    %v3971 = vrot.slane %v1740, %v3970
    %v3972 = vsel %vm3926, %v3971, %v3967
    %v3973 = vlaneseq
    %v3974 = vshrl.u32 %v3973, 7
    %v3975 = vsub.s32 %v3928, %v3974
    %v3976 = vrot.slane %v1743, %v3975
    %v3977 = vsel %vm3933, %v3976, %v3972
    %v3978 = vlaneseq
    %v3979 = vshrl.u32 %v3978, 7
    %v3980 = vsub.s32 %v3935, %v3979
    %v3981 = vrot.slane %v1746, %v3980
    %v3982 = vsel %vm3940, %v3981, %v3977
    %v3983 = vlaneseq
    %v3984 = vshrl.u32 %v3983, 7
    %v3985 = vsub.s32 %v3942, %v3984
    %v3986 = vrot.slane %v1749, %v3985
    %v3987 = vsel %vm3947, %v3986, %v3982
    %v3988 = vlaneseq
    %v3989 = vshrl.u32 %v3988, 7
    %v3990 = vsub.s32 %v3895, %v3989
    %v3991 = vrot.slane %v1752, %v3990
    %v3992 = vlaneseq
    %v3993 = vshrl.u32 %v3992, 7
    %v3994 = vsub.s32 %v3900, %v3993
    %v3995 = vrot.slane %v1755, %v3994
    %v3996 = vsel %vm3905, %v3995, %v3991
    %v3997 = vlaneseq
    %v3998 = vshrl.u32 %v3997, 7
    %v3999 = vsub.s32 %v3907, %v3998
    %v4000 = vrot.slane %v1758, %v3999
    %v4001 = vsel %vm3912, %v4000, %v3996
    %v4002 = vlaneseq
    %v4003 = vshrl.u32 %v4002, 7
    %v4004 = vsub.s32 %v3914, %v4003
    %v4005 = vrot.slane %v1761, %v4004
    %v4006 = vsel %vm3919, %v4005, %v4001
    %v4007 = vlaneseq
    %v4008 = vshrl.u32 %v4007, 7
    %v4009 = vsub.s32 %v3921, %v4008
    %v4010 = vrot.slane %v1764, %v4009
    %v4011 = vsel %vm3926, %v4010, %v4006
    %v4012 = vlaneseq
    %v4013 = vshrl.u32 %v4012, 7
    %v4014 = vsub.s32 %v3928, %v4013
    %v4015 = vrot.slane %v1767, %v4014
    %v4016 = vsel %vm3933, %v4015, %v4011
    %v4017 = vlaneseq
    %v4018 = vshrl.u32 %v4017, 7
    %v4019 = vsub.s32 %v3935, %v4018
    %v4020 = vrot.slane %v1770, %v4019
    %v4021 = vsel %vm3940, %v4020, %v4016
    %v4022 = vlaneseq
    %v4023 = vshrl.u32 %v4022, 7
    %v4024 = vsub.s32 %v3942, %v4023
    %v4025 = vrot.slane %v1773, %v4024
    %v4026 = vsel %vm3947, %v4025, %v4021
    %v4027 = vlaneseq
    %v4028 = vshrl.u32 %v4027, 7
    %v4029 = vsub.s32 %v3895, %v4028
    %v4030 = vrot.slane %v1776, %v4029
    %v4031 = vlaneseq
    %v4032 = vshrl.u32 %v4031, 7
    %v4033 = vsub.s32 %v3900, %v4032
    %v4034 = vrot.slane %v1779, %v4033
    %v4035 = vsel %vm3905, %v4034, %v4030
    %v4036 = vlaneseq
    %v4037 = vshrl.u32 %v4036, 7
    %v4038 = vsub.s32 %v3907, %v4037
    %v4039 = vrot.slane %v1782, %v4038
    %v4040 = vsel %vm3912, %v4039, %v4035
    %v4041 = vlaneseq
    %v4042 = vshrl.u32 %v4041, 7
    %v4043 = vsub.s32 %v3914, %v4042
    %v4044 = vrot.slane %v1785, %v4043
    %v4045 = vsel %vm3919, %v4044, %v4040
    %v4046 = vlaneseq
    %v4047 = vshrl.u32 %v4046, 7
    %v4048 = vsub.s32 %v3921, %v4047
    %v4049 = vrot.slane %v1788, %v4048
    %v4050 = vsel %vm3926, %v4049, %v4045
    %v4051 = vlaneseq
    %v4052 = vshrl.u32 %v4051, 7
    %v4053 = vsub.s32 %v3928, %v4052
    %v4054 = vrot.slane %v1791, %v4053
    %v4055 = vsel %vm3933, %v4054, %v4050
    %v4056 = vlaneseq
    %v4057 = vshrl.u32 %v4056, 7
    %v4058 = vsub.s32 %v3935, %v4057
    %v4059 = vrot.slane %v1794, %v4058
    %v4060 = vsel %vm3940, %v4059, %v4055
    %v4061 = vlaneseq
    %v4062 = vshrl.u32 %v4061, 7
    %v4063 = vsub.s32 %v3942, %v4062
    %v4064 = vrot.slane %v1797, %v4063
    %v4065 = vsel %vm3947, %v4064, %v4060
    %v4066 = vlaneseq
    %v4067 = vshrl.u32 %v4066, 7
    %v4068 = vsub.s32 %v3895, %v4067
    %v4069 = vrot.slane %v1800, %v4068
    %v4070 = vlaneseq
    %v4071 = vshrl.u32 %v4070, 7
    %v4072 = vsub.s32 %v3900, %v4071
    %v4073 = vrot.slane %v1803, %v4072
    %v4074 = vsel %vm3905, %v4073, %v4069
    %v4075 = vlaneseq
    %v4076 = vshrl.u32 %v4075, 7
    %v4077 = vsub.s32 %v3907, %v4076
    %v4078 = vrot.slane %v1806, %v4077
    %v4079 = vsel %vm3912, %v4078, %v4074
    %v4080 = vlaneseq
    %v4081 = vshrl.u32 %v4080, 7
    %v4082 = vsub.s32 %v3914, %v4081
    %v4083 = vrot.slane %v1809, %v4082
    %v4084 = vsel %vm3919, %v4083, %v4079
    %v4085 = vlaneseq
    %v4086 = vshrl.u32 %v4085, 7
    %v4087 = vsub.s32 %v3921, %v4086
    %v4088 = vrot.slane %v1812, %v4087
    %v4089 = vsel %vm3926, %v4088, %v4084
    %v4090 = vlaneseq
    %v4091 = vshrl.u32 %v4090, 7
    %v4092 = vsub.s32 %v3928, %v4091
    %v4093 = vrot.slane %v1815, %v4092
    %v4094 = vsel %vm3933, %v4093, %v4089
    %v4095 = vlaneseq
    %v4096 = vshrl.u32 %v4095, 7
    %v4097 = vsub.s32 %v3935, %v4096
    %v4098 = vrot.slane %v1818, %v4097
    %v4099 = vsel %vm3940, %v4098, %v4094
    %v4100 = vlaneseq
    %v4101 = vshrl.u32 %v4100, 7
    %v4102 = vsub.s32 %v3942, %v4101
    %v4103 = vrot.slane %v1821, %v4102
    %v4104 = vsel %vm3947, %v4103, %v4099
    %v4105 = vlaneseq
    %v4106 = vshrl.u32 %v4105, 7
    %v4107 = vsub.s32 %v3895, %v4106
    %v4108 = vrot.slane %v1824, %v4107
    %v4109 = vlaneseq
    %v4110 = vshrl.u32 %v4109, 7
    %v4111 = vsub.s32 %v3900, %v4110
    %v4112 = vrot.slane %v1827, %v4111
    %v4113 = vsel %vm3905, %v4112, %v4108
    %v4114 = vlaneseq
    %v4115 = vshrl.u32 %v4114, 7
    %v4116 = vsub.s32 %v3907, %v4115
    %v4117 = vrot.slane %v1830, %v4116
    %v4118 = vsel %vm3912, %v4117, %v4113
    %v4119 = vlaneseq
    %v4120 = vshrl.u32 %v4119, 7
    %v4121 = vsub.s32 %v3914, %v4120
    %v4122 = vrot.slane %v1833, %v4121
    %v4123 = vsel %vm3919, %v4122, %v4118
    %v4124 = vlaneseq
    %v4125 = vshrl.u32 %v4124, 7
    %v4126 = vsub.s32 %v3921, %v4125
    %v4127 = vrot.slane %v1836, %v4126
    %v4128 = vsel %vm3926, %v4127, %v4123
    %v4129 = vlaneseq
    %v4130 = vshrl.u32 %v4129, 7
    %v4131 = vsub.s32 %v3928, %v4130
    %v4132 = vrot.slane %v1839, %v4131
    %v4133 = vsel %vm3933, %v4132, %v4128
    %v4134 = vlaneseq
    %v4135 = vshrl.u32 %v4134, 7
    %v4136 = vsub.s32 %v3935, %v4135
    %v4137 = vrot.slane %v1842, %v4136
    %v4138 = vsel %vm3940, %v4137, %v4133
    %v4139 = vlaneseq
    %v4140 = vshrl.u32 %v4139, 7
    %v4141 = vsub.s32 %v3942, %v4140
    %v4142 = vrot.slane %v1845, %v4141
    %v4143 = vsel %vm3947, %v4142, %v4138
    %v4144 = vlaneseq
    %v4145 = vshrl.u32 %v4144, 7
    %v4146 = vsub.s32 %v3895, %v4145
    %v4147 = vrot.slane %v1848, %v4146
    %v4148 = vlaneseq
    %v4149 = vshrl.u32 %v4148, 7
    %v4150 = vsub.s32 %v3900, %v4149
    %v4151 = vrot.slane %v1851, %v4150
    %v4152 = vsel %vm3905, %v4151, %v4147
    %v4153 = vlaneseq
    %v4154 = vshrl.u32 %v4153, 7
    %v4155 = vsub.s32 %v3907, %v4154
    %v4156 = vrot.slane %v1854, %v4155
    %v4157 = vsel %vm3912, %v4156, %v4152
    %v4158 = vlaneseq
    %v4159 = vshrl.u32 %v4158, 7
    %v4160 = vsub.s32 %v3914, %v4159
    %v4161 = vrot.slane %v1857, %v4160
    %v4162 = vsel %vm3919, %v4161, %v4157
    %v4163 = vlaneseq
    %v4164 = vshrl.u32 %v4163, 7
    %v4165 = vsub.s32 %v3921, %v4164
    %v4166 = vrot.slane %v1860, %v4165
    %v4167 = vsel %vm3926, %v4166, %v4162
    %v4168 = vlaneseq
    %v4169 = vshrl.u32 %v4168, 7
    %v4170 = vsub.s32 %v3928, %v4169
    %v4171 = vrot.slane %v1863, %v4170
    %v4172 = vsel %vm3933, %v4171, %v4167
    %v4173 = vlaneseq
    %v4174 = vshrl.u32 %v4173, 7
    %v4175 = vsub.s32 %v3935, %v4174
    %v4176 = vrot.slane %v1866, %v4175
    %v4177 = vsel %vm3940, %v4176, %v4172
    %v4178 = vlaneseq
    %v4179 = vshrl.u32 %v4178, 7
    %v4180 = vsub.s32 %v3942, %v4179
    %v4181 = vrot.slane %v1869, %v4180
    %v4182 = vsel %vm3947, %v4181, %v4177
    %v4183 = vlaneseq
    %v4184 = vshrl.u32 %v4183, 7
    %v4185 = vsub.s32 %v3895, %v4184
    %v4186 = vrot.slane %v1872, %v4185
    %v4187 = vlaneseq
    %v4188 = vshrl.u32 %v4187, 7
    %v4189 = vsub.s32 %v3900, %v4188
    %v4190 = vrot.slane %v1875, %v4189
    %v4191 = vsel %vm3905, %v4190, %v4186
    %v4192 = vlaneseq
    %v4193 = vshrl.u32 %v4192, 7
    %v4194 = vsub.s32 %v3907, %v4193
    %v4195 = vrot.slane %v1878, %v4194
    %v4196 = vsel %vm3912, %v4195, %v4191
    %v4197 = vlaneseq
    %v4198 = vshrl.u32 %v4197, 7
    %v4199 = vsub.s32 %v3914, %v4198
    %v4200 = vrot.slane %v1881, %v4199
    %v4201 = vsel %vm3919, %v4200, %v4196
    %v4202 = vlaneseq
    %v4203 = vshrl.u32 %v4202, 7
    %v4204 = vsub.s32 %v3921, %v4203
    %v4205 = vrot.slane %v1884, %v4204
    %v4206 = vsel %vm3926, %v4205, %v4201
    %v4207 = vlaneseq
    %v4208 = vshrl.u32 %v4207, 7
    %v4209 = vsub.s32 %v3928, %v4208
    %v4210 = vrot.slane %v1887, %v4209
    %v4211 = vsel %vm3933, %v4210, %v4206
    %v4212 = vlaneseq
    %v4213 = vshrl.u32 %v4212, 7
    %v4214 = vsub.s32 %v3935, %v4213
    %v4215 = vrot.slane %v1890, %v4214
    %v4216 = vsel %vm3940, %v4215, %v4211
    %v4217 = vlaneseq
    %v4218 = vshrl.u32 %v4217, 7
    %v4219 = vsub.s32 %v3942, %v4218
    %v4220 = vrot.slane %v1893, %v4219
    %v4221 = vsel %vm3947, %v4220, %v4216
    %v4222 = vlaneseq
    %v4223 = vshrl.u32 %v4222, 7
    %v4224 = vsub.s32 %v3895, %v4223
    %v4225 = vrot.slane %v1896, %v4224
    %v4226 = vlaneseq
    %v4227 = vshrl.u32 %v4226, 7
    %v4228 = vsub.s32 %v3900, %v4227
    %v4229 = vrot.slane %v1899, %v4228
    %v4230 = vsel %vm3905, %v4229, %v4225
    %v4231 = vlaneseq
    %v4232 = vshrl.u32 %v4231, 7
    %v4233 = vsub.s32 %v3907, %v4232
    %v4234 = vrot.slane %v1902, %v4233
    %v4235 = vsel %vm3912, %v4234, %v4230
    %v4236 = vlaneseq
    %v4237 = vshrl.u32 %v4236, 7
    %v4238 = vsub.s32 %v3914, %v4237
    %v4239 = vrot.slane %v1905, %v4238
    %v4240 = vsel %vm3919, %v4239, %v4235
    %v4241 = vlaneseq
    %v4242 = vshrl.u32 %v4241, 7
    %v4243 = vsub.s32 %v3921, %v4242
    %v4244 = vrot.slane %v1908, %v4243
    %v4245 = vsel %vm3926, %v4244, %v4240
    %v4246 = vlaneseq
    %v4247 = vshrl.u32 %v4246, 7
    %v4248 = vsub.s32 %v3928, %v4247
    %v4249 = vrot.slane %v1911, %v4248
    %v4250 = vsel %vm3933, %v4249, %v4245
    %v4251 = vlaneseq
    %v4252 = vshrl.u32 %v4251, 7
    %v4253 = vsub.s32 %v3935, %v4252
    %v4254 = vrot.slane %v1914, %v4253
    %v4255 = vsel %vm3940, %v4254, %v4250
    %v4256 = vlaneseq
    %v4257 = vshrl.u32 %v4256, 7
    %v4258 = vsub.s32 %v3942, %v4257
    %v4259 = vrot.slane %v1917, %v4258
    %v4260 = vsel %vm3947, %v4259, %v4255
    %v4261 = vlaneseq
    %v4262 = vshrl.u32 %v4261, 7
    %v4263 = vsub.s32 %v3895, %v4262
    %v4264 = vrot.slane %v1920, %v4263
    %v4265 = vlaneseq
    %v4266 = vshrl.u32 %v4265, 7
    %v4267 = vsub.s32 %v3900, %v4266
    %v4268 = vrot.slane %v1923, %v4267
    %v4269 = vsel %vm3905, %v4268, %v4264
    %v4270 = vlaneseq
    %v4271 = vshrl.u32 %v4270, 7
    %v4272 = vsub.s32 %v3907, %v4271
    %v4273 = vrot.slane %v1926, %v4272
    %v4274 = vsel %vm3912, %v4273, %v4269
    %v4275 = vlaneseq
    %v4276 = vshrl.u32 %v4275, 7
    %v4277 = vsub.s32 %v3914, %v4276
    %v4278 = vrot.slane %v1929, %v4277
    %v4279 = vsel %vm3919, %v4278, %v4274
    %v4280 = vlaneseq
    %v4281 = vshrl.u32 %v4280, 7
    %v4282 = vsub.s32 %v3921, %v4281
    %v4283 = vrot.slane %v1932, %v4282
    %v4284 = vsel %vm3926, %v4283, %v4279
    %v4285 = vlaneseq
    %v4286 = vshrl.u32 %v4285, 7
    %v4287 = vsub.s32 %v3928, %v4286
    %v4288 = vrot.slane %v1935, %v4287
    %v4289 = vsel %vm3933, %v4288, %v4284
    %v4290 = vlaneseq
    %v4291 = vshrl.u32 %v4290, 7
    %v4292 = vsub.s32 %v3935, %v4291
    %v4293 = vrot.slane %v1938, %v4292
    %v4294 = vsel %vm3940, %v4293, %v4289
    %v4295 = vlaneseq
    %v4296 = vshrl.u32 %v4295, 7
    %v4297 = vsub.s32 %v3942, %v4296
    %v4298 = vrot.slane %v1941, %v4297
    %v4299 = vsel %vm3947, %v4298, %v4294
    %v4300 = vlaneseq
    %v4301 = vshrl.u32 %v4300, 7
    %v4302 = vsub.s32 %v3895, %v4301
    %v4303 = vrot.slane %v1944, %v4302
    %v4304 = vlaneseq
    %v4305 = vshrl.u32 %v4304, 7
    %v4306 = vsub.s32 %v3900, %v4305
    %v4307 = vrot.slane %v1947, %v4306
    %v4308 = vsel %vm3905, %v4307, %v4303
    %v4309 = vlaneseq
    %v4310 = vshrl.u32 %v4309, 7
    %v4311 = vsub.s32 %v3907, %v4310
    %v4312 = vrot.slane %v1950, %v4311
    %v4313 = vsel %vm3912, %v4312, %v4308
    %v4314 = vlaneseq
    %v4315 = vshrl.u32 %v4314, 7
    %v4316 = vsub.s32 %v3914, %v4315
    %v4317 = vrot.slane %v1953, %v4316
    %v4318 = vsel %vm3919, %v4317, %v4313
    %v4319 = vlaneseq
    %v4320 = vshrl.u32 %v4319, 7
    %v4321 = vsub.s32 %v3921, %v4320
    %v4322 = vrot.slane %v1956, %v4321
    %v4323 = vsel %vm3926, %v4322, %v4318
    %v4324 = vlaneseq
    %v4325 = vshrl.u32 %v4324, 7
    %v4326 = vsub.s32 %v3928, %v4325
    %v4327 = vrot.slane %v1959, %v4326
    %v4328 = vsel %vm3933, %v4327, %v4323
    %v4329 = vlaneseq
    %v4330 = vshrl.u32 %v4329, 7
    %v4331 = vsub.s32 %v3935, %v4330
    %v4332 = vrot.slane %v1962, %v4331
    %v4333 = vsel %vm3940, %v4332, %v4328
    %v4334 = vlaneseq
    %v4335 = vshrl.u32 %v4334, 7
    %v4336 = vsub.s32 %v3942, %v4335
    %v4337 = vrot.slane %v1965, %v4336
    %v4338 = vsel %vm3947, %v4337, %v4333
    %v4339 = vlaneseq
    %v4340 = vshrl.u32 %v4339, 7
    %v4341 = vsub.s32 %v3895, %v4340
    %v4342 = vrot.slane %v1968, %v4341
    %v4343 = vlaneseq
    %v4344 = vshrl.u32 %v4343, 7
    %v4345 = vsub.s32 %v3900, %v4344
    %v4346 = vrot.slane %v1971, %v4345
    %v4347 = vsel %vm3905, %v4346, %v4342
    %v4348 = vlaneseq
    %v4349 = vshrl.u32 %v4348, 7
    %v4350 = vsub.s32 %v3907, %v4349
    %v4351 = vrot.slane %v1974, %v4350
    %v4352 = vsel %vm3912, %v4351, %v4347
    %v4353 = vlaneseq
    %v4354 = vshrl.u32 %v4353, 7
    %v4355 = vsub.s32 %v3914, %v4354
    %v4356 = vrot.slane %v1977, %v4355
    %v4357 = vsel %vm3919, %v4356, %v4352
    %v4358 = vlaneseq
    %v4359 = vshrl.u32 %v4358, 7
    %v4360 = vsub.s32 %v3921, %v4359
    %v4361 = vrot.slane %v1980, %v4360
    %v4362 = vsel %vm3926, %v4361, %v4357
    %v4363 = vlaneseq
    %v4364 = vshrl.u32 %v4363, 7
    %v4365 = vsub.s32 %v3928, %v4364
    %v4366 = vrot.slane %v1983, %v4365
    %v4367 = vsel %vm3933, %v4366, %v4362
    %v4368 = vlaneseq
    %v4369 = vshrl.u32 %v4368, 7
    %v4370 = vsub.s32 %v3935, %v4369
    %v4371 = vrot.slane %v1986, %v4370
    %v4372 = vsel %vm3940, %v4371, %v4367
    %v4373 = vlaneseq
    %v4374 = vshrl.u32 %v4373, 7
    %v4375 = vsub.s32 %v3942, %v4374
    %v4376 = vrot.slane %v1989, %v4375
    %v4377 = vsel %vm3947, %v4376, %v4372
    %v4378 = vlaneseq
    %v4379 = vshrl.u32 %v4378, 7
    %v4380 = vsub.s32 %v3895, %v4379
    %v4381 = vrot.slane %v1992, %v4380
    %v4382 = vlaneseq
    %v4383 = vshrl.u32 %v4382, 7
    %v4384 = vsub.s32 %v3900, %v4383
    %v4385 = vrot.slane %v1995, %v4384
    %v4386 = vsel %vm3905, %v4385, %v4381
    %v4387 = vlaneseq
    %v4388 = vshrl.u32 %v4387, 7
    %v4389 = vsub.s32 %v3907, %v4388
    %v4390 = vrot.slane %v1998, %v4389
    %v4391 = vsel %vm3912, %v4390, %v4386
    %v4392 = vlaneseq
    %v4393 = vshrl.u32 %v4392, 7
    %v4394 = vsub.s32 %v3914, %v4393
    %v4395 = vrot.slane %v2001, %v4394
    %v4396 = vsel %vm3919, %v4395, %v4391
    %v4397 = vlaneseq
    %v4398 = vshrl.u32 %v4397, 7
    %v4399 = vsub.s32 %v3921, %v4398
    %v4400 = vrot.slane %v2004, %v4399
    %v4401 = vsel %vm3926, %v4400, %v4396
    %v4402 = vlaneseq
    %v4403 = vshrl.u32 %v4402, 7
    %v4404 = vsub.s32 %v3928, %v4403
    %v4405 = vrot.slane %v2007, %v4404
    %v4406 = vsel %vm3933, %v4405, %v4401
    %v4407 = vlaneseq
    %v4408 = vshrl.u32 %v4407, 7
    %v4409 = vsub.s32 %v3935, %v4408
    %v4410 = vrot.slane %v2010, %v4409
    %v4411 = vsel %vm3940, %v4410, %v4406
    %v4412 = vlaneseq
    %v4413 = vshrl.u32 %v4412, 7
    %v4414 = vsub.s32 %v3942, %v4413
    %v4415 = vrot.slane %v2013, %v4414
    %v4416 = vsel %vm3947, %v4415, %v4411
    %v4417 = vlaneseq
    %v4418 = vshrl.u32 %v4417, 7
    %v4419 = vsub.s32 %v3895, %v4418
    %v4420 = vrot.slane %v2016, %v4419
    %v4421 = vlaneseq
    %v4422 = vshrl.u32 %v4421, 7
    %v4423 = vsub.s32 %v3900, %v4422
    %v4424 = vrot.slane %v2019, %v4423
    %v4425 = vsel %vm3905, %v4424, %v4420
    %v4426 = vlaneseq
    %v4427 = vshrl.u32 %v4426, 7
    %v4428 = vsub.s32 %v3907, %v4427
    %v4429 = vrot.slane %v2022, %v4428
    %v4430 = vsel %vm3912, %v4429, %v4425
    %v4431 = vlaneseq
    %v4432 = vshrl.u32 %v4431, 7
    %v4433 = vsub.s32 %v3914, %v4432
    %v4434 = vrot.slane %v2025, %v4433
    %v4435 = vsel %vm3919, %v4434, %v4430
    %v4436 = vlaneseq
    %v4437 = vshrl.u32 %v4436, 7
    %v4438 = vsub.s32 %v3921, %v4437
    %v4439 = vrot.slane %v2028, %v4438
    %v4440 = vsel %vm3926, %v4439, %v4435
    %v4441 = vlaneseq
    %v4442 = vshrl.u32 %v4441, 7
    %v4443 = vsub.s32 %v3928, %v4442
    %v4444 = vrot.slane %v2031, %v4443
    %v4445 = vsel %vm3933, %v4444, %v4440
    %v4446 = vlaneseq
    %v4447 = vshrl.u32 %v4446, 7
    %v4448 = vsub.s32 %v3935, %v4447
    %v4449 = vrot.slane %v2034, %v4448
    %v4450 = vsel %vm3940, %v4449, %v4445
    %v4451 = vlaneseq
    %v4452 = vshrl.u32 %v4451, 7
    %v4453 = vsub.s32 %v3942, %v4452
    %v4454 = vrot.slane %v2037, %v4453
    %v4455 = vsel %vm3947, %v4454, %v4450
    %v4456 = vlaneseq
    %v4457 = vshrl.u32 %v4456, 7
    %v4458 = vsub.s32 %v3895, %v4457
    %v4459 = vrot.slane %v2040, %v4458
    %v4460 = vlaneseq
    %v4461 = vshrl.u32 %v4460, 7
    %v4462 = vsub.s32 %v3900, %v4461
    %v4463 = vrot.slane %v2043, %v4462
    %v4464 = vsel %vm3905, %v4463, %v4459
    %v4465 = vlaneseq
    %v4466 = vshrl.u32 %v4465, 7
    %v4467 = vsub.s32 %v3907, %v4466
    %v4468 = vrot.slane %v2046, %v4467
    %v4469 = vsel %vm3912, %v4468, %v4464
    %v4470 = vlaneseq
    %v4471 = vshrl.u32 %v4470, 7
    %v4472 = vsub.s32 %v3914, %v4471
    %v4473 = vrot.slane %v2049, %v4472
    %v4474 = vsel %vm3919, %v4473, %v4469
    %v4475 = vlaneseq
    %v4476 = vshrl.u32 %v4475, 7
    %v4477 = vsub.s32 %v3921, %v4476
    %v4478 = vrot.slane %v2052, %v4477
    %v4479 = vsel %vm3926, %v4478, %v4474
    %v4480 = vlaneseq
    %v4481 = vshrl.u32 %v4480, 7
    %v4482 = vsub.s32 %v3928, %v4481
    %v4483 = vrot.slane %v2055, %v4482
    %v4484 = vsel %vm3933, %v4483, %v4479
    %v4485 = vlaneseq
    %v4486 = vshrl.u32 %v4485, 7
    %v4487 = vsub.s32 %v3935, %v4486
    %v4488 = vrot.slane %v2058, %v4487
    %v4489 = vsel %vm3940, %v4488, %v4484
    %v4490 = vlaneseq
    %v4491 = vshrl.u32 %v4490, 7
    %v4492 = vsub.s32 %v3942, %v4491
    %v4493 = vrot.slane %v2061, %v4492
    %v4494 = vsel %vm3947, %v4493, %v4489
    %v4495 = vlaneseq
    %v4496 = vshrl.u32 %v4495, 7
    %v4497 = vsub.s32 %v3895, %v4496
    %v4498 = vrot.slane %v2064, %v4497
    %v4499 = vlaneseq
    %v4500 = vshrl.u32 %v4499, 7
    %v4501 = vsub.s32 %v3900, %v4500
    %v4502 = vrot.slane %v2067, %v4501
    %v4503 = vsel %vm3905, %v4502, %v4498
    %v4504 = vlaneseq
    %v4505 = vshrl.u32 %v4504, 7
    %v4506 = vsub.s32 %v3907, %v4505
    %v4507 = vrot.slane %v2070, %v4506
    %v4508 = vsel %vm3912, %v4507, %v4503
    %v4509 = vlaneseq
    %v4510 = vshrl.u32 %v4509, 7
    %v4511 = vsub.s32 %v3914, %v4510
    %v4512 = vrot.slane %v2073, %v4511
    %v4513 = vsel %vm3919, %v4512, %v4508
    %v4514 = vlaneseq
    %v4515 = vshrl.u32 %v4514, 7
    %v4516 = vsub.s32 %v3921, %v4515
    %v4517 = vrot.slane %v2076, %v4516
    %v4518 = vsel %vm3926, %v4517, %v4513
    %v4519 = vlaneseq
    %v4520 = vshrl.u32 %v4519, 7
    %v4521 = vsub.s32 %v3928, %v4520
    %v4522 = vrot.slane %v2079, %v4521
    %v4523 = vsel %vm3933, %v4522, %v4518
    %v4524 = vlaneseq
    %v4525 = vshrl.u32 %v4524, 7
    %v4526 = vsub.s32 %v3935, %v4525
    %v4527 = vrot.slane %v2082, %v4526
    %v4528 = vsel %vm3940, %v4527, %v4523
    %v4529 = vlaneseq
    %v4530 = vshrl.u32 %v4529, 7
    %v4531 = vsub.s32 %v3942, %v4530
    %v4532 = vrot.slane %v2085, %v4531
    %v4533 = vsel %vm3947, %v4532, %v4528
    %vm4534 = vcmask 1042434
    %v4535 = vsel %vm4534, %v3948, %v3948
    %vm4536 = vcmask 1043459
    %v4537 = vsel %vm4536, %v3948, %v4535
    %vm4538 = vcmask 1044484
    %v4539 = vsel %vm4538, %v3948, %v4537
    %vm4540 = vcmask 1045509
    %v4541 = vsel %vm4540, %v3948, %v4539
    %vm4542 = vcmask 1046534
    %v4543 = vsel %vm4542, %v3948, %v4541
    %vm4544 = vcmask 1047559
    %v4545 = vsel %vm4544, %v3948, %v4543
    %v4546 = vsel %vm4534, %v3987, %v3987
    %v4547 = vsel %vm4536, %v3987, %v4546
    %v4548 = vsel %vm4538, %v3987, %v4547
    %v4549 = vsel %vm4540, %v3987, %v4548
    %v4550 = vsel %vm4542, %v3987, %v4549
    %v4551 = vsel %vm4544, %v3987, %v4550
    %v4552 = vsel %vm4534, %v4026, %v4026
    %v4553 = vsel %vm4536, %v4026, %v4552
    %v4554 = vsel %vm4538, %v4026, %v4553
    %v4555 = vsel %vm4540, %v4026, %v4554
    %v4556 = vsel %vm4542, %v4026, %v4555
    %v4557 = vsel %vm4544, %v4026, %v4556
    %v4558 = vsel %vm4534, %v4065, %v4065
    %v4559 = vsel %vm4536, %v4065, %v4558
    %v4560 = vsel %vm4538, %v4065, %v4559
    %v4561 = vsel %vm4540, %v4065, %v4560
    %v4562 = vsel %vm4542, %v4065, %v4561
    %v4563 = vsel %vm4544, %v4065, %v4562
    %v4564 = vsel %vm4534, %v4104, %v4104
    %v4565 = vsel %vm4536, %v4104, %v4564
    %v4566 = vsel %vm4538, %v4104, %v4565
    %v4567 = vsel %vm4540, %v4104, %v4566
    %v4568 = vsel %vm4542, %v4104, %v4567
    %v4569 = vsel %vm4544, %v4104, %v4568
    %v4570 = vsel %vm4534, %v4143, %v4143
    %v4571 = vsel %vm4536, %v4143, %v4570
    %v4572 = vsel %vm4538, %v4143, %v4571
    %v4573 = vsel %vm4540, %v4143, %v4572
    %v4574 = vsel %vm4542, %v4143, %v4573
    %v4575 = vsel %vm4544, %v4143, %v4574
    %v4576 = vsel %vm4534, %v4182, %v4182
    %v4577 = vsel %vm4536, %v4182, %v4576
    %v4578 = vsel %vm4538, %v4182, %v4577
    %v4579 = vsel %vm4540, %v4182, %v4578
    %v4580 = vsel %vm4542, %v4182, %v4579
    %v4581 = vsel %vm4544, %v4182, %v4580
    %v4582 = vsel %vm4534, %v4221, %v4221
    %v4583 = vsel %vm4536, %v4221, %v4582
    %v4584 = vsel %vm4538, %v4221, %v4583
    %v4585 = vsel %vm4540, %v4221, %v4584
    %v4586 = vsel %vm4542, %v4221, %v4585
    %v4587 = vsel %vm4544, %v4221, %v4586
    %v4588 = vsel %vm4534, %v4260, %v4260
    %v4589 = vsel %vm4536, %v4260, %v4588
    %v4590 = vsel %vm4538, %v4260, %v4589
    %v4591 = vsel %vm4540, %v4260, %v4590
    %v4592 = vsel %vm4542, %v4260, %v4591
    %v4593 = vsel %vm4544, %v4260, %v4592
    %v4594 = vsel %vm4534, %v4299, %v4299
    %v4595 = vsel %vm4536, %v4299, %v4594
    %v4596 = vsel %vm4538, %v4299, %v4595
    %v4597 = vsel %vm4540, %v4299, %v4596
    %v4598 = vsel %vm4542, %v4299, %v4597
    %v4599 = vsel %vm4544, %v4299, %v4598
    %v4600 = vsel %vm4534, %v4338, %v4338
    %v4601 = vsel %vm4536, %v4338, %v4600
    %v4602 = vsel %vm4538, %v4338, %v4601
    %v4603 = vsel %vm4540, %v4338, %v4602
    %v4604 = vsel %vm4542, %v4338, %v4603
    %v4605 = vsel %vm4544, %v4338, %v4604
    %v4606 = vsel %vm4534, %v4377, %v4377
    %v4607 = vsel %vm4536, %v4377, %v4606
    %v4608 = vsel %vm4538, %v4377, %v4607
    %v4609 = vsel %vm4540, %v4377, %v4608
    %v4610 = vsel %vm4542, %v4377, %v4609
    %v4611 = vsel %vm4544, %v4377, %v4610
    %v4612 = vsel %vm4534, %v4416, %v4416
    %v4613 = vsel %vm4536, %v4416, %v4612
    %v4614 = vsel %vm4538, %v4416, %v4613
    %v4615 = vsel %vm4540, %v4416, %v4614
    %v4616 = vsel %vm4542, %v4416, %v4615
    %v4617 = vsel %vm4544, %v4416, %v4616
    %v4618 = vsel %vm4534, %v4455, %v4455
    %v4619 = vsel %vm4536, %v4455, %v4618
    %v4620 = vsel %vm4538, %v4455, %v4619
    %v4621 = vsel %vm4540, %v4455, %v4620
    %v4622 = vsel %vm4542, %v4455, %v4621
    %v4623 = vsel %vm4544, %v4455, %v4622
    %v4624 = vsel %vm4534, %v4494, %v4494
    %v4625 = vsel %vm4536, %v4494, %v4624
    %v4626 = vsel %vm4538, %v4494, %v4625
    %v4627 = vsel %vm4540, %v4494, %v4626
    %v4628 = vsel %vm4542, %v4494, %v4627
    %v4629 = vsel %vm4544, %v4494, %v4628
    %v4630 = vsel %vm4534, %v4533, %v4533
    %v4631 = vsel %vm4536, %v4533, %v4630
    %v4632 = vsel %vm4538, %v4533, %v4631
    %v4633 = vsel %vm4540, %v4533, %v4632
    %v4634 = vsel %vm4542, %v4533, %v4633
    %v4635 = vsel %vm4544, %v4533, %v4634
    %v4652 = vmul.f32 %v1152, %v4545
    %v4653 = vmul.f32 %v1157, %v4545
    %v4654 = vmul.f32 %v1162, %v4551
    %v4655 = vmul.f32 %v1167, %v4551
    %v4656 = vmul.f32 %v1172, %v4557
    %v4657 = vmul.f32 %v1177, %v4557
    %v4658 = vmul.f32 %v1182, %v4563
    %v4659 = vmul.f32 %v1187, %v4563
    %v4660 = vmul.f32 %v1192, %v4569
    %v4661 = vmul.f32 %v1197, %v4569
    %v4662 = vmul.f32 %v1202, %v4575
    %v4663 = vmul.f32 %v1207, %v4575
    %v4664 = vmul.f32 %v1212, %v4581
    %v4665 = vmul.f32 %v1217, %v4581
    %v4666 = vmul.f32 %v1222, %v4587
    %v4667 = vmul.f32 %v1227, %v4587
    %v4668 = vmul.f32 %v1232, %v4593
    %v4669 = vmul.f32 %v1237, %v4593
    %v4670 = vmul.f32 %v1242, %v4599
    %v4671 = vmul.f32 %v1247, %v4599
    %v4672 = vmul.f32 %v1252, %v4605
    %v4673 = vmul.f32 %v1257, %v4605
    %v4674 = vmul.f32 %v1262, %v4611
    %v4675 = vmul.f32 %v1267, %v4611
    %v4676 = vmul.f32 %v1272, %v4617
    %v4677 = vmul.f32 %v1277, %v4617
    %v4678 = vmul.f32 %v1282, %v4623
    %v4679 = vmul.f32 %v1287, %v4623
    %v4680 = vmul.f32 %v1292, %v4629
    %v4681 = vmul.f32 %v1297, %v4629
    %v4682 = vmul.f32 %v1302, %v4635
    %v4683 = vmul.f32 %v1307, %v4635
    %v4684 = vmax.f32 %v4652, 1e-12
    %v4685 = vmax.f32 %v4653, 1e-12
    %v4686 = vmax.f32 %v4654, 1e-12
    %v4687 = vmax.f32 %v4655, 1e-12
    %v4688 = vmax.f32 %v4656, 1e-12
    %v4689 = vmax.f32 %v4657, 1e-12
    %v4690 = vmax.f32 %v4658, 1e-12
    %v4691 = vmax.f32 %v4659, 1e-12
    %v4692 = vmax.f32 %v4660, 1e-12
    %v4693 = vmax.f32 %v4661, 1e-12
    %v4694 = vmax.f32 %v4662, 1e-12
    %v4695 = vmax.f32 %v4663, 1e-12
    %v4696 = vmax.f32 %v4664, 1e-12
    %v4697 = vmax.f32 %v4665, 1e-12
    %v4698 = vmax.f32 %v4666, 1e-12
    %v4699 = vmax.f32 %v4667, 1e-12
    %v4700 = vmax.f32 %v4668, 1e-12
    %v4701 = vmax.f32 %v4669, 1e-12
    %v4702 = vmax.f32 %v4670, 1e-12
    %v4703 = vmax.f32 %v4671, 1e-12
    %v4704 = vmax.f32 %v4672, 1e-12
    %v4705 = vmax.f32 %v4673, 1e-12
    %v4706 = vmax.f32 %v4674, 1e-12
    %v4707 = vmax.f32 %v4675, 1e-12
    %v4708 = vmax.f32 %v4676, 1e-12
    %v4709 = vmax.f32 %v4677, 1e-12
    %v4710 = vmax.f32 %v4678, 1e-12
    %v4711 = vmax.f32 %v4679, 1e-12
    %v4712 = vmax.f32 %v4680, 1e-12
    %v4713 = vmax.f32 %v4681, 1e-12
    %v4714 = vmax.f32 %v4682, 1e-12
    %v4715 = vmax.f32 %v4683, 1e-12
    %v4716 = vrsqrt.pop %v4684
    %v4717 = vrsqrt.pop %v4685
    %v4718 = vrsqrt.pop %v4686
    %v4719 = vrsqrt.pop %v4687
    %v4720 = vrsqrt.pop %v4688
    %v4721 = vrsqrt.pop %v4689
    %v4722 = vrsqrt.pop %v4690
    %v4723 = vrsqrt.pop %v4691
    %v4724 = vrsqrt.pop %v4692
    %v4725 = vrsqrt.pop %v4693
    %v4726 = vrsqrt.pop %v4694
    %v4727 = vrsqrt.pop %v4695
    %v4728 = vrsqrt.pop %v4696
    %v4729 = vrsqrt.pop %v4697
    %v4730 = vrsqrt.pop %v4698
    %v4731 = vrsqrt.pop %v4699
    %v4732 = vrsqrt.pop %v4700
    %v4733 = vrsqrt.pop %v4701
    %v4734 = vrsqrt.pop %v4702
    %v4735 = vrsqrt.pop %v4703
    %v4736 = vrsqrt.pop %v4704
    %v4737 = vrsqrt.pop %v4705
    %v4738 = vrsqrt.pop %v4706
    %v4739 = vrsqrt.pop %v4707
    %v4740 = vrsqrt.pop %v4708
    %v4741 = vrsqrt.pop %v4709
    %v4742 = vrsqrt.pop %v4710
    %v4743 = vrsqrt.pop %v4711
    %v4744 = vrsqrt.pop %v4712
    %v4745 = vrsqrt.pop %v4713
    %v4746 = vrsqrt.pop %v4714
    %v4747 = vrsqrt.pop %v4715
    %v4748 = vmul.f32 %v2183, %v4716
    %v4749 = vmul.f32 %v2188, %v4717
    %v4750 = vmul.f32 %v2288, %v4718
    %v4751 = vmul.f32 %v2293, %v4719
    %v4752 = vmul.f32 %v2393, %v4720
    %v4753 = vmul.f32 %v2398, %v4721
    %v4754 = vmul.f32 %v2498, %v4722
    %v4755 = vmul.f32 %v2503, %v4723
    %v4756 = vmul.f32 %v2603, %v4724
    %v4757 = vmul.f32 %v2608, %v4725
    %v4758 = vmul.f32 %v2708, %v4726
    %v4759 = vmul.f32 %v2713, %v4727
    %v4760 = vmul.f32 %v2813, %v4728
    %v4761 = vmul.f32 %v2818, %v4729
    %v4762 = vmul.f32 %v2918, %v4730
    %v4763 = vmul.f32 %v2923, %v4731
    %v4764 = vmul.f32 %v3023, %v4732
    %v4765 = vmul.f32 %v3028, %v4733
    %v4766 = vmul.f32 %v3128, %v4734
    %v4767 = vmul.f32 %v3133, %v4735
    %v4768 = vmul.f32 %v3233, %v4736
    %v4769 = vmul.f32 %v3238, %v4737
    %v4770 = vmul.f32 %v3338, %v4738
    %v4771 = vmul.f32 %v3343, %v4739
    %v4772 = vmul.f32 %v3443, %v4740
    %v4773 = vmul.f32 %v3448, %v4741
    %v4774 = vmul.f32 %v3548, %v4742
    %v4775 = vmul.f32 %v3553, %v4743
    %v4776 = vmul.f32 %v3653, %v4744
    %v4777 = vmul.f32 %v3658, %v4745
    %v4778 = vmul.f32 %v3758, %v4746
    %v4779 = vmul.f32 %v3763, %v4747
    %v4780 = vld [vmem:[%s13] sm:$0x1]
    %v4782 = vlaneseq
    %v4783 = vshrl.u32 %v4782, 7
    %v4784 = vsub.s32 0, %v4783
    %v4785 = vrot.slane %v4780, %v4784
    %v4787 = vmul.f32 %v4748, %v4785
    %v4788 = vmul.f32 %v4749, %v4785
    %v4789 = vmul.f32 %v4750, %v4785
    %v4790 = vmul.f32 %v4751, %v4785
    %v4791 = vmul.f32 %v4752, %v4785
    %v4792 = vmul.f32 %v4753, %v4785
    %v4793 = vmul.f32 %v4754, %v4785
    %v4794 = vmul.f32 %v4755, %v4785
    %v4795 = vmul.f32 %v4756, %v4785
    %v4796 = vmul.f32 %v4757, %v4785
    %v4797 = vmul.f32 %v4758, %v4785
    %v4798 = vmul.f32 %v4759, %v4785
    %v4799 = vmul.f32 %v4760, %v4785
    %v4800 = vmul.f32 %v4761, %v4785
    %v4801 = vmul.f32 %v4762, %v4785
    %v4802 = vmul.f32 %v4763, %v4785
    %v4803 = vmul.f32 %v4764, %v4785
    %v4804 = vmul.f32 %v4765, %v4785
    %v4805 = vmul.f32 %v4766, %v4785
    %v4806 = vmul.f32 %v4767, %v4785
    %v4807 = vmul.f32 %v4768, %v4785
    %v4808 = vmul.f32 %v4769, %v4785
    %v4809 = vmul.f32 %v4770, %v4785
    %v4810 = vmul.f32 %v4771, %v4785
    %v4811 = vmul.f32 %v4772, %v4785
    %v4812 = vmul.f32 %v4773, %v4785
    %v4813 = vmul.f32 %v4774, %v4785
    %v4814 = vmul.f32 %v4775, %v4785
    %v4815 = vmul.f32 %v4776, %v4785
    %v4816 = vmul.f32 %v4777, %v4785
    %v4817 = vmul.f32 %v4778, %v4785
    %v4818 = vmul.f32 %v4779, %v4785
    %v4819 = vld [vmem:[%s12] sm:$0xff]
    %v4820 = vld [vmem:[%s12 + $0x8] sm:$0xff]
    %v4821 = vadd.f32 %v4787, %v4819
    %v4822 = vadd.f32 %v4788, %v4820
    %v4823 = vadd.f32 %v4789, %v4819
    %v4824 = vadd.f32 %v4790, %v4820
    %v4825 = vadd.f32 %v4791, %v4819
    %v4826 = vadd.f32 %v4792, %v4820
    %v4827 = vadd.f32 %v4793, %v4819
    %v4828 = vadd.f32 %v4794, %v4820
    %v4829 = vadd.f32 %v4795, %v4819
    %v4830 = vadd.f32 %v4796, %v4820
    %v4831 = vadd.f32 %v4797, %v4819
    %v4832 = vadd.f32 %v4798, %v4820
    %v4833 = vadd.f32 %v4799, %v4819
    %v4834 = vadd.f32 %v4800, %v4820
    %v4835 = vadd.f32 %v4801, %v4819
    %v4836 = vadd.f32 %v4802, %v4820
    %v4837 = vadd.f32 %v4803, %v4819
    %v4838 = vadd.f32 %v4804, %v4820
    %v4839 = vadd.f32 %v4805, %v4819
    %v4840 = vadd.f32 %v4806, %v4820
    %v4841 = vadd.f32 %v4807, %v4819
    %v4842 = vadd.f32 %v4808, %v4820
    %v4843 = vadd.f32 %v4809, %v4819
    %v4844 = vadd.f32 %v4810, %v4820
    %v4845 = vadd.f32 %v4811, %v4819
    %v4846 = vadd.f32 %v4812, %v4820
    %v4847 = vadd.f32 %v4813, %v4819
    %v4848 = vadd.f32 %v4814, %v4820
    %v4849 = vadd.f32 %v4815, %v4819
    %v4850 = vadd.f32 %v4816, %v4820
    %v4851 = vadd.f32 %v4817, %v4819
    %v4852 = vadd.f32 %v4818, %v4820
    %vm4853 = vcmask 523264
    %v4854 = vsel %vm4853, %v4821, -inf
    %4855 = vmax.xlane.f32.xlu0 %v4854
    %v4856 = vpop.xlane.xlu0 %4855
    %v4857 = vsel %vm4853, %v4822, -inf
    %4858 = vmax.xlane.f32.xlu0 %v4857
    %v4859 = vpop.xlane.xlu0 %4858
    %v4860 = vsel %vm4853, %v4823, -inf
    %4861 = vmax.xlane.f32.xlu0 %v4860
    %v4862 = vpop.xlane.xlu0 %4861
    %v4863 = vsel %vm4853, %v4824, -inf
    %4864 = vmax.xlane.f32.xlu0 %v4863
    %v4865 = vpop.xlane.xlu0 %4864
    %v4866 = vsel %vm4853, %v4825, -inf
    %4867 = vmax.xlane.f32.xlu0 %v4866
    %v4868 = vpop.xlane.xlu0 %4867
    %v4869 = vsel %vm4853, %v4826, -inf
    %4870 = vmax.xlane.f32.xlu0 %v4869
    %v4871 = vpop.xlane.xlu0 %4870
    %v4872 = vsel %vm4853, %v4827, -inf
    %4873 = vmax.xlane.f32.xlu0 %v4872
    %v4874 = vpop.xlane.xlu0 %4873
    %v4875 = vsel %vm4853, %v4828, -inf
    %4876 = vmax.xlane.f32.xlu0 %v4875
    %v4877 = vpop.xlane.xlu0 %4876
    %v4878 = vsel %vm4853, %v4829, -inf
    %4879 = vmax.xlane.f32.xlu0 %v4878
    %v4880 = vpop.xlane.xlu0 %4879
    %v4881 = vsel %vm4853, %v4830, -inf
    %4882 = vmax.xlane.f32.xlu0 %v4881
    %v4883 = vpop.xlane.xlu0 %4882
    %v4884 = vsel %vm4853, %v4831, -inf
    %4885 = vmax.xlane.f32.xlu0 %v4884
    %v4886 = vpop.xlane.xlu0 %4885
    %v4887 = vsel %vm4853, %v4832, -inf
    %4888 = vmax.xlane.f32.xlu0 %v4887
    %v4889 = vpop.xlane.xlu0 %4888
    %v4890 = vsel %vm4853, %v4833, -inf
    %4891 = vmax.xlane.f32.xlu0 %v4890
    %v4892 = vpop.xlane.xlu0 %4891
    %v4893 = vsel %vm4853, %v4834, -inf
    %4894 = vmax.xlane.f32.xlu0 %v4893
    %v4895 = vpop.xlane.xlu0 %4894
    %v4896 = vsel %vm4853, %v4835, -inf
    %4897 = vmax.xlane.f32.xlu0 %v4896
    %v4898 = vpop.xlane.xlu0 %4897
    %v4899 = vsel %vm4853, %v4836, -inf
    %4900 = vmax.xlane.f32.xlu0 %v4899
    %v4901 = vpop.xlane.xlu0 %4900
    %v4902 = vsel %vm4853, %v4837, -inf
    %4903 = vmax.xlane.f32.xlu0 %v4902
    %v4904 = vpop.xlane.xlu0 %4903
    %v4905 = vsel %vm4853, %v4838, -inf
    %4906 = vmax.xlane.f32.xlu0 %v4905
    %v4907 = vpop.xlane.xlu0 %4906
    %v4908 = vsel %vm4853, %v4839, -inf
    %4909 = vmax.xlane.f32.xlu0 %v4908
    %v4910 = vpop.xlane.xlu0 %4909
    %v4911 = vsel %vm4853, %v4840, -inf
    %4912 = vmax.xlane.f32.xlu0 %v4911
    %v4913 = vpop.xlane.xlu0 %4912
    %v4914 = vsel %vm4853, %v4841, -inf
    %4915 = vmax.xlane.f32.xlu0 %v4914
    %v4916 = vpop.xlane.xlu0 %4915
    %v4917 = vsel %vm4853, %v4842, -inf
    %4918 = vmax.xlane.f32.xlu0 %v4917
    %v4919 = vpop.xlane.xlu0 %4918
    %v4920 = vsel %vm4853, %v4843, -inf
    %4921 = vmax.xlane.f32.xlu0 %v4920
    %v4922 = vpop.xlane.xlu0 %4921
    %v4923 = vsel %vm4853, %v4844, -inf
    %4924 = vmax.xlane.f32.xlu0 %v4923
    %v4925 = vpop.xlane.xlu0 %4924
    %v4926 = vsel %vm4853, %v4845, -inf
    %4927 = vmax.xlane.f32.xlu0 %v4926
    %v4928 = vpop.xlane.xlu0 %4927
    %v4929 = vsel %vm4853, %v4846, -inf
    %4930 = vmax.xlane.f32.xlu0 %v4929
    %v4931 = vpop.xlane.xlu0 %4930
    %v4932 = vsel %vm4853, %v4847, -inf
    %4933 = vmax.xlane.f32.xlu0 %v4932
    %v4934 = vpop.xlane.xlu0 %4933
    %v4935 = vsel %vm4853, %v4848, -inf
    %4936 = vmax.xlane.f32.xlu0 %v4935
    %v4937 = vpop.xlane.xlu0 %4936
    %v4938 = vsel %vm4853, %v4849, -inf
    %4939 = vmax.xlane.f32.xlu0 %v4938
    %v4940 = vpop.xlane.xlu0 %4939
    %v4941 = vsel %vm4853, %v4850, -inf
    %4942 = vmax.xlane.f32.xlu0 %v4941
    %v4943 = vpop.xlane.xlu0 %4942
    %v4944 = vsel %vm4853, %v4851, -inf
    %4945 = vmax.xlane.f32.xlu0 %v4944
    %v4946 = vpop.xlane.xlu0 %4945
    %v4947 = vsel %vm4853, %v4852, -inf
    %4948 = vmax.xlane.f32.xlu0 %v4947
    %v4949 = vpop.xlane.xlu0 %4948
    %v4950 = vsub.f32 %v4821, %v4856
    %v4951 = vsub.f32 %v4822, %v4859
    %v4952 = vsub.f32 %v4823, %v4862
    %v4953 = vsub.f32 %v4824, %v4865
    %v4954 = vsub.f32 %v4825, %v4868
    %v4955 = vsub.f32 %v4826, %v4871
    %v4956 = vsub.f32 %v4827, %v4874
    %v4957 = vsub.f32 %v4828, %v4877
    %v4958 = vsub.f32 %v4829, %v4880
    %v4959 = vsub.f32 %v4830, %v4883
    %v4960 = vsub.f32 %v4831, %v4886
    %v4961 = vsub.f32 %v4832, %v4889
    %v4962 = vsub.f32 %v4833, %v4892
    %v4963 = vsub.f32 %v4834, %v4895
    %v4964 = vsub.f32 %v4835, %v4898
    %v4965 = vsub.f32 %v4836, %v4901
    %v4966 = vsub.f32 %v4837, %v4904
    %v4967 = vsub.f32 %v4838, %v4907
    %v4968 = vsub.f32 %v4839, %v4910
    %v4969 = vsub.f32 %v4840, %v4913
    %v4970 = vsub.f32 %v4841, %v4916
    %v4971 = vsub.f32 %v4842, %v4919
    %v4972 = vsub.f32 %v4843, %v4922
    %v4973 = vsub.f32 %v4844, %v4925
    %v4974 = vsub.f32 %v4845, %v4928
    %v4975 = vsub.f32 %v4846, %v4931
    %v4976 = vsub.f32 %v4847, %v4934
    %v4977 = vsub.f32 %v4848, %v4937
    %v4978 = vsub.f32 %v4849, %v4940
    %v4979 = vsub.f32 %v4850, %v4943
    %v4980 = vsub.f32 %v4851, %v4946
    %v4981 = vsub.f32 %v4852, %v4949
    %v4982 = vmul.f32 %v4950, 1.442695
    %v4983 = vpow.pop %v4982
    %v4984 = vmul.f32 %v4951, 1.442695
    %v4985 = vpow.pop %v4984
    %v4986 = vmul.f32 %v4952, 1.442695
    %v4987 = vpow.pop %v4986
    %v4988 = vmul.f32 %v4953, 1.442695
    %v4989 = vpow.pop %v4988
    %v4990 = vmul.f32 %v4954, 1.442695
    %v4991 = vpow.pop %v4990
    %v4992 = vmul.f32 %v4955, 1.442695
    %v4993 = vpow.pop %v4992
    %v4994 = vmul.f32 %v4956, 1.442695
    %v4995 = vpow.pop %v4994
    %v4996 = vmul.f32 %v4957, 1.442695
    %v4997 = vpow.pop %v4996
    %v4998 = vmul.f32 %v4958, 1.442695
    %v4999 = vpow.pop %v4998
    %v5000 = vmul.f32 %v4959, 1.442695
    %v5001 = vpow.pop %v5000
    %v5002 = vmul.f32 %v4960, 1.442695
    %v5003 = vpow.pop %v5002
    %v5004 = vmul.f32 %v4961, 1.442695
    %v5005 = vpow.pop %v5004
    %v5006 = vmul.f32 %v4962, 1.442695
    %v5007 = vpow.pop %v5006
    %v5008 = vmul.f32 %v4963, 1.442695
    %v5009 = vpow.pop %v5008
    %v5010 = vmul.f32 %v4964, 1.442695
    %v5011 = vpow.pop %v5010
    %v5012 = vmul.f32 %v4965, 1.442695
    %v5013 = vpow.pop %v5012
    %v5014 = vmul.f32 %v4966, 1.442695
    %v5015 = vpow.pop %v5014
    %v5016 = vmul.f32 %v4967, 1.442695
    %v5017 = vpow.pop %v5016
    %v5018 = vmul.f32 %v4968, 1.442695
    %v5019 = vpow.pop %v5018
    %v5020 = vmul.f32 %v4969, 1.442695
    %v5021 = vpow.pop %v5020
    %v5022 = vmul.f32 %v4970, 1.442695
    %v5023 = vpow.pop %v5022
    %v5024 = vmul.f32 %v4971, 1.442695
    %v5025 = vpow.pop %v5024
    %v5026 = vmul.f32 %v4972, 1.442695
    %v5027 = vpow.pop %v5026
    %v5028 = vmul.f32 %v4973, 1.442695
    %v5029 = vpow.pop %v5028
    %v5030 = vmul.f32 %v4974, 1.442695
    %v5031 = vpow.pop %v5030
    %v5032 = vmul.f32 %v4975, 1.442695
    %v5033 = vpow.pop %v5032
    %v5034 = vmul.f32 %v4976, 1.442695
    %v5035 = vpow.pop %v5034
    %v5036 = vmul.f32 %v4977, 1.442695
    %v5037 = vpow.pop %v5036
    %v5038 = vmul.f32 %v4978, 1.442695
    %v5039 = vpow.pop %v5038
    %v5040 = vmul.f32 %v4979, 1.442695
    %v5041 = vpow.pop %v5040
    %v5042 = vmul.f32 %v4980, 1.442695
    %v5043 = vpow.pop %v5042
    %v5044 = vmul.f32 %v4981, 1.442695
    %v5045 = vpow.pop %v5044
    %v5046 = vld [vmem:[%s11] sm:$0xff]
    %v5047 = vld [vmem:[%s11 + $0x8] sm:$0xff]
    %v5048 = vld [vmem:[%s11 + $0x10] sm:$0xff]
    %v5049 = vld [vmem:[%s11 + $0x18] sm:$0xff]
    %v5050 = vld [vmem:[%s11 + $0x20] sm:$0xff]
    %v5051 = vld [vmem:[%s11 + $0x28] sm:$0xff]
    %v5052 = vld [vmem:[%s11 + $0x30] sm:$0xff]
    %v5053 = vld [vmem:[%s11 + $0x38] sm:$0xff]
    %v5055 = vsel %vm4853, %v4983, 0
    %v5058 = vsel %vm4853, %v4985, 0
    %v5061 = vsel %vm4853, %v4987, 0
    %v5064 = vsel %vm4853, %v4989, 0
    %v5067 = vsel %vm4853, %v4991, 0
    %v5070 = vsel %vm4853, %v4993, 0
    %v5073 = vsel %vm4853, %v4995, 0
    %v5076 = vsel %vm4853, %v4997, 0
    %v5079 = vsel %vm4853, %v4999, 0
    %v5082 = vsel %vm4853, %v5001, 0
    %v5085 = vsel %vm4853, %v5003, 0
    %v5088 = vsel %vm4853, %v5005, 0
    %v5091 = vsel %vm4853, %v5007, 0
    %v5094 = vsel %vm4853, %v5009, 0
    %v5097 = vsel %vm4853, %v5011, 0
    %v5100 = vsel %vm4853, %v5013, 0
    %v5103 = vsel %vm4853, %v5015, 0
    %v5106 = vsel %vm4853, %v5017, 0
    %v5109 = vsel %vm4853, %v5019, 0
    %v5112 = vsel %vm4853, %v5021, 0
    %v5115 = vsel %vm4853, %v5023, 0
    %v5118 = vsel %vm4853, %v5025, 0
    %v5121 = vsel %vm4853, %v5027, 0
    %v5124 = vsel %vm4853, %v5029, 0
    %v5127 = vsel %vm4853, %v5031, 0
    %v5130 = vsel %vm4853, %v5033, 0
    %v5133 = vsel %vm4853, %v5035, 0
    %v5136 = vsel %vm4853, %v5037, 0
    %v5139 = vsel %vm4853, %v5039, 0
    %v5142 = vsel %vm4853, %v5041, 0
    %v5145 = vsel %vm4853, %v5043, 0
    %v5148 = vsel %vm4853, %v5045, 0
    %5150 = vmatprep.subr.mxu0 0.0
    %5151 = vmatpush1.msra.mxu0 0.0
    %5152 = vmatprep.subr.mxu0 0.0
    %5153 = vmatpush1.msra.mxu0 0.0
    %5154 = vmatprep.subr.mxu0 0.0
    %5155 = vmatpush1.msra.mxu0 0.0
    %5156 = vmatprep.subr.mxu0 0.0
    %5157 = vmatpush1.msra.mxu0 0.0
    %5158 = vmatprep.subr.mxu0 0.0
    %5159 = vmatpush1.msra.mxu0 0.0
    %5160 = vmatprep.subr.mxu0 0.0
    %5161 = vmatpush1.msra.mxu0 0.0
    %5162 = vmatprep.subr.mxu0 0.0
    %5163 = vmatpush1.msra.mxu0 0.0
    %5164 = vmatprep.subr.mxu0 0.0
    %5165 = vmatpush1.msra.mxu0 0.0
    %5166 = vmatprep.subr.mxu0 0.0
    %5167 = vmatpush1.msra.mxu0 %v5053
    %5168 = vmatprep.subr.mxu0 0.0
    %5169 = vmatpush1.msra.mxu0 %v5052
    %5170 = vmatprep.subr.mxu0 0.0
    %5171 = vmatpush1.msra.mxu0 %v5051
    %5172 = vmatprep.subr.mxu0 0.0
    %5173 = vmatpush1.msra.mxu0 %v5050
    %5174 = vmatprep.subr.mxu0 0.0
    %5175 = vmatpush1.msra.mxu0 %v5049
    %5176 = vmatprep.subr.mxu0 0.0
    %5177 = vmatpush1.msra.mxu0 %v5048
    %5178 = vmatprep.subr.mxu0 0.0
    %5179 = vmatpush1.msra.mxu0 %v5047
    %5180 = vmatprep.subr.mxu0 0.0
    %5181 = vmatpush1.msra.mxu0 %v5046
    %5182 = vmatprep.subr.mxu0 0.0
    %5183 = vmatpush2.msra.mxu0 0.0
    %5184 = vmatprep.subr.mxu0 0.0
    %5185 = vmatpush2.msra.mxu0 0.0
    %5186 = vmatprep.subr.mxu0 0.0
    %5187 = vmatpush2.msra.mxu0 0.0
    %5188 = vmatprep.subr.mxu0 0.0
    %5189 = vmatpush2.msra.mxu0 0.0
    %5190 = vmatprep.subr.mxu0 0.0
    %5191 = vmatpush2.msra.mxu0 0.0
    %5192 = vmatprep.subr.mxu0 0.0
    %5193 = vmatpush2.msra.mxu0 0.0
    %5194 = vmatprep.subr.mxu0 0.0
    %5195 = vmatpush2.msra.mxu0 0.0
    %5196 = vmatprep.subr.mxu0 0.0
    %5197 = vmatpush2.msra.mxu0 0.0
    %5198 = vmatprep.subr.mxu0 0.0
    %5199 = vmatpush2.msra.mxu0 0.0
    %5200 = vmatprep.subr.mxu0 0.0
    %5201 = vmatpush2.msra.mxu0 0.0
    %5202 = vmatprep.subr.mxu0 0.0
    %5203 = vmatpush2.msra.mxu0 0.0
    %5204 = vmatprep.subr.mxu0 0.0
    %5205 = vmatpush2.msra.mxu0 0.0
    %5206 = vmatprep.subr.mxu0 0.0
    %5207 = vmatpush2.msra.mxu0 0.0
    %5208 = vmatprep.subr.mxu0 0.0
    %5209 = vmatpush2.msra.mxu0 0.0
    %5210 = vmatprep.subr.mxu0 0.0
    %5211 = vmatpush2.msra.mxu0 0.0
    %5212 = vmatprep.subr.mxu0 0.0
    %5213 = vmatpush2.msra.mxu0 0.0
    %5214 = vmatprep.mubr.f32.mxu0 0.0
    %5215 = vmatmul.mubr.f32.gmra.mxu0 %v5055
    %v5216 = vpop.f32.mrf.mxu0
    %v5217 = vadd.f32 0.0, %v5216
    %v5218 = vpop.f32.mrf.mxu0
    %5219 = vmatprep.mubr.f32.mxu0 0.0
    %5220 = vmatmul.mubr.f32.gmra.mxu0 %v5058
    %v5221 = vpop.f32.mrf.mxu0
    %v5222 = vadd.f32 0.0, %v5221
    %v5223 = vpop.f32.mrf.mxu0
    %5224 = vmatprep.mubr.f32.mxu0 0.0
    %5225 = vmatmul.mubr.f32.gmra.mxu0 %v5061
    %v5226 = vpop.f32.mrf.mxu0
    %v5227 = vadd.f32 0.0, %v5226
    %v5228 = vpop.f32.mrf.mxu0
    %5229 = vmatprep.mubr.f32.mxu0 0.0
    %5230 = vmatmul.mubr.f32.gmra.mxu0 %v5064
    %v5231 = vpop.f32.mrf.mxu0
    %v5232 = vadd.f32 0.0, %v5231
    %v5233 = vpop.f32.mrf.mxu0
    %5234 = vmatprep.mubr.f32.mxu0 0.0
    %5235 = vmatmul.mubr.f32.gmra.mxu0 %v5067
    %v5236 = vpop.f32.mrf.mxu0
    %v5237 = vadd.f32 0.0, %v5236
    %v5238 = vpop.f32.mrf.mxu0
    %5239 = vmatprep.mubr.f32.mxu0 0.0
    %5240 = vmatmul.mubr.f32.gmra.mxu0 %v5070
    %v5241 = vpop.f32.mrf.mxu0
    %v5242 = vadd.f32 0.0, %v5241
    %v5243 = vpop.f32.mrf.mxu0
    %5244 = vmatprep.mubr.f32.mxu0 0.0
    %5245 = vmatmul.mubr.f32.gmra.mxu0 %v5073
    %v5246 = vpop.f32.mrf.mxu0
    %v5247 = vadd.f32 0.0, %v5246
    %v5248 = vpop.f32.mrf.mxu0
    %5249 = vmatprep.mubr.f32.mxu0 0.0
    %5250 = vmatmul.mubr.f32.gmra.mxu0 %v5076
    %v5251 = vpop.f32.mrf.mxu0
    %v5252 = vadd.f32 0.0, %v5251
    %v5253 = vpop.f32.mrf.mxu0
    %5254 = vmatprep.mubr.f32.mxu0 0.0
    %5255 = vmatmul.mubr.f32.gmra.mxu0 %v5079
    %v5256 = vpop.f32.mrf.mxu0
    %v5257 = vadd.f32 0.0, %v5256
    %v5258 = vpop.f32.mrf.mxu0
    %5259 = vmatprep.mubr.f32.mxu0 0.0
    %5260 = vmatmul.mubr.f32.gmra.mxu0 %v5082
    %v5261 = vpop.f32.mrf.mxu0
    %v5262 = vadd.f32 0.0, %v5261
    %v5263 = vpop.f32.mrf.mxu0
    %5264 = vmatprep.mubr.f32.mxu0 0.0
    %5265 = vmatmul.mubr.f32.gmra.mxu0 %v5085
    %v5266 = vpop.f32.mrf.mxu0
    %v5267 = vadd.f32 0.0, %v5266
    %v5268 = vpop.f32.mrf.mxu0
    %5269 = vmatprep.mubr.f32.mxu0 0.0
    %5270 = vmatmul.mubr.f32.gmra.mxu0 %v5088
    %v5271 = vpop.f32.mrf.mxu0
    %v5272 = vadd.f32 0.0, %v5271
    %v5273 = vpop.f32.mrf.mxu0
    %5274 = vmatprep.mubr.f32.mxu0 0.0
    %5275 = vmatmul.mubr.f32.gmra.mxu0 %v5091
    %v5276 = vpop.f32.mrf.mxu0
    %v5277 = vadd.f32 0.0, %v5276
    %v5278 = vpop.f32.mrf.mxu0
    %5279 = vmatprep.mubr.f32.mxu0 0.0
    %5280 = vmatmul.mubr.f32.gmra.mxu0 %v5094
    %v5281 = vpop.f32.mrf.mxu0
    %v5282 = vadd.f32 0.0, %v5281
    %v5283 = vpop.f32.mrf.mxu0
    %5284 = vmatprep.mubr.f32.mxu0 0.0
    %5285 = vmatmul.mubr.f32.gmra.mxu0 %v5097
    %v5286 = vpop.f32.mrf.mxu0
    %v5287 = vadd.f32 0.0, %v5286
    %v5288 = vpop.f32.mrf.mxu0
    %5289 = vmatprep.mubr.f32.mxu0 0.0
    %5290 = vmatmul.mubr.f32.gmra.mxu0 %v5100
    %v5291 = vpop.f32.mrf.mxu0
    %v5292 = vadd.f32 0.0, %v5291
    %v5293 = vpop.f32.mrf.mxu0
    %5294 = vmatprep.mubr.f32.mxu0 0.0
    %5295 = vmatmul.mubr.f32.gmra.mxu0 %v5103
    %v5296 = vpop.f32.mrf.mxu0
    %v5297 = vadd.f32 0.0, %v5296
    %v5298 = vpop.f32.mrf.mxu0
    %5299 = vmatprep.mubr.f32.mxu0 0.0
    %5300 = vmatmul.mubr.f32.gmra.mxu0 %v5106
    %v5301 = vpop.f32.mrf.mxu0
    %v5302 = vadd.f32 0.0, %v5301
    %v5303 = vpop.f32.mrf.mxu0
    %5304 = vmatprep.mubr.f32.mxu0 0.0
    %5305 = vmatmul.mubr.f32.gmra.mxu0 %v5109
    %v5306 = vpop.f32.mrf.mxu0
    %v5307 = vadd.f32 0.0, %v5306
    %v5308 = vpop.f32.mrf.mxu0
    %5309 = vmatprep.mubr.f32.mxu0 0.0
    %5310 = vmatmul.mubr.f32.gmra.mxu0 %v5112
    %v5311 = vpop.f32.mrf.mxu0
    %v5312 = vadd.f32 0.0, %v5311
    %v5313 = vpop.f32.mrf.mxu0
    %5314 = vmatprep.mubr.f32.mxu0 0.0
    %5315 = vmatmul.mubr.f32.gmra.mxu0 %v5115
    %v5316 = vpop.f32.mrf.mxu0
    %v5317 = vadd.f32 0.0, %v5316
    %v5318 = vpop.f32.mrf.mxu0
    %5319 = vmatprep.mubr.f32.mxu0 0.0
    %5320 = vmatmul.mubr.f32.gmra.mxu0 %v5118
    %v5321 = vpop.f32.mrf.mxu0
    %v5322 = vadd.f32 0.0, %v5321
    %v5323 = vpop.f32.mrf.mxu0
    %5324 = vmatprep.mubr.f32.mxu0 0.0
    %5325 = vmatmul.mubr.f32.gmra.mxu0 %v5121
    %v5326 = vpop.f32.mrf.mxu0
    %v5327 = vadd.f32 0.0, %v5326
    %v5328 = vpop.f32.mrf.mxu0
    %5329 = vmatprep.mubr.f32.mxu0 0.0
    %5330 = vmatmul.mubr.f32.gmra.mxu0 %v5124
    %v5331 = vpop.f32.mrf.mxu0
    %v5332 = vadd.f32 0.0, %v5331
    %v5333 = vpop.f32.mrf.mxu0
    %5334 = vmatprep.mubr.f32.mxu0 0.0
    %5335 = vmatmul.mubr.f32.gmra.mxu0 %v5127
    %v5336 = vpop.f32.mrf.mxu0
    %v5337 = vadd.f32 0.0, %v5336
    %v5338 = vpop.f32.mrf.mxu0
    %5339 = vmatprep.mubr.f32.mxu0 0.0
    %5340 = vmatmul.mubr.f32.gmra.mxu0 %v5130
    %v5341 = vpop.f32.mrf.mxu0
    %v5342 = vadd.f32 0.0, %v5341
    %v5343 = vpop.f32.mrf.mxu0
    %5344 = vmatprep.mubr.f32.mxu0 0.0
    %5345 = vmatmul.mubr.f32.gmra.mxu0 %v5133
    %v5346 = vpop.f32.mrf.mxu0
    %v5347 = vadd.f32 0.0, %v5346
    %v5348 = vpop.f32.mrf.mxu0
    %5349 = vmatprep.mubr.f32.mxu0 0.0
    %5350 = vmatmul.mubr.f32.gmra.mxu0 %v5136
    %v5351 = vpop.f32.mrf.mxu0
    %v5352 = vadd.f32 0.0, %v5351
    %v5353 = vpop.f32.mrf.mxu0
    %5354 = vmatprep.mubr.f32.mxu0 0.0
    %5355 = vmatmul.mubr.f32.gmra.mxu0 %v5139
    %v5356 = vpop.f32.mrf.mxu0
    %v5357 = vadd.f32 0.0, %v5356
    %v5358 = vpop.f32.mrf.mxu0
    %5359 = vmatprep.mubr.f32.mxu0 0.0
    %5360 = vmatmul.mubr.f32.gmra.mxu0 %v5142
    %v5361 = vpop.f32.mrf.mxu0
    %v5362 = vadd.f32 0.0, %v5361
    %v5363 = vpop.f32.mrf.mxu0
    %5364 = vmatprep.mubr.f32.mxu0 0.0
    %5365 = vmatmul.mubr.f32.gmra.mxu0 %v5145
    %v5366 = vpop.f32.mrf.mxu0
    %v5367 = vadd.f32 0.0, %v5366
    %v5368 = vpop.f32.mrf.mxu0
    %5369 = vmatprep.mubr.f32.mxu0 0.0
    %5370 = vmatmul.mubr.f32.gmra.mxu0 %v5148
    %v5371 = vpop.f32.mrf.mxu0
    %v5372 = vadd.f32 0.0, %v5371
    %v5373 = vpop.f32.mrf.mxu0
    %5374 = vdwg.mxu0
    %v5375 = vrcp.pop %v5217
    %v5376 = vrcp.pop %v5222
    %v5377 = vrcp.pop %v5227
    %v5378 = vrcp.pop %v5232
    %v5379 = vrcp.pop %v5237
    %v5380 = vrcp.pop %v5242
    %v5381 = vrcp.pop %v5247
    %v5382 = vrcp.pop %v5252
    %v5383 = vrcp.pop %v5257
    %v5384 = vrcp.pop %v5262
    %v5385 = vrcp.pop %v5267
    %v5386 = vrcp.pop %v5272
    %v5387 = vrcp.pop %v5277
    %v5388 = vrcp.pop %v5282
    %v5389 = vrcp.pop %v5287
    %v5390 = vrcp.pop %v5292
    %v5391 = vrcp.pop %v5297
    %v5392 = vrcp.pop %v5302
    %v5393 = vrcp.pop %v5307
    %v5394 = vrcp.pop %v5312
    %v5395 = vrcp.pop %v5317
    %v5396 = vrcp.pop %v5322
    %v5397 = vrcp.pop %v5327
    %v5398 = vrcp.pop %v5332
    %v5399 = vrcp.pop %v5337
    %v5400 = vrcp.pop %v5342
    %v5401 = vrcp.pop %v5347
    %v5402 = vrcp.pop %v5352
    %v5403 = vrcp.pop %v5357
    %v5404 = vrcp.pop %v5362
    %v5405 = vrcp.pop %v5367
    %v5406 = vrcp.pop %v5372
    %v5407 = vmul.f32 %v4983, %v5375
    %v5408 = vmul.f32 %v4985, %v5376
    %v5409 = vmul.f32 %v4987, %v5377
    %v5410 = vmul.f32 %v4989, %v5378
    %v5411 = vmul.f32 %v4991, %v5379
    %v5412 = vmul.f32 %v4993, %v5380
    %v5413 = vmul.f32 %v4995, %v5381
    %v5414 = vmul.f32 %v4997, %v5382
    %v5415 = vmul.f32 %v4999, %v5383
    %v5416 = vmul.f32 %v5001, %v5384
    %v5417 = vmul.f32 %v5003, %v5385
    %v5418 = vmul.f32 %v5005, %v5386
    %v5419 = vmul.f32 %v5007, %v5387
    %v5420 = vmul.f32 %v5009, %v5388
    %v5421 = vmul.f32 %v5011, %v5389
    %v5422 = vmul.f32 %v5013, %v5390
    %v5423 = vmul.f32 %v5015, %v5391
    %v5424 = vmul.f32 %v5017, %v5392
    %v5425 = vmul.f32 %v5019, %v5393
    %v5426 = vmul.f32 %v5021, %v5394
    %v5427 = vmul.f32 %v5023, %v5395
    %v5428 = vmul.f32 %v5025, %v5396
    %v5429 = vmul.f32 %v5027, %v5397
    %v5430 = vmul.f32 %v5029, %v5398
    %v5431 = vmul.f32 %v5031, %v5399
    %v5432 = vmul.f32 %v5033, %v5400
    %v5433 = vmul.f32 %v5035, %v5401
    %v5434 = vmul.f32 %v5037, %v5402
    %v5435 = vmul.f32 %v5039, %v5403
    %v5436 = vmul.f32 %v5041, %v5404
    %v5437 = vmul.f32 %v5043, %v5405
    %v5438 = vmul.f32 %v5045, %v5406
    %v5440 = vsel %vm4853, %v5407, 0
    %v5443 = vsel %vm4853, %v5408, 0
    %5445 = vmatprep.subr.mxu0 0.0
    %5446 = vmatpush1.msra.mxu0 0.0
    %5447 = vmatprep.subr.mxu0 0.0
    %5448 = vmatpush1.msra.mxu0 0.0
    %5449 = vmatprep.subr.mxu0 0.0
    %5450 = vmatpush1.msra.mxu0 0.0
    %5451 = vmatprep.subr.mxu0 0.0
    %5452 = vmatpush1.msra.mxu0 0.0
    %5453 = vmatprep.subr.mxu0 0.0
    %5454 = vmatpush1.msra.mxu0 0.0
    %5455 = vmatprep.subr.mxu0 0.0
    %5456 = vmatpush1.msra.mxu0 0.0
    %5457 = vmatprep.subr.mxu0 0.0
    %5458 = vmatpush1.msra.mxu0 0.0
    %5459 = vmatprep.subr.mxu0 0.0
    %5460 = vmatpush1.msra.mxu0 0.0
    %5461 = vmatprep.subr.mxu0 0.0
    %5462 = vmatpush1.msra.mxu0 %v1453
    %5463 = vmatprep.subr.mxu0 0.0
    %5464 = vmatpush1.msra.mxu0 %v1452
    %5465 = vmatprep.subr.mxu0 0.0
    %5466 = vmatpush1.msra.mxu0 %v1451
    %5467 = vmatprep.subr.mxu0 0.0
    %5468 = vmatpush1.msra.mxu0 %v1450
    %5469 = vmatprep.subr.mxu0 0.0
    %5470 = vmatpush1.msra.mxu0 %v1449
    %5471 = vmatprep.subr.mxu0 0.0
    %5472 = vmatpush1.msra.mxu0 %v1448
    %5473 = vmatprep.subr.mxu0 0.0
    %5474 = vmatpush1.msra.mxu0 %v1447
    %5475 = vmatprep.subr.mxu0 0.0
    %5476 = vmatpush1.msra.mxu0 %v1446
    %5477 = vmatprep.subr.mxu0 0.0
    %5478 = vmatpush2.msra.mxu0 0.0
    %5479 = vmatprep.subr.mxu0 0.0
    %5480 = vmatpush2.msra.mxu0 0.0
    %5481 = vmatprep.subr.mxu0 0.0
    %5482 = vmatpush2.msra.mxu0 0.0
    %5483 = vmatprep.subr.mxu0 0.0
    %5484 = vmatpush2.msra.mxu0 0.0
    %5485 = vmatprep.subr.mxu0 0.0
    %5486 = vmatpush2.msra.mxu0 0.0
    %5487 = vmatprep.subr.mxu0 0.0
    %5488 = vmatpush2.msra.mxu0 0.0
    %5489 = vmatprep.subr.mxu0 0.0
    %5490 = vmatpush2.msra.mxu0 0.0
    %5491 = vmatprep.subr.mxu0 0.0
    %5492 = vmatpush2.msra.mxu0 0.0
    %5493 = vmatprep.subr.mxu0 0.0
    %5494 = vmatpush2.msra.mxu0 0.0
    %5495 = vmatprep.subr.mxu0 0.0
    %5496 = vmatpush2.msra.mxu0 0.0
    %5497 = vmatprep.subr.mxu0 0.0
    %5498 = vmatpush2.msra.mxu0 0.0
    %5499 = vmatprep.subr.mxu0 0.0
    %5500 = vmatpush2.msra.mxu0 0.0
    %5501 = vmatprep.subr.mxu0 0.0
    %5502 = vmatpush2.msra.mxu0 0.0
    %5503 = vmatprep.subr.mxu0 0.0
    %5504 = vmatpush2.msra.mxu0 0.0
    %5505 = vmatprep.subr.mxu0 0.0
    %5506 = vmatpush2.msra.mxu0 0.0
    %5507 = vmatprep.subr.mxu0 0.0
    %5508 = vmatpush2.msra.mxu0 0.0
    %5509 = vmatprep.mubr.f32.mxu0 0.0
    %5510 = vmatmul.mubr.f32.gmra.mxu0 %v5440
    %v5511 = vpop.f32.mrf.mxu0
    %v5512 = vadd.f32 0.0, %v5511
    %v5513 = vpop.f32.mrf.mxu0
    %5514 = vmatprep.mubr.f32.mxu0 0.0
    %5515 = vmatmul.mubr.f32.gmra.mxu0 %v5443
    %v5516 = vpop.f32.mrf.mxu0
    %v5517 = vadd.f32 0.0, %v5516
    %v5518 = vpop.f32.mrf.mxu0
    %5519 = vdwg.mxu0
    %v5521 = vsel %vm4853, %v5409, 0
    %v5524 = vsel %vm4853, %v5410, 0
    %5526 = vmatprep.subr.mxu0 0.0
    %5527 = vmatpush1.msra.mxu0 0.0
    %5528 = vmatprep.subr.mxu0 0.0
    %5529 = vmatpush1.msra.mxu0 0.0
    %5530 = vmatprep.subr.mxu0 0.0
    %5531 = vmatpush1.msra.mxu0 0.0
    %5532 = vmatprep.subr.mxu0 0.0
    %5533 = vmatpush1.msra.mxu0 0.0
    %5534 = vmatprep.subr.mxu0 0.0
    %5535 = vmatpush1.msra.mxu0 0.0
    %5536 = vmatprep.subr.mxu0 0.0
    %5537 = vmatpush1.msra.mxu0 0.0
    %5538 = vmatprep.subr.mxu0 0.0
    %5539 = vmatpush1.msra.mxu0 0.0
    %5540 = vmatprep.subr.mxu0 0.0
    %5541 = vmatpush1.msra.mxu0 0.0
    %5542 = vmatprep.subr.mxu0 0.0
    %5543 = vmatpush1.msra.mxu0 %v1461
    %5544 = vmatprep.subr.mxu0 0.0
    %5545 = vmatpush1.msra.mxu0 %v1460
    %5546 = vmatprep.subr.mxu0 0.0
    %5547 = vmatpush1.msra.mxu0 %v1459
    %5548 = vmatprep.subr.mxu0 0.0
    %5549 = vmatpush1.msra.mxu0 %v1458
    %5550 = vmatprep.subr.mxu0 0.0
    %5551 = vmatpush1.msra.mxu0 %v1457
    %5552 = vmatprep.subr.mxu0 0.0
    %5553 = vmatpush1.msra.mxu0 %v1456
    %5554 = vmatprep.subr.mxu0 0.0
    %5555 = vmatpush1.msra.mxu0 %v1455
    %5556 = vmatprep.subr.mxu0 0.0
    %5557 = vmatpush1.msra.mxu0 %v1454
    %5558 = vmatprep.subr.mxu0 0.0
    %5559 = vmatpush2.msra.mxu0 0.0
    %5560 = vmatprep.subr.mxu0 0.0
    %5561 = vmatpush2.msra.mxu0 0.0
    %5562 = vmatprep.subr.mxu0 0.0
    %5563 = vmatpush2.msra.mxu0 0.0
    %5564 = vmatprep.subr.mxu0 0.0
    %5565 = vmatpush2.msra.mxu0 0.0
    %5566 = vmatprep.subr.mxu0 0.0
    %5567 = vmatpush2.msra.mxu0 0.0
    %5568 = vmatprep.subr.mxu0 0.0
    %5569 = vmatpush2.msra.mxu0 0.0
    %5570 = vmatprep.subr.mxu0 0.0
    %5571 = vmatpush2.msra.mxu0 0.0
    %5572 = vmatprep.subr.mxu0 0.0
    %5573 = vmatpush2.msra.mxu0 0.0
    %5574 = vmatprep.subr.mxu0 0.0
    %5575 = vmatpush2.msra.mxu0 0.0
    %5576 = vmatprep.subr.mxu0 0.0
    %5577 = vmatpush2.msra.mxu0 0.0
    %5578 = vmatprep.subr.mxu0 0.0
    %5579 = vmatpush2.msra.mxu0 0.0
    %5580 = vmatprep.subr.mxu0 0.0
    %5581 = vmatpush2.msra.mxu0 0.0
    %5582 = vmatprep.subr.mxu0 0.0
    %5583 = vmatpush2.msra.mxu0 0.0
    %5584 = vmatprep.subr.mxu0 0.0
    %5585 = vmatpush2.msra.mxu0 0.0
    %5586 = vmatprep.subr.mxu0 0.0
    %5587 = vmatpush2.msra.mxu0 0.0
    %5588 = vmatprep.subr.mxu0 0.0
    %5589 = vmatpush2.msra.mxu0 0.0
    %5590 = vmatprep.mubr.f32.mxu0 0.0
    %5591 = vmatmul.mubr.f32.gmra.mxu0 %v5521
    %v5592 = vpop.f32.mrf.mxu0
    %v5593 = vadd.f32 0.0, %v5592
    %v5594 = vpop.f32.mrf.mxu0
    %5595 = vmatprep.mubr.f32.mxu0 0.0
    %5596 = vmatmul.mubr.f32.gmra.mxu0 %v5524
    %v5597 = vpop.f32.mrf.mxu0
    %v5598 = vadd.f32 0.0, %v5597
    %v5599 = vpop.f32.mrf.mxu0
    %5600 = vdwg.mxu0
    %v5602 = vsel %vm4853, %v5411, 0
    %v5605 = vsel %vm4853, %v5412, 0
    %5607 = vmatprep.subr.mxu0 0.0
    %5608 = vmatpush1.msra.mxu0 0.0
    %5609 = vmatprep.subr.mxu0 0.0
    %5610 = vmatpush1.msra.mxu0 0.0
    %5611 = vmatprep.subr.mxu0 0.0
    %5612 = vmatpush1.msra.mxu0 0.0
    %5613 = vmatprep.subr.mxu0 0.0
    %5614 = vmatpush1.msra.mxu0 0.0
    %5615 = vmatprep.subr.mxu0 0.0
    %5616 = vmatpush1.msra.mxu0 0.0
    %5617 = vmatprep.subr.mxu0 0.0
    %5618 = vmatpush1.msra.mxu0 0.0
    %5619 = vmatprep.subr.mxu0 0.0
    %5620 = vmatpush1.msra.mxu0 0.0
    %5621 = vmatprep.subr.mxu0 0.0
    %5622 = vmatpush1.msra.mxu0 0.0
    %5623 = vmatprep.subr.mxu0 0.0
    %5624 = vmatpush1.msra.mxu0 %v1469
    %5625 = vmatprep.subr.mxu0 0.0
    %5626 = vmatpush1.msra.mxu0 %v1468
    %5627 = vmatprep.subr.mxu0 0.0
    %5628 = vmatpush1.msra.mxu0 %v1467
    %5629 = vmatprep.subr.mxu0 0.0
    %5630 = vmatpush1.msra.mxu0 %v1466
    %5631 = vmatprep.subr.mxu0 0.0
    %5632 = vmatpush1.msra.mxu0 %v1465
    %5633 = vmatprep.subr.mxu0 0.0
    %5634 = vmatpush1.msra.mxu0 %v1464
    %5635 = vmatprep.subr.mxu0 0.0
    %5636 = vmatpush1.msra.mxu0 %v1463
    %5637 = vmatprep.subr.mxu0 0.0
    %5638 = vmatpush1.msra.mxu0 %v1462
    %5639 = vmatprep.subr.mxu0 0.0
    %5640 = vmatpush2.msra.mxu0 0.0
    %5641 = vmatprep.subr.mxu0 0.0
    %5642 = vmatpush2.msra.mxu0 0.0
    %5643 = vmatprep.subr.mxu0 0.0
    %5644 = vmatpush2.msra.mxu0 0.0
    %5645 = vmatprep.subr.mxu0 0.0
    %5646 = vmatpush2.msra.mxu0 0.0
    %5647 = vmatprep.subr.mxu0 0.0
    %5648 = vmatpush2.msra.mxu0 0.0
    %5649 = vmatprep.subr.mxu0 0.0
    %5650 = vmatpush2.msra.mxu0 0.0
    %5651 = vmatprep.subr.mxu0 0.0
    %5652 = vmatpush2.msra.mxu0 0.0
    %5653 = vmatprep.subr.mxu0 0.0
    %5654 = vmatpush2.msra.mxu0 0.0
    %5655 = vmatprep.subr.mxu0 0.0
    %5656 = vmatpush2.msra.mxu0 0.0
    %5657 = vmatprep.subr.mxu0 0.0
    %5658 = vmatpush2.msra.mxu0 0.0
    %5659 = vmatprep.subr.mxu0 0.0
    %5660 = vmatpush2.msra.mxu0 0.0
    %5661 = vmatprep.subr.mxu0 0.0
    %5662 = vmatpush2.msra.mxu0 0.0
    %5663 = vmatprep.subr.mxu0 0.0
    %5664 = vmatpush2.msra.mxu0 0.0
    %5665 = vmatprep.subr.mxu0 0.0
    %5666 = vmatpush2.msra.mxu0 0.0
    %5667 = vmatprep.subr.mxu0 0.0
    %5668 = vmatpush2.msra.mxu0 0.0
    %5669 = vmatprep.subr.mxu0 0.0
    %5670 = vmatpush2.msra.mxu0 0.0
    %5671 = vmatprep.mubr.f32.mxu0 0.0
    %5672 = vmatmul.mubr.f32.gmra.mxu0 %v5602
    %v5673 = vpop.f32.mrf.mxu0
    %v5674 = vadd.f32 0.0, %v5673
    %v5675 = vpop.f32.mrf.mxu0
    %5676 = vmatprep.mubr.f32.mxu0 0.0
    %5677 = vmatmul.mubr.f32.gmra.mxu0 %v5605
    %v5678 = vpop.f32.mrf.mxu0
    %v5679 = vadd.f32 0.0, %v5678
    %v5680 = vpop.f32.mrf.mxu0
    %5681 = vdwg.mxu0
    %v5683 = vsel %vm4853, %v5413, 0
    %v5686 = vsel %vm4853, %v5414, 0
    %5688 = vmatprep.subr.mxu0 0.0
    %5689 = vmatpush1.msra.mxu0 0.0
    %5690 = vmatprep.subr.mxu0 0.0
    %5691 = vmatpush1.msra.mxu0 0.0
    %5692 = vmatprep.subr.mxu0 0.0
    %5693 = vmatpush1.msra.mxu0 0.0
    %5694 = vmatprep.subr.mxu0 0.0
    %5695 = vmatpush1.msra.mxu0 0.0
    %5696 = vmatprep.subr.mxu0 0.0
    %5697 = vmatpush1.msra.mxu0 0.0
    %5698 = vmatprep.subr.mxu0 0.0
    %5699 = vmatpush1.msra.mxu0 0.0
    %5700 = vmatprep.subr.mxu0 0.0
    %5701 = vmatpush1.msra.mxu0 0.0
    %5702 = vmatprep.subr.mxu0 0.0
    %5703 = vmatpush1.msra.mxu0 0.0
    %5704 = vmatprep.subr.mxu0 0.0
    %5705 = vmatpush1.msra.mxu0 %v1477
    %5706 = vmatprep.subr.mxu0 0.0
    %5707 = vmatpush1.msra.mxu0 %v1476
    %5708 = vmatprep.subr.mxu0 0.0
    %5709 = vmatpush1.msra.mxu0 %v1475
    %5710 = vmatprep.subr.mxu0 0.0
    %5711 = vmatpush1.msra.mxu0 %v1474
    %5712 = vmatprep.subr.mxu0 0.0
    %5713 = vmatpush1.msra.mxu0 %v1473
    %5714 = vmatprep.subr.mxu0 0.0
    %5715 = vmatpush1.msra.mxu0 %v1472
    %5716 = vmatprep.subr.mxu0 0.0
    %5717 = vmatpush1.msra.mxu0 %v1471
    %5718 = vmatprep.subr.mxu0 0.0
    %5719 = vmatpush1.msra.mxu0 %v1470
    %5720 = vmatprep.subr.mxu0 0.0
    %5721 = vmatpush2.msra.mxu0 0.0
    %5722 = vmatprep.subr.mxu0 0.0
    %5723 = vmatpush2.msra.mxu0 0.0
    %5724 = vmatprep.subr.mxu0 0.0
    %5725 = vmatpush2.msra.mxu0 0.0
    %5726 = vmatprep.subr.mxu0 0.0
    %5727 = vmatpush2.msra.mxu0 0.0
    %5728 = vmatprep.subr.mxu0 0.0
    %5729 = vmatpush2.msra.mxu0 0.0
    %5730 = vmatprep.subr.mxu0 0.0
    %5731 = vmatpush2.msra.mxu0 0.0
    %5732 = vmatprep.subr.mxu0 0.0
    %5733 = vmatpush2.msra.mxu0 0.0
    %5734 = vmatprep.subr.mxu0 0.0
    %5735 = vmatpush2.msra.mxu0 0.0
    %5736 = vmatprep.subr.mxu0 0.0
    %5737 = vmatpush2.msra.mxu0 0.0
    %5738 = vmatprep.subr.mxu0 0.0
    %5739 = vmatpush2.msra.mxu0 0.0
    %5740 = vmatprep.subr.mxu0 0.0
    %5741 = vmatpush2.msra.mxu0 0.0
    %5742 = vmatprep.subr.mxu0 0.0
    %5743 = vmatpush2.msra.mxu0 0.0
    %5744 = vmatprep.subr.mxu0 0.0
    %5745 = vmatpush2.msra.mxu0 0.0
    %5746 = vmatprep.subr.mxu0 0.0
    %5747 = vmatpush2.msra.mxu0 0.0
    %5748 = vmatprep.subr.mxu0 0.0
    %5749 = vmatpush2.msra.mxu0 0.0
    %5750 = vmatprep.subr.mxu0 0.0
    %5751 = vmatpush2.msra.mxu0 0.0
    %5752 = vmatprep.mubr.f32.mxu0 0.0
    %5753 = vmatmul.mubr.f32.gmra.mxu0 %v5683
    %v5754 = vpop.f32.mrf.mxu0
    %v5755 = vadd.f32 0.0, %v5754
    %v5756 = vpop.f32.mrf.mxu0
    %5757 = vmatprep.mubr.f32.mxu0 0.0
    %5758 = vmatmul.mubr.f32.gmra.mxu0 %v5686
    %v5759 = vpop.f32.mrf.mxu0
    %v5760 = vadd.f32 0.0, %v5759
    %v5761 = vpop.f32.mrf.mxu0
    %5762 = vdwg.mxu0
    %v5764 = vsel %vm4853, %v5415, 0
    %v5767 = vsel %vm4853, %v5416, 0
    %5769 = vmatprep.subr.mxu0 0.0
    %5770 = vmatpush1.msra.mxu0 0.0
    %5771 = vmatprep.subr.mxu0 0.0
    %5772 = vmatpush1.msra.mxu0 0.0
    %5773 = vmatprep.subr.mxu0 0.0
    %5774 = vmatpush1.msra.mxu0 0.0
    %5775 = vmatprep.subr.mxu0 0.0
    %5776 = vmatpush1.msra.mxu0 0.0
    %5777 = vmatprep.subr.mxu0 0.0
    %5778 = vmatpush1.msra.mxu0 0.0
    %5779 = vmatprep.subr.mxu0 0.0
    %5780 = vmatpush1.msra.mxu0 0.0
    %5781 = vmatprep.subr.mxu0 0.0
    %5782 = vmatpush1.msra.mxu0 0.0
    %5783 = vmatprep.subr.mxu0 0.0
    %5784 = vmatpush1.msra.mxu0 0.0
    %5785 = vmatprep.subr.mxu0 0.0
    %5786 = vmatpush1.msra.mxu0 %v1485
    %5787 = vmatprep.subr.mxu0 0.0
    %5788 = vmatpush1.msra.mxu0 %v1484
    %5789 = vmatprep.subr.mxu0 0.0
    %5790 = vmatpush1.msra.mxu0 %v1483
    %5791 = vmatprep.subr.mxu0 0.0
    %5792 = vmatpush1.msra.mxu0 %v1482
    %5793 = vmatprep.subr.mxu0 0.0
    %5794 = vmatpush1.msra.mxu0 %v1481
    %5795 = vmatprep.subr.mxu0 0.0
    %5796 = vmatpush1.msra.mxu0 %v1480
    %5797 = vmatprep.subr.mxu0 0.0
    %5798 = vmatpush1.msra.mxu0 %v1479
    %5799 = vmatprep.subr.mxu0 0.0
    %5800 = vmatpush1.msra.mxu0 %v1478
    %5801 = vmatprep.subr.mxu0 0.0
    %5802 = vmatpush2.msra.mxu0 0.0
    %5803 = vmatprep.subr.mxu0 0.0
    %5804 = vmatpush2.msra.mxu0 0.0
    %5805 = vmatprep.subr.mxu0 0.0
    %5806 = vmatpush2.msra.mxu0 0.0
    %5807 = vmatprep.subr.mxu0 0.0
    %5808 = vmatpush2.msra.mxu0 0.0
    %5809 = vmatprep.subr.mxu0 0.0
    %5810 = vmatpush2.msra.mxu0 0.0
    %5811 = vmatprep.subr.mxu0 0.0
    %5812 = vmatpush2.msra.mxu0 0.0
    %5813 = vmatprep.subr.mxu0 0.0
    %5814 = vmatpush2.msra.mxu0 0.0
    %5815 = vmatprep.subr.mxu0 0.0
    %5816 = vmatpush2.msra.mxu0 0.0
    %5817 = vmatprep.subr.mxu0 0.0
    %5818 = vmatpush2.msra.mxu0 0.0
    %5819 = vmatprep.subr.mxu0 0.0
    %5820 = vmatpush2.msra.mxu0 0.0
    %5821 = vmatprep.subr.mxu0 0.0
    %5822 = vmatpush2.msra.mxu0 0.0
    %5823 = vmatprep.subr.mxu0 0.0
    %5824 = vmatpush2.msra.mxu0 0.0
    %5825 = vmatprep.subr.mxu0 0.0
    %5826 = vmatpush2.msra.mxu0 0.0
    %5827 = vmatprep.subr.mxu0 0.0
    %5828 = vmatpush2.msra.mxu0 0.0
    %5829 = vmatprep.subr.mxu0 0.0
    %5830 = vmatpush2.msra.mxu0 0.0
    %5831 = vmatprep.subr.mxu0 0.0
    %5832 = vmatpush2.msra.mxu0 0.0
    %5833 = vmatprep.mubr.f32.mxu0 0.0
    %5834 = vmatmul.mubr.f32.gmra.mxu0 %v5764
    %v5835 = vpop.f32.mrf.mxu0
    %v5836 = vadd.f32 0.0, %v5835
    %v5837 = vpop.f32.mrf.mxu0
    %5838 = vmatprep.mubr.f32.mxu0 0.0
    %5839 = vmatmul.mubr.f32.gmra.mxu0 %v5767
    %v5840 = vpop.f32.mrf.mxu0
    %v5841 = vadd.f32 0.0, %v5840
    %v5842 = vpop.f32.mrf.mxu0
    %5843 = vdwg.mxu0
    %v5845 = vsel %vm4853, %v5417, 0
    %v5848 = vsel %vm4853, %v5418, 0
    %5850 = vmatprep.subr.mxu0 0.0
    %5851 = vmatpush1.msra.mxu0 0.0
    %5852 = vmatprep.subr.mxu0 0.0
    %5853 = vmatpush1.msra.mxu0 0.0
    %5854 = vmatprep.subr.mxu0 0.0
    %5855 = vmatpush1.msra.mxu0 0.0
    %5856 = vmatprep.subr.mxu0 0.0
    %5857 = vmatpush1.msra.mxu0 0.0
    %5858 = vmatprep.subr.mxu0 0.0
    %5859 = vmatpush1.msra.mxu0 0.0
    %5860 = vmatprep.subr.mxu0 0.0
    %5861 = vmatpush1.msra.mxu0 0.0
    %5862 = vmatprep.subr.mxu0 0.0
    %5863 = vmatpush1.msra.mxu0 0.0
    %5864 = vmatprep.subr.mxu0 0.0
    %5865 = vmatpush1.msra.mxu0 0.0
    %5866 = vmatprep.subr.mxu0 0.0
    %5867 = vmatpush1.msra.mxu0 %v1493
    %5868 = vmatprep.subr.mxu0 0.0
    %5869 = vmatpush1.msra.mxu0 %v1492
    %5870 = vmatprep.subr.mxu0 0.0
    %5871 = vmatpush1.msra.mxu0 %v1491
    %5872 = vmatprep.subr.mxu0 0.0
    %5873 = vmatpush1.msra.mxu0 %v1490
    %5874 = vmatprep.subr.mxu0 0.0
    %5875 = vmatpush1.msra.mxu0 %v1489
    %5876 = vmatprep.subr.mxu0 0.0
    %5877 = vmatpush1.msra.mxu0 %v1488
    %5878 = vmatprep.subr.mxu0 0.0
    %5879 = vmatpush1.msra.mxu0 %v1487
    %5880 = vmatprep.subr.mxu0 0.0
    %5881 = vmatpush1.msra.mxu0 %v1486
    %5882 = vmatprep.subr.mxu0 0.0
    %5883 = vmatpush2.msra.mxu0 0.0
    %5884 = vmatprep.subr.mxu0 0.0
    %5885 = vmatpush2.msra.mxu0 0.0
    %5886 = vmatprep.subr.mxu0 0.0
    %5887 = vmatpush2.msra.mxu0 0.0
    %5888 = vmatprep.subr.mxu0 0.0
    %5889 = vmatpush2.msra.mxu0 0.0
    %5890 = vmatprep.subr.mxu0 0.0
    %5891 = vmatpush2.msra.mxu0 0.0
    %5892 = vmatprep.subr.mxu0 0.0
    %5893 = vmatpush2.msra.mxu0 0.0
    %5894 = vmatprep.subr.mxu0 0.0
    %5895 = vmatpush2.msra.mxu0 0.0
    %5896 = vmatprep.subr.mxu0 0.0
    %5897 = vmatpush2.msra.mxu0 0.0
    %5898 = vmatprep.subr.mxu0 0.0
    %5899 = vmatpush2.msra.mxu0 0.0
    %5900 = vmatprep.subr.mxu0 0.0
    %5901 = vmatpush2.msra.mxu0 0.0
    %5902 = vmatprep.subr.mxu0 0.0
    %5903 = vmatpush2.msra.mxu0 0.0
    %5904 = vmatprep.subr.mxu0 0.0
    %5905 = vmatpush2.msra.mxu0 0.0
    %5906 = vmatprep.subr.mxu0 0.0
    %5907 = vmatpush2.msra.mxu0 0.0
    %5908 = vmatprep.subr.mxu0 0.0
    %5909 = vmatpush2.msra.mxu0 0.0
    %5910 = vmatprep.subr.mxu0 0.0
    %5911 = vmatpush2.msra.mxu0 0.0
    %5912 = vmatprep.subr.mxu0 0.0
    %5913 = vmatpush2.msra.mxu0 0.0
    %5914 = vmatprep.mubr.f32.mxu0 0.0
    %5915 = vmatmul.mubr.f32.gmra.mxu0 %v5845
    %v5916 = vpop.f32.mrf.mxu0
    %v5917 = vadd.f32 0.0, %v5916
    %v5918 = vpop.f32.mrf.mxu0
    %5919 = vmatprep.mubr.f32.mxu0 0.0
    %5920 = vmatmul.mubr.f32.gmra.mxu0 %v5848
    %v5921 = vpop.f32.mrf.mxu0
    %v5922 = vadd.f32 0.0, %v5921
    %v5923 = vpop.f32.mrf.mxu0
    %5924 = vdwg.mxu0
    %v5926 = vsel %vm4853, %v5419, 0
    %v5929 = vsel %vm4853, %v5420, 0
    %5931 = vmatprep.subr.mxu0 0.0
    %5932 = vmatpush1.msra.mxu0 0.0
    %5933 = vmatprep.subr.mxu0 0.0
    %5934 = vmatpush1.msra.mxu0 0.0
    %5935 = vmatprep.subr.mxu0 0.0
    %5936 = vmatpush1.msra.mxu0 0.0
    %5937 = vmatprep.subr.mxu0 0.0
    %5938 = vmatpush1.msra.mxu0 0.0
    %5939 = vmatprep.subr.mxu0 0.0
    %5940 = vmatpush1.msra.mxu0 0.0
    %5941 = vmatprep.subr.mxu0 0.0
    %5942 = vmatpush1.msra.mxu0 0.0
    %5943 = vmatprep.subr.mxu0 0.0
    %5944 = vmatpush1.msra.mxu0 0.0
    %5945 = vmatprep.subr.mxu0 0.0
    %5946 = vmatpush1.msra.mxu0 0.0
    %5947 = vmatprep.subr.mxu0 0.0
    %5948 = vmatpush1.msra.mxu0 %v1501
    %5949 = vmatprep.subr.mxu0 0.0
    %5950 = vmatpush1.msra.mxu0 %v1500
    %5951 = vmatprep.subr.mxu0 0.0
    %5952 = vmatpush1.msra.mxu0 %v1499
    %5953 = vmatprep.subr.mxu0 0.0
    %5954 = vmatpush1.msra.mxu0 %v1498
    %5955 = vmatprep.subr.mxu0 0.0
    %5956 = vmatpush1.msra.mxu0 %v1497
    %5957 = vmatprep.subr.mxu0 0.0
    %5958 = vmatpush1.msra.mxu0 %v1496
    %5959 = vmatprep.subr.mxu0 0.0
    %5960 = vmatpush1.msra.mxu0 %v1495
    %5961 = vmatprep.subr.mxu0 0.0
    %5962 = vmatpush1.msra.mxu0 %v1494
    %5963 = vmatprep.subr.mxu0 0.0
    %5964 = vmatpush2.msra.mxu0 0.0
    %5965 = vmatprep.subr.mxu0 0.0
    %5966 = vmatpush2.msra.mxu0 0.0
    %5967 = vmatprep.subr.mxu0 0.0
    %5968 = vmatpush2.msra.mxu0 0.0
    %5969 = vmatprep.subr.mxu0 0.0
    %5970 = vmatpush2.msra.mxu0 0.0
    %5971 = vmatprep.subr.mxu0 0.0
    %5972 = vmatpush2.msra.mxu0 0.0
    %5973 = vmatprep.subr.mxu0 0.0
    %5974 = vmatpush2.msra.mxu0 0.0
    %5975 = vmatprep.subr.mxu0 0.0
    %5976 = vmatpush2.msra.mxu0 0.0
    %5977 = vmatprep.subr.mxu0 0.0
    %5978 = vmatpush2.msra.mxu0 0.0
    %5979 = vmatprep.subr.mxu0 0.0
    %5980 = vmatpush2.msra.mxu0 0.0
    %5981 = vmatprep.subr.mxu0 0.0
    %5982 = vmatpush2.msra.mxu0 0.0
    %5983 = vmatprep.subr.mxu0 0.0
    %5984 = vmatpush2.msra.mxu0 0.0
    %5985 = vmatprep.subr.mxu0 0.0
    %5986 = vmatpush2.msra.mxu0 0.0
    %5987 = vmatprep.subr.mxu0 0.0
    %5988 = vmatpush2.msra.mxu0 0.0
    %5989 = vmatprep.subr.mxu0 0.0
    %5990 = vmatpush2.msra.mxu0 0.0
    %5991 = vmatprep.subr.mxu0 0.0
    %5992 = vmatpush2.msra.mxu0 0.0
    %5993 = vmatprep.subr.mxu0 0.0
    %5994 = vmatpush2.msra.mxu0 0.0
    %5995 = vmatprep.mubr.f32.mxu0 0.0
    %5996 = vmatmul.mubr.f32.gmra.mxu0 %v5926
    %v5997 = vpop.f32.mrf.mxu0
    %v5998 = vadd.f32 0.0, %v5997
    %v5999 = vpop.f32.mrf.mxu0
    %6000 = vmatprep.mubr.f32.mxu0 0.0
    %6001 = vmatmul.mubr.f32.gmra.mxu0 %v5929
    %v6002 = vpop.f32.mrf.mxu0
    %v6003 = vadd.f32 0.0, %v6002
    %v6004 = vpop.f32.mrf.mxu0
    %6005 = vdwg.mxu0
    %v6007 = vsel %vm4853, %v5421, 0
    %v6010 = vsel %vm4853, %v5422, 0
    %6012 = vmatprep.subr.mxu0 0.0
    %6013 = vmatpush1.msra.mxu0 0.0
    %6014 = vmatprep.subr.mxu0 0.0
    %6015 = vmatpush1.msra.mxu0 0.0
    %6016 = vmatprep.subr.mxu0 0.0
    %6017 = vmatpush1.msra.mxu0 0.0
    %6018 = vmatprep.subr.mxu0 0.0
    %6019 = vmatpush1.msra.mxu0 0.0
    %6020 = vmatprep.subr.mxu0 0.0
    %6021 = vmatpush1.msra.mxu0 0.0
    %6022 = vmatprep.subr.mxu0 0.0
    %6023 = vmatpush1.msra.mxu0 0.0
    %6024 = vmatprep.subr.mxu0 0.0
    %6025 = vmatpush1.msra.mxu0 0.0
    %6026 = vmatprep.subr.mxu0 0.0
    %6027 = vmatpush1.msra.mxu0 0.0
    %6028 = vmatprep.subr.mxu0 0.0
    %6029 = vmatpush1.msra.mxu0 %v1509
    %6030 = vmatprep.subr.mxu0 0.0
    %6031 = vmatpush1.msra.mxu0 %v1508
    %6032 = vmatprep.subr.mxu0 0.0
    %6033 = vmatpush1.msra.mxu0 %v1507
    %6034 = vmatprep.subr.mxu0 0.0
    %6035 = vmatpush1.msra.mxu0 %v1506
    %6036 = vmatprep.subr.mxu0 0.0
    %6037 = vmatpush1.msra.mxu0 %v1505
    %6038 = vmatprep.subr.mxu0 0.0
    %6039 = vmatpush1.msra.mxu0 %v1504
    %6040 = vmatprep.subr.mxu0 0.0
    %6041 = vmatpush1.msra.mxu0 %v1503
    %6042 = vmatprep.subr.mxu0 0.0
    %6043 = vmatpush1.msra.mxu0 %v1502
    %6044 = vmatprep.subr.mxu0 0.0
    %6045 = vmatpush2.msra.mxu0 0.0
    %6046 = vmatprep.subr.mxu0 0.0
    %6047 = vmatpush2.msra.mxu0 0.0
    %6048 = vmatprep.subr.mxu0 0.0
    %6049 = vmatpush2.msra.mxu0 0.0
    %6050 = vmatprep.subr.mxu0 0.0
    %6051 = vmatpush2.msra.mxu0 0.0
    %6052 = vmatprep.subr.mxu0 0.0
    %6053 = vmatpush2.msra.mxu0 0.0
    %6054 = vmatprep.subr.mxu0 0.0
    %6055 = vmatpush2.msra.mxu0 0.0
    %6056 = vmatprep.subr.mxu0 0.0
    %6057 = vmatpush2.msra.mxu0 0.0
    %6058 = vmatprep.subr.mxu0 0.0
    %6059 = vmatpush2.msra.mxu0 0.0
    %6060 = vmatprep.subr.mxu0 0.0
    %6061 = vmatpush2.msra.mxu0 0.0
    %6062 = vmatprep.subr.mxu0 0.0
    %6063 = vmatpush2.msra.mxu0 0.0
    %6064 = vmatprep.subr.mxu0 0.0
    %6065 = vmatpush2.msra.mxu0 0.0
    %6066 = vmatprep.subr.mxu0 0.0
    %6067 = vmatpush2.msra.mxu0 0.0
    %6068 = vmatprep.subr.mxu0 0.0
    %6069 = vmatpush2.msra.mxu0 0.0
    %6070 = vmatprep.subr.mxu0 0.0
    %6071 = vmatpush2.msra.mxu0 0.0
    %6072 = vmatprep.subr.mxu0 0.0
    %6073 = vmatpush2.msra.mxu0 0.0
    %6074 = vmatprep.subr.mxu0 0.0
    %6075 = vmatpush2.msra.mxu0 0.0
    %6076 = vmatprep.mubr.f32.mxu0 0.0
    %6077 = vmatmul.mubr.f32.gmra.mxu0 %v6007
    %v6078 = vpop.f32.mrf.mxu0
    %v6079 = vadd.f32 0.0, %v6078
    %v6080 = vpop.f32.mrf.mxu0
    %6081 = vmatprep.mubr.f32.mxu0 0.0
    %6082 = vmatmul.mubr.f32.gmra.mxu0 %v6010
    %v6083 = vpop.f32.mrf.mxu0
    %v6084 = vadd.f32 0.0, %v6083
    %v6085 = vpop.f32.mrf.mxu0
    %6086 = vdwg.mxu0
    %v6088 = vsel %vm4853, %v5423, 0
    %v6091 = vsel %vm4853, %v5424, 0
    %6093 = vmatprep.subr.mxu0 0.0
    %6094 = vmatpush1.msra.mxu0 0.0
    %6095 = vmatprep.subr.mxu0 0.0
    %6096 = vmatpush1.msra.mxu0 0.0
    %6097 = vmatprep.subr.mxu0 0.0
    %6098 = vmatpush1.msra.mxu0 0.0
    %6099 = vmatprep.subr.mxu0 0.0
    %6100 = vmatpush1.msra.mxu0 0.0
    %6101 = vmatprep.subr.mxu0 0.0
    %6102 = vmatpush1.msra.mxu0 0.0
    %6103 = vmatprep.subr.mxu0 0.0
    %6104 = vmatpush1.msra.mxu0 0.0
    %6105 = vmatprep.subr.mxu0 0.0
    %6106 = vmatpush1.msra.mxu0 0.0
    %6107 = vmatprep.subr.mxu0 0.0
    %6108 = vmatpush1.msra.mxu0 0.0
    %6109 = vmatprep.subr.mxu0 0.0
    %6110 = vmatpush1.msra.mxu0 %v1517
    %6111 = vmatprep.subr.mxu0 0.0
    %6112 = vmatpush1.msra.mxu0 %v1516
    %6113 = vmatprep.subr.mxu0 0.0
    %6114 = vmatpush1.msra.mxu0 %v1515
    %6115 = vmatprep.subr.mxu0 0.0
    %6116 = vmatpush1.msra.mxu0 %v1514
    %6117 = vmatprep.subr.mxu0 0.0
    %6118 = vmatpush1.msra.mxu0 %v1513
    %6119 = vmatprep.subr.mxu0 0.0
    %6120 = vmatpush1.msra.mxu0 %v1512
    %6121 = vmatprep.subr.mxu0 0.0
    %6122 = vmatpush1.msra.mxu0 %v1511
    %6123 = vmatprep.subr.mxu0 0.0
    %6124 = vmatpush1.msra.mxu0 %v1510
    %6125 = vmatprep.subr.mxu0 0.0
    %6126 = vmatpush2.msra.mxu0 0.0
    %6127 = vmatprep.subr.mxu0 0.0
    %6128 = vmatpush2.msra.mxu0 0.0
    %6129 = vmatprep.subr.mxu0 0.0
    %6130 = vmatpush2.msra.mxu0 0.0
    %6131 = vmatprep.subr.mxu0 0.0
    %6132 = vmatpush2.msra.mxu0 0.0
    %6133 = vmatprep.subr.mxu0 0.0
    %6134 = vmatpush2.msra.mxu0 0.0
    %6135 = vmatprep.subr.mxu0 0.0
    %6136 = vmatpush2.msra.mxu0 0.0
    %6137 = vmatprep.subr.mxu0 0.0
    %6138 = vmatpush2.msra.mxu0 0.0
    %6139 = vmatprep.subr.mxu0 0.0
    %6140 = vmatpush2.msra.mxu0 0.0
    %6141 = vmatprep.subr.mxu0 0.0
    %6142 = vmatpush2.msra.mxu0 0.0
    %6143 = vmatprep.subr.mxu0 0.0
    %6144 = vmatpush2.msra.mxu0 0.0
    %6145 = vmatprep.subr.mxu0 0.0
    %6146 = vmatpush2.msra.mxu0 0.0
    %6147 = vmatprep.subr.mxu0 0.0
    %6148 = vmatpush2.msra.mxu0 0.0
    %6149 = vmatprep.subr.mxu0 0.0
    %6150 = vmatpush2.msra.mxu0 0.0
    %6151 = vmatprep.subr.mxu0 0.0
    %6152 = vmatpush2.msra.mxu0 0.0
    %6153 = vmatprep.subr.mxu0 0.0
    %6154 = vmatpush2.msra.mxu0 0.0
    %6155 = vmatprep.subr.mxu0 0.0
    %6156 = vmatpush2.msra.mxu0 0.0
    %6157 = vmatprep.mubr.f32.mxu0 0.0
    %6158 = vmatmul.mubr.f32.gmra.mxu0 %v6088
    %v6159 = vpop.f32.mrf.mxu0
    %v6160 = vadd.f32 0.0, %v6159
    %v6161 = vpop.f32.mrf.mxu0
    %6162 = vmatprep.mubr.f32.mxu0 0.0
    %6163 = vmatmul.mubr.f32.gmra.mxu0 %v6091
    %v6164 = vpop.f32.mrf.mxu0
    %v6165 = vadd.f32 0.0, %v6164
    %v6166 = vpop.f32.mrf.mxu0
    %6167 = vdwg.mxu0
    %v6169 = vsel %vm4853, %v5425, 0
    %v6172 = vsel %vm4853, %v5426, 0
    %6174 = vmatprep.subr.mxu0 0.0
    %6175 = vmatpush1.msra.mxu0 0.0
    %6176 = vmatprep.subr.mxu0 0.0
    %6177 = vmatpush1.msra.mxu0 0.0
    %6178 = vmatprep.subr.mxu0 0.0
    %6179 = vmatpush1.msra.mxu0 0.0
    %6180 = vmatprep.subr.mxu0 0.0
    %6181 = vmatpush1.msra.mxu0 0.0
    %6182 = vmatprep.subr.mxu0 0.0
    %6183 = vmatpush1.msra.mxu0 0.0
    %6184 = vmatprep.subr.mxu0 0.0
    %6185 = vmatpush1.msra.mxu0 0.0
    %6186 = vmatprep.subr.mxu0 0.0
    %6187 = vmatpush1.msra.mxu0 0.0
    %6188 = vmatprep.subr.mxu0 0.0
    %6189 = vmatpush1.msra.mxu0 0.0
    %6190 = vmatprep.subr.mxu0 0.0
    %6191 = vmatpush1.msra.mxu0 %v1525
    %6192 = vmatprep.subr.mxu0 0.0
    %6193 = vmatpush1.msra.mxu0 %v1524
    %6194 = vmatprep.subr.mxu0 0.0
    %6195 = vmatpush1.msra.mxu0 %v1523
    %6196 = vmatprep.subr.mxu0 0.0
    %6197 = vmatpush1.msra.mxu0 %v1522
    %6198 = vmatprep.subr.mxu0 0.0
    %6199 = vmatpush1.msra.mxu0 %v1521
    %6200 = vmatprep.subr.mxu0 0.0
    %6201 = vmatpush1.msra.mxu0 %v1520
    %6202 = vmatprep.subr.mxu0 0.0
    %6203 = vmatpush1.msra.mxu0 %v1519
    %6204 = vmatprep.subr.mxu0 0.0
    %6205 = vmatpush1.msra.mxu0 %v1518
    %6206 = vmatprep.subr.mxu0 0.0
    %6207 = vmatpush2.msra.mxu0 0.0
    %6208 = vmatprep.subr.mxu0 0.0
    %6209 = vmatpush2.msra.mxu0 0.0
    %6210 = vmatprep.subr.mxu0 0.0
    %6211 = vmatpush2.msra.mxu0 0.0
    %6212 = vmatprep.subr.mxu0 0.0
    %6213 = vmatpush2.msra.mxu0 0.0
    %6214 = vmatprep.subr.mxu0 0.0
    %6215 = vmatpush2.msra.mxu0 0.0
    %6216 = vmatprep.subr.mxu0 0.0
    %6217 = vmatpush2.msra.mxu0 0.0
    %6218 = vmatprep.subr.mxu0 0.0
    %6219 = vmatpush2.msra.mxu0 0.0
    %6220 = vmatprep.subr.mxu0 0.0
    %6221 = vmatpush2.msra.mxu0 0.0
    %6222 = vmatprep.subr.mxu0 0.0
    %6223 = vmatpush2.msra.mxu0 0.0
    %6224 = vmatprep.subr.mxu0 0.0
    %6225 = vmatpush2.msra.mxu0 0.0
    %6226 = vmatprep.subr.mxu0 0.0
    %6227 = vmatpush2.msra.mxu0 0.0
    %6228 = vmatprep.subr.mxu0 0.0
    %6229 = vmatpush2.msra.mxu0 0.0
    %6230 = vmatprep.subr.mxu0 0.0
    %6231 = vmatpush2.msra.mxu0 0.0
    %6232 = vmatprep.subr.mxu0 0.0
    %6233 = vmatpush2.msra.mxu0 0.0
    %6234 = vmatprep.subr.mxu0 0.0
    %6235 = vmatpush2.msra.mxu0 0.0
    %6236 = vmatprep.subr.mxu0 0.0
    %6237 = vmatpush2.msra.mxu0 0.0
    %6238 = vmatprep.mubr.f32.mxu0 0.0
    %6239 = vmatmul.mubr.f32.gmra.mxu0 %v6169
    %v6240 = vpop.f32.mrf.mxu0
    %v6241 = vadd.f32 0.0, %v6240
    %v6242 = vpop.f32.mrf.mxu0
    %6243 = vmatprep.mubr.f32.mxu0 0.0
    %6244 = vmatmul.mubr.f32.gmra.mxu0 %v6172
    %v6245 = vpop.f32.mrf.mxu0
    %v6246 = vadd.f32 0.0, %v6245
    %v6247 = vpop.f32.mrf.mxu0
    %6248 = vdwg.mxu0
    %v6250 = vsel %vm4853, %v5427, 0
    %v6253 = vsel %vm4853, %v5428, 0
    %6255 = vmatprep.subr.mxu0 0.0
    %6256 = vmatpush1.msra.mxu0 0.0
    %6257 = vmatprep.subr.mxu0 0.0
    %6258 = vmatpush1.msra.mxu0 0.0
    %6259 = vmatprep.subr.mxu0 0.0
    %6260 = vmatpush1.msra.mxu0 0.0
    %6261 = vmatprep.subr.mxu0 0.0
    %6262 = vmatpush1.msra.mxu0 0.0
    %6263 = vmatprep.subr.mxu0 0.0
    %6264 = vmatpush1.msra.mxu0 0.0
    %6265 = vmatprep.subr.mxu0 0.0
    %6266 = vmatpush1.msra.mxu0 0.0
    %6267 = vmatprep.subr.mxu0 0.0
    %6268 = vmatpush1.msra.mxu0 0.0
    %6269 = vmatprep.subr.mxu0 0.0
    %6270 = vmatpush1.msra.mxu0 0.0
    %6271 = vmatprep.subr.mxu0 0.0
    %6272 = vmatpush1.msra.mxu0 %v1533
    %6273 = vmatprep.subr.mxu0 0.0
    %6274 = vmatpush1.msra.mxu0 %v1532
    %6275 = vmatprep.subr.mxu0 0.0
    %6276 = vmatpush1.msra.mxu0 %v1531
    %6277 = vmatprep.subr.mxu0 0.0
    %6278 = vmatpush1.msra.mxu0 %v1530
    %6279 = vmatprep.subr.mxu0 0.0
    %6280 = vmatpush1.msra.mxu0 %v1529
    %6281 = vmatprep.subr.mxu0 0.0
    %6282 = vmatpush1.msra.mxu0 %v1528
    %6283 = vmatprep.subr.mxu0 0.0
    %6284 = vmatpush1.msra.mxu0 %v1527
    %6285 = vmatprep.subr.mxu0 0.0
    %6286 = vmatpush1.msra.mxu0 %v1526
    %6287 = vmatprep.subr.mxu0 0.0
    %6288 = vmatpush2.msra.mxu0 0.0
    %6289 = vmatprep.subr.mxu0 0.0
    %6290 = vmatpush2.msra.mxu0 0.0
    %6291 = vmatprep.subr.mxu0 0.0
    %6292 = vmatpush2.msra.mxu0 0.0
    %6293 = vmatprep.subr.mxu0 0.0
    %6294 = vmatpush2.msra.mxu0 0.0
    %6295 = vmatprep.subr.mxu0 0.0
    %6296 = vmatpush2.msra.mxu0 0.0
    %6297 = vmatprep.subr.mxu0 0.0
    %6298 = vmatpush2.msra.mxu0 0.0
    %6299 = vmatprep.subr.mxu0 0.0
    %6300 = vmatpush2.msra.mxu0 0.0
    %6301 = vmatprep.subr.mxu0 0.0
    %6302 = vmatpush2.msra.mxu0 0.0
    %6303 = vmatprep.subr.mxu0 0.0
    %6304 = vmatpush2.msra.mxu0 0.0
    %6305 = vmatprep.subr.mxu0 0.0
    %6306 = vmatpush2.msra.mxu0 0.0
    %6307 = vmatprep.subr.mxu0 0.0
    %6308 = vmatpush2.msra.mxu0 0.0
    %6309 = vmatprep.subr.mxu0 0.0
    %6310 = vmatpush2.msra.mxu0 0.0
    %6311 = vmatprep.subr.mxu0 0.0
    %6312 = vmatpush2.msra.mxu0 0.0
    %6313 = vmatprep.subr.mxu0 0.0
    %6314 = vmatpush2.msra.mxu0 0.0
    %6315 = vmatprep.subr.mxu0 0.0
    %6316 = vmatpush2.msra.mxu0 0.0
    %6317 = vmatprep.subr.mxu0 0.0
    %6318 = vmatpush2.msra.mxu0 0.0
    %6319 = vmatprep.mubr.f32.mxu0 0.0
    %6320 = vmatmul.mubr.f32.gmra.mxu0 %v6250
    %v6321 = vpop.f32.mrf.mxu0
    %v6322 = vadd.f32 0.0, %v6321
    %v6323 = vpop.f32.mrf.mxu0
    %6324 = vmatprep.mubr.f32.mxu0 0.0
    %6325 = vmatmul.mubr.f32.gmra.mxu0 %v6253
    %v6326 = vpop.f32.mrf.mxu0
    %v6327 = vadd.f32 0.0, %v6326
    %v6328 = vpop.f32.mrf.mxu0
    %6329 = vdwg.mxu0
    %v6331 = vsel %vm4853, %v5429, 0
    %v6334 = vsel %vm4853, %v5430, 0
    %6336 = vmatprep.subr.mxu0 0.0
    %6337 = vmatpush1.msra.mxu0 0.0
    %6338 = vmatprep.subr.mxu0 0.0
    %6339 = vmatpush1.msra.mxu0 0.0
    %6340 = vmatprep.subr.mxu0 0.0
    %6341 = vmatpush1.msra.mxu0 0.0
    %6342 = vmatprep.subr.mxu0 0.0
    %6343 = vmatpush1.msra.mxu0 0.0
    %6344 = vmatprep.subr.mxu0 0.0
    %6345 = vmatpush1.msra.mxu0 0.0
    %6346 = vmatprep.subr.mxu0 0.0
    %6347 = vmatpush1.msra.mxu0 0.0
    %6348 = vmatprep.subr.mxu0 0.0
    %6349 = vmatpush1.msra.mxu0 0.0
    %6350 = vmatprep.subr.mxu0 0.0
    %6351 = vmatpush1.msra.mxu0 0.0
    %6352 = vmatprep.subr.mxu0 0.0
    %6353 = vmatpush1.msra.mxu0 %v1541
    %6354 = vmatprep.subr.mxu0 0.0
    %6355 = vmatpush1.msra.mxu0 %v1540
    %6356 = vmatprep.subr.mxu0 0.0
    %6357 = vmatpush1.msra.mxu0 %v1539
    %6358 = vmatprep.subr.mxu0 0.0
    %6359 = vmatpush1.msra.mxu0 %v1538
    %6360 = vmatprep.subr.mxu0 0.0
    %6361 = vmatpush1.msra.mxu0 %v1537
    %6362 = vmatprep.subr.mxu0 0.0
    %6363 = vmatpush1.msra.mxu0 %v1536
    %6364 = vmatprep.subr.mxu0 0.0
    %6365 = vmatpush1.msra.mxu0 %v1535
    %6366 = vmatprep.subr.mxu0 0.0
    %6367 = vmatpush1.msra.mxu0 %v1534
    %6368 = vmatprep.subr.mxu0 0.0
    %6369 = vmatpush2.msra.mxu0 0.0
    %6370 = vmatprep.subr.mxu0 0.0
    %6371 = vmatpush2.msra.mxu0 0.0
    %6372 = vmatprep.subr.mxu0 0.0
    %6373 = vmatpush2.msra.mxu0 0.0
    %6374 = vmatprep.subr.mxu0 0.0
    %6375 = vmatpush2.msra.mxu0 0.0
    %6376 = vmatprep.subr.mxu0 0.0
    %6377 = vmatpush2.msra.mxu0 0.0
    %6378 = vmatprep.subr.mxu0 0.0
    %6379 = vmatpush2.msra.mxu0 0.0
    %6380 = vmatprep.subr.mxu0 0.0
    %6381 = vmatpush2.msra.mxu0 0.0
    %6382 = vmatprep.subr.mxu0 0.0
    %6383 = vmatpush2.msra.mxu0 0.0
    %6384 = vmatprep.subr.mxu0 0.0
    %6385 = vmatpush2.msra.mxu0 0.0
    %6386 = vmatprep.subr.mxu0 0.0
    %6387 = vmatpush2.msra.mxu0 0.0
    %6388 = vmatprep.subr.mxu0 0.0
    %6389 = vmatpush2.msra.mxu0 0.0
    %6390 = vmatprep.subr.mxu0 0.0
    %6391 = vmatpush2.msra.mxu0 0.0
    %6392 = vmatprep.subr.mxu0 0.0
    %6393 = vmatpush2.msra.mxu0 0.0
    %6394 = vmatprep.subr.mxu0 0.0
    %6395 = vmatpush2.msra.mxu0 0.0
    %6396 = vmatprep.subr.mxu0 0.0
    %6397 = vmatpush2.msra.mxu0 0.0
    %6398 = vmatprep.subr.mxu0 0.0
    %6399 = vmatpush2.msra.mxu0 0.0
    %6400 = vmatprep.mubr.f32.mxu0 0.0
    %6401 = vmatmul.mubr.f32.gmra.mxu0 %v6331
    %v6402 = vpop.f32.mrf.mxu0
    %v6403 = vadd.f32 0.0, %v6402
    %v6404 = vpop.f32.mrf.mxu0
    %6405 = vmatprep.mubr.f32.mxu0 0.0
    %6406 = vmatmul.mubr.f32.gmra.mxu0 %v6334
    %v6407 = vpop.f32.mrf.mxu0
    %v6408 = vadd.f32 0.0, %v6407
    %v6409 = vpop.f32.mrf.mxu0
    %6410 = vdwg.mxu0
    %v6412 = vsel %vm4853, %v5431, 0
    %v6415 = vsel %vm4853, %v5432, 0
    %6417 = vmatprep.subr.mxu0 0.0
    %6418 = vmatpush1.msra.mxu0 0.0
    %6419 = vmatprep.subr.mxu0 0.0
    %6420 = vmatpush1.msra.mxu0 0.0
    %6421 = vmatprep.subr.mxu0 0.0
    %6422 = vmatpush1.msra.mxu0 0.0
    %6423 = vmatprep.subr.mxu0 0.0
    %6424 = vmatpush1.msra.mxu0 0.0
    %6425 = vmatprep.subr.mxu0 0.0
    %6426 = vmatpush1.msra.mxu0 0.0
    %6427 = vmatprep.subr.mxu0 0.0
    %6428 = vmatpush1.msra.mxu0 0.0
    %6429 = vmatprep.subr.mxu0 0.0
    %6430 = vmatpush1.msra.mxu0 0.0
    %6431 = vmatprep.subr.mxu0 0.0
    %6432 = vmatpush1.msra.mxu0 0.0
    %6433 = vmatprep.subr.mxu0 0.0
    %6434 = vmatpush1.msra.mxu0 %v1549
    %6435 = vmatprep.subr.mxu0 0.0
    %6436 = vmatpush1.msra.mxu0 %v1548
    %6437 = vmatprep.subr.mxu0 0.0
    %6438 = vmatpush1.msra.mxu0 %v1547
    %6439 = vmatprep.subr.mxu0 0.0
    %6440 = vmatpush1.msra.mxu0 %v1546
    %6441 = vmatprep.subr.mxu0 0.0
    %6442 = vmatpush1.msra.mxu0 %v1545
    %6443 = vmatprep.subr.mxu0 0.0
    %6444 = vmatpush1.msra.mxu0 %v1544
    %6445 = vmatprep.subr.mxu0 0.0
    %6446 = vmatpush1.msra.mxu0 %v1543
    %6447 = vmatprep.subr.mxu0 0.0
    %6448 = vmatpush1.msra.mxu0 %v1542
    %6449 = vmatprep.subr.mxu0 0.0
    %6450 = vmatpush2.msra.mxu0 0.0
    %6451 = vmatprep.subr.mxu0 0.0
    %6452 = vmatpush2.msra.mxu0 0.0
    %6453 = vmatprep.subr.mxu0 0.0
    %6454 = vmatpush2.msra.mxu0 0.0
    %6455 = vmatprep.subr.mxu0 0.0
    %6456 = vmatpush2.msra.mxu0 0.0
    %6457 = vmatprep.subr.mxu0 0.0
    %6458 = vmatpush2.msra.mxu0 0.0
    %6459 = vmatprep.subr.mxu0 0.0
    %6460 = vmatpush2.msra.mxu0 0.0
    %6461 = vmatprep.subr.mxu0 0.0
    %6462 = vmatpush2.msra.mxu0 0.0
    %6463 = vmatprep.subr.mxu0 0.0
    %6464 = vmatpush2.msra.mxu0 0.0
    %6465 = vmatprep.subr.mxu0 0.0
    %6466 = vmatpush2.msra.mxu0 0.0
    %6467 = vmatprep.subr.mxu0 0.0
    %6468 = vmatpush2.msra.mxu0 0.0
    %6469 = vmatprep.subr.mxu0 0.0
    %6470 = vmatpush2.msra.mxu0 0.0
    %6471 = vmatprep.subr.mxu0 0.0
    %6472 = vmatpush2.msra.mxu0 0.0
    %6473 = vmatprep.subr.mxu0 0.0
    %6474 = vmatpush2.msra.mxu0 0.0
    %6475 = vmatprep.subr.mxu0 0.0
    %6476 = vmatpush2.msra.mxu0 0.0
    %6477 = vmatprep.subr.mxu0 0.0
    %6478 = vmatpush2.msra.mxu0 0.0
    %6479 = vmatprep.subr.mxu0 0.0
    %6480 = vmatpush2.msra.mxu0 0.0
    %6481 = vmatprep.mubr.f32.mxu0 0.0
    %6482 = vmatmul.mubr.f32.gmra.mxu0 %v6412
    %v6483 = vpop.f32.mrf.mxu0
    %v6484 = vadd.f32 0.0, %v6483
    %v6485 = vpop.f32.mrf.mxu0
    %6486 = vmatprep.mubr.f32.mxu0 0.0
    %6487 = vmatmul.mubr.f32.gmra.mxu0 %v6415
    %v6488 = vpop.f32.mrf.mxu0
    %v6489 = vadd.f32 0.0, %v6488
    %v6490 = vpop.f32.mrf.mxu0
    %6491 = vdwg.mxu0
    %v6493 = vsel %vm4853, %v5433, 0
    %v6496 = vsel %vm4853, %v5434, 0
    %6498 = vmatprep.subr.mxu0 0.0
    %6499 = vmatpush1.msra.mxu0 0.0
    %6500 = vmatprep.subr.mxu0 0.0
    %6501 = vmatpush1.msra.mxu0 0.0
    %6502 = vmatprep.subr.mxu0 0.0
    %6503 = vmatpush1.msra.mxu0 0.0
    %6504 = vmatprep.subr.mxu0 0.0
    %6505 = vmatpush1.msra.mxu0 0.0
    %6506 = vmatprep.subr.mxu0 0.0
    %6507 = vmatpush1.msra.mxu0 0.0
    %6508 = vmatprep.subr.mxu0 0.0
    %6509 = vmatpush1.msra.mxu0 0.0
    %6510 = vmatprep.subr.mxu0 0.0
    %6511 = vmatpush1.msra.mxu0 0.0
    %6512 = vmatprep.subr.mxu0 0.0
    %6513 = vmatpush1.msra.mxu0 0.0
    %6514 = vmatprep.subr.mxu0 0.0
    %6515 = vmatpush1.msra.mxu0 %v1557
    %6516 = vmatprep.subr.mxu0 0.0
    %6517 = vmatpush1.msra.mxu0 %v1556
    %6518 = vmatprep.subr.mxu0 0.0
    %6519 = vmatpush1.msra.mxu0 %v1555
    %6520 = vmatprep.subr.mxu0 0.0
    %6521 = vmatpush1.msra.mxu0 %v1554
    %6522 = vmatprep.subr.mxu0 0.0
    %6523 = vmatpush1.msra.mxu0 %v1553
    %6524 = vmatprep.subr.mxu0 0.0
    %6525 = vmatpush1.msra.mxu0 %v1552
    %6526 = vmatprep.subr.mxu0 0.0
    %6527 = vmatpush1.msra.mxu0 %v1551
    %6528 = vmatprep.subr.mxu0 0.0
    %6529 = vmatpush1.msra.mxu0 %v1550
    %6530 = vmatprep.subr.mxu0 0.0
    %6531 = vmatpush2.msra.mxu0 0.0
    %6532 = vmatprep.subr.mxu0 0.0
    %6533 = vmatpush2.msra.mxu0 0.0
    %6534 = vmatprep.subr.mxu0 0.0
    %6535 = vmatpush2.msra.mxu0 0.0
    %6536 = vmatprep.subr.mxu0 0.0
    %6537 = vmatpush2.msra.mxu0 0.0
    %6538 = vmatprep.subr.mxu0 0.0
    %6539 = vmatpush2.msra.mxu0 0.0
    %6540 = vmatprep.subr.mxu0 0.0
    %6541 = vmatpush2.msra.mxu0 0.0
    %6542 = vmatprep.subr.mxu0 0.0
    %6543 = vmatpush2.msra.mxu0 0.0
    %6544 = vmatprep.subr.mxu0 0.0
    %6545 = vmatpush2.msra.mxu0 0.0
    %6546 = vmatprep.subr.mxu0 0.0
    %6547 = vmatpush2.msra.mxu0 0.0
    %6548 = vmatprep.subr.mxu0 0.0
    %6549 = vmatpush2.msra.mxu0 0.0
    %6550 = vmatprep.subr.mxu0 0.0
    %6551 = vmatpush2.msra.mxu0 0.0
    %6552 = vmatprep.subr.mxu0 0.0
    %6553 = vmatpush2.msra.mxu0 0.0
    %6554 = vmatprep.subr.mxu0 0.0
    %6555 = vmatpush2.msra.mxu0 0.0
    %6556 = vmatprep.subr.mxu0 0.0
    %6557 = vmatpush2.msra.mxu0 0.0
    %6558 = vmatprep.subr.mxu0 0.0
    %6559 = vmatpush2.msra.mxu0 0.0
    %6560 = vmatprep.subr.mxu0 0.0
    %6561 = vmatpush2.msra.mxu0 0.0
    %6562 = vmatprep.mubr.f32.mxu0 0.0
    %6563 = vmatmul.mubr.f32.gmra.mxu0 %v6493
    %v6564 = vpop.f32.mrf.mxu0
    %v6565 = vadd.f32 0.0, %v6564
    %v6566 = vpop.f32.mrf.mxu0
    %6567 = vmatprep.mubr.f32.mxu0 0.0
    %6568 = vmatmul.mubr.f32.gmra.mxu0 %v6496
    %v6569 = vpop.f32.mrf.mxu0
    %v6570 = vadd.f32 0.0, %v6569
    %v6571 = vpop.f32.mrf.mxu0
    %6572 = vdwg.mxu0
    %v6574 = vsel %vm4853, %v5435, 0
    %v6577 = vsel %vm4853, %v5436, 0
    %6579 = vmatprep.subr.mxu0 0.0
    %6580 = vmatpush1.msra.mxu0 0.0
    %6581 = vmatprep.subr.mxu0 0.0
    %6582 = vmatpush1.msra.mxu0 0.0
    %6583 = vmatprep.subr.mxu0 0.0
    %6584 = vmatpush1.msra.mxu0 0.0
    %6585 = vmatprep.subr.mxu0 0.0
    %6586 = vmatpush1.msra.mxu0 0.0
    %6587 = vmatprep.subr.mxu0 0.0
    %6588 = vmatpush1.msra.mxu0 0.0
    %6589 = vmatprep.subr.mxu0 0.0
    %6590 = vmatpush1.msra.mxu0 0.0
    %6591 = vmatprep.subr.mxu0 0.0
    %6592 = vmatpush1.msra.mxu0 0.0
    %6593 = vmatprep.subr.mxu0 0.0
    %6594 = vmatpush1.msra.mxu0 0.0
    %6595 = vmatprep.subr.mxu0 0.0
    %6596 = vmatpush1.msra.mxu0 %v1565
    %6597 = vmatprep.subr.mxu0 0.0
    %6598 = vmatpush1.msra.mxu0 %v1564
    %6599 = vmatprep.subr.mxu0 0.0
    %6600 = vmatpush1.msra.mxu0 %v1563
    %6601 = vmatprep.subr.mxu0 0.0
    %6602 = vmatpush1.msra.mxu0 %v1562
    %6603 = vmatprep.subr.mxu0 0.0
    %6604 = vmatpush1.msra.mxu0 %v1561
    %6605 = vmatprep.subr.mxu0 0.0
    %6606 = vmatpush1.msra.mxu0 %v1560
    %6607 = vmatprep.subr.mxu0 0.0
    %6608 = vmatpush1.msra.mxu0 %v1559
    %6609 = vmatprep.subr.mxu0 0.0
    %6610 = vmatpush1.msra.mxu0 %v1558
    %6611 = vmatprep.subr.mxu0 0.0
    %6612 = vmatpush2.msra.mxu0 0.0
    %6613 = vmatprep.subr.mxu0 0.0
    %6614 = vmatpush2.msra.mxu0 0.0
    %6615 = vmatprep.subr.mxu0 0.0
    %6616 = vmatpush2.msra.mxu0 0.0
    %6617 = vmatprep.subr.mxu0 0.0
    %6618 = vmatpush2.msra.mxu0 0.0
    %6619 = vmatprep.subr.mxu0 0.0
    %6620 = vmatpush2.msra.mxu0 0.0
    %6621 = vmatprep.subr.mxu0 0.0
    %6622 = vmatpush2.msra.mxu0 0.0
    %6623 = vmatprep.subr.mxu0 0.0
    %6624 = vmatpush2.msra.mxu0 0.0
    %6625 = vmatprep.subr.mxu0 0.0
    %6626 = vmatpush2.msra.mxu0 0.0
    %6627 = vmatprep.subr.mxu0 0.0
    %6628 = vmatpush2.msra.mxu0 0.0
    %6629 = vmatprep.subr.mxu0 0.0
    %6630 = vmatpush2.msra.mxu0 0.0
    %6631 = vmatprep.subr.mxu0 0.0
    %6632 = vmatpush2.msra.mxu0 0.0
    %6633 = vmatprep.subr.mxu0 0.0
    %6634 = vmatpush2.msra.mxu0 0.0
    %6635 = vmatprep.subr.mxu0 0.0
    %6636 = vmatpush2.msra.mxu0 0.0
    %6637 = vmatprep.subr.mxu0 0.0
    %6638 = vmatpush2.msra.mxu0 0.0
    %6639 = vmatprep.subr.mxu0 0.0
    %6640 = vmatpush2.msra.mxu0 0.0
    %6641 = vmatprep.subr.mxu0 0.0
    %6642 = vmatpush2.msra.mxu0 0.0
    %6643 = vmatprep.mubr.f32.mxu0 0.0
    %6644 = vmatmul.mubr.f32.gmra.mxu0 %v6574
    %v6645 = vpop.f32.mrf.mxu0
    %v6646 = vadd.f32 0.0, %v6645
    %v6647 = vpop.f32.mrf.mxu0
    %6648 = vmatprep.mubr.f32.mxu0 0.0
    %6649 = vmatmul.mubr.f32.gmra.mxu0 %v6577
    %v6650 = vpop.f32.mrf.mxu0
    %v6651 = vadd.f32 0.0, %v6650
    %v6652 = vpop.f32.mrf.mxu0
    %6653 = vdwg.mxu0
    %v6655 = vsel %vm4853, %v5437, 0
    %v6658 = vsel %vm4853, %v5438, 0
    %6660 = vmatprep.subr.mxu0 0.0
    %6661 = vmatpush1.msra.mxu0 0.0
    %6662 = vmatprep.subr.mxu0 0.0
    %6663 = vmatpush1.msra.mxu0 0.0
    %6664 = vmatprep.subr.mxu0 0.0
    %6665 = vmatpush1.msra.mxu0 0.0
    %6666 = vmatprep.subr.mxu0 0.0
    %6667 = vmatpush1.msra.mxu0 0.0
    %6668 = vmatprep.subr.mxu0 0.0
    %6669 = vmatpush1.msra.mxu0 0.0
    %6670 = vmatprep.subr.mxu0 0.0
    %6671 = vmatpush1.msra.mxu0 0.0
    %6672 = vmatprep.subr.mxu0 0.0
    %6673 = vmatpush1.msra.mxu0 0.0
    %6674 = vmatprep.subr.mxu0 0.0
    %6675 = vmatpush1.msra.mxu0 0.0
    %6676 = vmatprep.subr.mxu0 0.0
    %6677 = vmatpush1.msra.mxu0 %v1573
    %6678 = vmatprep.subr.mxu0 0.0
    %6679 = vmatpush1.msra.mxu0 %v1572
    %6680 = vmatprep.subr.mxu0 0.0
    %6681 = vmatpush1.msra.mxu0 %v1571
    %6682 = vmatprep.subr.mxu0 0.0
    %6683 = vmatpush1.msra.mxu0 %v1570
    %6684 = vmatprep.subr.mxu0 0.0
    %6685 = vmatpush1.msra.mxu0 %v1569
    %6686 = vmatprep.subr.mxu0 0.0
    %6687 = vmatpush1.msra.mxu0 %v1568
    %6688 = vmatprep.subr.mxu0 0.0
    %6689 = vmatpush1.msra.mxu0 %v1567
    %6690 = vmatprep.subr.mxu0 0.0
    %6691 = vmatpush1.msra.mxu0 %v1566
    %6692 = vmatprep.subr.mxu0 0.0
    %6693 = vmatpush2.msra.mxu0 0.0
    %6694 = vmatprep.subr.mxu0 0.0
    %6695 = vmatpush2.msra.mxu0 0.0
    %6696 = vmatprep.subr.mxu0 0.0
    %6697 = vmatpush2.msra.mxu0 0.0
    %6698 = vmatprep.subr.mxu0 0.0
    %6699 = vmatpush2.msra.mxu0 0.0
    %6700 = vmatprep.subr.mxu0 0.0
    %6701 = vmatpush2.msra.mxu0 0.0
    %6702 = vmatprep.subr.mxu0 0.0
    %6703 = vmatpush2.msra.mxu0 0.0
    %6704 = vmatprep.subr.mxu0 0.0
    %6705 = vmatpush2.msra.mxu0 0.0
    %6706 = vmatprep.subr.mxu0 0.0
    %6707 = vmatpush2.msra.mxu0 0.0
    %6708 = vmatprep.subr.mxu0 0.0
    %6709 = vmatpush2.msra.mxu0 0.0
    %6710 = vmatprep.subr.mxu0 0.0
    %6711 = vmatpush2.msra.mxu0 0.0
    %6712 = vmatprep.subr.mxu0 0.0
    %6713 = vmatpush2.msra.mxu0 0.0
    %6714 = vmatprep.subr.mxu0 0.0
    %6715 = vmatpush2.msra.mxu0 0.0
    %6716 = vmatprep.subr.mxu0 0.0
    %6717 = vmatpush2.msra.mxu0 0.0
    %6718 = vmatprep.subr.mxu0 0.0
    %6719 = vmatpush2.msra.mxu0 0.0
    %6720 = vmatprep.subr.mxu0 0.0
    %6721 = vmatpush2.msra.mxu0 0.0
    %6722 = vmatprep.subr.mxu0 0.0
    %6723 = vmatpush2.msra.mxu0 0.0
    %6724 = vmatprep.mubr.f32.mxu0 0.0
    %6725 = vmatmul.mubr.f32.gmra.mxu0 %v6655
    %v6726 = vpop.f32.mrf.mxu0
    %v6727 = vadd.f32 0.0, %v6726
    %v6728 = vpop.f32.mrf.mxu0
    %6729 = vmatprep.mubr.f32.mxu0 0.0
    %6730 = vmatmul.mubr.f32.gmra.mxu0 %v6658
    %v6731 = vpop.f32.mrf.mxu0
    %v6732 = vadd.f32 0.0, %v6731
    %v6733 = vpop.f32.mrf.mxu0
    %6734 = vdwg.mxu0
    %v6735 = vld [vmem:[#allocation8] sm:$0xff]
    %v6736 = vld [vmem:[#allocation8 + $0x8] sm:$0xff]
    %v6737 = vld [vmem:[#allocation8 + $0x10] sm:$0xff]
    %v6738 = vld [vmem:[#allocation8 + $0x18] sm:$0xff]
    %v6739 = vld [vmem:[%s8] sm:$0x1]
    %v6741 = vlaneseq
    %v6742 = vshrl.u32 %v6741, 7
    %v6743 = vsub.s32 0, %v6742
    %v6744 = vrot.slane %v6739, %v6743
    %v6747 = vsel %vm159, %v5512, 0
    %v6750 = vsel %vm159, %v5517, 0
    %v6753 = vsel %vm159, %v5593, 0
    %v6756 = vsel %vm159, %v5598, 0
    %v6759 = vsel %vm159, %v5674, 0
    %v6762 = vsel %vm159, %v5679, 0
    %v6765 = vsel %vm159, %v5755, 0
    %v6768 = vsel %vm159, %v5760, 0
    %v6771 = vsel %vm159, %v5836, 0
    %v6774 = vsel %vm159, %v5841, 0
    %v6777 = vsel %vm159, %v5917, 0
    %v6780 = vsel %vm159, %v5922, 0
    %v6783 = vsel %vm159, %v5998, 0
    %v6786 = vsel %vm159, %v6003, 0
    %v6789 = vsel %vm159, %v6079, 0
    %v6792 = vsel %vm159, %v6084, 0
    %v6795 = vsel %vm159, %v6160, 0
    %v6798 = vsel %vm159, %v6165, 0
    %v6801 = vsel %vm159, %v6241, 0
    %v6804 = vsel %vm159, %v6246, 0
    %v6807 = vsel %vm159, %v6322, 0
    %v6810 = vsel %vm159, %v6327, 0
    %v6813 = vsel %vm159, %v6403, 0
    %v6816 = vsel %vm159, %v6408, 0
    %v6819 = vsel %vm159, %v6484, 0
    %v6822 = vsel %vm159, %v6489, 0
    %v6825 = vsel %vm159, %v6565, 0
    %v6828 = vsel %vm159, %v6570, 0
    %v6831 = vsel %vm159, %v6646, 0
    %v6834 = vsel %vm159, %v6651, 0
    %v6837 = vsel %vm159, %v6727, 0
    %v6840 = vsel %vm159, %v6732, 0
    %6842 = vmatprep.subr.mxu0 0.0
    %6843 = vmatpush1.msra.mxu0 0.0
    %6844 = vmatprep.subr.mxu0 0.0
    %6845 = vmatpush1.msra.mxu0 0.0
    %6846 = vmatprep.subr.mxu0 0.0
    %6847 = vmatpush1.msra.mxu0 0.0
    %6848 = vmatprep.subr.mxu0 0.0
    %6849 = vmatpush1.msra.mxu0 0.0
    %6850 = vmatprep.subr.mxu0 0.0
    %6851 = vmatpush1.msra.mxu0 0.0
    %6852 = vmatprep.subr.mxu0 0.0
    %6853 = vmatpush1.msra.mxu0 0.0
    %6854 = vmatprep.subr.mxu0 0.0
    %6855 = vmatpush1.msra.mxu0 0.0
    %6856 = vmatprep.subr.mxu0 0.0
    %6857 = vmatpush1.msra.mxu0 0.0
    %6858 = vmatprep.subr.mxu0 0.0
    %6859 = vmatpush1.msra.mxu0 0.0
    %6860 = vmatprep.subr.mxu0 0.0
    %6861 = vmatpush1.msra.mxu0 0.0
    %6862 = vmatprep.subr.mxu0 0.0
    %6863 = vmatpush1.msra.mxu0 0.0
    %6864 = vmatprep.subr.mxu0 0.0
    %6865 = vmatpush1.msra.mxu0 0.0
    %6866 = vmatprep.subr.mxu0 0.0
    %6867 = vmatpush1.msra.mxu0 %v6738
    %6868 = vmatprep.subr.mxu0 0.0
    %6869 = vmatpush1.msra.mxu0 %v6737
    %6870 = vmatprep.subr.mxu0 0.0
    %6871 = vmatpush1.msra.mxu0 %v6736
    %6872 = vmatprep.subr.mxu0 0.0
    %6873 = vmatpush1.msra.mxu0 %v6735
    %6874 = vmatprep.subr.mxu0 0.0
    %6875 = vmatpush2.msra.mxu0 0.0
    %6876 = vmatprep.subr.mxu0 0.0
    %6877 = vmatpush2.msra.mxu0 0.0
    %6878 = vmatprep.subr.mxu0 0.0
    %6879 = vmatpush2.msra.mxu0 0.0
    %6880 = vmatprep.subr.mxu0 0.0
    %6881 = vmatpush2.msra.mxu0 0.0
    %6882 = vmatprep.subr.mxu0 0.0
    %6883 = vmatpush2.msra.mxu0 0.0
    %6884 = vmatprep.subr.mxu0 0.0
    %6885 = vmatpush2.msra.mxu0 0.0
    %6886 = vmatprep.subr.mxu0 0.0
    %6887 = vmatpush2.msra.mxu0 0.0
    %6888 = vmatprep.subr.mxu0 0.0
    %6889 = vmatpush2.msra.mxu0 0.0
    %6890 = vmatprep.subr.mxu0 0.0
    %6891 = vmatpush2.msra.mxu0 0.0
    %6892 = vmatprep.subr.mxu0 0.0
    %6893 = vmatpush2.msra.mxu0 0.0
    %6894 = vmatprep.subr.mxu0 0.0
    %6895 = vmatpush2.msra.mxu0 0.0
    %6896 = vmatprep.subr.mxu0 0.0
    %6897 = vmatpush2.msra.mxu0 0.0
    %6898 = vmatprep.subr.mxu0 0.0
    %6899 = vmatpush2.msra.mxu0 0.0
    %6900 = vmatprep.subr.mxu0 0.0
    %6901 = vmatpush2.msra.mxu0 0.0
    %6902 = vmatprep.subr.mxu0 0.0
    %6903 = vmatpush2.msra.mxu0 0.0
    %6904 = vmatprep.subr.mxu0 0.0
    %6905 = vmatpush2.msra.mxu0 0.0
    %6906 = vmatprep.mubr.f32.mxu0 0.0
    %6907 = vmatmul.mubr.f32.gmra.mxu0 %v6747
    %v6908 = vpop.f32.mrf.mxu0
    %v6909 = vadd.f32 %v6744, %v6908
    %v6910 = vpop.f32.mrf.mxu0
    %6911 = vmatprep.mubr.f32.mxu0 0.0
    %6912 = vmatmul.mubr.f32.gmra.mxu0 %v6750
    %v6913 = vpop.f32.mrf.mxu0
    %v6914 = vadd.f32 %v6744, %v6913
    %v6915 = vpop.f32.mrf.mxu0
    %6916 = vmatprep.mubr.f32.mxu0 0.0
    %6917 = vmatmul.mubr.f32.gmra.mxu0 %v6753
    %v6918 = vpop.f32.mrf.mxu0
    %v6919 = vadd.f32 %v6744, %v6918
    %v6920 = vpop.f32.mrf.mxu0
    %6921 = vmatprep.mubr.f32.mxu0 0.0
    %6922 = vmatmul.mubr.f32.gmra.mxu0 %v6756
    %v6923 = vpop.f32.mrf.mxu0
    %v6924 = vadd.f32 %v6744, %v6923
    %v6925 = vpop.f32.mrf.mxu0
    %6926 = vmatprep.mubr.f32.mxu0 0.0
    %6927 = vmatmul.mubr.f32.gmra.mxu0 %v6759
    %v6928 = vpop.f32.mrf.mxu0
    %v6929 = vadd.f32 %v6744, %v6928
    %v6930 = vpop.f32.mrf.mxu0
    %6931 = vmatprep.mubr.f32.mxu0 0.0
    %6932 = vmatmul.mubr.f32.gmra.mxu0 %v6762
    %v6933 = vpop.f32.mrf.mxu0
    %v6934 = vadd.f32 %v6744, %v6933
    %v6935 = vpop.f32.mrf.mxu0
    %6936 = vmatprep.mubr.f32.mxu0 0.0
    %6937 = vmatmul.mubr.f32.gmra.mxu0 %v6765
    %v6938 = vpop.f32.mrf.mxu0
    %v6939 = vadd.f32 %v6744, %v6938
    %v6940 = vpop.f32.mrf.mxu0
    %6941 = vmatprep.mubr.f32.mxu0 0.0
    %6942 = vmatmul.mubr.f32.gmra.mxu0 %v6768
    %v6943 = vpop.f32.mrf.mxu0
    %v6944 = vadd.f32 %v6744, %v6943
    %v6945 = vpop.f32.mrf.mxu0
    %6946 = vmatprep.mubr.f32.mxu0 0.0
    %6947 = vmatmul.mubr.f32.gmra.mxu0 %v6771
    %v6948 = vpop.f32.mrf.mxu0
    %v6949 = vadd.f32 %v6744, %v6948
    %v6950 = vpop.f32.mrf.mxu0
    %6951 = vmatprep.mubr.f32.mxu0 0.0
    %6952 = vmatmul.mubr.f32.gmra.mxu0 %v6774
    %v6953 = vpop.f32.mrf.mxu0
    %v6954 = vadd.f32 %v6744, %v6953
    %v6955 = vpop.f32.mrf.mxu0
    %6956 = vmatprep.mubr.f32.mxu0 0.0
    %6957 = vmatmul.mubr.f32.gmra.mxu0 %v6777
    %v6958 = vpop.f32.mrf.mxu0
    %v6959 = vadd.f32 %v6744, %v6958
    %v6960 = vpop.f32.mrf.mxu0
    %6961 = vmatprep.mubr.f32.mxu0 0.0
    %6962 = vmatmul.mubr.f32.gmra.mxu0 %v6780
    %v6963 = vpop.f32.mrf.mxu0
    %v6964 = vadd.f32 %v6744, %v6963
    %v6965 = vpop.f32.mrf.mxu0
    %6966 = vmatprep.mubr.f32.mxu0 0.0
    %6967 = vmatmul.mubr.f32.gmra.mxu0 %v6783
    %v6968 = vpop.f32.mrf.mxu0
    %v6969 = vadd.f32 %v6744, %v6968
    %v6970 = vpop.f32.mrf.mxu0
    %6971 = vmatprep.mubr.f32.mxu0 0.0
    %6972 = vmatmul.mubr.f32.gmra.mxu0 %v6786
    %v6973 = vpop.f32.mrf.mxu0
    %v6974 = vadd.f32 %v6744, %v6973
    %v6975 = vpop.f32.mrf.mxu0
    %6976 = vmatprep.mubr.f32.mxu0 0.0
    %6977 = vmatmul.mubr.f32.gmra.mxu0 %v6789
    %v6978 = vpop.f32.mrf.mxu0
    %v6979 = vadd.f32 %v6744, %v6978
    %v6980 = vpop.f32.mrf.mxu0
    %6981 = vmatprep.mubr.f32.mxu0 0.0
    %6982 = vmatmul.mubr.f32.gmra.mxu0 %v6792
    %v6983 = vpop.f32.mrf.mxu0
    %v6984 = vadd.f32 %v6744, %v6983
    %v6985 = vpop.f32.mrf.mxu0
    %6986 = vmatprep.mubr.f32.mxu0 0.0
    %6987 = vmatmul.mubr.f32.gmra.mxu0 %v6795
    %v6988 = vpop.f32.mrf.mxu0
    %v6989 = vadd.f32 %v6744, %v6988
    %v6990 = vpop.f32.mrf.mxu0
    %6991 = vmatprep.mubr.f32.mxu0 0.0
    %6992 = vmatmul.mubr.f32.gmra.mxu0 %v6798
    %v6993 = vpop.f32.mrf.mxu0
    %v6994 = vadd.f32 %v6744, %v6993
    %v6995 = vpop.f32.mrf.mxu0
    %6996 = vmatprep.mubr.f32.mxu0 0.0
    %6997 = vmatmul.mubr.f32.gmra.mxu0 %v6801
    %v6998 = vpop.f32.mrf.mxu0
    %v6999 = vadd.f32 %v6744, %v6998
    %v7000 = vpop.f32.mrf.mxu0
    %7001 = vmatprep.mubr.f32.mxu0 0.0
    %7002 = vmatmul.mubr.f32.gmra.mxu0 %v6804
    %v7003 = vpop.f32.mrf.mxu0
    %v7004 = vadd.f32 %v6744, %v7003
    %v7005 = vpop.f32.mrf.mxu0
    %7006 = vmatprep.mubr.f32.mxu0 0.0
    %7007 = vmatmul.mubr.f32.gmra.mxu0 %v6807
    %v7008 = vpop.f32.mrf.mxu0
    %v7009 = vadd.f32 %v6744, %v7008
    %v7010 = vpop.f32.mrf.mxu0
    %7011 = vmatprep.mubr.f32.mxu0 0.0
    %7012 = vmatmul.mubr.f32.gmra.mxu0 %v6810
    %v7013 = vpop.f32.mrf.mxu0
    %v7014 = vadd.f32 %v6744, %v7013
    %v7015 = vpop.f32.mrf.mxu0
    %7016 = vmatprep.mubr.f32.mxu0 0.0
    %7017 = vmatmul.mubr.f32.gmra.mxu0 %v6813
    %v7018 = vpop.f32.mrf.mxu0
    %v7019 = vadd.f32 %v6744, %v7018
    %v7020 = vpop.f32.mrf.mxu0
    %7021 = vmatprep.mubr.f32.mxu0 0.0
    %7022 = vmatmul.mubr.f32.gmra.mxu0 %v6816
    %v7023 = vpop.f32.mrf.mxu0
    %v7024 = vadd.f32 %v6744, %v7023
    %v7025 = vpop.f32.mrf.mxu0
    %7026 = vmatprep.mubr.f32.mxu0 0.0
    %7027 = vmatmul.mubr.f32.gmra.mxu0 %v6819
    %v7028 = vpop.f32.mrf.mxu0
    %v7029 = vadd.f32 %v6744, %v7028
    %v7030 = vpop.f32.mrf.mxu0
    %7031 = vmatprep.mubr.f32.mxu0 0.0
    %7032 = vmatmul.mubr.f32.gmra.mxu0 %v6822
    %v7033 = vpop.f32.mrf.mxu0
    %v7034 = vadd.f32 %v6744, %v7033
    %v7035 = vpop.f32.mrf.mxu0
    %7036 = vmatprep.mubr.f32.mxu0 0.0
    %7037 = vmatmul.mubr.f32.gmra.mxu0 %v6825
    %v7038 = vpop.f32.mrf.mxu0
    %v7039 = vadd.f32 %v6744, %v7038
    %v7040 = vpop.f32.mrf.mxu0
    %7041 = vmatprep.mubr.f32.mxu0 0.0
    %7042 = vmatmul.mubr.f32.gmra.mxu0 %v6828
    %v7043 = vpop.f32.mrf.mxu0
    %v7044 = vadd.f32 %v6744, %v7043
    %v7045 = vpop.f32.mrf.mxu0
    %7046 = vmatprep.mubr.f32.mxu0 0.0
    %7047 = vmatmul.mubr.f32.gmra.mxu0 %v6831
    %v7048 = vpop.f32.mrf.mxu0
    %v7049 = vadd.f32 %v6744, %v7048
    %v7050 = vpop.f32.mrf.mxu0
    %7051 = vmatprep.mubr.f32.mxu0 0.0
    %7052 = vmatmul.mubr.f32.gmra.mxu0 %v6834
    %v7053 = vpop.f32.mrf.mxu0
    %v7054 = vadd.f32 %v6744, %v7053
    %v7055 = vpop.f32.mrf.mxu0
    %7056 = vmatprep.mubr.f32.mxu0 0.0
    %7057 = vmatmul.mubr.f32.gmra.mxu0 %v6837
    %v7058 = vpop.f32.mrf.mxu0
    %v7059 = vadd.f32 %v6744, %v7058
    %v7060 = vpop.f32.mrf.mxu0
    %7061 = vmatprep.mubr.f32.mxu0 0.0
    %7062 = vmatmul.mubr.f32.gmra.mxu0 %v6840
    %v7063 = vpop.f32.mrf.mxu0
    %v7064 = vadd.f32 %v6744, %v7063
    %v7065 = vpop.f32.mrf.mxu0
    %7066 = vdwg.mxu0
    %7067 = vst.msk [vmem:[#allocation11] sm:$0xff] %vm159, %v6909
    %7068 = vst.msk [vmem:[#allocation11 + $0x8] sm:$0xff] %vm159, %v6914
    %7069 = vst.msk [vmem:[#allocation11 + $0x10] sm:$0xff] %vm159, %v6919
    %7070 = vst.msk [vmem:[#allocation11 + $0x18] sm:$0xff] %vm159, %v6924
    %7071 = vst.msk [vmem:[#allocation11 + $0x20] sm:$0xff] %vm159, %v6929
    %7072 = vst.msk [vmem:[#allocation11 + $0x28] sm:$0xff] %vm159, %v6934
    %7073 = vst.msk [vmem:[#allocation11 + $0x30] sm:$0xff] %vm159, %v6939
    %7074 = vst.msk [vmem:[#allocation11 + $0x38] sm:$0xff] %vm159, %v6944
    %7075 = vst.msk [vmem:[#allocation11 + $0x40] sm:$0xff] %vm159, %v6949
    %7076 = vst.msk [vmem:[#allocation11 + $0x48] sm:$0xff] %vm159, %v6954
    %7077 = vst.msk [vmem:[#allocation11 + $0x50] sm:$0xff] %vm159, %v6959
    %7078 = vst.msk [vmem:[#allocation11 + $0x58] sm:$0xff] %vm159, %v6964
    %7079 = vst.msk [vmem:[#allocation11 + $0x60] sm:$0xff] %vm159, %v6969
    %7080 = vst.msk [vmem:[#allocation11 + $0x68] sm:$0xff] %vm159, %v6974
    %7081 = vst.msk [vmem:[#allocation11 + $0x70] sm:$0xff] %vm159, %v6979
    %7082 = vst.msk [vmem:[#allocation11 + $0x78] sm:$0xff] %vm159, %v6984
    %7083 = vst.msk [vmem:[#allocation11 + $0x80] sm:$0xff] %vm159, %v6989
    %7084 = vst.msk [vmem:[#allocation11 + $0x88] sm:$0xff] %vm159, %v6994
    %7085 = vst.msk [vmem:[#allocation11 + $0x90] sm:$0xff] %vm159, %v6999
    %7086 = vst.msk [vmem:[#allocation11 + $0x98] sm:$0xff] %vm159, %v7004
    %7087 = vst.msk [vmem:[#allocation11 + $0xa0] sm:$0xff] %vm159, %v7009
    %7088 = vst.msk [vmem:[#allocation11 + $0xa8] sm:$0xff] %vm159, %v7014
    %7089 = vst.msk [vmem:[#allocation11 + $0xb0] sm:$0xff] %vm159, %v7019
    %7090 = vst.msk [vmem:[#allocation11 + $0xb8] sm:$0xff] %vm159, %v7024
    %7091 = vst.msk [vmem:[#allocation11 + $0xc0] sm:$0xff] %vm159, %v7029
    %7092 = vst.msk [vmem:[#allocation11 + $0xc8] sm:$0xff] %vm159, %v7034
    %7093 = vst.msk [vmem:[#allocation11 + $0xd0] sm:$0xff] %vm159, %v7039
    %7094 = vst.msk [vmem:[#allocation11 + $0xd8] sm:$0xff] %vm159, %v7044
    %7095 = vst.msk [vmem:[#allocation11 + $0xe0] sm:$0xff] %vm159, %v7049
    %7096 = vst.msk [vmem:[#allocation11 + $0xe8] sm:$0xff] %vm159, %v7054
    %7097 = vst.msk [vmem:[#allocation11 + $0xf0] sm:$0xff] %vm159, %v7059
    %7098 = vst.msk [vmem:[#allocation11 + $0xf8] sm:$0xff] %vm159, %v7064
    // Predicated region
    $region78: #{tpu_custom_call.1} parent=1 // pred_check
      _
    $region79: #{tpu_custom_call.1} parent=1 // pred_check_branch
      %7100 = sbr.rel (0) target = $region81
    $region80: #{tpu_custom_call.1} parent=1 // pred_region
      %s7102 = ssub.s32 4096, 4096
      %7103 = vsyncadd [#allocation4], %s7102
      %s7104 = sshll.u32 [#allocation11], 4
      %s7105 = int_to_ptr.vmem [resolvable:$true] %s7104
      %7110 = dma.vmem_to_hbm [thread:$0]  %s7105, 4096, %s14, [#allocation4], 128, 128, 8
    $region81: #{tpu_custom_call.1} parent=1 // pred_fallthru
      _
    // Predicated region
    $region82: #{tpu_custom_call.1} parent=1 // pred_check
      _
    $region83: #{tpu_custom_call.1} parent=1 // pred_check_branch
      %7112 = sbr.rel (0) target = $region85
    $region84: #{tpu_custom_call.1} parent=1 // pred_region
      %7113 = dma.done [#allocation4], 4096
    $region85: #{tpu_custom_call.1} parent=1 // pred_fallthru
      _
    %7114 = vsyncpa [#allocation3], 1
    %7115 = vsyncpa [#allocation6], 1
    %7116 = vsyncpa [#allocation9], 1
    %7117 = vsyncpa [#allocation4], 1

</llo_original>
